<compile_context>
chip_gen: v7x
topology: tpu7x:2x2x1
jax: 0.10.0
libtpu: 0.0.40
codegen_flags: <defaults>
</compile_context>

<pallas_src>
import jax
import jax.numpy as jnp
import numpy as np
from jax.experimental import pallas as pl
from jax.experimental.pallas import tpu as pltpu

S_DIM = 3           # state dim
RF_NUM = 256        # feature_dim / rf_num
TWO_RF = 2 * RF_NUM
LN_EPS = 1e-5       # torch LayerNorm default eps


def rfv_critic_kernel(x_ref, w_ref, b_ref, gw_ref, scal_ref, q_ref):
    """One batch tile (batch on lanes, fourier features on sublanes).

    x_ref:    (S_DIM, TB)      states tile, transposed
    w_ref:    (2*RF, S_DIM)    embed-folded fourier weights, heads stacked on axis 0
    b_ref:    (2*RF, 1)        embed-folded fourier biases
    gw_ref:   (2*RF, 1)        10 * ln_gamma * out_w per head, stacked
    scal_ref: (4,)   SMEM      [G1, G2, const1, const2]   (G = sum(gw) per head)
    q_ref:    (2, TB)          row 0 = q1, row 1 = q2
    """
    x = x_ref[...]                               # (S_DIM, TB)
    w = w_ref[...]                               # (2RF, S_DIM)

    # z = W @ x + b with K = 3: three broadcast-FMAs on the VPU (no MXU).
    z = b_ref[...]                               # (2RF, 1), broadcasts on first FMA
    for k in range(S_DIM):                       # static unroll over the tiny K
        z = z + w[:, k:k + 1] * x[k:k + 1, :]    # (2RF,1)*(1,TB) -> (2RF, TB)

    c = jnp.cos(z)                               # single cos over both heads
    gw = gw_ref[...]                             # (2RF, 1)
    inv_n = 1.0 / RF_NUM

    def head(ci, gwi, g_sum, const):
        # Single-pass fused 10*LayerNorm + output head over ci (RF, TB):
        #   q = rsqrt(E[c^2] - mu^2 + eps) * (sum(c*gw) - mu*sum(gw)) + const
        s1 = jnp.sum(ci, axis=0, keepdims=True)            # (1, TB)
        s2 = jnp.sum(ci * ci, axis=0, keepdims=True)       # (1, TB)
        s3 = jnp.sum(ci * gwi, axis=0, keepdims=True)      # (1, TB)
        mu = s1 * inv_n
        var = s2 * inv_n - mu * mu                         # biased var (torch LN)
        inv = jax.lax.rsqrt(var + LN_EPS)
        return inv * (s3 - mu * g_sum) + const

    q1 = head(c[:RF_NUM, :], gw[:RF_NUM, :], scal_ref[0], scal_ref[2])
    q2 = head(c[RF_NUM:, :], gw[RF_NUM:, :], scal_ref[1], scal_ref[3])
    q_ref[...] = jnp.concatenate([q1, q2], axis=0)         # single lane-dense store


def prepare_params(params):
    """One-time host-side folding (NOT in the per-step forward path)."""
    f32 = jnp.float32
    e_w = params["embed_w"].astype(f32)     # (s, s), torch (out, in) layout
    e_b = params["embed_b"].astype(f32)     # (s,)

    def fold(fw, fb):
        # (x @ e_w.T + e_b) @ fw.T + fb  ==  x @ (fw @ e_w).T + (fw @ e_b + fb)
        fw = fw.astype(f32)
        fb = fb.astype(f32)
        return fw @ e_w, fw @ e_b + fb      # (RF, S_DIM)  feature-major, (RF,)

    w1, b1 = fold(params["f1_w"], params["f1_b"])
    w2, b2 = fold(params["f2_w"], params["f2_b"])
    w_cat = jnp.concatenate([w1, w2], axis=0)                     # (2RF, S_DIM)
    b_cat = jnp.concatenate([b1, b2]).reshape(TWO_RF, 1)          # (2RF, 1)

    # 10x and LN gamma folded into the output weights.
    gw1 = 10.0 * params["ln1_w"].astype(f32) * params["out1_w"].astype(f32)
    gw2 = 10.0 * params["ln2_w"].astype(f32) * params["out2_w"].astype(f32)
    gw_cat = jnp.concatenate([gw1, gw2]).reshape(TWO_RF, 1)       # (2RF, 1)

    # Per-head scalars: G = sum(gw); const = 10*sum(ln_beta*w_out) + out_bias
    # (const is exactly 0 for this module: LN beta and output biases are frozen 0).
    g1, g2 = jnp.sum(gw1), jnp.sum(gw2)
    c1 = (10.0 * jnp.sum(params["ln1_b"].astype(f32) * params["out1_w"].astype(f32))
          + params["out1_b"].astype(f32).reshape(()))
    c2 = (10.0 * jnp.sum(params["ln2_b"].astype(f32) * params["out2_w"].astype(f32))
          + params["out2_b"].astype(f32).reshape(()))
    scal = jnp.stack([g1, g2, c1, c2]).astype(f32)                # (4,) for SMEM

    return {"w": w_cat, "b": b_cat, "gw": gw_cat, "scal": scal}


def _round_up(x, m):
    return ((x + m - 1) // m) * m


def _choose_tb(B, tb_max=2048):
    """Batch (lane) tile.

    B <= 128: one full-array block.  Otherwise: smallest EVEN grid whose
    128-aligned tile fits tb_max (so both v7x TensorCores get work), capped at
    tb_max (~10-14 MiB live per step, safe under the 32 MiB scoped VMEM limit on
    v6e/v7x; v5e/v6e have 2x the headroom).
    """
    if B <= 128:
        return B
    nb = 2
    while _round_up(pl.cdiv(B, nb), 128) > tb_max:
        nb += 2
    return _round_up(pl.cdiv(B, nb), 128)


@jax.jit
def rfv_critic_forward(states, prep):
    """states: (B, S_DIM) float32; prep: output of prepare_params.

    Returns (q1, q2), each (B, 1) float32.
    """
    B = states.shape[0]
    x_t = states.astype(jnp.float32).T            # (S_DIM, B): batch on lanes
    TB = _choose_tb(B)
    nb = pl.cdiv(B, TB)

    q = pl.pallas_call(
        rfv_critic_kernel,
        out_shape=jax.ShapeDtypeStruct((2, B), jnp.float32),
        grid=(nb,),
        in_specs=[
            pl.BlockSpec((S_DIM, TB), lambda i: (0, i)),        # states tile
            pl.BlockSpec((TWO_RF, S_DIM), lambda i: (0, 0)),    # resident weights
            pl.BlockSpec((TWO_RF, 1), lambda i: (0, 0)),
            pl.BlockSpec((TWO_RF, 1), lambda i: (0, 0)),
            pl.BlockSpec(memory_space=pltpu.MemorySpace.SMEM),  # (4,) scalars
        ],
        out_specs=pl.BlockSpec((2, TB), lambda i: (0, i)),
        compiler_params=pltpu.CompilerParams(
            dimension_semantics=("parallel",),
            vmem_limit_bytes=32 * 1024 * 1024,
        ),
    )(x_t, prep["w"], prep["b"], prep["gw"], prep["scal"])

    return q[0][:, None], q[1][:, None]


def init_params(key):
    """Deterministic synthetic parameters matching RFVCritic.__init__ (default args)."""
    k1, k2, k3, k4, k5, k6 = jax.random.split(key, 6)
    f32 = jnp.float32
    return {
        # embed: Linear(3, 3), weight = identity, bias = zeros (frozen)
        "embed_w": jnp.eye(S_DIM, dtype=f32),                 # torch (out, in)
        "embed_b": jnp.zeros((S_DIM,), f32),
        # fourier feats: normal(0,1) weights (sigma=0 branch), uniform(0, 2*pi) bias
        "f1_w": jax.random.normal(k1, (RF_NUM, S_DIM), f32),  # torch (out, in)
        "f1_b": jax.random.uniform(k2, (RF_NUM,), f32, 0.0, 2.0 * np.pi),
        "f2_w": jax.random.normal(k3, (RF_NUM, S_DIM), f32),
        "f2_b": jax.random.uniform(k4, (RF_NUM,), f32, 0.0, 2.0 * np.pi),
        # layer norms: gamma=1, beta=0 (beta frozen)
        "ln1_w": jnp.ones((RF_NUM,), f32),
        "ln1_b": jnp.zeros((RF_NUM,), f32),
        "ln2_w": jnp.ones((RF_NUM,), f32),
        "ln2_b": jnp.zeros((RF_NUM,), f32),
        # output heads: Linear(256, 1); deterministic uniform of matching scale;
        # biases frozen at zero.
        "out1_w": jax.random.uniform(
            k5, (RF_NUM,), f32, -1.0 / np.sqrt(RF_NUM), 1.0 / np.sqrt(RF_NUM)),
        "out1_b": jnp.zeros((1,), f32),
        "out2_w": jax.random.uniform(
            k6, (RF_NUM,), f32, -1.0 / np.sqrt(RF_NUM), 1.0 / np.sqrt(RF_NUM)),
        "out2_b": jnp.zeros((1,), f32),
    }


def reference_forward(states, p):
    """Pure-JAX reference mirroring the PyTorch forward exactly (unfused)."""
    x = states @ p["embed_w"].T + p["embed_b"]
    z1 = x @ p["f1_w"].T + p["f1_b"]
    z2 = x @ p["f2_w"].T + p["f2_b"]
    c1, c2 = jnp.cos(z1), jnp.cos(z2)

    def ln(v, w, b):
        mu = jnp.mean(v, -1, keepdims=True)
        var = jnp.mean((v - mu) ** 2, -1, keepdims=True)
        return (v - mu) / jnp.sqrt(var + LN_EPS) * w + b

    x1 = 10.0 * ln(c1, p["ln1_w"], p["ln1_b"])
    x2 = 10.0 * ln(c2, p["ln2_w"], p["ln2_b"])
    q1 = x1 @ p["out1_w"].reshape(RF_NUM, 1) + p["out1_b"]
    q2 = x2 @ p["out2_w"].reshape(RF_NUM, 1) + p["out2_b"]
    return q1, q2


if __name__ == "__main__":
    key = jax.random.PRNGKey(0)
    pkey, xkey1, xkey2 = jax.random.split(key, 3)

    params = init_params(pkey)
    prep = prepare_params(params)          # one-time host-side fold/pack
    jax.block_until_ready(prep)

    # Small batch (single full-array block).
    B = 8
    states = jax.random.normal(xkey1, (B, S_DIM), jnp.float32)
    q1, q2 = rfv_critic_forward(states, prep)
    jax.block_until_ready((q1, q2))
    r1, r2 = reference_forward(states, params)
    assert q1.shape == (B, 1) and q2.shape == (B, 1)
    np.testing.assert_allclose(np.asarray(q1), np.asarray(r1), rtol=1e-4, atol=1e-4)
    np.testing.assert_allclose(np.asarray(q2), np.asarray(r2), rtol=1e-4, atol=1e-4)

    # Larger batch exercising the even grid + partial boundary block (TB=384, 2 blocks).
    B2 = 600
    states2 = jax.random.normal(xkey2, (B2, S_DIM), jnp.float32)
    q1b, q2b = rfv_critic_forward(states2, prep)
    jax.block_until_ready((q1b, q2b))
    r1b, r2b = reference_forward(states2, params)
    np.testing.assert_allclose(np.asarray(q1b), np.asarray(r1b), rtol=1e-4, atol=1e-4)
    np.testing.assert_allclose(np.asarray(q2b), np.asarray(r2b), rtol=1e-4, atol=1e-4)

    # TODO(synk): robust_feature=True branch (pertubation_phi / pertubation_w) is off
    # by default and not implemented in the kernel.
    print("KERNEL_OK")
</pallas_src>

<mosaic_0001>
module attributes {stable_mosaic.version = 11 : i64} {
  func.func @rfv_critic_kernel(%arg0: i32, %arg1: memref<3x8xf32, #tpu.memory_space<vmem>>, %arg2: memref<512x3xf32, #tpu.memory_space<vmem>>, %arg3: memref<512x1xf32, #tpu.memory_space<vmem>>, %arg4: memref<512x1xf32, #tpu.memory_space<vmem>>, %arg5: memref<4xf32, #tpu.memory_space<smem>>, %arg6: memref<2x8xf32, #tpu.memory_space<vmem>>) attributes {dimension_semantics = [#tpu.dimension_semantics<parallel>], iteration_bounds = array<i64: 1>, scalar_prefetch = 0 : i64, scratch_operands = 0 : i64, tpu.core_type = #tpu.core_type<tc>, window_params = [{transform_indices = @transform_0, window_bounds = array<i64: 3, 8>}, {pipeline_mode = #tpu.pipeline_mode<synchronous>, transform_indices = @transform_1, window_bounds = array<i64: 512, 3>}, {pipeline_mode = #tpu.pipeline_mode<synchronous>, transform_indices = @transform_2, window_bounds = array<i64: 512, 1>}, {pipeline_mode = #tpu.pipeline_mode<synchronous>, transform_indices = @transform_3, window_bounds = array<i64: 512, 1>}, {transform_indices = @transform_4, window_bounds = array<i64: 4>}, {transform_indices = @transform_5, window_bounds = array<i64: 2, 8>}]} {
    %c0 = arith.constant 0 : index
    %c0_0 = arith.constant 0 : index
    %0 = vector.load %arg1[%c0, %c0_0] : memref<3x8xf32, #tpu.memory_space<vmem>>, vector<3x8xf32>
    %c0_1 = arith.constant 0 : index
    %c0_2 = arith.constant 0 : index
    %1 = vector.load %arg2[%c0_1, %c0_2] : memref<512x3xf32, #tpu.memory_space<vmem>>, vector<512x3xf32>
    %c0_3 = arith.constant 0 : index
    %c0_4 = arith.constant 0 : index
    %2 = vector.load %arg3[%c0_3, %c0_4] : memref<512x1xf32, #tpu.memory_space<vmem>>, vector<512x1xf32>
    %3 = vector.extract_strided_slice %1 {offsets = [0, 0], sizes = [512, 1], strides = [1, 1]} : vector<512x3xf32> to vector<512x1xf32>
    %4 = vector.extract_strided_slice %0 {offsets = [0, 0], sizes = [1, 8], strides = [1, 1]} : vector<3x8xf32> to vector<1x8xf32>
    %5 = vector.broadcast %3 : vector<512x1xf32> to vector<512x8xf32>
    %6 = vector.broadcast %4 : vector<1x8xf32> to vector<512x8xf32>
    %7 = arith.mulf %5, %6 : vector<512x8xf32>
    %8 = vector.broadcast %2 : vector<512x1xf32> to vector<512x8xf32>
    %9 = arith.addf %8, %7 : vector<512x8xf32>
    %10 = vector.extract_strided_slice %1 {offsets = [0, 1], sizes = [512, 1], strides = [1, 1]} : vector<512x3xf32> to vector<512x1xf32>
    %11 = vector.extract_strided_slice %0 {offsets = [1, 0], sizes = [1, 8], strides = [1, 1]} : vector<3x8xf32> to vector<1x8xf32>
    %12 = vector.broadcast %10 : vector<512x1xf32> to vector<512x8xf32>
    %13 = vector.broadcast %11 : vector<1x8xf32> to vector<512x8xf32>
    %14 = arith.mulf %12, %13 : vector<512x8xf32>
    %15 = arith.addf %9, %14 : vector<512x8xf32>
    %16 = vector.extract_strided_slice %1 {offsets = [0, 2], sizes = [512, 1], strides = [1, 1]} : vector<512x3xf32> to vector<512x1xf32>
    %17 = vector.extract_strided_slice %0 {offsets = [2, 0], sizes = [1, 8], strides = [1, 1]} : vector<3x8xf32> to vector<1x8xf32>
    %18 = vector.broadcast %16 : vector<512x1xf32> to vector<512x8xf32>
    %19 = vector.broadcast %17 : vector<1x8xf32> to vector<512x8xf32>
    %20 = arith.mulf %18, %19 : vector<512x8xf32>
    %21 = arith.addf %15, %20 : vector<512x8xf32>
    %22 = math.cos %21 : vector<512x8xf32>
    %c0_5 = arith.constant 0 : index
    %c0_6 = arith.constant 0 : index
    %23 = vector.load %arg4[%c0_5, %c0_6] : memref<512x1xf32, #tpu.memory_space<vmem>>, vector<512x1xf32>
    %24 = vector.extract_strided_slice %22 {offsets = [0, 0], sizes = [256, 8], strides = [1, 1]} : vector<512x8xf32> to vector<256x8xf32>
    %25 = vector.extract_strided_slice %23 {offsets = [0, 0], sizes = [256, 1], strides = [1, 1]} : vector<512x1xf32> to vector<256x1xf32>
    %c0_7 = arith.constant 0 : index
    %26 = memref.load %arg5[%c0_7] : memref<4xf32, #tpu.memory_space<smem>>
    %c2 = arith.constant 2 : index
    %27 = memref.load %arg5[%c2] : memref<4xf32, #tpu.memory_space<smem>>
    %cst = arith.constant dense<0.000000e+00> : vector<8xf32>
    %28 = vector.multi_reduction <add>, %24, %cst [0] : vector<256x8xf32> to vector<8xf32>
    %29 = vector.shape_cast %28 : vector<8xf32> to vector<1x8xf32>
    %30 = arith.mulf %24, %24 : vector<256x8xf32>
    %cst_8 = arith.constant dense<0.000000e+00> : vector<8xf32>
    %31 = vector.multi_reduction <add>, %30, %cst_8 [0] : vector<256x8xf32> to vector<8xf32>
    %32 = vector.shape_cast %31 : vector<8xf32> to vector<1x8xf32>
    %33 = vector.broadcast %25 : vector<256x1xf32> to vector<256x8xf32>
    %34 = arith.mulf %24, %33 : vector<256x8xf32>
    %cst_9 = arith.constant dense<0.000000e+00> : vector<8xf32>
    %35 = vector.multi_reduction <add>, %34, %cst_9 [0] : vector<256x8xf32> to vector<8xf32>
    %36 = vector.shape_cast %35 : vector<8xf32> to vector<1x8xf32>
    %cst_10 = arith.constant 3.906250e-03 : f32
    %37 = vector.broadcast %cst_10 : f32 to vector<1x8xf32>
    %38 = arith.mulf %29, %37 : vector<1x8xf32>
    %cst_11 = arith.constant 3.906250e-03 : f32
    %39 = vector.broadcast %cst_11 : f32 to vector<1x8xf32>
    %40 = arith.mulf %32, %39 : vector<1x8xf32>
    %41 = arith.mulf %38, %38 : vector<1x8xf32>
    %42 = arith.subf %40, %41 : vector<1x8xf32>
    %cst_12 = arith.constant 9.99999974E-6 : f32
    %43 = vector.broadcast %cst_12 : f32 to vector<1x8xf32>
    %44 = arith.addf %42, %43 : vector<1x8xf32>
    %45 = math.rsqrt %44 : vector<1x8xf32>
    %46 = vector.broadcast %26 : f32 to vector<1x8xf32>
    %47 = arith.mulf %38, %46 : vector<1x8xf32>
    %48 = arith.subf %36, %47 : vector<1x8xf32>
    %49 = arith.mulf %45, %48 : vector<1x8xf32>
    %50 = vector.broadcast %27 : f32 to vector<1x8xf32>
    %51 = arith.addf %49, %50 : vector<1x8xf32>
    %52 = vector.extract_strided_slice %22 {offsets = [256, 0], sizes = [256, 8], strides = [1, 1]} : vector<512x8xf32> to vector<256x8xf32>
    %53 = vector.extract_strided_slice %23 {offsets = [256, 0], sizes = [256, 1], strides = [1, 1]} : vector<512x1xf32> to vector<256x1xf32>
    %c1 = arith.constant 1 : index
    %54 = memref.load %arg5[%c1] : memref<4xf32, #tpu.memory_space<smem>>
    %c3 = arith.constant 3 : index
    %55 = memref.load %arg5[%c3] : memref<4xf32, #tpu.memory_space<smem>>
    %cst_13 = arith.constant dense<0.000000e+00> : vector<8xf32>
    %56 = vector.multi_reduction <add>, %52, %cst_13 [0] : vector<256x8xf32> to vector<8xf32>
    %57 = vector.shape_cast %56 : vector<8xf32> to vector<1x8xf32>
    %58 = arith.mulf %52, %52 : vector<256x8xf32>
    %cst_14 = arith.constant dense<0.000000e+00> : vector<8xf32>
    %59 = vector.multi_reduction <add>, %58, %cst_14 [0] : vector<256x8xf32> to vector<8xf32>
    %60 = vector.shape_cast %59 : vector<8xf32> to vector<1x8xf32>
    %61 = vector.broadcast %53 : vector<256x1xf32> to vector<256x8xf32>
    %62 = arith.mulf %52, %61 : vector<256x8xf32>
    %cst_15 = arith.constant dense<0.000000e+00> : vector<8xf32>
    %63 = vector.multi_reduction <add>, %62, %cst_15 [0] : vector<256x8xf32> to vector<8xf32>
    %64 = vector.shape_cast %63 : vector<8xf32> to vector<1x8xf32>
    %cst_16 = arith.constant 3.906250e-03 : f32
    %65 = vector.broadcast %cst_16 : f32 to vector<1x8xf32>
    %66 = arith.mulf %57, %65 : vector<1x8xf32>
    %cst_17 = arith.constant 3.906250e-03 : f32
    %67 = vector.broadcast %cst_17 : f32 to vector<1x8xf32>
    %68 = arith.mulf %60, %67 : vector<1x8xf32>
    %69 = arith.mulf %66, %66 : vector<1x8xf32>
    %70 = arith.subf %68, %69 : vector<1x8xf32>
    %cst_18 = arith.constant 9.99999974E-6 : f32
    %71 = vector.broadcast %cst_18 : f32 to vector<1x8xf32>
    %72 = arith.addf %70, %71 : vector<1x8xf32>
    %73 = math.rsqrt %72 : vector<1x8xf32>
    %74 = vector.broadcast %54 : f32 to vector<1x8xf32>
    %75 = arith.mulf %66, %74 : vector<1x8xf32>
    %76 = arith.subf %64, %75 : vector<1x8xf32>
    %77 = arith.mulf %73, %76 : vector<1x8xf32>
    %78 = vector.broadcast %55 : f32 to vector<1x8xf32>
    %79 = arith.addf %77, %78 : vector<1x8xf32>
    %80 = tpu.concatenate %51, %79 in 0 : vector<1x8xf32>, vector<1x8xf32> -> vector<2x8xf32>
    %c0_19 = arith.constant 0 : index
    %c0_20 = arith.constant 0 : index
    %81 = vector.load %arg6[%c0_19, %c0_20] : memref<2x8xf32, #tpu.memory_space<vmem>>, vector<2x8xf32>
    tpu.vector_store %arg6[%c0_19, %c0_20], %80 {strides = array<i32>} : memref<2x8xf32, #tpu.memory_space<vmem>>, vector<2x8xf32>,
    return
  }
  func.func @transform_0(%arg0: i32) -> (i32, i32) {
    %c0_i32 = arith.constant 0 : i32
    %c0_i32_0 = arith.constant 0 : i32
    return %c0_i32, %arg0 : i32, i32
  }
  func.func @transform_1(%arg0: i32) -> (i32, i32) {
    %c0_i32 = arith.constant 0 : i32
    %c0_i32_0 = arith.constant 0 : i32
    %c0_i32_1 = arith.constant 0 : i32
    return %c0_i32, %c0_i32_0 : i32, i32
  }
  func.func @transform_2(%arg0: i32) -> (i32, i32) {
    %c0_i32 = arith.constant 0 : i32
    %c0_i32_0 = arith.constant 0 : i32
    %c0_i32_1 = arith.constant 0 : i32
    return %c0_i32, %c0_i32_0 : i32, i32
  }
  func.func @transform_3(%arg0: i32) -> (i32, i32) {
    %c0_i32 = arith.constant 0 : i32
    %c0_i32_0 = arith.constant 0 : i32
    %c0_i32_1 = arith.constant 0 : i32
    return %c0_i32, %c0_i32_0 : i32, i32
  }
  func.func @transform_4(%arg0: i32) -> i32 {
    %c0_i32 = arith.constant 0 : i32
    %c0_i32_0 = arith.constant 0 : i32
    return %c0_i32 : i32
  }
  func.func @transform_5(%arg0: i32) -> (i32, i32) {
    %c0_i32 = arith.constant 0 : i32
    %c0_i32_0 = arith.constant 0 : i32
    return %c0_i32, %arg0 : i32, i32
  }
}

</mosaic_0001>

<llo_original>
// kernel: rfv_critic_forward.1
$region0: #{rfv_critic_forward.1}
  #allocation0 [shape = 'u32[]', space=smem, size = 0x4, offset = 0x4, fixed_abs, tag = 'smem constant byte address 0x4 - core index']
  #allocation1 [shape = 'u32[144,128]{1,0:T(1,128)}', space=vmem, size = 0x12000, scoped, tag = 'internal scratch']
  %s0 = inlined_call_operand.vmem [shape: f32[3,8], index: 0, kind: input, shape index: {}]
  %s1 = inlined_call_operand.vmem [shape: f32[512,3], index: 1, kind: input, shape index: {}]
  %s2 = inlined_call_operand.vmem [shape: f32[512,1], index: 2, kind: input, shape index: {}]
  %s3 = inlined_call_operand.vmem [shape: f32[512,1], index: 3, kind: input, shape index: {}]
  %s4 = inlined_call_operand.vmem [shape: f32[4], index: 4, kind: input, shape index: {}]
  %s5 = inlined_call_operand.vmem [shape: f32[2,8], index: 5, kind: output, shape index: {}]
  %s6 = sld [smem:[#allocation0]]
  $region34: #{rfv_critic_forward.1} parent=0
    _
  %s8 = ssub.s32 1, %s6
  %s9 = scalar_select 0, %s8, %s6
  $region1: #{rfv_critic_forward.1} parent=0
    #allocation2 [shape = 'u8[512]{0}', space=smem, size = 0x200, scoped, tag = 'input window, operand 4, single buffered']
    #allocation3 [shape = 's32[1]{0}', space=sflag, size = 0x4, scoped, tag = 'scoped memory for rfv_critic_forward.1']
    %10 = vsyncpa [#allocation3], 0
    // Predicated region
    $region2: #{rfv_critic_forward.1} parent=1 // pred_check
      _
    $region3: #{rfv_critic_forward.1} parent=1 // pred_check_branch
      %12 = sbr.rel (0) target = $region5
    $region4: #{rfv_critic_forward.1} parent=1 // pred_region
      _
    $region5: #{rfv_critic_forward.1} parent=1 // pred_fallthru
      _
    // Predicated region
    $region6: #{rfv_critic_forward.1} parent=1 // pred_check
      _
    $region7: #{rfv_critic_forward.1} parent=1 // pred_check_branch
      %14 = sbr.rel (0) target = $region9
    $region8: #{rfv_critic_forward.1} parent=1 // pred_region
      _
    $region9: #{rfv_critic_forward.1} parent=1 // pred_fallthru
      _
    // Predicated region
    $region10: #{rfv_critic_forward.1} parent=1 // pred_check
      _
    $region11: #{rfv_critic_forward.1} parent=1 // pred_check_branch
      %16 = sbr.rel (0) target = $region13
    $region12: #{rfv_critic_forward.1} parent=1 // pred_region
      _
    $region13: #{rfv_critic_forward.1} parent=1 // pred_fallthru
      _
    // Predicated region
    $region14: #{rfv_critic_forward.1} parent=1 // pred_check
      _
    $region15: #{rfv_critic_forward.1} parent=1 // pred_check_branch
      %18 = sbr.rel (0) target = $region17
    $region16: #{rfv_critic_forward.1} parent=1 // pred_region
      _
    $region17: #{rfv_critic_forward.1} parent=1 // pred_fallthru
      _
    // Predicated region
    $region18: #{rfv_critic_forward.1} parent=1 // pred_check
      _
    $region19: #{rfv_critic_forward.1} parent=1 // pred_check_branch
      %20 = sbr.rel (0) target = $region21
    $region20: #{rfv_critic_forward.1} parent=1 // pred_region
      %s22 = ssub.s32 16, 16
      %23 = vsyncadd [#allocation3], %s22
      %s25 = sshll.u32 %s4, 4
      %s26 = int_to_ptr.vmem [resolvable:$true] %s25
      %28 = dma.vmem_to_smem %s26, 16, [#allocation2], [#allocation3]
    $region21: #{rfv_critic_forward.1} parent=1 // pred_fallthru
      _
    // Predicated region
    $region22: #{rfv_critic_forward.1} parent=1 // pred_check
      _
    $region23: #{rfv_critic_forward.1} parent=1 // pred_check_branch
      %30 = sbr.rel (0) target = $region25
    $region24: #{rfv_critic_forward.1} parent=1 // pred_region
      %31 = dma.done [#allocation3], 16
    $region25: #{rfv_critic_forward.1} parent=1 // pred_fallthru
      _
    %32 = sfence
    %v33 = vld [vmem:[%s0] sm:$0x7]
    %v34 = vld [vmem:[%s1] sm:$0xff]
    %v35 = vld [vmem:[%s1 + $0x8] sm:$0xff]
    %v36 = vld [vmem:[%s1 + $0x10] sm:$0xff]
    %v37 = vld [vmem:[%s1 + $0x18] sm:$0xff]
    %v38 = vld [vmem:[%s1 + $0x20] sm:$0xff]
    %v39 = vld [vmem:[%s1 + $0x28] sm:$0xff]
    %v40 = vld [vmem:[%s1 + $0x30] sm:$0xff]
    %v41 = vld [vmem:[%s1 + $0x38] sm:$0xff]
    %v42 = vld [vmem:[%s1 + $0x40] sm:$0xff]
    %v43 = vld [vmem:[%s1 + $0x48] sm:$0xff]
    %v44 = vld [vmem:[%s1 + $0x50] sm:$0xff]
    %v45 = vld [vmem:[%s1 + $0x58] sm:$0xff]
    %v46 = vld [vmem:[%s1 + $0x60] sm:$0xff]
    %v47 = vld [vmem:[%s1 + $0x68] sm:$0xff]
    %v48 = vld [vmem:[%s1 + $0x70] sm:$0xff]
    %v49 = vld [vmem:[%s1 + $0x78] sm:$0xff]
    %v50 = vld [vmem:[%s1 + $0x80] sm:$0xff]
    %v51 = vld [vmem:[%s1 + $0x88] sm:$0xff]
    %v52 = vld [vmem:[%s1 + $0x90] sm:$0xff]
    %v53 = vld [vmem:[%s1 + $0x98] sm:$0xff]
    %v54 = vld [vmem:[%s1 + $0xa0] sm:$0xff]
    %v55 = vld [vmem:[%s1 + $0xa8] sm:$0xff]
    %v56 = vld [vmem:[%s1 + $0xb0] sm:$0xff]
    %v57 = vld [vmem:[%s1 + $0xb8] sm:$0xff]
    %v58 = vld [vmem:[%s1 + $0xc0] sm:$0xff]
    %v59 = vld [vmem:[%s1 + $0xc8] sm:$0xff]
    %v60 = vld [vmem:[%s1 + $0xd0] sm:$0xff]
    %v61 = vld [vmem:[%s1 + $0xd8] sm:$0xff]
    %v62 = vld [vmem:[%s1 + $0xe0] sm:$0xff]
    %v63 = vld [vmem:[%s1 + $0xe8] sm:$0xff]
    %v64 = vld [vmem:[%s1 + $0xf0] sm:$0xff]
    %v65 = vld [vmem:[%s1 + $0xf8] sm:$0xff]
    %v66 = vld [vmem:[%s1 + $0x100] sm:$0xff]
    %v67 = vld [vmem:[%s1 + $0x108] sm:$0xff]
    %v68 = vld [vmem:[%s1 + $0x110] sm:$0xff]
    %v69 = vld [vmem:[%s1 + $0x118] sm:$0xff]
    %v70 = vld [vmem:[%s1 + $0x120] sm:$0xff]
    %v71 = vld [vmem:[%s1 + $0x128] sm:$0xff]
    %v72 = vld [vmem:[%s1 + $0x130] sm:$0xff]
    %v73 = vld [vmem:[%s1 + $0x138] sm:$0xff]
    %v74 = vld [vmem:[%s1 + $0x140] sm:$0xff]
    %v75 = vld [vmem:[%s1 + $0x148] sm:$0xff]
    %v76 = vld [vmem:[%s1 + $0x150] sm:$0xff]
    %v77 = vld [vmem:[%s1 + $0x158] sm:$0xff]
    %v78 = vld [vmem:[%s1 + $0x160] sm:$0xff]
    %v79 = vld [vmem:[%s1 + $0x168] sm:$0xff]
    %v80 = vld [vmem:[%s1 + $0x170] sm:$0xff]
    %v81 = vld [vmem:[%s1 + $0x178] sm:$0xff]
    %v82 = vld [vmem:[%s1 + $0x180] sm:$0xff]
    %v83 = vld [vmem:[%s1 + $0x188] sm:$0xff]
    %v84 = vld [vmem:[%s1 + $0x190] sm:$0xff]
    %v85 = vld [vmem:[%s1 + $0x198] sm:$0xff]
    %v86 = vld [vmem:[%s1 + $0x1a0] sm:$0xff]
    %v87 = vld [vmem:[%s1 + $0x1a8] sm:$0xff]
    %v88 = vld [vmem:[%s1 + $0x1b0] sm:$0xff]
    %v89 = vld [vmem:[%s1 + $0x1b8] sm:$0xff]
    %v90 = vld [vmem:[%s1 + $0x1c0] sm:$0xff]
    %v91 = vld [vmem:[%s1 + $0x1c8] sm:$0xff]
    %v92 = vld [vmem:[%s1 + $0x1d0] sm:$0xff]
    %v93 = vld [vmem:[%s1 + $0x1d8] sm:$0xff]
    %v94 = vld [vmem:[%s1 + $0x1e0] sm:$0xff]
    %v95 = vld [vmem:[%s1 + $0x1e8] sm:$0xff]
    %v96 = vld [vmem:[%s1 + $0x1f0] sm:$0xff]
    %v97 = vld [vmem:[%s1 + $0x1f8] sm:$0xff]
    %v98 = vld [vmem:[%s2] sm:$0xff]
    %v99 = vld [vmem:[%s2 + $0x8] sm:$0xff]
    %v100 = vld [vmem:[%s2 + $0x10] sm:$0xff]
    %v101 = vld [vmem:[%s2 + $0x18] sm:$0xff]
    %v102 = vld [vmem:[%s2 + $0x20] sm:$0xff]
    %v103 = vld [vmem:[%s2 + $0x28] sm:$0xff]
    %v104 = vld [vmem:[%s2 + $0x30] sm:$0xff]
    %v105 = vld [vmem:[%s2 + $0x38] sm:$0xff]
    %v106 = vld [vmem:[%s2 + $0x40] sm:$0xff]
    %v107 = vld [vmem:[%s2 + $0x48] sm:$0xff]
    %v108 = vld [vmem:[%s2 + $0x50] sm:$0xff]
    %v109 = vld [vmem:[%s2 + $0x58] sm:$0xff]
    %v110 = vld [vmem:[%s2 + $0x60] sm:$0xff]
    %v111 = vld [vmem:[%s2 + $0x68] sm:$0xff]
    %v112 = vld [vmem:[%s2 + $0x70] sm:$0xff]
    %v113 = vld [vmem:[%s2 + $0x78] sm:$0xff]
    %v114 = vld [vmem:[%s2 + $0x80] sm:$0xff]
    %v115 = vld [vmem:[%s2 + $0x88] sm:$0xff]
    %v116 = vld [vmem:[%s2 + $0x90] sm:$0xff]
    %v117 = vld [vmem:[%s2 + $0x98] sm:$0xff]
    %v118 = vld [vmem:[%s2 + $0xa0] sm:$0xff]
    %v119 = vld [vmem:[%s2 + $0xa8] sm:$0xff]
    %v120 = vld [vmem:[%s2 + $0xb0] sm:$0xff]
    %v121 = vld [vmem:[%s2 + $0xb8] sm:$0xff]
    %v122 = vld [vmem:[%s2 + $0xc0] sm:$0xff]
    %v123 = vld [vmem:[%s2 + $0xc8] sm:$0xff]
    %v124 = vld [vmem:[%s2 + $0xd0] sm:$0xff]
    %v125 = vld [vmem:[%s2 + $0xd8] sm:$0xff]
    %v126 = vld [vmem:[%s2 + $0xe0] sm:$0xff]
    %v127 = vld [vmem:[%s2 + $0xe8] sm:$0xff]
    %v128 = vld [vmem:[%s2 + $0xf0] sm:$0xff]
    %v129 = vld [vmem:[%s2 + $0xf8] sm:$0xff]
    %v130 = vld [vmem:[%s2 + $0x100] sm:$0xff]
    %v131 = vld [vmem:[%s2 + $0x108] sm:$0xff]
    %v132 = vld [vmem:[%s2 + $0x110] sm:$0xff]
    %v133 = vld [vmem:[%s2 + $0x118] sm:$0xff]
    %v134 = vld [vmem:[%s2 + $0x120] sm:$0xff]
    %v135 = vld [vmem:[%s2 + $0x128] sm:$0xff]
    %v136 = vld [vmem:[%s2 + $0x130] sm:$0xff]
    %v137 = vld [vmem:[%s2 + $0x138] sm:$0xff]
    %v138 = vld [vmem:[%s2 + $0x140] sm:$0xff]
    %v139 = vld [vmem:[%s2 + $0x148] sm:$0xff]
    %v140 = vld [vmem:[%s2 + $0x150] sm:$0xff]
    %v141 = vld [vmem:[%s2 + $0x158] sm:$0xff]
    %v142 = vld [vmem:[%s2 + $0x160] sm:$0xff]
    %v143 = vld [vmem:[%s2 + $0x168] sm:$0xff]
    %v144 = vld [vmem:[%s2 + $0x170] sm:$0xff]
    %v145 = vld [vmem:[%s2 + $0x178] sm:$0xff]
    %v146 = vld [vmem:[%s2 + $0x180] sm:$0xff]
    %v147 = vld [vmem:[%s2 + $0x188] sm:$0xff]
    %v148 = vld [vmem:[%s2 + $0x190] sm:$0xff]
    %v149 = vld [vmem:[%s2 + $0x198] sm:$0xff]
    %v150 = vld [vmem:[%s2 + $0x1a0] sm:$0xff]
    %v151 = vld [vmem:[%s2 + $0x1a8] sm:$0xff]
    %v152 = vld [vmem:[%s2 + $0x1b0] sm:$0xff]
    %v153 = vld [vmem:[%s2 + $0x1b8] sm:$0xff]
    %v154 = vld [vmem:[%s2 + $0x1c0] sm:$0xff]
    %v155 = vld [vmem:[%s2 + $0x1c8] sm:$0xff]
    %v156 = vld [vmem:[%s2 + $0x1d0] sm:$0xff]
    %v157 = vld [vmem:[%s2 + $0x1d8] sm:$0xff]
    %v158 = vld [vmem:[%s2 + $0x1e0] sm:$0xff]
    %v159 = vld [vmem:[%s2 + $0x1e8] sm:$0xff]
    %v160 = vld [vmem:[%s2 + $0x1f0] sm:$0xff]
    %v161 = vld [vmem:[%s2 + $0x1f8] sm:$0xff]
    %163 = vset.pattern.permute.xlu0 0
    %164 = vperm.xlu0 %163, %v34
    %v165 = vpop.permute.xlu0 %164
    %168 = vset.pattern.permute.xlu0 0
    %169 = vperm.xlu0 %168, %v35
    %v170 = vpop.permute.xlu0 %169
    %173 = vset.pattern.permute.xlu0 0
    %174 = vperm.xlu0 %173, %v36
    %v175 = vpop.permute.xlu0 %174
    %178 = vset.pattern.permute.xlu0 0
    %179 = vperm.xlu0 %178, %v37
    %v180 = vpop.permute.xlu0 %179
    %183 = vset.pattern.permute.xlu0 0
    %184 = vperm.xlu0 %183, %v38
    %v185 = vpop.permute.xlu0 %184
    %188 = vset.pattern.permute.xlu0 0
    %189 = vperm.xlu0 %188, %v39
    %v190 = vpop.permute.xlu0 %189
    %193 = vset.pattern.permute.xlu0 0
    %194 = vperm.xlu0 %193, %v40
    %v195 = vpop.permute.xlu0 %194
    %198 = vset.pattern.permute.xlu0 0
    %199 = vperm.xlu0 %198, %v41
    %v200 = vpop.permute.xlu0 %199
    %203 = vset.pattern.permute.xlu0 0
    %204 = vperm.xlu0 %203, %v42
    %v205 = vpop.permute.xlu0 %204
    %208 = vset.pattern.permute.xlu0 0
    %209 = vperm.xlu0 %208, %v43
    %v210 = vpop.permute.xlu0 %209
    %213 = vset.pattern.permute.xlu0 0
    %214 = vperm.xlu0 %213, %v44
    %v215 = vpop.permute.xlu0 %214
    %218 = vset.pattern.permute.xlu0 0
    %219 = vperm.xlu0 %218, %v45
    %v220 = vpop.permute.xlu0 %219
    %223 = vset.pattern.permute.xlu0 0
    %224 = vperm.xlu0 %223, %v46
    %v225 = vpop.permute.xlu0 %224
    %228 = vset.pattern.permute.xlu0 0
    %229 = vperm.xlu0 %228, %v47
    %v230 = vpop.permute.xlu0 %229
    %233 = vset.pattern.permute.xlu0 0
    %234 = vperm.xlu0 %233, %v48
    %v235 = vpop.permute.xlu0 %234
    %238 = vset.pattern.permute.xlu0 0
    %239 = vperm.xlu0 %238, %v49
    %v240 = vpop.permute.xlu0 %239
    %243 = vset.pattern.permute.xlu0 0
    %244 = vperm.xlu0 %243, %v50
    %v245 = vpop.permute.xlu0 %244
    %248 = vset.pattern.permute.xlu0 0
    %249 = vperm.xlu0 %248, %v51
    %v250 = vpop.permute.xlu0 %249
    %253 = vset.pattern.permute.xlu0 0
    %254 = vperm.xlu0 %253, %v52
    %v255 = vpop.permute.xlu0 %254
    %258 = vset.pattern.permute.xlu0 0
    %259 = vperm.xlu0 %258, %v53
    %v260 = vpop.permute.xlu0 %259
    %263 = vset.pattern.permute.xlu0 0
    %264 = vperm.xlu0 %263, %v54
    %v265 = vpop.permute.xlu0 %264
    %268 = vset.pattern.permute.xlu0 0
    %269 = vperm.xlu0 %268, %v55
    %v270 = vpop.permute.xlu0 %269
    %273 = vset.pattern.permute.xlu0 0
    %274 = vperm.xlu0 %273, %v56
    %v275 = vpop.permute.xlu0 %274
    %278 = vset.pattern.permute.xlu0 0
    %279 = vperm.xlu0 %278, %v57
    %v280 = vpop.permute.xlu0 %279
    %283 = vset.pattern.permute.xlu0 0
    %284 = vperm.xlu0 %283, %v58
    %v285 = vpop.permute.xlu0 %284
    %288 = vset.pattern.permute.xlu0 0
    %289 = vperm.xlu0 %288, %v59
    %v290 = vpop.permute.xlu0 %289
    %293 = vset.pattern.permute.xlu0 0
    %294 = vperm.xlu0 %293, %v60
    %v295 = vpop.permute.xlu0 %294
    %298 = vset.pattern.permute.xlu0 0
    %299 = vperm.xlu0 %298, %v61
    %v300 = vpop.permute.xlu0 %299
    %303 = vset.pattern.permute.xlu0 0
    %304 = vperm.xlu0 %303, %v62
    %v305 = vpop.permute.xlu0 %304
    %308 = vset.pattern.permute.xlu0 0
    %309 = vperm.xlu0 %308, %v63
    %v310 = vpop.permute.xlu0 %309
    %313 = vset.pattern.permute.xlu0 0
    %314 = vperm.xlu0 %313, %v64
    %v315 = vpop.permute.xlu0 %314
    %318 = vset.pattern.permute.xlu0 0
    %319 = vperm.xlu0 %318, %v65
    %v320 = vpop.permute.xlu0 %319
    %323 = vset.pattern.permute.xlu0 0
    %324 = vperm.xlu0 %323, %v66
    %v325 = vpop.permute.xlu0 %324
    %328 = vset.pattern.permute.xlu0 0
    %329 = vperm.xlu0 %328, %v67
    %v330 = vpop.permute.xlu0 %329
    %333 = vset.pattern.permute.xlu0 0
    %334 = vperm.xlu0 %333, %v68
    %v335 = vpop.permute.xlu0 %334
    %338 = vset.pattern.permute.xlu0 0
    %339 = vperm.xlu0 %338, %v69
    %v340 = vpop.permute.xlu0 %339
    %343 = vset.pattern.permute.xlu0 0
    %344 = vperm.xlu0 %343, %v70
    %v345 = vpop.permute.xlu0 %344
    %348 = vset.pattern.permute.xlu0 0
    %349 = vperm.xlu0 %348, %v71
    %v350 = vpop.permute.xlu0 %349
    %353 = vset.pattern.permute.xlu0 0
    %354 = vperm.xlu0 %353, %v72
    %v355 = vpop.permute.xlu0 %354
    %358 = vset.pattern.permute.xlu0 0
    %359 = vperm.xlu0 %358, %v73
    %v360 = vpop.permute.xlu0 %359
    %363 = vset.pattern.permute.xlu0 0
    %364 = vperm.xlu0 %363, %v74
    %v365 = vpop.permute.xlu0 %364
    %368 = vset.pattern.permute.xlu0 0
    %369 = vperm.xlu0 %368, %v75
    %v370 = vpop.permute.xlu0 %369
    %373 = vset.pattern.permute.xlu0 0
    %374 = vperm.xlu0 %373, %v76
    %v375 = vpop.permute.xlu0 %374
    %378 = vset.pattern.permute.xlu0 0
    %379 = vperm.xlu0 %378, %v77
    %v380 = vpop.permute.xlu0 %379
    %383 = vset.pattern.permute.xlu0 0
    %384 = vperm.xlu0 %383, %v78
    %v385 = vpop.permute.xlu0 %384
    %388 = vset.pattern.permute.xlu0 0
    %389 = vperm.xlu0 %388, %v79
    %v390 = vpop.permute.xlu0 %389
    %393 = vset.pattern.permute.xlu0 0
    %394 = vperm.xlu0 %393, %v80
    %v395 = vpop.permute.xlu0 %394
    %398 = vset.pattern.permute.xlu0 0
    %399 = vperm.xlu0 %398, %v81
    %v400 = vpop.permute.xlu0 %399
    %403 = vset.pattern.permute.xlu0 0
    %404 = vperm.xlu0 %403, %v82
    %v405 = vpop.permute.xlu0 %404
    %408 = vset.pattern.permute.xlu0 0
    %409 = vperm.xlu0 %408, %v83
    %v410 = vpop.permute.xlu0 %409
    %413 = vset.pattern.permute.xlu0 0
    %414 = vperm.xlu0 %413, %v84
    %v415 = vpop.permute.xlu0 %414
    %418 = vset.pattern.permute.xlu0 0
    %419 = vperm.xlu0 %418, %v85
    %v420 = vpop.permute.xlu0 %419
    %423 = vset.pattern.permute.xlu0 0
    %424 = vperm.xlu0 %423, %v86
    %v425 = vpop.permute.xlu0 %424
    %428 = vset.pattern.permute.xlu0 0
    %429 = vperm.xlu0 %428, %v87
    %v430 = vpop.permute.xlu0 %429
    %433 = vset.pattern.permute.xlu0 0
    %434 = vperm.xlu0 %433, %v88
    %v435 = vpop.permute.xlu0 %434
    %438 = vset.pattern.permute.xlu0 0
    %439 = vperm.xlu0 %438, %v89
    %v440 = vpop.permute.xlu0 %439
    %443 = vset.pattern.permute.xlu0 0
    %444 = vperm.xlu0 %443, %v90
    %v445 = vpop.permute.xlu0 %444
    %448 = vset.pattern.permute.xlu0 0
    %449 = vperm.xlu0 %448, %v91
    %v450 = vpop.permute.xlu0 %449
    %453 = vset.pattern.permute.xlu0 0
    %454 = vperm.xlu0 %453, %v92
    %v455 = vpop.permute.xlu0 %454
    %458 = vset.pattern.permute.xlu0 0
    %459 = vperm.xlu0 %458, %v93
    %v460 = vpop.permute.xlu0 %459
    %463 = vset.pattern.permute.xlu0 0
    %464 = vperm.xlu0 %463, %v94
    %v465 = vpop.permute.xlu0 %464
    %468 = vset.pattern.permute.xlu0 0
    %469 = vperm.xlu0 %468, %v95
    %v470 = vpop.permute.xlu0 %469
    %473 = vset.pattern.permute.xlu0 0
    %474 = vperm.xlu0 %473, %v96
    %v475 = vpop.permute.xlu0 %474
    %478 = vset.pattern.permute.xlu0 0
    %479 = vperm.xlu0 %478, %v97
    %v480 = vpop.permute.xlu0 %479
    %v482 = vlaneseq
    %v483 = vshrl.u32 %v482, 7
    %v484 = vsub.s32 0, %v483
    %v485 = vrot.slane %v33, %v484
    %v486 = vmul.f32 %v165, %v485
    %v487 = vmul.f32 %v170, %v485
    %v488 = vmul.f32 %v175, %v485
    %v489 = vmul.f32 %v180, %v485
    %v490 = vmul.f32 %v185, %v485
    %v491 = vmul.f32 %v190, %v485
    %v492 = vmul.f32 %v195, %v485
    %v493 = vmul.f32 %v200, %v485
    %v494 = vmul.f32 %v205, %v485
    %v495 = vmul.f32 %v210, %v485
    %v496 = vmul.f32 %v215, %v485
    %v497 = vmul.f32 %v220, %v485
    %v498 = vmul.f32 %v225, %v485
    %v499 = vmul.f32 %v230, %v485
    %v500 = vmul.f32 %v235, %v485
    %v501 = vmul.f32 %v240, %v485
    %v502 = vmul.f32 %v245, %v485
    %v503 = vmul.f32 %v250, %v485
    %v504 = vmul.f32 %v255, %v485
    %v505 = vmul.f32 %v260, %v485
    %v506 = vmul.f32 %v265, %v485
    %v507 = vmul.f32 %v270, %v485
    %v508 = vmul.f32 %v275, %v485
    %v509 = vmul.f32 %v280, %v485
    %v510 = vmul.f32 %v285, %v485
    %v511 = vmul.f32 %v290, %v485
    %v512 = vmul.f32 %v295, %v485
    %v513 = vmul.f32 %v300, %v485
    %v514 = vmul.f32 %v305, %v485
    %v515 = vmul.f32 %v310, %v485
    %v516 = vmul.f32 %v315, %v485
    %v517 = vmul.f32 %v320, %v485
    %v518 = vmul.f32 %v325, %v485
    %v519 = vmul.f32 %v330, %v485
    %v520 = vmul.f32 %v335, %v485
    %v521 = vmul.f32 %v340, %v485
    %v522 = vmul.f32 %v345, %v485
    %v523 = vmul.f32 %v350, %v485
    %v524 = vmul.f32 %v355, %v485
    %v525 = vmul.f32 %v360, %v485
    %v526 = vmul.f32 %v365, %v485
    %v527 = vmul.f32 %v370, %v485
    %v528 = vmul.f32 %v375, %v485
    %v529 = vmul.f32 %v380, %v485
    %v530 = vmul.f32 %v385, %v485
    %v531 = vmul.f32 %v390, %v485
    %v532 = vmul.f32 %v395, %v485
    %v533 = vmul.f32 %v400, %v485
    %v534 = vmul.f32 %v405, %v485
    %v535 = vmul.f32 %v410, %v485
    %v536 = vmul.f32 %v415, %v485
    %v537 = vmul.f32 %v420, %v485
    %v538 = vmul.f32 %v425, %v485
    %v539 = vmul.f32 %v430, %v485
    %v540 = vmul.f32 %v435, %v485
    %v541 = vmul.f32 %v440, %v485
    %v542 = vmul.f32 %v445, %v485
    %v543 = vmul.f32 %v450, %v485
    %v544 = vmul.f32 %v455, %v485
    %v545 = vmul.f32 %v460, %v485
    %v546 = vmul.f32 %v465, %v485
    %v547 = vmul.f32 %v470, %v485
    %v548 = vmul.f32 %v475, %v485
    %v549 = vmul.f32 %v480, %v485
    %551 = vset.pattern.permute.xlu0 0
    %552 = vperm.xlu0 %551, %v98
    %v553 = vpop.permute.xlu0 %552
    %556 = vset.pattern.permute.xlu0 0
    %557 = vperm.xlu0 %556, %v99
    %v558 = vpop.permute.xlu0 %557
    %561 = vset.pattern.permute.xlu0 0
    %562 = vperm.xlu0 %561, %v100
    %v563 = vpop.permute.xlu0 %562
    %566 = vset.pattern.permute.xlu0 0
    %567 = vperm.xlu0 %566, %v101
    %v568 = vpop.permute.xlu0 %567
    %571 = vset.pattern.permute.xlu0 0
    %572 = vperm.xlu0 %571, %v102
    %v573 = vpop.permute.xlu0 %572
    %576 = vset.pattern.permute.xlu0 0
    %577 = vperm.xlu0 %576, %v103
    %v578 = vpop.permute.xlu0 %577
    %581 = vset.pattern.permute.xlu0 0
    %582 = vperm.xlu0 %581, %v104
    %v583 = vpop.permute.xlu0 %582
    %586 = vset.pattern.permute.xlu0 0
    %587 = vperm.xlu0 %586, %v105
    %v588 = vpop.permute.xlu0 %587
    %591 = vset.pattern.permute.xlu0 0
    %592 = vperm.xlu0 %591, %v106
    %v593 = vpop.permute.xlu0 %592
    %596 = vset.pattern.permute.xlu0 0
    %597 = vperm.xlu0 %596, %v107
    %v598 = vpop.permute.xlu0 %597
    %601 = vset.pattern.permute.xlu0 0
    %602 = vperm.xlu0 %601, %v108
    %v603 = vpop.permute.xlu0 %602
    %606 = vset.pattern.permute.xlu0 0
    %607 = vperm.xlu0 %606, %v109
    %v608 = vpop.permute.xlu0 %607
    %611 = vset.pattern.permute.xlu0 0
    %612 = vperm.xlu0 %611, %v110
    %v613 = vpop.permute.xlu0 %612
    %616 = vset.pattern.permute.xlu0 0
    %617 = vperm.xlu0 %616, %v111
    %v618 = vpop.permute.xlu0 %617
    %621 = vset.pattern.permute.xlu0 0
    %622 = vperm.xlu0 %621, %v112
    %v623 = vpop.permute.xlu0 %622
    %626 = vset.pattern.permute.xlu0 0
    %627 = vperm.xlu0 %626, %v113
    %v628 = vpop.permute.xlu0 %627
    %631 = vset.pattern.permute.xlu0 0
    %632 = vperm.xlu0 %631, %v114
    %v633 = vpop.permute.xlu0 %632
    %636 = vset.pattern.permute.xlu0 0
    %637 = vperm.xlu0 %636, %v115
    %v638 = vpop.permute.xlu0 %637
    %641 = vset.pattern.permute.xlu0 0
    %642 = vperm.xlu0 %641, %v116
    %v643 = vpop.permute.xlu0 %642
    %646 = vset.pattern.permute.xlu0 0
    %647 = vperm.xlu0 %646, %v117
    %v648 = vpop.permute.xlu0 %647
    %651 = vset.pattern.permute.xlu0 0
    %652 = vperm.xlu0 %651, %v118
    %v653 = vpop.permute.xlu0 %652
    %656 = vset.pattern.permute.xlu0 0
    %657 = vperm.xlu0 %656, %v119
    %v658 = vpop.permute.xlu0 %657
    %661 = vset.pattern.permute.xlu0 0
    %662 = vperm.xlu0 %661, %v120
    %v663 = vpop.permute.xlu0 %662
    %666 = vset.pattern.permute.xlu0 0
    %667 = vperm.xlu0 %666, %v121
    %v668 = vpop.permute.xlu0 %667
    %671 = vset.pattern.permute.xlu0 0
    %672 = vperm.xlu0 %671, %v122
    %v673 = vpop.permute.xlu0 %672
    %676 = vset.pattern.permute.xlu0 0
    %677 = vperm.xlu0 %676, %v123
    %v678 = vpop.permute.xlu0 %677
    %681 = vset.pattern.permute.xlu0 0
    %682 = vperm.xlu0 %681, %v124
    %v683 = vpop.permute.xlu0 %682
    %686 = vset.pattern.permute.xlu0 0
    %687 = vperm.xlu0 %686, %v125
    %v688 = vpop.permute.xlu0 %687
    %691 = vset.pattern.permute.xlu0 0
    %692 = vperm.xlu0 %691, %v126
    %v693 = vpop.permute.xlu0 %692
    %696 = vset.pattern.permute.xlu0 0
    %697 = vperm.xlu0 %696, %v127
    %v698 = vpop.permute.xlu0 %697
    %701 = vset.pattern.permute.xlu0 0
    %702 = vperm.xlu0 %701, %v128
    %v703 = vpop.permute.xlu0 %702
    %706 = vset.pattern.permute.xlu0 0
    %707 = vperm.xlu0 %706, %v129
    %v708 = vpop.permute.xlu0 %707
    %711 = vset.pattern.permute.xlu0 0
    %712 = vperm.xlu0 %711, %v130
    %v713 = vpop.permute.xlu0 %712
    %716 = vset.pattern.permute.xlu0 0
    %717 = vperm.xlu0 %716, %v131
    %v718 = vpop.permute.xlu0 %717
    %721 = vset.pattern.permute.xlu0 0
    %722 = vperm.xlu0 %721, %v132
    %v723 = vpop.permute.xlu0 %722
    %726 = vset.pattern.permute.xlu0 0
    %727 = vperm.xlu0 %726, %v133
    %v728 = vpop.permute.xlu0 %727
    %731 = vset.pattern.permute.xlu0 0
    %732 = vperm.xlu0 %731, %v134
    %v733 = vpop.permute.xlu0 %732
    %736 = vset.pattern.permute.xlu0 0
    %737 = vperm.xlu0 %736, %v135
    %v738 = vpop.permute.xlu0 %737
    %741 = vset.pattern.permute.xlu0 0
    %742 = vperm.xlu0 %741, %v136
    %v743 = vpop.permute.xlu0 %742
    %746 = vset.pattern.permute.xlu0 0
    %747 = vperm.xlu0 %746, %v137
    %v748 = vpop.permute.xlu0 %747
    %751 = vset.pattern.permute.xlu0 0
    %752 = vperm.xlu0 %751, %v138
    %v753 = vpop.permute.xlu0 %752
    %756 = vset.pattern.permute.xlu0 0
    %757 = vperm.xlu0 %756, %v139
    %v758 = vpop.permute.xlu0 %757
    %761 = vset.pattern.permute.xlu0 0
    %762 = vperm.xlu0 %761, %v140
    %v763 = vpop.permute.xlu0 %762
    %766 = vset.pattern.permute.xlu0 0
    %767 = vperm.xlu0 %766, %v141
    %v768 = vpop.permute.xlu0 %767
    %771 = vset.pattern.permute.xlu0 0
    %772 = vperm.xlu0 %771, %v142
    %v773 = vpop.permute.xlu0 %772
    %776 = vset.pattern.permute.xlu0 0
    %777 = vperm.xlu0 %776, %v143
    %v778 = vpop.permute.xlu0 %777
    %781 = vset.pattern.permute.xlu0 0
    %782 = vperm.xlu0 %781, %v144
    %v783 = vpop.permute.xlu0 %782
    %786 = vset.pattern.permute.xlu0 0
    %787 = vperm.xlu0 %786, %v145
    %v788 = vpop.permute.xlu0 %787
    %791 = vset.pattern.permute.xlu0 0
    %792 = vperm.xlu0 %791, %v146
    %v793 = vpop.permute.xlu0 %792
    %796 = vset.pattern.permute.xlu0 0
    %797 = vperm.xlu0 %796, %v147
    %v798 = vpop.permute.xlu0 %797
    %801 = vset.pattern.permute.xlu0 0
    %802 = vperm.xlu0 %801, %v148
    %v803 = vpop.permute.xlu0 %802
    %806 = vset.pattern.permute.xlu0 0
    %807 = vperm.xlu0 %806, %v149
    %v808 = vpop.permute.xlu0 %807
    %811 = vset.pattern.permute.xlu0 0
    %812 = vperm.xlu0 %811, %v150
    %v813 = vpop.permute.xlu0 %812
    %816 = vset.pattern.permute.xlu0 0
    %817 = vperm.xlu0 %816, %v151
    %v818 = vpop.permute.xlu0 %817
    %821 = vset.pattern.permute.xlu0 0
    %822 = vperm.xlu0 %821, %v152
    %v823 = vpop.permute.xlu0 %822
    %826 = vset.pattern.permute.xlu0 0
    %827 = vperm.xlu0 %826, %v153
    %v828 = vpop.permute.xlu0 %827
    %831 = vset.pattern.permute.xlu0 0
    %832 = vperm.xlu0 %831, %v154
    %v833 = vpop.permute.xlu0 %832
    %836 = vset.pattern.permute.xlu0 0
    %837 = vperm.xlu0 %836, %v155
    %v838 = vpop.permute.xlu0 %837
    %841 = vset.pattern.permute.xlu0 0
    %842 = vperm.xlu0 %841, %v156
    %v843 = vpop.permute.xlu0 %842
    %846 = vset.pattern.permute.xlu0 0
    %847 = vperm.xlu0 %846, %v157
    %v848 = vpop.permute.xlu0 %847
    %851 = vset.pattern.permute.xlu0 0
    %852 = vperm.xlu0 %851, %v158
    %v853 = vpop.permute.xlu0 %852
    %856 = vset.pattern.permute.xlu0 0
    %857 = vperm.xlu0 %856, %v159
    %v858 = vpop.permute.xlu0 %857
    %861 = vset.pattern.permute.xlu0 0
    %862 = vperm.xlu0 %861, %v160
    %v863 = vpop.permute.xlu0 %862
    %866 = vset.pattern.permute.xlu0 0
    %867 = vperm.xlu0 %866, %v161
    %v868 = vpop.permute.xlu0 %867
    %v870 = vadd.f32 %v553, %v486
    %v871 = vadd.f32 %v558, %v487
    %v872 = vadd.f32 %v563, %v488
    %v873 = vadd.f32 %v568, %v489
    %v874 = vadd.f32 %v573, %v490
    %v875 = vadd.f32 %v578, %v491
    %v876 = vadd.f32 %v583, %v492
    %v877 = vadd.f32 %v588, %v493
    %v878 = vadd.f32 %v593, %v494
    %v879 = vadd.f32 %v598, %v495
    %v880 = vadd.f32 %v603, %v496
    %v881 = vadd.f32 %v608, %v497
    %v882 = vadd.f32 %v613, %v498
    %v883 = vadd.f32 %v618, %v499
    %v884 = vadd.f32 %v623, %v500
    %v885 = vadd.f32 %v628, %v501
    %v886 = vadd.f32 %v633, %v502
    %v887 = vadd.f32 %v638, %v503
    %v888 = vadd.f32 %v643, %v504
    %v889 = vadd.f32 %v648, %v505
    %v890 = vadd.f32 %v653, %v506
    %v891 = vadd.f32 %v658, %v507
    %v892 = vadd.f32 %v663, %v508
    %v893 = vadd.f32 %v668, %v509
    %v894 = vadd.f32 %v673, %v510
    %v895 = vadd.f32 %v678, %v511
    %v896 = vadd.f32 %v683, %v512
    %v897 = vadd.f32 %v688, %v513
    %v898 = vadd.f32 %v693, %v514
    %v899 = vadd.f32 %v698, %v515
    %v900 = vadd.f32 %v703, %v516
    %v901 = vadd.f32 %v708, %v517
    %v902 = vadd.f32 %v713, %v518
    %v903 = vadd.f32 %v718, %v519
    %v904 = vadd.f32 %v723, %v520
    %v905 = vadd.f32 %v728, %v521
    %v906 = vadd.f32 %v733, %v522
    %v907 = vadd.f32 %v738, %v523
    %v908 = vadd.f32 %v743, %v524
    %v909 = vadd.f32 %v748, %v525
    %v910 = vadd.f32 %v753, %v526
    %v911 = vadd.f32 %v758, %v527
    %v912 = vadd.f32 %v763, %v528
    %v913 = vadd.f32 %v768, %v529
    %v914 = vadd.f32 %v773, %v530
    %v915 = vadd.f32 %v778, %v531
    %v916 = vadd.f32 %v783, %v532
    %v917 = vadd.f32 %v788, %v533
    %v918 = vadd.f32 %v793, %v534
    %v919 = vadd.f32 %v798, %v535
    %v920 = vadd.f32 %v803, %v536
    %v921 = vadd.f32 %v808, %v537
    %v922 = vadd.f32 %v813, %v538
    %v923 = vadd.f32 %v818, %v539
    %v924 = vadd.f32 %v823, %v540
    %v925 = vadd.f32 %v828, %v541
    %v926 = vadd.f32 %v833, %v542
    %v927 = vadd.f32 %v838, %v543
    %v928 = vadd.f32 %v843, %v544
    %v929 = vadd.f32 %v848, %v545
    %v930 = vadd.f32 %v853, %v546
    %v931 = vadd.f32 %v858, %v547
    %v932 = vadd.f32 %v863, %v548
    %v933 = vadd.f32 %v868, %v549
    %934 = vset.pattern.permute.xlu0 1
    %935 = vperm.xlu0 %934, %v34
    %v936 = vpop.permute.xlu0 %935
    %938 = vset.pattern.permute.xlu0 1
    %939 = vperm.xlu0 %938, %v35
    %v940 = vpop.permute.xlu0 %939
    %942 = vset.pattern.permute.xlu0 1
    %943 = vperm.xlu0 %942, %v36
    %v944 = vpop.permute.xlu0 %943
    %946 = vset.pattern.permute.xlu0 1
    %947 = vperm.xlu0 %946, %v37
    %v948 = vpop.permute.xlu0 %947
    %950 = vset.pattern.permute.xlu0 1
    %951 = vperm.xlu0 %950, %v38
    %v952 = vpop.permute.xlu0 %951
    %954 = vset.pattern.permute.xlu0 1
    %955 = vperm.xlu0 %954, %v39
    %v956 = vpop.permute.xlu0 %955
    %958 = vset.pattern.permute.xlu0 1
    %959 = vperm.xlu0 %958, %v40
    %v960 = vpop.permute.xlu0 %959
    %962 = vset.pattern.permute.xlu0 1
    %963 = vperm.xlu0 %962, %v41
    %v964 = vpop.permute.xlu0 %963
    %966 = vset.pattern.permute.xlu0 1
    %967 = vperm.xlu0 %966, %v42
    %v968 = vpop.permute.xlu0 %967
    %970 = vset.pattern.permute.xlu0 1
    %971 = vperm.xlu0 %970, %v43
    %v972 = vpop.permute.xlu0 %971
    %974 = vset.pattern.permute.xlu0 1
    %975 = vperm.xlu0 %974, %v44
    %v976 = vpop.permute.xlu0 %975
    %978 = vset.pattern.permute.xlu0 1
    %979 = vperm.xlu0 %978, %v45
    %v980 = vpop.permute.xlu0 %979
    %982 = vset.pattern.permute.xlu0 1
    %983 = vperm.xlu0 %982, %v46
    %v984 = vpop.permute.xlu0 %983
    %986 = vset.pattern.permute.xlu0 1
    %987 = vperm.xlu0 %986, %v47
    %v988 = vpop.permute.xlu0 %987
    %990 = vset.pattern.permute.xlu0 1
    %991 = vperm.xlu0 %990, %v48
    %v992 = vpop.permute.xlu0 %991
    %994 = vset.pattern.permute.xlu0 1
    %995 = vperm.xlu0 %994, %v49
    %v996 = vpop.permute.xlu0 %995
    %998 = vset.pattern.permute.xlu0 1
    %999 = vperm.xlu0 %998, %v50
    %v1000 = vpop.permute.xlu0 %999
    %1002 = vset.pattern.permute.xlu0 1
    %1003 = vperm.xlu0 %1002, %v51
    %v1004 = vpop.permute.xlu0 %1003
    %1006 = vset.pattern.permute.xlu0 1
    %1007 = vperm.xlu0 %1006, %v52
    %v1008 = vpop.permute.xlu0 %1007
    %1010 = vset.pattern.permute.xlu0 1
    %1011 = vperm.xlu0 %1010, %v53
    %v1012 = vpop.permute.xlu0 %1011
    %1014 = vset.pattern.permute.xlu0 1
    %1015 = vperm.xlu0 %1014, %v54
    %v1016 = vpop.permute.xlu0 %1015
    %1018 = vset.pattern.permute.xlu0 1
    %1019 = vperm.xlu0 %1018, %v55
    %v1020 = vpop.permute.xlu0 %1019
    %1022 = vset.pattern.permute.xlu0 1
    %1023 = vperm.xlu0 %1022, %v56
    %v1024 = vpop.permute.xlu0 %1023
    %1026 = vset.pattern.permute.xlu0 1
    %1027 = vperm.xlu0 %1026, %v57
    %v1028 = vpop.permute.xlu0 %1027
    %1030 = vset.pattern.permute.xlu0 1
    %1031 = vperm.xlu0 %1030, %v58
    %v1032 = vpop.permute.xlu0 %1031
    %1034 = vset.pattern.permute.xlu0 1
    %1035 = vperm.xlu0 %1034, %v59
    %v1036 = vpop.permute.xlu0 %1035
    %1038 = vset.pattern.permute.xlu0 1
    %1039 = vperm.xlu0 %1038, %v60
    %v1040 = vpop.permute.xlu0 %1039
    %1042 = vset.pattern.permute.xlu0 1
    %1043 = vperm.xlu0 %1042, %v61
    %v1044 = vpop.permute.xlu0 %1043
    %1046 = vset.pattern.permute.xlu0 1
    %1047 = vperm.xlu0 %1046, %v62
    %v1048 = vpop.permute.xlu0 %1047
    %1050 = vset.pattern.permute.xlu0 1
    %1051 = vperm.xlu0 %1050, %v63
    %v1052 = vpop.permute.xlu0 %1051
    %1054 = vset.pattern.permute.xlu0 1
    %1055 = vperm.xlu0 %1054, %v64
    %v1056 = vpop.permute.xlu0 %1055
    %1058 = vset.pattern.permute.xlu0 1
    %1059 = vperm.xlu0 %1058, %v65
    %v1060 = vpop.permute.xlu0 %1059
    %1062 = vset.pattern.permute.xlu0 1
    %1063 = vperm.xlu0 %1062, %v66
    %v1064 = vpop.permute.xlu0 %1063
    %1066 = vset.pattern.permute.xlu0 1
    %1067 = vperm.xlu0 %1066, %v67
    %v1068 = vpop.permute.xlu0 %1067
    %1070 = vset.pattern.permute.xlu0 1
    %1071 = vperm.xlu0 %1070, %v68
    %v1072 = vpop.permute.xlu0 %1071
    %1074 = vset.pattern.permute.xlu0 1
    %1075 = vperm.xlu0 %1074, %v69
    %v1076 = vpop.permute.xlu0 %1075
    %1078 = vset.pattern.permute.xlu0 1
    %1079 = vperm.xlu0 %1078, %v70
    %v1080 = vpop.permute.xlu0 %1079
    %1082 = vset.pattern.permute.xlu0 1
    %1083 = vperm.xlu0 %1082, %v71
    %v1084 = vpop.permute.xlu0 %1083
    %1086 = vset.pattern.permute.xlu0 1
    %1087 = vperm.xlu0 %1086, %v72
    %v1088 = vpop.permute.xlu0 %1087
    %1090 = vset.pattern.permute.xlu0 1
    %1091 = vperm.xlu0 %1090, %v73
    %v1092 = vpop.permute.xlu0 %1091
    %1094 = vset.pattern.permute.xlu0 1
    %1095 = vperm.xlu0 %1094, %v74
    %v1096 = vpop.permute.xlu0 %1095
    %1098 = vset.pattern.permute.xlu0 1
    %1099 = vperm.xlu0 %1098, %v75
    %v1100 = vpop.permute.xlu0 %1099
    %1102 = vset.pattern.permute.xlu0 1
    %1103 = vperm.xlu0 %1102, %v76
    %v1104 = vpop.permute.xlu0 %1103
    %1106 = vset.pattern.permute.xlu0 1
    %1107 = vperm.xlu0 %1106, %v77
    %v1108 = vpop.permute.xlu0 %1107
    %1110 = vset.pattern.permute.xlu0 1
    %1111 = vperm.xlu0 %1110, %v78
    %v1112 = vpop.permute.xlu0 %1111
    %1114 = vset.pattern.permute.xlu0 1
    %1115 = vperm.xlu0 %1114, %v79
    %v1116 = vpop.permute.xlu0 %1115
    %1118 = vset.pattern.permute.xlu0 1
    %1119 = vperm.xlu0 %1118, %v80
    %v1120 = vpop.permute.xlu0 %1119
    %1122 = vset.pattern.permute.xlu0 1
    %1123 = vperm.xlu0 %1122, %v81
    %v1124 = vpop.permute.xlu0 %1123
    %1126 = vset.pattern.permute.xlu0 1
    %1127 = vperm.xlu0 %1126, %v82
    %v1128 = vpop.permute.xlu0 %1127
    %1130 = vset.pattern.permute.xlu0 1
    %1131 = vperm.xlu0 %1130, %v83
    %v1132 = vpop.permute.xlu0 %1131
    %1134 = vset.pattern.permute.xlu0 1
    %1135 = vperm.xlu0 %1134, %v84
    %v1136 = vpop.permute.xlu0 %1135
    %1138 = vset.pattern.permute.xlu0 1
    %1139 = vperm.xlu0 %1138, %v85
    %v1140 = vpop.permute.xlu0 %1139
    %1142 = vset.pattern.permute.xlu0 1
    %1143 = vperm.xlu0 %1142, %v86
    %v1144 = vpop.permute.xlu0 %1143
    %1146 = vset.pattern.permute.xlu0 1
    %1147 = vperm.xlu0 %1146, %v87
    %v1148 = vpop.permute.xlu0 %1147
    %1150 = vset.pattern.permute.xlu0 1
    %1151 = vperm.xlu0 %1150, %v88
    %v1152 = vpop.permute.xlu0 %1151
    %1154 = vset.pattern.permute.xlu0 1
    %1155 = vperm.xlu0 %1154, %v89
    %v1156 = vpop.permute.xlu0 %1155
    %1158 = vset.pattern.permute.xlu0 1
    %1159 = vperm.xlu0 %1158, %v90
    %v1160 = vpop.permute.xlu0 %1159
    %1162 = vset.pattern.permute.xlu0 1
    %1163 = vperm.xlu0 %1162, %v91
    %v1164 = vpop.permute.xlu0 %1163
    %1166 = vset.pattern.permute.xlu0 1
    %1167 = vperm.xlu0 %1166, %v92
    %v1168 = vpop.permute.xlu0 %1167
    %1170 = vset.pattern.permute.xlu0 1
    %1171 = vperm.xlu0 %1170, %v93
    %v1172 = vpop.permute.xlu0 %1171
    %1174 = vset.pattern.permute.xlu0 1
    %1175 = vperm.xlu0 %1174, %v94
    %v1176 = vpop.permute.xlu0 %1175
    %1178 = vset.pattern.permute.xlu0 1
    %1179 = vperm.xlu0 %1178, %v95
    %v1180 = vpop.permute.xlu0 %1179
    %1182 = vset.pattern.permute.xlu0 1
    %1183 = vperm.xlu0 %1182, %v96
    %v1184 = vpop.permute.xlu0 %1183
    %1186 = vset.pattern.permute.xlu0 1
    %1187 = vperm.xlu0 %1186, %v97
    %v1188 = vpop.permute.xlu0 %1187
    %v1190 = vlaneseq
    %v1191 = vshrl.u32 %v1190, 7
    %v1192 = vsub.s32 1, %v1191
    %v1193 = vrot.slane %v33, %v1192
    %v1194 = vmul.f32 %v936, %v1193
    %v1195 = vmul.f32 %v940, %v1193
    %v1196 = vmul.f32 %v944, %v1193
    %v1197 = vmul.f32 %v948, %v1193
    %v1198 = vmul.f32 %v952, %v1193
    %v1199 = vmul.f32 %v956, %v1193
    %v1200 = vmul.f32 %v960, %v1193
    %v1201 = vmul.f32 %v964, %v1193
    %v1202 = vmul.f32 %v968, %v1193
    %v1203 = vmul.f32 %v972, %v1193
    %v1204 = vmul.f32 %v976, %v1193
    %v1205 = vmul.f32 %v980, %v1193
    %v1206 = vmul.f32 %v984, %v1193
    %v1207 = vmul.f32 %v988, %v1193
    %v1208 = vmul.f32 %v992, %v1193
    %v1209 = vmul.f32 %v996, %v1193
    %v1210 = vmul.f32 %v1000, %v1193
    %v1211 = vmul.f32 %v1004, %v1193
    %v1212 = vmul.f32 %v1008, %v1193
    %v1213 = vmul.f32 %v1012, %v1193
    %v1214 = vmul.f32 %v1016, %v1193
    %v1215 = vmul.f32 %v1020, %v1193
    %v1216 = vmul.f32 %v1024, %v1193
    %v1217 = vmul.f32 %v1028, %v1193
    %v1218 = vmul.f32 %v1032, %v1193
    %v1219 = vmul.f32 %v1036, %v1193
    %v1220 = vmul.f32 %v1040, %v1193
    %v1221 = vmul.f32 %v1044, %v1193
    %v1222 = vmul.f32 %v1048, %v1193
    %v1223 = vmul.f32 %v1052, %v1193
    %v1224 = vmul.f32 %v1056, %v1193
    %v1225 = vmul.f32 %v1060, %v1193
    %v1226 = vmul.f32 %v1064, %v1193
    %v1227 = vmul.f32 %v1068, %v1193
    %v1228 = vmul.f32 %v1072, %v1193
    %v1229 = vmul.f32 %v1076, %v1193
    %v1230 = vmul.f32 %v1080, %v1193
    %v1231 = vmul.f32 %v1084, %v1193
    %v1232 = vmul.f32 %v1088, %v1193
    %v1233 = vmul.f32 %v1092, %v1193
    %v1234 = vmul.f32 %v1096, %v1193
    %v1235 = vmul.f32 %v1100, %v1193
    %v1236 = vmul.f32 %v1104, %v1193
    %v1237 = vmul.f32 %v1108, %v1193
    %v1238 = vmul.f32 %v1112, %v1193
    %v1239 = vmul.f32 %v1116, %v1193
    %v1240 = vmul.f32 %v1120, %v1193
    %v1241 = vmul.f32 %v1124, %v1193
    %v1242 = vmul.f32 %v1128, %v1193
    %v1243 = vmul.f32 %v1132, %v1193
    %v1244 = vmul.f32 %v1136, %v1193
    %v1245 = vmul.f32 %v1140, %v1193
    %v1246 = vmul.f32 %v1144, %v1193
    %v1247 = vmul.f32 %v1148, %v1193
    %v1248 = vmul.f32 %v1152, %v1193
    %v1249 = vmul.f32 %v1156, %v1193
    %v1250 = vmul.f32 %v1160, %v1193
    %v1251 = vmul.f32 %v1164, %v1193
    %v1252 = vmul.f32 %v1168, %v1193
    %v1253 = vmul.f32 %v1172, %v1193
    %v1254 = vmul.f32 %v1176, %v1193
    %v1255 = vmul.f32 %v1180, %v1193
    %v1256 = vmul.f32 %v1184, %v1193
    %v1257 = vmul.f32 %v1188, %v1193
    %v1258 = vadd.f32 %v870, %v1194
    %v1259 = vadd.f32 %v871, %v1195
    %v1260 = vadd.f32 %v872, %v1196
    %v1261 = vadd.f32 %v873, %v1197
    %v1262 = vadd.f32 %v874, %v1198
    %v1263 = vadd.f32 %v875, %v1199
    %v1264 = vadd.f32 %v876, %v1200
    %v1265 = vadd.f32 %v877, %v1201
    %v1266 = vadd.f32 %v878, %v1202
    %v1267 = vadd.f32 %v879, %v1203
    %v1268 = vadd.f32 %v880, %v1204
    %v1269 = vadd.f32 %v881, %v1205
    %v1270 = vadd.f32 %v882, %v1206
    %v1271 = vadd.f32 %v883, %v1207
    %v1272 = vadd.f32 %v884, %v1208
    %v1273 = vadd.f32 %v885, %v1209
    %v1274 = vadd.f32 %v886, %v1210
    %v1275 = vadd.f32 %v887, %v1211
    %v1276 = vadd.f32 %v888, %v1212
    %v1277 = vadd.f32 %v889, %v1213
    %v1278 = vadd.f32 %v890, %v1214
    %v1279 = vadd.f32 %v891, %v1215
    %v1280 = vadd.f32 %v892, %v1216
    %v1281 = vadd.f32 %v893, %v1217
    %v1282 = vadd.f32 %v894, %v1218
    %v1283 = vadd.f32 %v895, %v1219
    %v1284 = vadd.f32 %v896, %v1220
    %v1285 = vadd.f32 %v897, %v1221
    %v1286 = vadd.f32 %v898, %v1222
    %v1287 = vadd.f32 %v899, %v1223
    %v1288 = vadd.f32 %v900, %v1224
    %v1289 = vadd.f32 %v901, %v1225
    %v1290 = vadd.f32 %v902, %v1226
    %v1291 = vadd.f32 %v903, %v1227
    %v1292 = vadd.f32 %v904, %v1228
    %v1293 = vadd.f32 %v905, %v1229
    %v1294 = vadd.f32 %v906, %v1230
    %v1295 = vadd.f32 %v907, %v1231
    %v1296 = vadd.f32 %v908, %v1232
    %v1297 = vadd.f32 %v909, %v1233
    %v1298 = vadd.f32 %v910, %v1234
    %v1299 = vadd.f32 %v911, %v1235
    %v1300 = vadd.f32 %v912, %v1236
    %v1301 = vadd.f32 %v913, %v1237
    %v1302 = vadd.f32 %v914, %v1238
    %v1303 = vadd.f32 %v915, %v1239
    %v1304 = vadd.f32 %v916, %v1240
    %v1305 = vadd.f32 %v917, %v1241
    %v1306 = vadd.f32 %v918, %v1242
    %v1307 = vadd.f32 %v919, %v1243
    %v1308 = vadd.f32 %v920, %v1244
    %v1309 = vadd.f32 %v921, %v1245
    %v1310 = vadd.f32 %v922, %v1246
    %v1311 = vadd.f32 %v923, %v1247
    %v1312 = vadd.f32 %v924, %v1248
    %v1313 = vadd.f32 %v925, %v1249
    %v1314 = vadd.f32 %v926, %v1250
    %v1315 = vadd.f32 %v927, %v1251
    %v1316 = vadd.f32 %v928, %v1252
    %v1317 = vadd.f32 %v929, %v1253
    %v1318 = vadd.f32 %v930, %v1254
    %v1319 = vadd.f32 %v931, %v1255
    %v1320 = vadd.f32 %v932, %v1256
    %v1321 = vadd.f32 %v933, %v1257
    %1322 = vset.pattern.permute.xlu0 2
    %1323 = vperm.xlu0 %1322, %v34
    %v1324 = vpop.permute.xlu0 %1323
    %1326 = vset.pattern.permute.xlu0 2
    %1327 = vperm.xlu0 %1326, %v35
    %v1328 = vpop.permute.xlu0 %1327
    %1330 = vset.pattern.permute.xlu0 2
    %1331 = vperm.xlu0 %1330, %v36
    %v1332 = vpop.permute.xlu0 %1331
    %1334 = vset.pattern.permute.xlu0 2
    %1335 = vperm.xlu0 %1334, %v37
    %v1336 = vpop.permute.xlu0 %1335
    %1338 = vset.pattern.permute.xlu0 2
    %1339 = vperm.xlu0 %1338, %v38
    %v1340 = vpop.permute.xlu0 %1339
    %1342 = vset.pattern.permute.xlu0 2
    %1343 = vperm.xlu0 %1342, %v39
    %v1344 = vpop.permute.xlu0 %1343
    %1346 = vset.pattern.permute.xlu0 2
    %1347 = vperm.xlu0 %1346, %v40
    %v1348 = vpop.permute.xlu0 %1347
    %1350 = vset.pattern.permute.xlu0 2
    %1351 = vperm.xlu0 %1350, %v41
    %v1352 = vpop.permute.xlu0 %1351
    %1354 = vset.pattern.permute.xlu0 2
    %1355 = vperm.xlu0 %1354, %v42
    %v1356 = vpop.permute.xlu0 %1355
    %1358 = vset.pattern.permute.xlu0 2
    %1359 = vperm.xlu0 %1358, %v43
    %v1360 = vpop.permute.xlu0 %1359
    %1362 = vset.pattern.permute.xlu0 2
    %1363 = vperm.xlu0 %1362, %v44
    %v1364 = vpop.permute.xlu0 %1363
    %1366 = vset.pattern.permute.xlu0 2
    %1367 = vperm.xlu0 %1366, %v45
    %v1368 = vpop.permute.xlu0 %1367
    %1370 = vset.pattern.permute.xlu0 2
    %1371 = vperm.xlu0 %1370, %v46
    %v1372 = vpop.permute.xlu0 %1371
    %1374 = vset.pattern.permute.xlu0 2
    %1375 = vperm.xlu0 %1374, %v47
    %v1376 = vpop.permute.xlu0 %1375
    %1378 = vset.pattern.permute.xlu0 2
    %1379 = vperm.xlu0 %1378, %v48
    %v1380 = vpop.permute.xlu0 %1379
    %1382 = vset.pattern.permute.xlu0 2
    %1383 = vperm.xlu0 %1382, %v49
    %v1384 = vpop.permute.xlu0 %1383
    %1386 = vset.pattern.permute.xlu0 2
    %1387 = vperm.xlu0 %1386, %v50
    %v1388 = vpop.permute.xlu0 %1387
    %1390 = vset.pattern.permute.xlu0 2
    %1391 = vperm.xlu0 %1390, %v51
    %v1392 = vpop.permute.xlu0 %1391
    %1394 = vset.pattern.permute.xlu0 2
    %1395 = vperm.xlu0 %1394, %v52
    %v1396 = vpop.permute.xlu0 %1395
    %1398 = vset.pattern.permute.xlu0 2
    %1399 = vperm.xlu0 %1398, %v53
    %v1400 = vpop.permute.xlu0 %1399
    %1402 = vset.pattern.permute.xlu0 2
    %1403 = vperm.xlu0 %1402, %v54
    %v1404 = vpop.permute.xlu0 %1403
    %1406 = vset.pattern.permute.xlu0 2
    %1407 = vperm.xlu0 %1406, %v55
    %v1408 = vpop.permute.xlu0 %1407
    %1410 = vset.pattern.permute.xlu0 2
    %1411 = vperm.xlu0 %1410, %v56
    %v1412 = vpop.permute.xlu0 %1411
    %1414 = vset.pattern.permute.xlu0 2
    %1415 = vperm.xlu0 %1414, %v57
    %v1416 = vpop.permute.xlu0 %1415
    %1418 = vset.pattern.permute.xlu0 2
    %1419 = vperm.xlu0 %1418, %v58
    %v1420 = vpop.permute.xlu0 %1419
    %1422 = vset.pattern.permute.xlu0 2
    %1423 = vperm.xlu0 %1422, %v59
    %v1424 = vpop.permute.xlu0 %1423
    %1426 = vset.pattern.permute.xlu0 2
    %1427 = vperm.xlu0 %1426, %v60
    %v1428 = vpop.permute.xlu0 %1427
    %1430 = vset.pattern.permute.xlu0 2
    %1431 = vperm.xlu0 %1430, %v61
    %v1432 = vpop.permute.xlu0 %1431
    %1434 = vset.pattern.permute.xlu0 2
    %1435 = vperm.xlu0 %1434, %v62
    %v1436 = vpop.permute.xlu0 %1435
    %1438 = vset.pattern.permute.xlu0 2
    %1439 = vperm.xlu0 %1438, %v63
    %v1440 = vpop.permute.xlu0 %1439
    %1442 = vset.pattern.permute.xlu0 2
    %1443 = vperm.xlu0 %1442, %v64
    %v1444 = vpop.permute.xlu0 %1443
    %1446 = vset.pattern.permute.xlu0 2
    %1447 = vperm.xlu0 %1446, %v65
    %v1448 = vpop.permute.xlu0 %1447
    %1450 = vset.pattern.permute.xlu0 2
    %1451 = vperm.xlu0 %1450, %v66
    %v1452 = vpop.permute.xlu0 %1451
    %1454 = vset.pattern.permute.xlu0 2
    %1455 = vperm.xlu0 %1454, %v67
    %v1456 = vpop.permute.xlu0 %1455
    %1458 = vset.pattern.permute.xlu0 2
    %1459 = vperm.xlu0 %1458, %v68
    %v1460 = vpop.permute.xlu0 %1459
    %1462 = vset.pattern.permute.xlu0 2
    %1463 = vperm.xlu0 %1462, %v69
    %v1464 = vpop.permute.xlu0 %1463
    %1466 = vset.pattern.permute.xlu0 2
    %1467 = vperm.xlu0 %1466, %v70
    %v1468 = vpop.permute.xlu0 %1467
    %1470 = vset.pattern.permute.xlu0 2
    %1471 = vperm.xlu0 %1470, %v71
    %v1472 = vpop.permute.xlu0 %1471
    %1474 = vset.pattern.permute.xlu0 2
    %1475 = vperm.xlu0 %1474, %v72
    %v1476 = vpop.permute.xlu0 %1475
    %1478 = vset.pattern.permute.xlu0 2
    %1479 = vperm.xlu0 %1478, %v73
    %v1480 = vpop.permute.xlu0 %1479
    %1482 = vset.pattern.permute.xlu0 2
    %1483 = vperm.xlu0 %1482, %v74
    %v1484 = vpop.permute.xlu0 %1483
    %1486 = vset.pattern.permute.xlu0 2
    %1487 = vperm.xlu0 %1486, %v75
    %v1488 = vpop.permute.xlu0 %1487
    %1490 = vset.pattern.permute.xlu0 2
    %1491 = vperm.xlu0 %1490, %v76
    %v1492 = vpop.permute.xlu0 %1491
    %1494 = vset.pattern.permute.xlu0 2
    %1495 = vperm.xlu0 %1494, %v77
    %v1496 = vpop.permute.xlu0 %1495
    %1498 = vset.pattern.permute.xlu0 2
    %1499 = vperm.xlu0 %1498, %v78
    %v1500 = vpop.permute.xlu0 %1499
    %1502 = vset.pattern.permute.xlu0 2
    %1503 = vperm.xlu0 %1502, %v79
    %v1504 = vpop.permute.xlu0 %1503
    %1506 = vset.pattern.permute.xlu0 2
    %1507 = vperm.xlu0 %1506, %v80
    %v1508 = vpop.permute.xlu0 %1507
    %1510 = vset.pattern.permute.xlu0 2
    %1511 = vperm.xlu0 %1510, %v81
    %v1512 = vpop.permute.xlu0 %1511
    %1514 = vset.pattern.permute.xlu0 2
    %1515 = vperm.xlu0 %1514, %v82
    %v1516 = vpop.permute.xlu0 %1515
    %1518 = vset.pattern.permute.xlu0 2
    %1519 = vperm.xlu0 %1518, %v83
    %v1520 = vpop.permute.xlu0 %1519
    %1522 = vset.pattern.permute.xlu0 2
    %1523 = vperm.xlu0 %1522, %v84
    %v1524 = vpop.permute.xlu0 %1523
    %1526 = vset.pattern.permute.xlu0 2
    %1527 = vperm.xlu0 %1526, %v85
    %v1528 = vpop.permute.xlu0 %1527
    %1530 = vset.pattern.permute.xlu0 2
    %1531 = vperm.xlu0 %1530, %v86
    %v1532 = vpop.permute.xlu0 %1531
    %1534 = vset.pattern.permute.xlu0 2
    %1535 = vperm.xlu0 %1534, %v87
    %v1536 = vpop.permute.xlu0 %1535
    %1538 = vset.pattern.permute.xlu0 2
    %1539 = vperm.xlu0 %1538, %v88
    %v1540 = vpop.permute.xlu0 %1539
    %1542 = vset.pattern.permute.xlu0 2
    %1543 = vperm.xlu0 %1542, %v89
    %v1544 = vpop.permute.xlu0 %1543
    %1546 = vset.pattern.permute.xlu0 2
    %1547 = vperm.xlu0 %1546, %v90
    %v1548 = vpop.permute.xlu0 %1547
    %1550 = vset.pattern.permute.xlu0 2
    %1551 = vperm.xlu0 %1550, %v91
    %v1552 = vpop.permute.xlu0 %1551
    %1554 = vset.pattern.permute.xlu0 2
    %1555 = vperm.xlu0 %1554, %v92
    %v1556 = vpop.permute.xlu0 %1555
    %1558 = vset.pattern.permute.xlu0 2
    %1559 = vperm.xlu0 %1558, %v93
    %v1560 = vpop.permute.xlu0 %1559
    %1562 = vset.pattern.permute.xlu0 2
    %1563 = vperm.xlu0 %1562, %v94
    %v1564 = vpop.permute.xlu0 %1563
    %1566 = vset.pattern.permute.xlu0 2
    %1567 = vperm.xlu0 %1566, %v95
    %v1568 = vpop.permute.xlu0 %1567
    %1570 = vset.pattern.permute.xlu0 2
    %1571 = vperm.xlu0 %1570, %v96
    %v1572 = vpop.permute.xlu0 %1571
    %1574 = vset.pattern.permute.xlu0 2
    %1575 = vperm.xlu0 %1574, %v97
    %v1576 = vpop.permute.xlu0 %1575
    %v1578 = vlaneseq
    %v1579 = vshrl.u32 %v1578, 7
    %v1580 = vsub.s32 2, %v1579
    %v1581 = vrot.slane %v33, %v1580
    %v1582 = vmul.f32 %v1324, %v1581
    %v1583 = vmul.f32 %v1328, %v1581
    %v1584 = vmul.f32 %v1332, %v1581
    %v1585 = vmul.f32 %v1336, %v1581
    %v1586 = vmul.f32 %v1340, %v1581
    %v1587 = vmul.f32 %v1344, %v1581
    %v1588 = vmul.f32 %v1348, %v1581
    %v1589 = vmul.f32 %v1352, %v1581
    %v1590 = vmul.f32 %v1356, %v1581
    %v1591 = vmul.f32 %v1360, %v1581
    %v1592 = vmul.f32 %v1364, %v1581
    %v1593 = vmul.f32 %v1368, %v1581
    %v1594 = vmul.f32 %v1372, %v1581
    %v1595 = vmul.f32 %v1376, %v1581
    %v1596 = vmul.f32 %v1380, %v1581
    %v1597 = vmul.f32 %v1384, %v1581
    %v1598 = vmul.f32 %v1388, %v1581
    %v1599 = vmul.f32 %v1392, %v1581
    %v1600 = vmul.f32 %v1396, %v1581
    %v1601 = vmul.f32 %v1400, %v1581
    %v1602 = vmul.f32 %v1404, %v1581
    %v1603 = vmul.f32 %v1408, %v1581
    %v1604 = vmul.f32 %v1412, %v1581
    %v1605 = vmul.f32 %v1416, %v1581
    %v1606 = vmul.f32 %v1420, %v1581
    %v1607 = vmul.f32 %v1424, %v1581
    %v1608 = vmul.f32 %v1428, %v1581
    %v1609 = vmul.f32 %v1432, %v1581
    %v1610 = vmul.f32 %v1436, %v1581
    %v1611 = vmul.f32 %v1440, %v1581
    %v1612 = vmul.f32 %v1444, %v1581
    %v1613 = vmul.f32 %v1448, %v1581
    %v1614 = vmul.f32 %v1452, %v1581
    %v1615 = vmul.f32 %v1456, %v1581
    %v1616 = vmul.f32 %v1460, %v1581
    %v1617 = vmul.f32 %v1464, %v1581
    %v1618 = vmul.f32 %v1468, %v1581
    %v1619 = vmul.f32 %v1472, %v1581
    %v1620 = vmul.f32 %v1476, %v1581
    %v1621 = vmul.f32 %v1480, %v1581
    %v1622 = vmul.f32 %v1484, %v1581
    %v1623 = vmul.f32 %v1488, %v1581
    %v1624 = vmul.f32 %v1492, %v1581
    %v1625 = vmul.f32 %v1496, %v1581
    %v1626 = vmul.f32 %v1500, %v1581
    %v1627 = vmul.f32 %v1504, %v1581
    %v1628 = vmul.f32 %v1508, %v1581
    %v1629 = vmul.f32 %v1512, %v1581
    %v1630 = vmul.f32 %v1516, %v1581
    %v1631 = vmul.f32 %v1520, %v1581
    %v1632 = vmul.f32 %v1524, %v1581
    %v1633 = vmul.f32 %v1528, %v1581
    %v1634 = vmul.f32 %v1532, %v1581
    %v1635 = vmul.f32 %v1536, %v1581
    %v1636 = vmul.f32 %v1540, %v1581
    %v1637 = vmul.f32 %v1544, %v1581
    %v1638 = vmul.f32 %v1548, %v1581
    %v1639 = vmul.f32 %v1552, %v1581
    %v1640 = vmul.f32 %v1556, %v1581
    %v1641 = vmul.f32 %v1560, %v1581
    %v1642 = vmul.f32 %v1564, %v1581
    %v1643 = vmul.f32 %v1568, %v1581
    %v1644 = vmul.f32 %v1572, %v1581
    %v1645 = vmul.f32 %v1576, %v1581
    %v1646 = vadd.f32 %v1258, %v1582
    %v1647 = vadd.f32 %v1259, %v1583
    %v1648 = vadd.f32 %v1260, %v1584
    %v1649 = vadd.f32 %v1261, %v1585
    %v1650 = vadd.f32 %v1262, %v1586
    %v1651 = vadd.f32 %v1263, %v1587
    %v1652 = vadd.f32 %v1264, %v1588
    %v1653 = vadd.f32 %v1265, %v1589
    %v1654 = vadd.f32 %v1266, %v1590
    %v1655 = vadd.f32 %v1267, %v1591
    %v1656 = vadd.f32 %v1268, %v1592
    %v1657 = vadd.f32 %v1269, %v1593
    %v1658 = vadd.f32 %v1270, %v1594
    %v1659 = vadd.f32 %v1271, %v1595
    %v1660 = vadd.f32 %v1272, %v1596
    %v1661 = vadd.f32 %v1273, %v1597
    %v1662 = vadd.f32 %v1274, %v1598
    %v1663 = vadd.f32 %v1275, %v1599
    %v1664 = vadd.f32 %v1276, %v1600
    %v1665 = vadd.f32 %v1277, %v1601
    %v1666 = vadd.f32 %v1278, %v1602
    %v1667 = vadd.f32 %v1279, %v1603
    %v1668 = vadd.f32 %v1280, %v1604
    %v1669 = vadd.f32 %v1281, %v1605
    %v1670 = vadd.f32 %v1282, %v1606
    %v1671 = vadd.f32 %v1283, %v1607
    %v1672 = vadd.f32 %v1284, %v1608
    %v1673 = vadd.f32 %v1285, %v1609
    %v1674 = vadd.f32 %v1286, %v1610
    %v1675 = vadd.f32 %v1287, %v1611
    %v1676 = vadd.f32 %v1288, %v1612
    %v1677 = vadd.f32 %v1289, %v1613
    %v1678 = vadd.f32 %v1290, %v1614
    %v1679 = vadd.f32 %v1291, %v1615
    %v1680 = vadd.f32 %v1292, %v1616
    %v1681 = vadd.f32 %v1293, %v1617
    %v1682 = vadd.f32 %v1294, %v1618
    %v1683 = vadd.f32 %v1295, %v1619
    %v1684 = vadd.f32 %v1296, %v1620
    %v1685 = vadd.f32 %v1297, %v1621
    %v1686 = vadd.f32 %v1298, %v1622
    %v1687 = vadd.f32 %v1299, %v1623
    %v1688 = vadd.f32 %v1300, %v1624
    %v1689 = vadd.f32 %v1301, %v1625
    %v1690 = vadd.f32 %v1302, %v1626
    %v1691 = vadd.f32 %v1303, %v1627
    %v1692 = vadd.f32 %v1304, %v1628
    %v1693 = vadd.f32 %v1305, %v1629
    %v1694 = vadd.f32 %v1306, %v1630
    %v1695 = vadd.f32 %v1307, %v1631
    %v1696 = vadd.f32 %v1308, %v1632
    %v1697 = vadd.f32 %v1309, %v1633
    %v1698 = vadd.f32 %v1310, %v1634
    %v1699 = vadd.f32 %v1311, %v1635
    %v1700 = vadd.f32 %v1312, %v1636
    %v1701 = vadd.f32 %v1313, %v1637
    %v1702 = vadd.f32 %v1314, %v1638
    %v1703 = vadd.f32 %v1315, %v1639
    %v1704 = vadd.f32 %v1316, %v1640
    %v1705 = vadd.f32 %v1317, %v1641
    %v1706 = vadd.f32 %v1318, %v1642
    %v1707 = vadd.f32 %v1319, %v1643
    %v1708 = vadd.f32 %v1320, %v1644
    %v1709 = vadd.f32 %v1321, %v1645
    %v1710 = vand.u32 2147483647, %v1646
    %vm1711 = vcmp.le.f32.partialorder %v1710, 0.7853982
    %vm1712 = vcmp.lt.s32.totalorder %v1646, 0
    %v1713 = vand.u32 %v1646, 2139095040
    %v1714 = vshrl.u32 %v1713, 23
    %v1715 = vsub.s32 %v1714, 127
    %v1716 = vand.u32 2147483647, %v1646
    %v1717 = vand.u32 %v1716, 8388607
    %v1718 = vor.u32 %v1717, 8388608
    %v1719 = vsub.s32 0, %v1718
    %v1720 = vadd.s32 %v1715, 1
    %vm1721 = vcmp.gt.s32.totalorder %v1720, 0
    %v1722 = vsel %vm1721, %v1720, 0
    %v1723 = vshrl.u32 %v1722, 5
    %v1724 = vand.u32 %v1722, 31
    %v1725 = vsub.s32 32, %v1724
    %v1726 = vshrl.u32 683565275, %v1725
    %v1727 = vshll.u32 683565275, %v1724
    %v1728 = vshrl.u32 2475754826, %v1725
    %v1729 = vor.u32 %v1727, %v1728
    %v1730 = vshll.u32 2475754826, %v1724
    %v1731 = vshrl.u32 2131351028, %v1725
    %v1732 = vor.u32 %v1730, %v1731
    %v1733 = vshll.u32 2131351028, %v1724
    %v1734 = vshrl.u32 2102212464, %v1725
    %v1735 = vor.u32 %v1733, %v1734
    %v1736 = vshll.u32 2102212464, %v1724
    %v1737 = vshrl.u32 920167782, %v1725
    %v1738 = vor.u32 %v1736, %v1737
    %v1739 = vshll.u32 920167782, %v1724
    %v1740 = vshrl.u32 1326507024, %v1725
    %v1741 = vor.u32 %v1739, %v1740
    %vm1742 = vcmp.lt.s32.totalorder %v1723, 1
    %vm1743 = vcmp.lt.s32.totalorder %v1723, 2
    %vm1744 = vcmp.lt.s32.totalorder %v1723, 3
    %vm1745 = vcmp.lt.s32.totalorder %v1723, 4
    %v1746 = vsel %vm1742, %v1726, %v1729
    %v1747 = vsel %vm1745, %v1735, 2102212464
    %v1748 = vsel %vm1744, %v1732, %v1747
    %v1749 = vsel %vm1743, %v1746, %v1748
    %v1750 = vsel %vm1742, %v1729, %v1732
    %v1751 = vsel %vm1745, %v1738, 920167782
    %v1752 = vsel %vm1744, %v1735, %v1751
    %v1753 = vsel %vm1743, %v1750, %v1752
    %v1754 = vsel %vm1742, %v1732, %v1735
    %v1755 = vsel %vm1745, %v1741, 1326507024
    %v1756 = vsel %vm1744, %v1738, %v1755
    %v1757 = vsel %vm1743, %v1754, %v1756
    %v1758 = vshll.u32 %v1718, 8
    %v1759 = vmul.u32.u64.compose %v1758, %v1757
    %v1760 = vextract.low.u32 %v1759
    %v1761 = vextract.high.u32 %v1759
    %v1762 = vmul.u32.u64.compose %v1758, %v1753
    %v1763 = vextract.low.u32 %v1762
    %v1764 = vextract.high.u32 %v1762
    %v1765 = vmul.u32 %v1758, %v1749
    %v1766 = vadd.s32 %v1761, %v1763
    %vm1767 = vc.u32 %v1761, %v1763
    %v1768 = vadd.s32 %v1764, 1
    %v1769 = vsel %vm1767, %v1768, %v1764
    %v1770 = vadd.s32 %v1765, %v1769
    %v1771 = vadd.s32 %v1770, 536870912
    %v1772 = vshrl.u32 %v1771, 30
    %v1773 = vshll.u32 %v1772, 30
    %v1774 = vsub.s32 %v1770, %v1773
    %vm1775 = vcmp.lt.s32.totalorder %v1774, 0
    %v1776 = vsub.s32 0, %v1774
    %v1777 = vsel %vm1775, %v1776, %v1774
    %v1778 = vclz %v1777
    %v1779 = vsub.s32 %v1778, 2
    %vm1780 = vcmp.gt.s32.totalorder 0, %v1779
    %v1781 = vsel %vm1780, 0, %v1779
    %v1782 = vsub.s32 32, %v1781
    %v1783 = vshll.u32 %v1774, %v1781
    %v1784 = vshrl.u32 %v1766, %v1782
    %v1785 = vor.u32 %v1783, %v1784
    %v1786 = vsub.s32 4294967266, %v1781
    %v1787 = vadd.s32 %v1786, 127
    %v1788 = vshll.u32 %v1787, 23
    %v1789 = vor.u32 4788187, %v1788
    %v1790 = vand.u32 2147483647, %v1789
    %v1792 = vcvt.s32.f32 %v1785
    %v1793 = vmul.f32 %v1792, %v1790
    %v1794 = vxor.u32 %v1793, 2147483648
    %v1795 = vsel %vm1712, %v1794, %v1793
    %v1796 = vsub.s32 4, %v1772
    %v1797 = vsel %vm1712, %v1796, %v1772
    %v1798 = vsel %vm1711, %v1646, %v1795
    %v1799 = vsel %vm1711, 0, %v1797
    %v1800 = vcosq.f32.pop %v1798
    %v1801 = vsinq.f32.pop %v1798
    %vm1802 = vweird.f32 %v1646
    %v1803 = vand.u32 %v1799, 3
    %vm1804 = vcmp.lt.s32.totalorder %v1803, 2
    %vm1805 = vcmp.eq.s32.totalorder %v1803, 0
    %v1806 = vxor.u32 %v1801, 2147483648
    %v1807 = vsel %vm1805, %v1800, %v1806
    %vm1808 = vcmp.eq.s32.totalorder %v1803, 2
    %v1809 = vxor.u32 %v1800, 2147483648
    %v1810 = vsel %vm1808, %v1809, %v1801
    %v1811 = vsel %vm1804, %v1807, %v1810
    %v1812 = vsel %vm1802, nan, %v1811
    %v1813 = vand.u32 2147483647, %v1647
    %vm1814 = vcmp.le.f32.partialorder %v1813, 0.7853982
    %vm1815 = vcmp.lt.s32.totalorder %v1647, 0
    %v1816 = vand.u32 %v1647, 2139095040
    %v1817 = vshrl.u32 %v1816, 23
    %v1818 = vsub.s32 %v1817, 127
    %v1819 = vand.u32 2147483647, %v1647
    %v1820 = vand.u32 %v1819, 8388607
    %v1821 = vor.u32 %v1820, 8388608
    %v1822 = vsub.s32 0, %v1821
    %v1823 = vadd.s32 %v1818, 1
    %vm1824 = vcmp.gt.s32.totalorder %v1823, 0
    %v1825 = vsel %vm1824, %v1823, 0
    %v1826 = vshrl.u32 %v1825, 5
    %v1827 = vand.u32 %v1825, 31
    %v1828 = vsub.s32 32, %v1827
    %v1829 = vshrl.u32 683565275, %v1828
    %v1830 = vshll.u32 683565275, %v1827
    %v1831 = vshrl.u32 2475754826, %v1828
    %v1832 = vor.u32 %v1830, %v1831
    %v1833 = vshll.u32 2475754826, %v1827
    %v1834 = vshrl.u32 2131351028, %v1828
    %v1835 = vor.u32 %v1833, %v1834
    %v1836 = vshll.u32 2131351028, %v1827
    %v1837 = vshrl.u32 2102212464, %v1828
    %v1838 = vor.u32 %v1836, %v1837
    %v1839 = vshll.u32 2102212464, %v1827
    %v1840 = vshrl.u32 920167782, %v1828
    %v1841 = vor.u32 %v1839, %v1840
    %v1842 = vshll.u32 920167782, %v1827
    %v1843 = vshrl.u32 1326507024, %v1828
    %v1844 = vor.u32 %v1842, %v1843
    %vm1845 = vcmp.lt.s32.totalorder %v1826, 1
    %vm1846 = vcmp.lt.s32.totalorder %v1826, 2
    %vm1847 = vcmp.lt.s32.totalorder %v1826, 3
    %vm1848 = vcmp.lt.s32.totalorder %v1826, 4
    %v1849 = vsel %vm1845, %v1829, %v1832
    %v1850 = vsel %vm1848, %v1838, 2102212464
    %v1851 = vsel %vm1847, %v1835, %v1850
    %v1852 = vsel %vm1846, %v1849, %v1851
    %v1853 = vsel %vm1845, %v1832, %v1835
    %v1854 = vsel %vm1848, %v1841, 920167782
    %v1855 = vsel %vm1847, %v1838, %v1854
    %v1856 = vsel %vm1846, %v1853, %v1855
    %v1857 = vsel %vm1845, %v1835, %v1838
    %v1858 = vsel %vm1848, %v1844, 1326507024
    %v1859 = vsel %vm1847, %v1841, %v1858
    %v1860 = vsel %vm1846, %v1857, %v1859
    %v1861 = vshll.u32 %v1821, 8
    %v1862 = vmul.u32.u64.compose %v1861, %v1860
    %v1863 = vextract.low.u32 %v1862
    %v1864 = vextract.high.u32 %v1862
    %v1865 = vmul.u32.u64.compose %v1861, %v1856
    %v1866 = vextract.low.u32 %v1865
    %v1867 = vextract.high.u32 %v1865
    %v1868 = vmul.u32 %v1861, %v1852
    %v1869 = vadd.s32 %v1864, %v1866
    %vm1870 = vc.u32 %v1864, %v1866
    %v1871 = vadd.s32 %v1867, 1
    %v1872 = vsel %vm1870, %v1871, %v1867
    %v1873 = vadd.s32 %v1868, %v1872
    %v1874 = vadd.s32 %v1873, 536870912
    %v1875 = vshrl.u32 %v1874, 30
    %v1876 = vshll.u32 %v1875, 30
    %v1877 = vsub.s32 %v1873, %v1876
    %vm1878 = vcmp.lt.s32.totalorder %v1877, 0
    %v1879 = vsub.s32 0, %v1877
    %v1880 = vsel %vm1878, %v1879, %v1877
    %v1881 = vclz %v1880
    %v1882 = vsub.s32 %v1881, 2
    %vm1883 = vcmp.gt.s32.totalorder 0, %v1882
    %v1884 = vsel %vm1883, 0, %v1882
    %v1885 = vsub.s32 32, %v1884
    %v1886 = vshll.u32 %v1877, %v1884
    %v1887 = vshrl.u32 %v1869, %v1885
    %v1888 = vor.u32 %v1886, %v1887
    %v1889 = vsub.s32 4294967266, %v1884
    %v1890 = vadd.s32 %v1889, 127
    %v1891 = vshll.u32 %v1890, 23
    %v1892 = vor.u32 4788187, %v1891
    %v1893 = vand.u32 2147483647, %v1892
    %v1895 = vcvt.s32.f32 %v1888
    %v1896 = vmul.f32 %v1895, %v1893
    %v1897 = vxor.u32 %v1896, 2147483648
    %v1898 = vsel %vm1815, %v1897, %v1896
    %v1899 = vsub.s32 4, %v1875
    %v1900 = vsel %vm1815, %v1899, %v1875
    %v1901 = vsel %vm1814, %v1647, %v1898
    %v1902 = vsel %vm1814, 0, %v1900
    %v1903 = vcosq.f32.pop %v1901
    %v1904 = vsinq.f32.pop %v1901
    %vm1905 = vweird.f32 %v1647
    %v1906 = vand.u32 %v1902, 3
    %vm1907 = vcmp.lt.s32.totalorder %v1906, 2
    %vm1908 = vcmp.eq.s32.totalorder %v1906, 0
    %v1909 = vxor.u32 %v1904, 2147483648
    %v1910 = vsel %vm1908, %v1903, %v1909
    %vm1911 = vcmp.eq.s32.totalorder %v1906, 2
    %v1912 = vxor.u32 %v1903, 2147483648
    %v1913 = vsel %vm1911, %v1912, %v1904
    %v1914 = vsel %vm1907, %v1910, %v1913
    %v1915 = vsel %vm1905, nan, %v1914
    %v1916 = vand.u32 2147483647, %v1648
    %vm1917 = vcmp.le.f32.partialorder %v1916, 0.7853982
    %vm1918 = vcmp.lt.s32.totalorder %v1648, 0
    %v1919 = vand.u32 %v1648, 2139095040
    %v1920 = vshrl.u32 %v1919, 23
    %v1921 = vsub.s32 %v1920, 127
    %v1922 = vand.u32 2147483647, %v1648
    %v1923 = vand.u32 %v1922, 8388607
    %v1924 = vor.u32 %v1923, 8388608
    %v1925 = vsub.s32 0, %v1924
    %v1926 = vadd.s32 %v1921, 1
    %vm1927 = vcmp.gt.s32.totalorder %v1926, 0
    %v1928 = vsel %vm1927, %v1926, 0
    %v1929 = vshrl.u32 %v1928, 5
    %v1930 = vand.u32 %v1928, 31
    %v1931 = vsub.s32 32, %v1930
    %v1932 = vshrl.u32 683565275, %v1931
    %v1933 = vshll.u32 683565275, %v1930
    %v1934 = vshrl.u32 2475754826, %v1931
    %v1935 = vor.u32 %v1933, %v1934
    %v1936 = vshll.u32 2475754826, %v1930
    %v1937 = vshrl.u32 2131351028, %v1931
    %v1938 = vor.u32 %v1936, %v1937
    %v1939 = vshll.u32 2131351028, %v1930
    %v1940 = vshrl.u32 2102212464, %v1931
    %v1941 = vor.u32 %v1939, %v1940
    %v1942 = vshll.u32 2102212464, %v1930
    %v1943 = vshrl.u32 920167782, %v1931
    %v1944 = vor.u32 %v1942, %v1943
    %v1945 = vshll.u32 920167782, %v1930
    %v1946 = vshrl.u32 1326507024, %v1931
    %v1947 = vor.u32 %v1945, %v1946
    %vm1948 = vcmp.lt.s32.totalorder %v1929, 1
    %vm1949 = vcmp.lt.s32.totalorder %v1929, 2
    %vm1950 = vcmp.lt.s32.totalorder %v1929, 3
    %vm1951 = vcmp.lt.s32.totalorder %v1929, 4
    %v1952 = vsel %vm1948, %v1932, %v1935
    %v1953 = vsel %vm1951, %v1941, 2102212464
    %v1954 = vsel %vm1950, %v1938, %v1953
    %v1955 = vsel %vm1949, %v1952, %v1954
    %v1956 = vsel %vm1948, %v1935, %v1938
    %v1957 = vsel %vm1951, %v1944, 920167782
    %v1958 = vsel %vm1950, %v1941, %v1957
    %v1959 = vsel %vm1949, %v1956, %v1958
    %v1960 = vsel %vm1948, %v1938, %v1941
    %v1961 = vsel %vm1951, %v1947, 1326507024
    %v1962 = vsel %vm1950, %v1944, %v1961
    %v1963 = vsel %vm1949, %v1960, %v1962
    %v1964 = vshll.u32 %v1924, 8
    %v1965 = vmul.u32.u64.compose %v1964, %v1963
    %v1966 = vextract.low.u32 %v1965
    %v1967 = vextract.high.u32 %v1965
    %v1968 = vmul.u32.u64.compose %v1964, %v1959
    %v1969 = vextract.low.u32 %v1968
    %v1970 = vextract.high.u32 %v1968
    %v1971 = vmul.u32 %v1964, %v1955
    %v1972 = vadd.s32 %v1967, %v1969
    %vm1973 = vc.u32 %v1967, %v1969
    %v1974 = vadd.s32 %v1970, 1
    %v1975 = vsel %vm1973, %v1974, %v1970
    %v1976 = vadd.s32 %v1971, %v1975
    %v1977 = vadd.s32 %v1976, 536870912
    %v1978 = vshrl.u32 %v1977, 30
    %v1979 = vshll.u32 %v1978, 30
    %v1980 = vsub.s32 %v1976, %v1979
    %vm1981 = vcmp.lt.s32.totalorder %v1980, 0
    %v1982 = vsub.s32 0, %v1980
    %v1983 = vsel %vm1981, %v1982, %v1980
    %v1984 = vclz %v1983
    %v1985 = vsub.s32 %v1984, 2
    %vm1986 = vcmp.gt.s32.totalorder 0, %v1985
    %v1987 = vsel %vm1986, 0, %v1985
    %v1988 = vsub.s32 32, %v1987
    %v1989 = vshll.u32 %v1980, %v1987
    %v1990 = vshrl.u32 %v1972, %v1988
    %v1991 = vor.u32 %v1989, %v1990
    %v1992 = vsub.s32 4294967266, %v1987
    %v1993 = vadd.s32 %v1992, 127
    %v1994 = vshll.u32 %v1993, 23
    %v1995 = vor.u32 4788187, %v1994
    %v1996 = vand.u32 2147483647, %v1995
    %v1998 = vcvt.s32.f32 %v1991
    %v1999 = vmul.f32 %v1998, %v1996
    %v2000 = vxor.u32 %v1999, 2147483648
    %v2001 = vsel %vm1918, %v2000, %v1999
    %v2002 = vsub.s32 4, %v1978
    %v2003 = vsel %vm1918, %v2002, %v1978
    %v2004 = vsel %vm1917, %v1648, %v2001
    %v2005 = vsel %vm1917, 0, %v2003
    %v2006 = vcosq.f32.pop %v2004
    %v2007 = vsinq.f32.pop %v2004
    %vm2008 = vweird.f32 %v1648
    %v2009 = vand.u32 %v2005, 3
    %vm2010 = vcmp.lt.s32.totalorder %v2009, 2
    %vm2011 = vcmp.eq.s32.totalorder %v2009, 0
    %v2012 = vxor.u32 %v2007, 2147483648
    %v2013 = vsel %vm2011, %v2006, %v2012
    %vm2014 = vcmp.eq.s32.totalorder %v2009, 2
    %v2015 = vxor.u32 %v2006, 2147483648
    %v2016 = vsel %vm2014, %v2015, %v2007
    %v2017 = vsel %vm2010, %v2013, %v2016
    %v2018 = vsel %vm2008, nan, %v2017
    %v2019 = vand.u32 2147483647, %v1649
    %vm2020 = vcmp.le.f32.partialorder %v2019, 0.7853982
    %vm2021 = vcmp.lt.s32.totalorder %v1649, 0
    %v2022 = vand.u32 %v1649, 2139095040
    %v2023 = vshrl.u32 %v2022, 23
    %v2024 = vsub.s32 %v2023, 127
    %v2025 = vand.u32 2147483647, %v1649
    %v2026 = vand.u32 %v2025, 8388607
    %v2027 = vor.u32 %v2026, 8388608
    %v2028 = vsub.s32 0, %v2027
    %v2029 = vadd.s32 %v2024, 1
    %vm2030 = vcmp.gt.s32.totalorder %v2029, 0
    %v2031 = vsel %vm2030, %v2029, 0
    %v2032 = vshrl.u32 %v2031, 5
    %v2033 = vand.u32 %v2031, 31
    %v2034 = vsub.s32 32, %v2033
    %v2035 = vshrl.u32 683565275, %v2034
    %v2036 = vshll.u32 683565275, %v2033
    %v2037 = vshrl.u32 2475754826, %v2034
    %v2038 = vor.u32 %v2036, %v2037
    %v2039 = vshll.u32 2475754826, %v2033
    %v2040 = vshrl.u32 2131351028, %v2034
    %v2041 = vor.u32 %v2039, %v2040
    %v2042 = vshll.u32 2131351028, %v2033
    %v2043 = vshrl.u32 2102212464, %v2034
    %v2044 = vor.u32 %v2042, %v2043
    %v2045 = vshll.u32 2102212464, %v2033
    %v2046 = vshrl.u32 920167782, %v2034
    %v2047 = vor.u32 %v2045, %v2046
    %v2048 = vshll.u32 920167782, %v2033
    %v2049 = vshrl.u32 1326507024, %v2034
    %v2050 = vor.u32 %v2048, %v2049
    %vm2051 = vcmp.lt.s32.totalorder %v2032, 1
    %vm2052 = vcmp.lt.s32.totalorder %v2032, 2
    %vm2053 = vcmp.lt.s32.totalorder %v2032, 3
    %vm2054 = vcmp.lt.s32.totalorder %v2032, 4
    %v2055 = vsel %vm2051, %v2035, %v2038
    %v2056 = vsel %vm2054, %v2044, 2102212464
    %v2057 = vsel %vm2053, %v2041, %v2056
    %v2058 = vsel %vm2052, %v2055, %v2057
    %v2059 = vsel %vm2051, %v2038, %v2041
    %v2060 = vsel %vm2054, %v2047, 920167782
    %v2061 = vsel %vm2053, %v2044, %v2060
    %v2062 = vsel %vm2052, %v2059, %v2061
    %v2063 = vsel %vm2051, %v2041, %v2044
    %v2064 = vsel %vm2054, %v2050, 1326507024
    %v2065 = vsel %vm2053, %v2047, %v2064
    %v2066 = vsel %vm2052, %v2063, %v2065
    %v2067 = vshll.u32 %v2027, 8
    %v2068 = vmul.u32.u64.compose %v2067, %v2066
    %v2069 = vextract.low.u32 %v2068
    %v2070 = vextract.high.u32 %v2068
    %v2071 = vmul.u32.u64.compose %v2067, %v2062
    %v2072 = vextract.low.u32 %v2071
    %v2073 = vextract.high.u32 %v2071
    %v2074 = vmul.u32 %v2067, %v2058
    %v2075 = vadd.s32 %v2070, %v2072
    %vm2076 = vc.u32 %v2070, %v2072
    %v2077 = vadd.s32 %v2073, 1
    %v2078 = vsel %vm2076, %v2077, %v2073
    %v2079 = vadd.s32 %v2074, %v2078
    %v2080 = vadd.s32 %v2079, 536870912
    %v2081 = vshrl.u32 %v2080, 30
    %v2082 = vshll.u32 %v2081, 30
    %v2083 = vsub.s32 %v2079, %v2082
    %vm2084 = vcmp.lt.s32.totalorder %v2083, 0
    %v2085 = vsub.s32 0, %v2083
    %v2086 = vsel %vm2084, %v2085, %v2083
    %v2087 = vclz %v2086
    %v2088 = vsub.s32 %v2087, 2
    %vm2089 = vcmp.gt.s32.totalorder 0, %v2088
    %v2090 = vsel %vm2089, 0, %v2088
    %v2091 = vsub.s32 32, %v2090
    %v2092 = vshll.u32 %v2083, %v2090
    %v2093 = vshrl.u32 %v2075, %v2091
    %v2094 = vor.u32 %v2092, %v2093
    %v2095 = vsub.s32 4294967266, %v2090
    %v2096 = vadd.s32 %v2095, 127
    %v2097 = vshll.u32 %v2096, 23
    %v2098 = vor.u32 4788187, %v2097
    %v2099 = vand.u32 2147483647, %v2098
    %v2101 = vcvt.s32.f32 %v2094
    %v2102 = vmul.f32 %v2101, %v2099
    %v2103 = vxor.u32 %v2102, 2147483648
    %v2104 = vsel %vm2021, %v2103, %v2102
    %v2105 = vsub.s32 4, %v2081
    %v2106 = vsel %vm2021, %v2105, %v2081
    %v2107 = vsel %vm2020, %v1649, %v2104
    %v2108 = vsel %vm2020, 0, %v2106
    %v2109 = vcosq.f32.pop %v2107
    %v2110 = vsinq.f32.pop %v2107
    %vm2111 = vweird.f32 %v1649
    %v2112 = vand.u32 %v2108, 3
    %vm2113 = vcmp.lt.s32.totalorder %v2112, 2
    %vm2114 = vcmp.eq.s32.totalorder %v2112, 0
    %v2115 = vxor.u32 %v2110, 2147483648
    %v2116 = vsel %vm2114, %v2109, %v2115
    %vm2117 = vcmp.eq.s32.totalorder %v2112, 2
    %v2118 = vxor.u32 %v2109, 2147483648
    %v2119 = vsel %vm2117, %v2118, %v2110
    %v2120 = vsel %vm2113, %v2116, %v2119
    %v2121 = vsel %vm2111, nan, %v2120
    %v2122 = vand.u32 2147483647, %v1650
    %vm2123 = vcmp.le.f32.partialorder %v2122, 0.7853982
    %vm2124 = vcmp.lt.s32.totalorder %v1650, 0
    %v2125 = vand.u32 %v1650, 2139095040
    %v2126 = vshrl.u32 %v2125, 23
    %v2127 = vsub.s32 %v2126, 127
    %v2128 = vand.u32 2147483647, %v1650
    %v2129 = vand.u32 %v2128, 8388607
    %v2130 = vor.u32 %v2129, 8388608
    %v2131 = vsub.s32 0, %v2130
    %v2132 = vadd.s32 %v2127, 1
    %vm2133 = vcmp.gt.s32.totalorder %v2132, 0
    %v2134 = vsel %vm2133, %v2132, 0
    %v2135 = vshrl.u32 %v2134, 5
    %v2136 = vand.u32 %v2134, 31
    %v2137 = vsub.s32 32, %v2136
    %v2138 = vshrl.u32 683565275, %v2137
    %v2139 = vshll.u32 683565275, %v2136
    %v2140 = vshrl.u32 2475754826, %v2137
    %v2141 = vor.u32 %v2139, %v2140
    %v2142 = vshll.u32 2475754826, %v2136
    %v2143 = vshrl.u32 2131351028, %v2137
    %v2144 = vor.u32 %v2142, %v2143
    %v2145 = vshll.u32 2131351028, %v2136
    %v2146 = vshrl.u32 2102212464, %v2137
    %v2147 = vor.u32 %v2145, %v2146
    %v2148 = vshll.u32 2102212464, %v2136
    %v2149 = vshrl.u32 920167782, %v2137
    %v2150 = vor.u32 %v2148, %v2149
    %v2151 = vshll.u32 920167782, %v2136
    %v2152 = vshrl.u32 1326507024, %v2137
    %v2153 = vor.u32 %v2151, %v2152
    %vm2154 = vcmp.lt.s32.totalorder %v2135, 1
    %vm2155 = vcmp.lt.s32.totalorder %v2135, 2
    %vm2156 = vcmp.lt.s32.totalorder %v2135, 3
    %vm2157 = vcmp.lt.s32.totalorder %v2135, 4
    %v2158 = vsel %vm2154, %v2138, %v2141
    %v2159 = vsel %vm2157, %v2147, 2102212464
    %v2160 = vsel %vm2156, %v2144, %v2159
    %v2161 = vsel %vm2155, %v2158, %v2160
    %v2162 = vsel %vm2154, %v2141, %v2144
    %v2163 = vsel %vm2157, %v2150, 920167782
    %v2164 = vsel %vm2156, %v2147, %v2163
    %v2165 = vsel %vm2155, %v2162, %v2164
    %v2166 = vsel %vm2154, %v2144, %v2147
    %v2167 = vsel %vm2157, %v2153, 1326507024
    %v2168 = vsel %vm2156, %v2150, %v2167
    %v2169 = vsel %vm2155, %v2166, %v2168
    %v2170 = vshll.u32 %v2130, 8
    %v2171 = vmul.u32.u64.compose %v2170, %v2169
    %v2172 = vextract.low.u32 %v2171
    %v2173 = vextract.high.u32 %v2171
    %v2174 = vmul.u32.u64.compose %v2170, %v2165
    %v2175 = vextract.low.u32 %v2174
    %v2176 = vextract.high.u32 %v2174
    %v2177 = vmul.u32 %v2170, %v2161
    %v2178 = vadd.s32 %v2173, %v2175
    %vm2179 = vc.u32 %v2173, %v2175
    %v2180 = vadd.s32 %v2176, 1
    %v2181 = vsel %vm2179, %v2180, %v2176
    %v2182 = vadd.s32 %v2177, %v2181
    %v2183 = vadd.s32 %v2182, 536870912
    %v2184 = vshrl.u32 %v2183, 30
    %v2185 = vshll.u32 %v2184, 30
    %v2186 = vsub.s32 %v2182, %v2185
    %vm2187 = vcmp.lt.s32.totalorder %v2186, 0
    %v2188 = vsub.s32 0, %v2186
    %v2189 = vsel %vm2187, %v2188, %v2186
    %v2190 = vclz %v2189
    %v2191 = vsub.s32 %v2190, 2
    %vm2192 = vcmp.gt.s32.totalorder 0, %v2191
    %v2193 = vsel %vm2192, 0, %v2191
    %v2194 = vsub.s32 32, %v2193
    %v2195 = vshll.u32 %v2186, %v2193
    %v2196 = vshrl.u32 %v2178, %v2194
    %v2197 = vor.u32 %v2195, %v2196
    %v2198 = vsub.s32 4294967266, %v2193
    %v2199 = vadd.s32 %v2198, 127
    %v2200 = vshll.u32 %v2199, 23
    %v2201 = vor.u32 4788187, %v2200
    %v2202 = vand.u32 2147483647, %v2201
    %v2204 = vcvt.s32.f32 %v2197
    %v2205 = vmul.f32 %v2204, %v2202
    %v2206 = vxor.u32 %v2205, 2147483648
    %v2207 = vsel %vm2124, %v2206, %v2205
    %v2208 = vsub.s32 4, %v2184
    %v2209 = vsel %vm2124, %v2208, %v2184
    %v2210 = vsel %vm2123, %v1650, %v2207
    %v2211 = vsel %vm2123, 0, %v2209
    %v2212 = vcosq.f32.pop %v2210
    %v2213 = vsinq.f32.pop %v2210
    %vm2214 = vweird.f32 %v1650
    %v2215 = vand.u32 %v2211, 3
    %vm2216 = vcmp.lt.s32.totalorder %v2215, 2
    %vm2217 = vcmp.eq.s32.totalorder %v2215, 0
    %v2218 = vxor.u32 %v2213, 2147483648
    %v2219 = vsel %vm2217, %v2212, %v2218
    %vm2220 = vcmp.eq.s32.totalorder %v2215, 2
    %v2221 = vxor.u32 %v2212, 2147483648
    %v2222 = vsel %vm2220, %v2221, %v2213
    %v2223 = vsel %vm2216, %v2219, %v2222
    %v2224 = vsel %vm2214, nan, %v2223
    %v2225 = vand.u32 2147483647, %v1651
    %vm2226 = vcmp.le.f32.partialorder %v2225, 0.7853982
    %vm2227 = vcmp.lt.s32.totalorder %v1651, 0
    %v2228 = vand.u32 %v1651, 2139095040
    %v2229 = vshrl.u32 %v2228, 23
    %v2230 = vsub.s32 %v2229, 127
    %v2231 = vand.u32 2147483647, %v1651
    %v2232 = vand.u32 %v2231, 8388607
    %v2233 = vor.u32 %v2232, 8388608
    %v2234 = vsub.s32 0, %v2233
    %v2235 = vadd.s32 %v2230, 1
    %vm2236 = vcmp.gt.s32.totalorder %v2235, 0
    %v2237 = vsel %vm2236, %v2235, 0
    %v2238 = vshrl.u32 %v2237, 5
    %v2239 = vand.u32 %v2237, 31
    %v2240 = vsub.s32 32, %v2239
    %v2241 = vshrl.u32 683565275, %v2240
    %v2242 = vshll.u32 683565275, %v2239
    %v2243 = vshrl.u32 2475754826, %v2240
    %v2244 = vor.u32 %v2242, %v2243
    %v2245 = vshll.u32 2475754826, %v2239
    %v2246 = vshrl.u32 2131351028, %v2240
    %v2247 = vor.u32 %v2245, %v2246
    %v2248 = vshll.u32 2131351028, %v2239
    %v2249 = vshrl.u32 2102212464, %v2240
    %v2250 = vor.u32 %v2248, %v2249
    %v2251 = vshll.u32 2102212464, %v2239
    %v2252 = vshrl.u32 920167782, %v2240
    %v2253 = vor.u32 %v2251, %v2252
    %v2254 = vshll.u32 920167782, %v2239
    %v2255 = vshrl.u32 1326507024, %v2240
    %v2256 = vor.u32 %v2254, %v2255
    %vm2257 = vcmp.lt.s32.totalorder %v2238, 1
    %vm2258 = vcmp.lt.s32.totalorder %v2238, 2
    %vm2259 = vcmp.lt.s32.totalorder %v2238, 3
    %vm2260 = vcmp.lt.s32.totalorder %v2238, 4
    %v2261 = vsel %vm2257, %v2241, %v2244
    %v2262 = vsel %vm2260, %v2250, 2102212464
    %v2263 = vsel %vm2259, %v2247, %v2262
    %v2264 = vsel %vm2258, %v2261, %v2263
    %v2265 = vsel %vm2257, %v2244, %v2247
    %v2266 = vsel %vm2260, %v2253, 920167782
    %v2267 = vsel %vm2259, %v2250, %v2266
    %v2268 = vsel %vm2258, %v2265, %v2267
    %v2269 = vsel %vm2257, %v2247, %v2250
    %v2270 = vsel %vm2260, %v2256, 1326507024
    %v2271 = vsel %vm2259, %v2253, %v2270
    %v2272 = vsel %vm2258, %v2269, %v2271
    %v2273 = vshll.u32 %v2233, 8
    %v2274 = vmul.u32.u64.compose %v2273, %v2272
    %v2275 = vextract.low.u32 %v2274
    %v2276 = vextract.high.u32 %v2274
    %v2277 = vmul.u32.u64.compose %v2273, %v2268
    %v2278 = vextract.low.u32 %v2277
    %v2279 = vextract.high.u32 %v2277
    %v2280 = vmul.u32 %v2273, %v2264
    %v2281 = vadd.s32 %v2276, %v2278
    %vm2282 = vc.u32 %v2276, %v2278
    %v2283 = vadd.s32 %v2279, 1
    %v2284 = vsel %vm2282, %v2283, %v2279
    %v2285 = vadd.s32 %v2280, %v2284
    %v2286 = vadd.s32 %v2285, 536870912
    %v2287 = vshrl.u32 %v2286, 30
    %v2288 = vshll.u32 %v2287, 30
    %v2289 = vsub.s32 %v2285, %v2288
    %vm2290 = vcmp.lt.s32.totalorder %v2289, 0
    %v2291 = vsub.s32 0, %v2289
    %v2292 = vsel %vm2290, %v2291, %v2289
    %v2293 = vclz %v2292
    %v2294 = vsub.s32 %v2293, 2
    %vm2295 = vcmp.gt.s32.totalorder 0, %v2294
    %v2296 = vsel %vm2295, 0, %v2294
    %v2297 = vsub.s32 32, %v2296
    %v2298 = vshll.u32 %v2289, %v2296
    %v2299 = vshrl.u32 %v2281, %v2297
    %v2300 = vor.u32 %v2298, %v2299
    %v2301 = vsub.s32 4294967266, %v2296
    %v2302 = vadd.s32 %v2301, 127
    %v2303 = vshll.u32 %v2302, 23
    %v2304 = vor.u32 4788187, %v2303
    %v2305 = vand.u32 2147483647, %v2304
    %v2307 = vcvt.s32.f32 %v2300
    %v2308 = vmul.f32 %v2307, %v2305
    %v2309 = vxor.u32 %v2308, 2147483648
    %v2310 = vsel %vm2227, %v2309, %v2308
    %v2311 = vsub.s32 4, %v2287
    %v2312 = vsel %vm2227, %v2311, %v2287
    %v2313 = vsel %vm2226, %v1651, %v2310
    %v2314 = vsel %vm2226, 0, %v2312
    %v2315 = vcosq.f32.pop %v2313
    %v2316 = vsinq.f32.pop %v2313
    %vm2317 = vweird.f32 %v1651
    %v2318 = vand.u32 %v2314, 3
    %vm2319 = vcmp.lt.s32.totalorder %v2318, 2
    %vm2320 = vcmp.eq.s32.totalorder %v2318, 0
    %v2321 = vxor.u32 %v2316, 2147483648
    %v2322 = vsel %vm2320, %v2315, %v2321
    %vm2323 = vcmp.eq.s32.totalorder %v2318, 2
    %v2324 = vxor.u32 %v2315, 2147483648
    %v2325 = vsel %vm2323, %v2324, %v2316
    %v2326 = vsel %vm2319, %v2322, %v2325
    %v2327 = vsel %vm2317, nan, %v2326
    %v2328 = vand.u32 2147483647, %v1652
    %vm2329 = vcmp.le.f32.partialorder %v2328, 0.7853982
    %vm2330 = vcmp.lt.s32.totalorder %v1652, 0
    %v2331 = vand.u32 %v1652, 2139095040
    %v2332 = vshrl.u32 %v2331, 23
    %v2333 = vsub.s32 %v2332, 127
    %v2334 = vand.u32 2147483647, %v1652
    %v2335 = vand.u32 %v2334, 8388607
    %v2336 = vor.u32 %v2335, 8388608
    %v2337 = vsub.s32 0, %v2336
    %v2338 = vadd.s32 %v2333, 1
    %vm2339 = vcmp.gt.s32.totalorder %v2338, 0
    %v2340 = vsel %vm2339, %v2338, 0
    %v2341 = vshrl.u32 %v2340, 5
    %v2342 = vand.u32 %v2340, 31
    %v2343 = vsub.s32 32, %v2342
    %v2344 = vshrl.u32 683565275, %v2343
    %v2345 = vshll.u32 683565275, %v2342
    %v2346 = vshrl.u32 2475754826, %v2343
    %v2347 = vor.u32 %v2345, %v2346
    %v2348 = vshll.u32 2475754826, %v2342
    %v2349 = vshrl.u32 2131351028, %v2343
    %v2350 = vor.u32 %v2348, %v2349
    %v2351 = vshll.u32 2131351028, %v2342
    %v2352 = vshrl.u32 2102212464, %v2343
    %v2353 = vor.u32 %v2351, %v2352
    %v2354 = vshll.u32 2102212464, %v2342
    %v2355 = vshrl.u32 920167782, %v2343
    %v2356 = vor.u32 %v2354, %v2355
    %v2357 = vshll.u32 920167782, %v2342
    %v2358 = vshrl.u32 1326507024, %v2343
    %v2359 = vor.u32 %v2357, %v2358
    %vm2360 = vcmp.lt.s32.totalorder %v2341, 1
    %vm2361 = vcmp.lt.s32.totalorder %v2341, 2
    %vm2362 = vcmp.lt.s32.totalorder %v2341, 3
    %vm2363 = vcmp.lt.s32.totalorder %v2341, 4
    %v2364 = vsel %vm2360, %v2344, %v2347
    %v2365 = vsel %vm2363, %v2353, 2102212464
    %v2366 = vsel %vm2362, %v2350, %v2365
    %v2367 = vsel %vm2361, %v2364, %v2366
    %v2368 = vsel %vm2360, %v2347, %v2350
    %v2369 = vsel %vm2363, %v2356, 920167782
    %v2370 = vsel %vm2362, %v2353, %v2369
    %v2371 = vsel %vm2361, %v2368, %v2370
    %v2372 = vsel %vm2360, %v2350, %v2353
    %v2373 = vsel %vm2363, %v2359, 1326507024
    %v2374 = vsel %vm2362, %v2356, %v2373
    %v2375 = vsel %vm2361, %v2372, %v2374
    %v2376 = vshll.u32 %v2336, 8
    %v2377 = vmul.u32.u64.compose %v2376, %v2375
    %v2378 = vextract.low.u32 %v2377
    %v2379 = vextract.high.u32 %v2377
    %v2380 = vmul.u32.u64.compose %v2376, %v2371
    %v2381 = vextract.low.u32 %v2380
    %v2382 = vextract.high.u32 %v2380
    %v2383 = vmul.u32 %v2376, %v2367
    %v2384 = vadd.s32 %v2379, %v2381
    %vm2385 = vc.u32 %v2379, %v2381
    %v2386 = vadd.s32 %v2382, 1
    %v2387 = vsel %vm2385, %v2386, %v2382
    %v2388 = vadd.s32 %v2383, %v2387
    %v2389 = vadd.s32 %v2388, 536870912
    %v2390 = vshrl.u32 %v2389, 30
    %v2391 = vshll.u32 %v2390, 30
    %v2392 = vsub.s32 %v2388, %v2391
    %vm2393 = vcmp.lt.s32.totalorder %v2392, 0
    %v2394 = vsub.s32 0, %v2392
    %v2395 = vsel %vm2393, %v2394, %v2392
    %v2396 = vclz %v2395
    %v2397 = vsub.s32 %v2396, 2
    %vm2398 = vcmp.gt.s32.totalorder 0, %v2397
    %v2399 = vsel %vm2398, 0, %v2397
    %v2400 = vsub.s32 32, %v2399
    %v2401 = vshll.u32 %v2392, %v2399
    %v2402 = vshrl.u32 %v2384, %v2400
    %v2403 = vor.u32 %v2401, %v2402
    %v2404 = vsub.s32 4294967266, %v2399
    %v2405 = vadd.s32 %v2404, 127
    %v2406 = vshll.u32 %v2405, 23
    %v2407 = vor.u32 4788187, %v2406
    %v2408 = vand.u32 2147483647, %v2407
    %v2410 = vcvt.s32.f32 %v2403
    %v2411 = vmul.f32 %v2410, %v2408
    %v2412 = vxor.u32 %v2411, 2147483648
    %v2413 = vsel %vm2330, %v2412, %v2411
    %v2414 = vsub.s32 4, %v2390
    %v2415 = vsel %vm2330, %v2414, %v2390
    %v2416 = vsel %vm2329, %v1652, %v2413
    %v2417 = vsel %vm2329, 0, %v2415
    %v2418 = vcosq.f32.pop %v2416
    %v2419 = vsinq.f32.pop %v2416
    %vm2420 = vweird.f32 %v1652
    %v2421 = vand.u32 %v2417, 3
    %vm2422 = vcmp.lt.s32.totalorder %v2421, 2
    %vm2423 = vcmp.eq.s32.totalorder %v2421, 0
    %v2424 = vxor.u32 %v2419, 2147483648
    %v2425 = vsel %vm2423, %v2418, %v2424
    %vm2426 = vcmp.eq.s32.totalorder %v2421, 2
    %v2427 = vxor.u32 %v2418, 2147483648
    %v2428 = vsel %vm2426, %v2427, %v2419
    %v2429 = vsel %vm2422, %v2425, %v2428
    %v2430 = vsel %vm2420, nan, %v2429
    %v2431 = vand.u32 2147483647, %v1653
    %vm2432 = vcmp.le.f32.partialorder %v2431, 0.7853982
    %vm2433 = vcmp.lt.s32.totalorder %v1653, 0
    %v2434 = vand.u32 %v1653, 2139095040
    %v2435 = vshrl.u32 %v2434, 23
    %v2436 = vsub.s32 %v2435, 127
    %v2437 = vand.u32 2147483647, %v1653
    %v2438 = vand.u32 %v2437, 8388607
    %v2439 = vor.u32 %v2438, 8388608
    %v2440 = vsub.s32 0, %v2439
    %v2441 = vadd.s32 %v2436, 1
    %vm2442 = vcmp.gt.s32.totalorder %v2441, 0
    %v2443 = vsel %vm2442, %v2441, 0
    %v2444 = vshrl.u32 %v2443, 5
    %v2445 = vand.u32 %v2443, 31
    %v2446 = vsub.s32 32, %v2445
    %v2447 = vshrl.u32 683565275, %v2446
    %v2448 = vshll.u32 683565275, %v2445
    %v2449 = vshrl.u32 2475754826, %v2446
    %v2450 = vor.u32 %v2448, %v2449
    %v2451 = vshll.u32 2475754826, %v2445
    %v2452 = vshrl.u32 2131351028, %v2446
    %v2453 = vor.u32 %v2451, %v2452
    %v2454 = vshll.u32 2131351028, %v2445
    %v2455 = vshrl.u32 2102212464, %v2446
    %v2456 = vor.u32 %v2454, %v2455
    %v2457 = vshll.u32 2102212464, %v2445
    %v2458 = vshrl.u32 920167782, %v2446
    %v2459 = vor.u32 %v2457, %v2458
    %v2460 = vshll.u32 920167782, %v2445
    %v2461 = vshrl.u32 1326507024, %v2446
    %v2462 = vor.u32 %v2460, %v2461
    %vm2463 = vcmp.lt.s32.totalorder %v2444, 1
    %vm2464 = vcmp.lt.s32.totalorder %v2444, 2
    %vm2465 = vcmp.lt.s32.totalorder %v2444, 3
    %vm2466 = vcmp.lt.s32.totalorder %v2444, 4
    %v2467 = vsel %vm2463, %v2447, %v2450
    %v2468 = vsel %vm2466, %v2456, 2102212464
    %v2469 = vsel %vm2465, %v2453, %v2468
    %v2470 = vsel %vm2464, %v2467, %v2469
    %v2471 = vsel %vm2463, %v2450, %v2453
    %v2472 = vsel %vm2466, %v2459, 920167782
    %v2473 = vsel %vm2465, %v2456, %v2472
    %v2474 = vsel %vm2464, %v2471, %v2473
    %v2475 = vsel %vm2463, %v2453, %v2456
    %v2476 = vsel %vm2466, %v2462, 1326507024
    %v2477 = vsel %vm2465, %v2459, %v2476
    %v2478 = vsel %vm2464, %v2475, %v2477
    %v2479 = vshll.u32 %v2439, 8
    %v2480 = vmul.u32.u64.compose %v2479, %v2478
    %v2481 = vextract.low.u32 %v2480
    %v2482 = vextract.high.u32 %v2480
    %v2483 = vmul.u32.u64.compose %v2479, %v2474
    %v2484 = vextract.low.u32 %v2483
    %v2485 = vextract.high.u32 %v2483
    %v2486 = vmul.u32 %v2479, %v2470
    %v2487 = vadd.s32 %v2482, %v2484
    %vm2488 = vc.u32 %v2482, %v2484
    %v2489 = vadd.s32 %v2485, 1
    %v2490 = vsel %vm2488, %v2489, %v2485
    %v2491 = vadd.s32 %v2486, %v2490
    %v2492 = vadd.s32 %v2491, 536870912
    %v2493 = vshrl.u32 %v2492, 30
    %v2494 = vshll.u32 %v2493, 30
    %v2495 = vsub.s32 %v2491, %v2494
    %vm2496 = vcmp.lt.s32.totalorder %v2495, 0
    %v2497 = vsub.s32 0, %v2495
    %v2498 = vsel %vm2496, %v2497, %v2495
    %v2499 = vclz %v2498
    %v2500 = vsub.s32 %v2499, 2
    %vm2501 = vcmp.gt.s32.totalorder 0, %v2500
    %v2502 = vsel %vm2501, 0, %v2500
    %v2503 = vsub.s32 32, %v2502
    %v2504 = vshll.u32 %v2495, %v2502
    %v2505 = vshrl.u32 %v2487, %v2503
    %v2506 = vor.u32 %v2504, %v2505
    %v2507 = vsub.s32 4294967266, %v2502
    %v2508 = vadd.s32 %v2507, 127
    %v2509 = vshll.u32 %v2508, 23
    %v2510 = vor.u32 4788187, %v2509
    %v2511 = vand.u32 2147483647, %v2510
    %v2513 = vcvt.s32.f32 %v2506
    %v2514 = vmul.f32 %v2513, %v2511
    %v2515 = vxor.u32 %v2514, 2147483648
    %v2516 = vsel %vm2433, %v2515, %v2514
    %v2517 = vsub.s32 4, %v2493
    %v2518 = vsel %vm2433, %v2517, %v2493
    %v2519 = vsel %vm2432, %v1653, %v2516
    %v2520 = vsel %vm2432, 0, %v2518
    %v2521 = vcosq.f32.pop %v2519
    %v2522 = vsinq.f32.pop %v2519
    %vm2523 = vweird.f32 %v1653
    %v2524 = vand.u32 %v2520, 3
    %vm2525 = vcmp.lt.s32.totalorder %v2524, 2
    %vm2526 = vcmp.eq.s32.totalorder %v2524, 0
    %v2527 = vxor.u32 %v2522, 2147483648
    %v2528 = vsel %vm2526, %v2521, %v2527
    %vm2529 = vcmp.eq.s32.totalorder %v2524, 2
    %v2530 = vxor.u32 %v2521, 2147483648
    %v2531 = vsel %vm2529, %v2530, %v2522
    %v2532 = vsel %vm2525, %v2528, %v2531
    %v2533 = vsel %vm2523, nan, %v2532
    %v2534 = vand.u32 2147483647, %v1654
    %vm2535 = vcmp.le.f32.partialorder %v2534, 0.7853982
    %vm2536 = vcmp.lt.s32.totalorder %v1654, 0
    %v2537 = vand.u32 %v1654, 2139095040
    %v2538 = vshrl.u32 %v2537, 23
    %v2539 = vsub.s32 %v2538, 127
    %v2540 = vand.u32 2147483647, %v1654
    %v2541 = vand.u32 %v2540, 8388607
    %v2542 = vor.u32 %v2541, 8388608
    %v2543 = vsub.s32 0, %v2542
    %v2544 = vadd.s32 %v2539, 1
    %vm2545 = vcmp.gt.s32.totalorder %v2544, 0
    %v2546 = vsel %vm2545, %v2544, 0
    %v2547 = vshrl.u32 %v2546, 5
    %v2548 = vand.u32 %v2546, 31
    %v2549 = vsub.s32 32, %v2548
    %v2550 = vshrl.u32 683565275, %v2549
    %v2551 = vshll.u32 683565275, %v2548
    %v2552 = vshrl.u32 2475754826, %v2549
    %v2553 = vor.u32 %v2551, %v2552
    %v2554 = vshll.u32 2475754826, %v2548
    %v2555 = vshrl.u32 2131351028, %v2549
    %v2556 = vor.u32 %v2554, %v2555
    %v2557 = vshll.u32 2131351028, %v2548
    %v2558 = vshrl.u32 2102212464, %v2549
    %v2559 = vor.u32 %v2557, %v2558
    %v2560 = vshll.u32 2102212464, %v2548
    %v2561 = vshrl.u32 920167782, %v2549
    %v2562 = vor.u32 %v2560, %v2561
    %v2563 = vshll.u32 920167782, %v2548
    %v2564 = vshrl.u32 1326507024, %v2549
    %v2565 = vor.u32 %v2563, %v2564
    %vm2566 = vcmp.lt.s32.totalorder %v2547, 1
    %vm2567 = vcmp.lt.s32.totalorder %v2547, 2
    %vm2568 = vcmp.lt.s32.totalorder %v2547, 3
    %vm2569 = vcmp.lt.s32.totalorder %v2547, 4
    %v2570 = vsel %vm2566, %v2550, %v2553
    %v2571 = vsel %vm2569, %v2559, 2102212464
    %v2572 = vsel %vm2568, %v2556, %v2571
    %v2573 = vsel %vm2567, %v2570, %v2572
    %v2574 = vsel %vm2566, %v2553, %v2556
    %v2575 = vsel %vm2569, %v2562, 920167782
    %v2576 = vsel %vm2568, %v2559, %v2575
    %v2577 = vsel %vm2567, %v2574, %v2576
    %v2578 = vsel %vm2566, %v2556, %v2559
    %v2579 = vsel %vm2569, %v2565, 1326507024
    %v2580 = vsel %vm2568, %v2562, %v2579
    %v2581 = vsel %vm2567, %v2578, %v2580
    %v2582 = vshll.u32 %v2542, 8
    %v2583 = vmul.u32.u64.compose %v2582, %v2581
    %v2584 = vextract.low.u32 %v2583
    %v2585 = vextract.high.u32 %v2583
    %v2586 = vmul.u32.u64.compose %v2582, %v2577
    %v2587 = vextract.low.u32 %v2586
    %v2588 = vextract.high.u32 %v2586
    %v2589 = vmul.u32 %v2582, %v2573
    %v2590 = vadd.s32 %v2585, %v2587
    %vm2591 = vc.u32 %v2585, %v2587
    %v2592 = vadd.s32 %v2588, 1
    %v2593 = vsel %vm2591, %v2592, %v2588
    %v2594 = vadd.s32 %v2589, %v2593
    %v2595 = vadd.s32 %v2594, 536870912
    %v2596 = vshrl.u32 %v2595, 30
    %v2597 = vshll.u32 %v2596, 30
    %v2598 = vsub.s32 %v2594, %v2597
    %vm2599 = vcmp.lt.s32.totalorder %v2598, 0
    %v2600 = vsub.s32 0, %v2598
    %v2601 = vsel %vm2599, %v2600, %v2598
    %v2602 = vclz %v2601
    %v2603 = vsub.s32 %v2602, 2
    %vm2604 = vcmp.gt.s32.totalorder 0, %v2603
    %v2605 = vsel %vm2604, 0, %v2603
    %v2606 = vsub.s32 32, %v2605
    %v2607 = vshll.u32 %v2598, %v2605
    %v2608 = vshrl.u32 %v2590, %v2606
    %v2609 = vor.u32 %v2607, %v2608
    %v2610 = vsub.s32 4294967266, %v2605
    %v2611 = vadd.s32 %v2610, 127
    %v2612 = vshll.u32 %v2611, 23
    %v2613 = vor.u32 4788187, %v2612
    %v2614 = vand.u32 2147483647, %v2613
    %v2616 = vcvt.s32.f32 %v2609
    %v2617 = vmul.f32 %v2616, %v2614
    %v2618 = vxor.u32 %v2617, 2147483648
    %v2619 = vsel %vm2536, %v2618, %v2617
    %v2620 = vsub.s32 4, %v2596
    %v2621 = vsel %vm2536, %v2620, %v2596
    %v2622 = vsel %vm2535, %v1654, %v2619
    %v2623 = vsel %vm2535, 0, %v2621
    %v2624 = vcosq.f32.pop %v2622
    %v2625 = vsinq.f32.pop %v2622
    %vm2626 = vweird.f32 %v1654
    %v2627 = vand.u32 %v2623, 3
    %vm2628 = vcmp.lt.s32.totalorder %v2627, 2
    %vm2629 = vcmp.eq.s32.totalorder %v2627, 0
    %v2630 = vxor.u32 %v2625, 2147483648
    %v2631 = vsel %vm2629, %v2624, %v2630
    %vm2632 = vcmp.eq.s32.totalorder %v2627, 2
    %v2633 = vxor.u32 %v2624, 2147483648
    %v2634 = vsel %vm2632, %v2633, %v2625
    %v2635 = vsel %vm2628, %v2631, %v2634
    %v2636 = vsel %vm2626, nan, %v2635
    %v2637 = vand.u32 2147483647, %v1655
    %vm2638 = vcmp.le.f32.partialorder %v2637, 0.7853982
    %vm2639 = vcmp.lt.s32.totalorder %v1655, 0
    %v2640 = vand.u32 %v1655, 2139095040
    %v2641 = vshrl.u32 %v2640, 23
    %v2642 = vsub.s32 %v2641, 127
    %v2643 = vand.u32 2147483647, %v1655
    %v2644 = vand.u32 %v2643, 8388607
    %v2645 = vor.u32 %v2644, 8388608
    %v2646 = vsub.s32 0, %v2645
    %v2647 = vadd.s32 %v2642, 1
    %vm2648 = vcmp.gt.s32.totalorder %v2647, 0
    %v2649 = vsel %vm2648, %v2647, 0
    %v2650 = vshrl.u32 %v2649, 5
    %v2651 = vand.u32 %v2649, 31
    %v2652 = vsub.s32 32, %v2651
    %v2653 = vshrl.u32 683565275, %v2652
    %v2654 = vshll.u32 683565275, %v2651
    %v2655 = vshrl.u32 2475754826, %v2652
    %v2656 = vor.u32 %v2654, %v2655
    %v2657 = vshll.u32 2475754826, %v2651
    %v2658 = vshrl.u32 2131351028, %v2652
    %v2659 = vor.u32 %v2657, %v2658
    %v2660 = vshll.u32 2131351028, %v2651
    %v2661 = vshrl.u32 2102212464, %v2652
    %v2662 = vor.u32 %v2660, %v2661
    %v2663 = vshll.u32 2102212464, %v2651
    %v2664 = vshrl.u32 920167782, %v2652
    %v2665 = vor.u32 %v2663, %v2664
    %v2666 = vshll.u32 920167782, %v2651
    %v2667 = vshrl.u32 1326507024, %v2652
    %v2668 = vor.u32 %v2666, %v2667
    %vm2669 = vcmp.lt.s32.totalorder %v2650, 1
    %vm2670 = vcmp.lt.s32.totalorder %v2650, 2
    %vm2671 = vcmp.lt.s32.totalorder %v2650, 3
    %vm2672 = vcmp.lt.s32.totalorder %v2650, 4
    %v2673 = vsel %vm2669, %v2653, %v2656
    %v2674 = vsel %vm2672, %v2662, 2102212464
    %v2675 = vsel %vm2671, %v2659, %v2674
    %v2676 = vsel %vm2670, %v2673, %v2675
    %v2677 = vsel %vm2669, %v2656, %v2659
    %v2678 = vsel %vm2672, %v2665, 920167782
    %v2679 = vsel %vm2671, %v2662, %v2678
    %v2680 = vsel %vm2670, %v2677, %v2679
    %v2681 = vsel %vm2669, %v2659, %v2662
    %v2682 = vsel %vm2672, %v2668, 1326507024
    %v2683 = vsel %vm2671, %v2665, %v2682
    %v2684 = vsel %vm2670, %v2681, %v2683
    %v2685 = vshll.u32 %v2645, 8
    %v2686 = vmul.u32.u64.compose %v2685, %v2684
    %v2687 = vextract.low.u32 %v2686
    %v2688 = vextract.high.u32 %v2686
    %v2689 = vmul.u32.u64.compose %v2685, %v2680
    %v2690 = vextract.low.u32 %v2689
    %v2691 = vextract.high.u32 %v2689
    %v2692 = vmul.u32 %v2685, %v2676
    %v2693 = vadd.s32 %v2688, %v2690
    %vm2694 = vc.u32 %v2688, %v2690
    %v2695 = vadd.s32 %v2691, 1
    %v2696 = vsel %vm2694, %v2695, %v2691
    %v2697 = vadd.s32 %v2692, %v2696
    %v2698 = vadd.s32 %v2697, 536870912
    %v2699 = vshrl.u32 %v2698, 30
    %v2700 = vshll.u32 %v2699, 30
    %v2701 = vsub.s32 %v2697, %v2700
    %vm2702 = vcmp.lt.s32.totalorder %v2701, 0
    %v2703 = vsub.s32 0, %v2701
    %v2704 = vsel %vm2702, %v2703, %v2701
    %v2705 = vclz %v2704
    %v2706 = vsub.s32 %v2705, 2
    %vm2707 = vcmp.gt.s32.totalorder 0, %v2706
    %v2708 = vsel %vm2707, 0, %v2706
    %v2709 = vsub.s32 32, %v2708
    %v2710 = vshll.u32 %v2701, %v2708
    %v2711 = vshrl.u32 %v2693, %v2709
    %v2712 = vor.u32 %v2710, %v2711
    %v2713 = vsub.s32 4294967266, %v2708
    %v2714 = vadd.s32 %v2713, 127
    %v2715 = vshll.u32 %v2714, 23
    %v2716 = vor.u32 4788187, %v2715
    %v2717 = vand.u32 2147483647, %v2716
    %v2719 = vcvt.s32.f32 %v2712
    %v2720 = vmul.f32 %v2719, %v2717
    %v2721 = vxor.u32 %v2720, 2147483648
    %v2722 = vsel %vm2639, %v2721, %v2720
    %v2723 = vsub.s32 4, %v2699
    %v2724 = vsel %vm2639, %v2723, %v2699
    %v2725 = vsel %vm2638, %v1655, %v2722
    %v2726 = vsel %vm2638, 0, %v2724
    %v2727 = vcosq.f32.pop %v2725
    %v2728 = vsinq.f32.pop %v2725
    %vm2729 = vweird.f32 %v1655
    %v2730 = vand.u32 %v2726, 3
    %vm2731 = vcmp.lt.s32.totalorder %v2730, 2
    %vm2732 = vcmp.eq.s32.totalorder %v2730, 0
    %v2733 = vxor.u32 %v2728, 2147483648
    %v2734 = vsel %vm2732, %v2727, %v2733
    %vm2735 = vcmp.eq.s32.totalorder %v2730, 2
    %v2736 = vxor.u32 %v2727, 2147483648
    %v2737 = vsel %vm2735, %v2736, %v2728
    %v2738 = vsel %vm2731, %v2734, %v2737
    %v2739 = vsel %vm2729, nan, %v2738
    %v2740 = vand.u32 2147483647, %v1656
    %vm2741 = vcmp.le.f32.partialorder %v2740, 0.7853982
    %vm2742 = vcmp.lt.s32.totalorder %v1656, 0
    %v2743 = vand.u32 %v1656, 2139095040
    %v2744 = vshrl.u32 %v2743, 23
    %v2745 = vsub.s32 %v2744, 127
    %v2746 = vand.u32 2147483647, %v1656
    %v2747 = vand.u32 %v2746, 8388607
    %v2748 = vor.u32 %v2747, 8388608
    %v2749 = vsub.s32 0, %v2748
    %v2750 = vadd.s32 %v2745, 1
    %vm2751 = vcmp.gt.s32.totalorder %v2750, 0
    %v2752 = vsel %vm2751, %v2750, 0
    %v2753 = vshrl.u32 %v2752, 5
    %v2754 = vand.u32 %v2752, 31
    %v2755 = vsub.s32 32, %v2754
    %v2756 = vshrl.u32 683565275, %v2755
    %v2757 = vshll.u32 683565275, %v2754
    %v2758 = vshrl.u32 2475754826, %v2755
    %v2759 = vor.u32 %v2757, %v2758
    %v2760 = vshll.u32 2475754826, %v2754
    %v2761 = vshrl.u32 2131351028, %v2755
    %v2762 = vor.u32 %v2760, %v2761
    %v2763 = vshll.u32 2131351028, %v2754
    %v2764 = vshrl.u32 2102212464, %v2755
    %v2765 = vor.u32 %v2763, %v2764
    %v2766 = vshll.u32 2102212464, %v2754
    %v2767 = vshrl.u32 920167782, %v2755
    %v2768 = vor.u32 %v2766, %v2767
    %v2769 = vshll.u32 920167782, %v2754
    %v2770 = vshrl.u32 1326507024, %v2755
    %v2771 = vor.u32 %v2769, %v2770
    %vm2772 = vcmp.lt.s32.totalorder %v2753, 1
    %vm2773 = vcmp.lt.s32.totalorder %v2753, 2
    %vm2774 = vcmp.lt.s32.totalorder %v2753, 3
    %vm2775 = vcmp.lt.s32.totalorder %v2753, 4
    %v2776 = vsel %vm2772, %v2756, %v2759
    %v2777 = vsel %vm2775, %v2765, 2102212464
    %v2778 = vsel %vm2774, %v2762, %v2777
    %v2779 = vsel %vm2773, %v2776, %v2778
    %v2780 = vsel %vm2772, %v2759, %v2762
    %v2781 = vsel %vm2775, %v2768, 920167782
    %v2782 = vsel %vm2774, %v2765, %v2781
    %v2783 = vsel %vm2773, %v2780, %v2782
    %v2784 = vsel %vm2772, %v2762, %v2765
    %v2785 = vsel %vm2775, %v2771, 1326507024
    %v2786 = vsel %vm2774, %v2768, %v2785
    %v2787 = vsel %vm2773, %v2784, %v2786
    %v2788 = vshll.u32 %v2748, 8
    %v2789 = vmul.u32.u64.compose %v2788, %v2787
    %v2790 = vextract.low.u32 %v2789
    %v2791 = vextract.high.u32 %v2789
    %v2792 = vmul.u32.u64.compose %v2788, %v2783
    %v2793 = vextract.low.u32 %v2792
    %v2794 = vextract.high.u32 %v2792
    %v2795 = vmul.u32 %v2788, %v2779
    %v2796 = vadd.s32 %v2791, %v2793
    %vm2797 = vc.u32 %v2791, %v2793
    %v2798 = vadd.s32 %v2794, 1
    %v2799 = vsel %vm2797, %v2798, %v2794
    %v2800 = vadd.s32 %v2795, %v2799
    %v2801 = vadd.s32 %v2800, 536870912
    %v2802 = vshrl.u32 %v2801, 30
    %v2803 = vshll.u32 %v2802, 30
    %v2804 = vsub.s32 %v2800, %v2803
    %vm2805 = vcmp.lt.s32.totalorder %v2804, 0
    %v2806 = vsub.s32 0, %v2804
    %v2807 = vsel %vm2805, %v2806, %v2804
    %v2808 = vclz %v2807
    %v2809 = vsub.s32 %v2808, 2
    %vm2810 = vcmp.gt.s32.totalorder 0, %v2809
    %v2811 = vsel %vm2810, 0, %v2809
    %v2812 = vsub.s32 32, %v2811
    %v2813 = vshll.u32 %v2804, %v2811
    %v2814 = vshrl.u32 %v2796, %v2812
    %v2815 = vor.u32 %v2813, %v2814
    %v2816 = vsub.s32 4294967266, %v2811
    %v2817 = vadd.s32 %v2816, 127
    %v2818 = vshll.u32 %v2817, 23
    %v2819 = vor.u32 4788187, %v2818
    %v2820 = vand.u32 2147483647, %v2819
    %v2822 = vcvt.s32.f32 %v2815
    %v2823 = vmul.f32 %v2822, %v2820
    %v2824 = vxor.u32 %v2823, 2147483648
    %v2825 = vsel %vm2742, %v2824, %v2823
    %v2826 = vsub.s32 4, %v2802
    %v2827 = vsel %vm2742, %v2826, %v2802
    %v2828 = vsel %vm2741, %v1656, %v2825
    %v2829 = vsel %vm2741, 0, %v2827
    %v2830 = vcosq.f32.pop %v2828
    %v2831 = vsinq.f32.pop %v2828
    %vm2832 = vweird.f32 %v1656
    %v2833 = vand.u32 %v2829, 3
    %vm2834 = vcmp.lt.s32.totalorder %v2833, 2
    %vm2835 = vcmp.eq.s32.totalorder %v2833, 0
    %v2836 = vxor.u32 %v2831, 2147483648
    %v2837 = vsel %vm2835, %v2830, %v2836
    %vm2838 = vcmp.eq.s32.totalorder %v2833, 2
    %v2839 = vxor.u32 %v2830, 2147483648
    %v2840 = vsel %vm2838, %v2839, %v2831
    %v2841 = vsel %vm2834, %v2837, %v2840
    %v2842 = vsel %vm2832, nan, %v2841
    %v2843 = vand.u32 2147483647, %v1657
    %vm2844 = vcmp.le.f32.partialorder %v2843, 0.7853982
    %vm2845 = vcmp.lt.s32.totalorder %v1657, 0
    %v2846 = vand.u32 %v1657, 2139095040
    %v2847 = vshrl.u32 %v2846, 23
    %v2848 = vsub.s32 %v2847, 127
    %v2849 = vand.u32 2147483647, %v1657
    %v2850 = vand.u32 %v2849, 8388607
    %v2851 = vor.u32 %v2850, 8388608
    %v2852 = vsub.s32 0, %v2851
    %v2853 = vadd.s32 %v2848, 1
    %vm2854 = vcmp.gt.s32.totalorder %v2853, 0
    %v2855 = vsel %vm2854, %v2853, 0
    %v2856 = vshrl.u32 %v2855, 5
    %v2857 = vand.u32 %v2855, 31
    %v2858 = vsub.s32 32, %v2857
    %v2859 = vshrl.u32 683565275, %v2858
    %v2860 = vshll.u32 683565275, %v2857
    %v2861 = vshrl.u32 2475754826, %v2858
    %v2862 = vor.u32 %v2860, %v2861
    %v2863 = vshll.u32 2475754826, %v2857
    %v2864 = vshrl.u32 2131351028, %v2858
    %v2865 = vor.u32 %v2863, %v2864
    %v2866 = vshll.u32 2131351028, %v2857
    %v2867 = vshrl.u32 2102212464, %v2858
    %v2868 = vor.u32 %v2866, %v2867
    %v2869 = vshll.u32 2102212464, %v2857
    %v2870 = vshrl.u32 920167782, %v2858
    %v2871 = vor.u32 %v2869, %v2870
    %v2872 = vshll.u32 920167782, %v2857
    %v2873 = vshrl.u32 1326507024, %v2858
    %v2874 = vor.u32 %v2872, %v2873
    %vm2875 = vcmp.lt.s32.totalorder %v2856, 1
    %vm2876 = vcmp.lt.s32.totalorder %v2856, 2
    %vm2877 = vcmp.lt.s32.totalorder %v2856, 3
    %vm2878 = vcmp.lt.s32.totalorder %v2856, 4
    %v2879 = vsel %vm2875, %v2859, %v2862
    %v2880 = vsel %vm2878, %v2868, 2102212464
    %v2881 = vsel %vm2877, %v2865, %v2880
    %v2882 = vsel %vm2876, %v2879, %v2881
    %v2883 = vsel %vm2875, %v2862, %v2865
    %v2884 = vsel %vm2878, %v2871, 920167782
    %v2885 = vsel %vm2877, %v2868, %v2884
    %v2886 = vsel %vm2876, %v2883, %v2885
    %v2887 = vsel %vm2875, %v2865, %v2868
    %v2888 = vsel %vm2878, %v2874, 1326507024
    %v2889 = vsel %vm2877, %v2871, %v2888
    %v2890 = vsel %vm2876, %v2887, %v2889
    %v2891 = vshll.u32 %v2851, 8
    %v2892 = vmul.u32.u64.compose %v2891, %v2890
    %v2893 = vextract.low.u32 %v2892
    %v2894 = vextract.high.u32 %v2892
    %v2895 = vmul.u32.u64.compose %v2891, %v2886
    %v2896 = vextract.low.u32 %v2895
    %v2897 = vextract.high.u32 %v2895
    %v2898 = vmul.u32 %v2891, %v2882
    %v2899 = vadd.s32 %v2894, %v2896
    %vm2900 = vc.u32 %v2894, %v2896
    %v2901 = vadd.s32 %v2897, 1
    %v2902 = vsel %vm2900, %v2901, %v2897
    %v2903 = vadd.s32 %v2898, %v2902
    %v2904 = vadd.s32 %v2903, 536870912
    %v2905 = vshrl.u32 %v2904, 30
    %v2906 = vshll.u32 %v2905, 30
    %v2907 = vsub.s32 %v2903, %v2906
    %vm2908 = vcmp.lt.s32.totalorder %v2907, 0
    %v2909 = vsub.s32 0, %v2907
    %v2910 = vsel %vm2908, %v2909, %v2907
    %v2911 = vclz %v2910
    %v2912 = vsub.s32 %v2911, 2
    %vm2913 = vcmp.gt.s32.totalorder 0, %v2912
    %v2914 = vsel %vm2913, 0, %v2912
    %v2915 = vsub.s32 32, %v2914
    %v2916 = vshll.u32 %v2907, %v2914
    %v2917 = vshrl.u32 %v2899, %v2915
    %v2918 = vor.u32 %v2916, %v2917
    %v2919 = vsub.s32 4294967266, %v2914
    %v2920 = vadd.s32 %v2919, 127
    %v2921 = vshll.u32 %v2920, 23
    %v2922 = vor.u32 4788187, %v2921
    %v2923 = vand.u32 2147483647, %v2922
    %v2925 = vcvt.s32.f32 %v2918
    %v2926 = vmul.f32 %v2925, %v2923
    %v2927 = vxor.u32 %v2926, 2147483648
    %v2928 = vsel %vm2845, %v2927, %v2926
    %v2929 = vsub.s32 4, %v2905
    %v2930 = vsel %vm2845, %v2929, %v2905
    %v2931 = vsel %vm2844, %v1657, %v2928
    %v2932 = vsel %vm2844, 0, %v2930
    %v2933 = vcosq.f32.pop %v2931
    %v2934 = vsinq.f32.pop %v2931
    %vm2935 = vweird.f32 %v1657
    %v2936 = vand.u32 %v2932, 3
    %vm2937 = vcmp.lt.s32.totalorder %v2936, 2
    %vm2938 = vcmp.eq.s32.totalorder %v2936, 0
    %v2939 = vxor.u32 %v2934, 2147483648
    %v2940 = vsel %vm2938, %v2933, %v2939
    %vm2941 = vcmp.eq.s32.totalorder %v2936, 2
    %v2942 = vxor.u32 %v2933, 2147483648
    %v2943 = vsel %vm2941, %v2942, %v2934
    %v2944 = vsel %vm2937, %v2940, %v2943
    %v2945 = vsel %vm2935, nan, %v2944
    %v2946 = vand.u32 2147483647, %v1658
    %vm2947 = vcmp.le.f32.partialorder %v2946, 0.7853982
    %vm2948 = vcmp.lt.s32.totalorder %v1658, 0
    %v2949 = vand.u32 %v1658, 2139095040
    %v2950 = vshrl.u32 %v2949, 23
    %v2951 = vsub.s32 %v2950, 127
    %v2952 = vand.u32 2147483647, %v1658
    %v2953 = vand.u32 %v2952, 8388607
    %v2954 = vor.u32 %v2953, 8388608
    %v2955 = vsub.s32 0, %v2954
    %v2956 = vadd.s32 %v2951, 1
    %vm2957 = vcmp.gt.s32.totalorder %v2956, 0
    %v2958 = vsel %vm2957, %v2956, 0
    %v2959 = vshrl.u32 %v2958, 5
    %v2960 = vand.u32 %v2958, 31
    %v2961 = vsub.s32 32, %v2960
    %v2962 = vshrl.u32 683565275, %v2961
    %v2963 = vshll.u32 683565275, %v2960
    %v2964 = vshrl.u32 2475754826, %v2961
    %v2965 = vor.u32 %v2963, %v2964
    %v2966 = vshll.u32 2475754826, %v2960
    %v2967 = vshrl.u32 2131351028, %v2961
    %v2968 = vor.u32 %v2966, %v2967
    %v2969 = vshll.u32 2131351028, %v2960
    %v2970 = vshrl.u32 2102212464, %v2961
    %v2971 = vor.u32 %v2969, %v2970
    %v2972 = vshll.u32 2102212464, %v2960
    %v2973 = vshrl.u32 920167782, %v2961
    %v2974 = vor.u32 %v2972, %v2973
    %v2975 = vshll.u32 920167782, %v2960
    %v2976 = vshrl.u32 1326507024, %v2961
    %v2977 = vor.u32 %v2975, %v2976
    %vm2978 = vcmp.lt.s32.totalorder %v2959, 1
    %vm2979 = vcmp.lt.s32.totalorder %v2959, 2
    %vm2980 = vcmp.lt.s32.totalorder %v2959, 3
    %vm2981 = vcmp.lt.s32.totalorder %v2959, 4
    %v2982 = vsel %vm2978, %v2962, %v2965
    %v2983 = vsel %vm2981, %v2971, 2102212464
    %v2984 = vsel %vm2980, %v2968, %v2983
    %v2985 = vsel %vm2979, %v2982, %v2984
    %v2986 = vsel %vm2978, %v2965, %v2968
    %v2987 = vsel %vm2981, %v2974, 920167782
    %v2988 = vsel %vm2980, %v2971, %v2987
    %v2989 = vsel %vm2979, %v2986, %v2988
    %v2990 = vsel %vm2978, %v2968, %v2971
    %v2991 = vsel %vm2981, %v2977, 1326507024
    %v2992 = vsel %vm2980, %v2974, %v2991
    %v2993 = vsel %vm2979, %v2990, %v2992
    %v2994 = vshll.u32 %v2954, 8
    %v2995 = vmul.u32.u64.compose %v2994, %v2993
    %v2996 = vextract.low.u32 %v2995
    %v2997 = vextract.high.u32 %v2995
    %v2998 = vmul.u32.u64.compose %v2994, %v2989
    %v2999 = vextract.low.u32 %v2998
    %v3000 = vextract.high.u32 %v2998
    %v3001 = vmul.u32 %v2994, %v2985
    %v3002 = vadd.s32 %v2997, %v2999
    %vm3003 = vc.u32 %v2997, %v2999
    %v3004 = vadd.s32 %v3000, 1
    %v3005 = vsel %vm3003, %v3004, %v3000
    %v3006 = vadd.s32 %v3001, %v3005
    %v3007 = vadd.s32 %v3006, 536870912
    %v3008 = vshrl.u32 %v3007, 30
    %v3009 = vshll.u32 %v3008, 30
    %v3010 = vsub.s32 %v3006, %v3009
    %vm3011 = vcmp.lt.s32.totalorder %v3010, 0
    %v3012 = vsub.s32 0, %v3010
    %v3013 = vsel %vm3011, %v3012, %v3010
    %v3014 = vclz %v3013
    %v3015 = vsub.s32 %v3014, 2
    %vm3016 = vcmp.gt.s32.totalorder 0, %v3015
    %v3017 = vsel %vm3016, 0, %v3015
    %v3018 = vsub.s32 32, %v3017
    %v3019 = vshll.u32 %v3010, %v3017
    %v3020 = vshrl.u32 %v3002, %v3018
    %v3021 = vor.u32 %v3019, %v3020
    %v3022 = vsub.s32 4294967266, %v3017
    %v3023 = vadd.s32 %v3022, 127
    %v3024 = vshll.u32 %v3023, 23
    %v3025 = vor.u32 4788187, %v3024
    %v3026 = vand.u32 2147483647, %v3025
    %v3028 = vcvt.s32.f32 %v3021
    %v3029 = vmul.f32 %v3028, %v3026
    %v3030 = vxor.u32 %v3029, 2147483648
    %v3031 = vsel %vm2948, %v3030, %v3029
    %v3032 = vsub.s32 4, %v3008
    %v3033 = vsel %vm2948, %v3032, %v3008
    %v3034 = vsel %vm2947, %v1658, %v3031
    %v3035 = vsel %vm2947, 0, %v3033
    %v3036 = vcosq.f32.pop %v3034
    %v3037 = vsinq.f32.pop %v3034
    %vm3038 = vweird.f32 %v1658
    %v3039 = vand.u32 %v3035, 3
    %vm3040 = vcmp.lt.s32.totalorder %v3039, 2
    %vm3041 = vcmp.eq.s32.totalorder %v3039, 0
    %v3042 = vxor.u32 %v3037, 2147483648
    %v3043 = vsel %vm3041, %v3036, %v3042
    %vm3044 = vcmp.eq.s32.totalorder %v3039, 2
    %v3045 = vxor.u32 %v3036, 2147483648
    %v3046 = vsel %vm3044, %v3045, %v3037
    %v3047 = vsel %vm3040, %v3043, %v3046
    %v3048 = vsel %vm3038, nan, %v3047
    %v3049 = vand.u32 2147483647, %v1659
    %vm3050 = vcmp.le.f32.partialorder %v3049, 0.7853982
    %vm3051 = vcmp.lt.s32.totalorder %v1659, 0
    %v3052 = vand.u32 %v1659, 2139095040
    %v3053 = vshrl.u32 %v3052, 23
    %v3054 = vsub.s32 %v3053, 127
    %v3055 = vand.u32 2147483647, %v1659
    %v3056 = vand.u32 %v3055, 8388607
    %v3057 = vor.u32 %v3056, 8388608
    %v3058 = vsub.s32 0, %v3057
    %v3059 = vadd.s32 %v3054, 1
    %vm3060 = vcmp.gt.s32.totalorder %v3059, 0
    %v3061 = vsel %vm3060, %v3059, 0
    %v3062 = vshrl.u32 %v3061, 5
    %v3063 = vand.u32 %v3061, 31
    %v3064 = vsub.s32 32, %v3063
    %v3065 = vshrl.u32 683565275, %v3064
    %v3066 = vshll.u32 683565275, %v3063
    %v3067 = vshrl.u32 2475754826, %v3064
    %v3068 = vor.u32 %v3066, %v3067
    %v3069 = vshll.u32 2475754826, %v3063
    %v3070 = vshrl.u32 2131351028, %v3064
    %v3071 = vor.u32 %v3069, %v3070
    %v3072 = vshll.u32 2131351028, %v3063
    %v3073 = vshrl.u32 2102212464, %v3064
    %v3074 = vor.u32 %v3072, %v3073
    %v3075 = vshll.u32 2102212464, %v3063
    %v3076 = vshrl.u32 920167782, %v3064
    %v3077 = vor.u32 %v3075, %v3076
    %v3078 = vshll.u32 920167782, %v3063
    %v3079 = vshrl.u32 1326507024, %v3064
    %v3080 = vor.u32 %v3078, %v3079
    %vm3081 = vcmp.lt.s32.totalorder %v3062, 1
    %vm3082 = vcmp.lt.s32.totalorder %v3062, 2
    %vm3083 = vcmp.lt.s32.totalorder %v3062, 3
    %vm3084 = vcmp.lt.s32.totalorder %v3062, 4
    %v3085 = vsel %vm3081, %v3065, %v3068
    %v3086 = vsel %vm3084, %v3074, 2102212464
    %v3087 = vsel %vm3083, %v3071, %v3086
    %v3088 = vsel %vm3082, %v3085, %v3087
    %v3089 = vsel %vm3081, %v3068, %v3071
    %v3090 = vsel %vm3084, %v3077, 920167782
    %v3091 = vsel %vm3083, %v3074, %v3090
    %v3092 = vsel %vm3082, %v3089, %v3091
    %v3093 = vsel %vm3081, %v3071, %v3074
    %v3094 = vsel %vm3084, %v3080, 1326507024
    %v3095 = vsel %vm3083, %v3077, %v3094
    %v3096 = vsel %vm3082, %v3093, %v3095
    %v3097 = vshll.u32 %v3057, 8
    %v3098 = vmul.u32.u64.compose %v3097, %v3096
    %v3099 = vextract.low.u32 %v3098
    %v3100 = vextract.high.u32 %v3098
    %v3101 = vmul.u32.u64.compose %v3097, %v3092
    %v3102 = vextract.low.u32 %v3101
    %v3103 = vextract.high.u32 %v3101
    %v3104 = vmul.u32 %v3097, %v3088
    %v3105 = vadd.s32 %v3100, %v3102
    %vm3106 = vc.u32 %v3100, %v3102
    %v3107 = vadd.s32 %v3103, 1
    %v3108 = vsel %vm3106, %v3107, %v3103
    %v3109 = vadd.s32 %v3104, %v3108
    %v3110 = vadd.s32 %v3109, 536870912
    %v3111 = vshrl.u32 %v3110, 30
    %v3112 = vshll.u32 %v3111, 30
    %v3113 = vsub.s32 %v3109, %v3112
    %vm3114 = vcmp.lt.s32.totalorder %v3113, 0
    %v3115 = vsub.s32 0, %v3113
    %v3116 = vsel %vm3114, %v3115, %v3113
    %v3117 = vclz %v3116
    %v3118 = vsub.s32 %v3117, 2
    %vm3119 = vcmp.gt.s32.totalorder 0, %v3118
    %v3120 = vsel %vm3119, 0, %v3118
    %v3121 = vsub.s32 32, %v3120
    %v3122 = vshll.u32 %v3113, %v3120
    %v3123 = vshrl.u32 %v3105, %v3121
    %v3124 = vor.u32 %v3122, %v3123
    %v3125 = vsub.s32 4294967266, %v3120
    %v3126 = vadd.s32 %v3125, 127
    %v3127 = vshll.u32 %v3126, 23
    %v3128 = vor.u32 4788187, %v3127
    %v3129 = vand.u32 2147483647, %v3128
    %v3131 = vcvt.s32.f32 %v3124
    %v3132 = vmul.f32 %v3131, %v3129
    %v3133 = vxor.u32 %v3132, 2147483648
    %v3134 = vsel %vm3051, %v3133, %v3132
    %v3135 = vsub.s32 4, %v3111
    %v3136 = vsel %vm3051, %v3135, %v3111
    %v3137 = vsel %vm3050, %v1659, %v3134
    %v3138 = vsel %vm3050, 0, %v3136
    %v3139 = vcosq.f32.pop %v3137
    %v3140 = vsinq.f32.pop %v3137
    %vm3141 = vweird.f32 %v1659
    %v3142 = vand.u32 %v3138, 3
    %vm3143 = vcmp.lt.s32.totalorder %v3142, 2
    %vm3144 = vcmp.eq.s32.totalorder %v3142, 0
    %v3145 = vxor.u32 %v3140, 2147483648
    %v3146 = vsel %vm3144, %v3139, %v3145
    %vm3147 = vcmp.eq.s32.totalorder %v3142, 2
    %v3148 = vxor.u32 %v3139, 2147483648
    %v3149 = vsel %vm3147, %v3148, %v3140
    %v3150 = vsel %vm3143, %v3146, %v3149
    %v3151 = vsel %vm3141, nan, %v3150
    %v3152 = vand.u32 2147483647, %v1660
    %vm3153 = vcmp.le.f32.partialorder %v3152, 0.7853982
    %vm3154 = vcmp.lt.s32.totalorder %v1660, 0
    %v3155 = vand.u32 %v1660, 2139095040
    %v3156 = vshrl.u32 %v3155, 23
    %v3157 = vsub.s32 %v3156, 127
    %v3158 = vand.u32 2147483647, %v1660
    %v3159 = vand.u32 %v3158, 8388607
    %v3160 = vor.u32 %v3159, 8388608
    %v3161 = vsub.s32 0, %v3160
    %v3162 = vadd.s32 %v3157, 1
    %vm3163 = vcmp.gt.s32.totalorder %v3162, 0
    %v3164 = vsel %vm3163, %v3162, 0
    %v3165 = vshrl.u32 %v3164, 5
    %v3166 = vand.u32 %v3164, 31
    %v3167 = vsub.s32 32, %v3166
    %v3168 = vshrl.u32 683565275, %v3167
    %v3169 = vshll.u32 683565275, %v3166
    %v3170 = vshrl.u32 2475754826, %v3167
    %v3171 = vor.u32 %v3169, %v3170
    %v3172 = vshll.u32 2475754826, %v3166
    %v3173 = vshrl.u32 2131351028, %v3167
    %v3174 = vor.u32 %v3172, %v3173
    %v3175 = vshll.u32 2131351028, %v3166
    %v3176 = vshrl.u32 2102212464, %v3167
    %v3177 = vor.u32 %v3175, %v3176
    %v3178 = vshll.u32 2102212464, %v3166
    %v3179 = vshrl.u32 920167782, %v3167
    %v3180 = vor.u32 %v3178, %v3179
    %v3181 = vshll.u32 920167782, %v3166
    %v3182 = vshrl.u32 1326507024, %v3167
    %v3183 = vor.u32 %v3181, %v3182
    %vm3184 = vcmp.lt.s32.totalorder %v3165, 1
    %vm3185 = vcmp.lt.s32.totalorder %v3165, 2
    %vm3186 = vcmp.lt.s32.totalorder %v3165, 3
    %vm3187 = vcmp.lt.s32.totalorder %v3165, 4
    %v3188 = vsel %vm3184, %v3168, %v3171
    %v3189 = vsel %vm3187, %v3177, 2102212464
    %v3190 = vsel %vm3186, %v3174, %v3189
    %v3191 = vsel %vm3185, %v3188, %v3190
    %v3192 = vsel %vm3184, %v3171, %v3174
    %v3193 = vsel %vm3187, %v3180, 920167782
    %v3194 = vsel %vm3186, %v3177, %v3193
    %v3195 = vsel %vm3185, %v3192, %v3194
    %v3196 = vsel %vm3184, %v3174, %v3177
    %v3197 = vsel %vm3187, %v3183, 1326507024
    %v3198 = vsel %vm3186, %v3180, %v3197
    %v3199 = vsel %vm3185, %v3196, %v3198
    %v3200 = vshll.u32 %v3160, 8
    %v3201 = vmul.u32.u64.compose %v3200, %v3199
    %v3202 = vextract.low.u32 %v3201
    %v3203 = vextract.high.u32 %v3201
    %v3204 = vmul.u32.u64.compose %v3200, %v3195
    %v3205 = vextract.low.u32 %v3204
    %v3206 = vextract.high.u32 %v3204
    %v3207 = vmul.u32 %v3200, %v3191
    %v3208 = vadd.s32 %v3203, %v3205
    %vm3209 = vc.u32 %v3203, %v3205
    %v3210 = vadd.s32 %v3206, 1
    %v3211 = vsel %vm3209, %v3210, %v3206
    %v3212 = vadd.s32 %v3207, %v3211
    %v3213 = vadd.s32 %v3212, 536870912
    %v3214 = vshrl.u32 %v3213, 30
    %v3215 = vshll.u32 %v3214, 30
    %v3216 = vsub.s32 %v3212, %v3215
    %vm3217 = vcmp.lt.s32.totalorder %v3216, 0
    %v3218 = vsub.s32 0, %v3216
    %v3219 = vsel %vm3217, %v3218, %v3216
    %v3220 = vclz %v3219
    %v3221 = vsub.s32 %v3220, 2
    %vm3222 = vcmp.gt.s32.totalorder 0, %v3221
    %v3223 = vsel %vm3222, 0, %v3221
    %v3224 = vsub.s32 32, %v3223
    %v3225 = vshll.u32 %v3216, %v3223
    %v3226 = vshrl.u32 %v3208, %v3224
    %v3227 = vor.u32 %v3225, %v3226
    %v3228 = vsub.s32 4294967266, %v3223
    %v3229 = vadd.s32 %v3228, 127
    %v3230 = vshll.u32 %v3229, 23
    %v3231 = vor.u32 4788187, %v3230
    %v3232 = vand.u32 2147483647, %v3231
    %v3234 = vcvt.s32.f32 %v3227
    %v3235 = vmul.f32 %v3234, %v3232
    %v3236 = vxor.u32 %v3235, 2147483648
    %v3237 = vsel %vm3154, %v3236, %v3235
    %v3238 = vsub.s32 4, %v3214
    %v3239 = vsel %vm3154, %v3238, %v3214
    %v3240 = vsel %vm3153, %v1660, %v3237
    %v3241 = vsel %vm3153, 0, %v3239
    %v3242 = vcosq.f32.pop %v3240
    %v3243 = vsinq.f32.pop %v3240
    %vm3244 = vweird.f32 %v1660
    %v3245 = vand.u32 %v3241, 3
    %vm3246 = vcmp.lt.s32.totalorder %v3245, 2
    %vm3247 = vcmp.eq.s32.totalorder %v3245, 0
    %v3248 = vxor.u32 %v3243, 2147483648
    %v3249 = vsel %vm3247, %v3242, %v3248
    %vm3250 = vcmp.eq.s32.totalorder %v3245, 2
    %v3251 = vxor.u32 %v3242, 2147483648
    %v3252 = vsel %vm3250, %v3251, %v3243
    %v3253 = vsel %vm3246, %v3249, %v3252
    %v3254 = vsel %vm3244, nan, %v3253
    %v3255 = vand.u32 2147483647, %v1661
    %vm3256 = vcmp.le.f32.partialorder %v3255, 0.7853982
    %vm3257 = vcmp.lt.s32.totalorder %v1661, 0
    %v3258 = vand.u32 %v1661, 2139095040
    %v3259 = vshrl.u32 %v3258, 23
    %v3260 = vsub.s32 %v3259, 127
    %v3261 = vand.u32 2147483647, %v1661
    %v3262 = vand.u32 %v3261, 8388607
    %v3263 = vor.u32 %v3262, 8388608
    %v3264 = vsub.s32 0, %v3263
    %v3265 = vadd.s32 %v3260, 1
    %vm3266 = vcmp.gt.s32.totalorder %v3265, 0
    %v3267 = vsel %vm3266, %v3265, 0
    %v3268 = vshrl.u32 %v3267, 5
    %v3269 = vand.u32 %v3267, 31
    %v3270 = vsub.s32 32, %v3269
    %v3271 = vshrl.u32 683565275, %v3270
    %v3272 = vshll.u32 683565275, %v3269
    %v3273 = vshrl.u32 2475754826, %v3270
    %v3274 = vor.u32 %v3272, %v3273
    %v3275 = vshll.u32 2475754826, %v3269
    %v3276 = vshrl.u32 2131351028, %v3270
    %v3277 = vor.u32 %v3275, %v3276
    %v3278 = vshll.u32 2131351028, %v3269
    %v3279 = vshrl.u32 2102212464, %v3270
    %v3280 = vor.u32 %v3278, %v3279
    %v3281 = vshll.u32 2102212464, %v3269
    %v3282 = vshrl.u32 920167782, %v3270
    %v3283 = vor.u32 %v3281, %v3282
    %v3284 = vshll.u32 920167782, %v3269
    %v3285 = vshrl.u32 1326507024, %v3270
    %v3286 = vor.u32 %v3284, %v3285
    %vm3287 = vcmp.lt.s32.totalorder %v3268, 1
    %vm3288 = vcmp.lt.s32.totalorder %v3268, 2
    %vm3289 = vcmp.lt.s32.totalorder %v3268, 3
    %vm3290 = vcmp.lt.s32.totalorder %v3268, 4
    %v3291 = vsel %vm3287, %v3271, %v3274
    %v3292 = vsel %vm3290, %v3280, 2102212464
    %v3293 = vsel %vm3289, %v3277, %v3292
    %v3294 = vsel %vm3288, %v3291, %v3293
    %v3295 = vsel %vm3287, %v3274, %v3277
    %v3296 = vsel %vm3290, %v3283, 920167782
    %v3297 = vsel %vm3289, %v3280, %v3296
    %v3298 = vsel %vm3288, %v3295, %v3297
    %v3299 = vsel %vm3287, %v3277, %v3280
    %v3300 = vsel %vm3290, %v3286, 1326507024
    %v3301 = vsel %vm3289, %v3283, %v3300
    %v3302 = vsel %vm3288, %v3299, %v3301
    %v3303 = vshll.u32 %v3263, 8
    %v3304 = vmul.u32.u64.compose %v3303, %v3302
    %v3305 = vextract.low.u32 %v3304
    %v3306 = vextract.high.u32 %v3304
    %v3307 = vmul.u32.u64.compose %v3303, %v3298
    %v3308 = vextract.low.u32 %v3307
    %v3309 = vextract.high.u32 %v3307
    %v3310 = vmul.u32 %v3303, %v3294
    %v3311 = vadd.s32 %v3306, %v3308
    %vm3312 = vc.u32 %v3306, %v3308
    %v3313 = vadd.s32 %v3309, 1
    %v3314 = vsel %vm3312, %v3313, %v3309
    %v3315 = vadd.s32 %v3310, %v3314
    %v3316 = vadd.s32 %v3315, 536870912
    %v3317 = vshrl.u32 %v3316, 30
    %v3318 = vshll.u32 %v3317, 30
    %v3319 = vsub.s32 %v3315, %v3318
    %vm3320 = vcmp.lt.s32.totalorder %v3319, 0
    %v3321 = vsub.s32 0, %v3319
    %v3322 = vsel %vm3320, %v3321, %v3319
    %v3323 = vclz %v3322
    %v3324 = vsub.s32 %v3323, 2
    %vm3325 = vcmp.gt.s32.totalorder 0, %v3324
    %v3326 = vsel %vm3325, 0, %v3324
    %v3327 = vsub.s32 32, %v3326
    %v3328 = vshll.u32 %v3319, %v3326
    %v3329 = vshrl.u32 %v3311, %v3327
    %v3330 = vor.u32 %v3328, %v3329
    %v3331 = vsub.s32 4294967266, %v3326
    %v3332 = vadd.s32 %v3331, 127
    %v3333 = vshll.u32 %v3332, 23
    %v3334 = vor.u32 4788187, %v3333
    %v3335 = vand.u32 2147483647, %v3334
    %v3337 = vcvt.s32.f32 %v3330
    %v3338 = vmul.f32 %v3337, %v3335
    %v3339 = vxor.u32 %v3338, 2147483648
    %v3340 = vsel %vm3257, %v3339, %v3338
    %v3341 = vsub.s32 4, %v3317
    %v3342 = vsel %vm3257, %v3341, %v3317
    %v3343 = vsel %vm3256, %v1661, %v3340
    %v3344 = vsel %vm3256, 0, %v3342
    %v3345 = vcosq.f32.pop %v3343
    %v3346 = vsinq.f32.pop %v3343
    %vm3347 = vweird.f32 %v1661
    %v3348 = vand.u32 %v3344, 3
    %vm3349 = vcmp.lt.s32.totalorder %v3348, 2
    %vm3350 = vcmp.eq.s32.totalorder %v3348, 0
    %v3351 = vxor.u32 %v3346, 2147483648
    %v3352 = vsel %vm3350, %v3345, %v3351
    %vm3353 = vcmp.eq.s32.totalorder %v3348, 2
    %v3354 = vxor.u32 %v3345, 2147483648
    %v3355 = vsel %vm3353, %v3354, %v3346
    %v3356 = vsel %vm3349, %v3352, %v3355
    %v3357 = vsel %vm3347, nan, %v3356
    %v3358 = vand.u32 2147483647, %v1662
    %vm3359 = vcmp.le.f32.partialorder %v3358, 0.7853982
    %vm3360 = vcmp.lt.s32.totalorder %v1662, 0
    %v3361 = vand.u32 %v1662, 2139095040
    %v3362 = vshrl.u32 %v3361, 23
    %v3363 = vsub.s32 %v3362, 127
    %v3364 = vand.u32 2147483647, %v1662
    %v3365 = vand.u32 %v3364, 8388607
    %v3366 = vor.u32 %v3365, 8388608
    %v3367 = vsub.s32 0, %v3366
    %v3368 = vadd.s32 %v3363, 1
    %vm3369 = vcmp.gt.s32.totalorder %v3368, 0
    %v3370 = vsel %vm3369, %v3368, 0
    %v3371 = vshrl.u32 %v3370, 5
    %v3372 = vand.u32 %v3370, 31
    %v3373 = vsub.s32 32, %v3372
    %v3374 = vshrl.u32 683565275, %v3373
    %v3375 = vshll.u32 683565275, %v3372
    %v3376 = vshrl.u32 2475754826, %v3373
    %v3377 = vor.u32 %v3375, %v3376
    %v3378 = vshll.u32 2475754826, %v3372
    %v3379 = vshrl.u32 2131351028, %v3373
    %v3380 = vor.u32 %v3378, %v3379
    %v3381 = vshll.u32 2131351028, %v3372
    %v3382 = vshrl.u32 2102212464, %v3373
    %v3383 = vor.u32 %v3381, %v3382
    %v3384 = vshll.u32 2102212464, %v3372
    %v3385 = vshrl.u32 920167782, %v3373
    %v3386 = vor.u32 %v3384, %v3385
    %v3387 = vshll.u32 920167782, %v3372
    %v3388 = vshrl.u32 1326507024, %v3373
    %v3389 = vor.u32 %v3387, %v3388
    %vm3390 = vcmp.lt.s32.totalorder %v3371, 1
    %vm3391 = vcmp.lt.s32.totalorder %v3371, 2
    %vm3392 = vcmp.lt.s32.totalorder %v3371, 3
    %vm3393 = vcmp.lt.s32.totalorder %v3371, 4
    %v3394 = vsel %vm3390, %v3374, %v3377
    %v3395 = vsel %vm3393, %v3383, 2102212464
    %v3396 = vsel %vm3392, %v3380, %v3395
    %v3397 = vsel %vm3391, %v3394, %v3396
    %v3398 = vsel %vm3390, %v3377, %v3380
    %v3399 = vsel %vm3393, %v3386, 920167782
    %v3400 = vsel %vm3392, %v3383, %v3399
    %v3401 = vsel %vm3391, %v3398, %v3400
    %v3402 = vsel %vm3390, %v3380, %v3383
    %v3403 = vsel %vm3393, %v3389, 1326507024
    %v3404 = vsel %vm3392, %v3386, %v3403
    %v3405 = vsel %vm3391, %v3402, %v3404
    %v3406 = vshll.u32 %v3366, 8
    %v3407 = vmul.u32.u64.compose %v3406, %v3405
    %v3408 = vextract.low.u32 %v3407
    %v3409 = vextract.high.u32 %v3407
    %v3410 = vmul.u32.u64.compose %v3406, %v3401
    %v3411 = vextract.low.u32 %v3410
    %v3412 = vextract.high.u32 %v3410
    %v3413 = vmul.u32 %v3406, %v3397
    %v3414 = vadd.s32 %v3409, %v3411
    %vm3415 = vc.u32 %v3409, %v3411
    %v3416 = vadd.s32 %v3412, 1
    %v3417 = vsel %vm3415, %v3416, %v3412
    %v3418 = vadd.s32 %v3413, %v3417
    %v3419 = vadd.s32 %v3418, 536870912
    %v3420 = vshrl.u32 %v3419, 30
    %v3421 = vshll.u32 %v3420, 30
    %v3422 = vsub.s32 %v3418, %v3421
    %vm3423 = vcmp.lt.s32.totalorder %v3422, 0
    %v3424 = vsub.s32 0, %v3422
    %v3425 = vsel %vm3423, %v3424, %v3422
    %v3426 = vclz %v3425
    %v3427 = vsub.s32 %v3426, 2
    %vm3428 = vcmp.gt.s32.totalorder 0, %v3427
    %v3429 = vsel %vm3428, 0, %v3427
    %v3430 = vsub.s32 32, %v3429
    %v3431 = vshll.u32 %v3422, %v3429
    %v3432 = vshrl.u32 %v3414, %v3430
    %v3433 = vor.u32 %v3431, %v3432
    %v3434 = vsub.s32 4294967266, %v3429
    %v3435 = vadd.s32 %v3434, 127
    %v3436 = vshll.u32 %v3435, 23
    %v3437 = vor.u32 4788187, %v3436
    %v3438 = vand.u32 2147483647, %v3437
    %v3440 = vcvt.s32.f32 %v3433
    %v3441 = vmul.f32 %v3440, %v3438
    %v3442 = vxor.u32 %v3441, 2147483648
    %v3443 = vsel %vm3360, %v3442, %v3441
    %v3444 = vsub.s32 4, %v3420
    %v3445 = vsel %vm3360, %v3444, %v3420
    %v3446 = vsel %vm3359, %v1662, %v3443
    %v3447 = vsel %vm3359, 0, %v3445
    %v3448 = vcosq.f32.pop %v3446
    %v3449 = vsinq.f32.pop %v3446
    %vm3450 = vweird.f32 %v1662
    %v3451 = vand.u32 %v3447, 3
    %vm3452 = vcmp.lt.s32.totalorder %v3451, 2
    %vm3453 = vcmp.eq.s32.totalorder %v3451, 0
    %v3454 = vxor.u32 %v3449, 2147483648
    %v3455 = vsel %vm3453, %v3448, %v3454
    %vm3456 = vcmp.eq.s32.totalorder %v3451, 2
    %v3457 = vxor.u32 %v3448, 2147483648
    %v3458 = vsel %vm3456, %v3457, %v3449
    %v3459 = vsel %vm3452, %v3455, %v3458
    %v3460 = vsel %vm3450, nan, %v3459
    %v3461 = vand.u32 2147483647, %v1663
    %vm3462 = vcmp.le.f32.partialorder %v3461, 0.7853982
    %vm3463 = vcmp.lt.s32.totalorder %v1663, 0
    %v3464 = vand.u32 %v1663, 2139095040
    %v3465 = vshrl.u32 %v3464, 23
    %v3466 = vsub.s32 %v3465, 127
    %v3467 = vand.u32 2147483647, %v1663
    %v3468 = vand.u32 %v3467, 8388607
    %v3469 = vor.u32 %v3468, 8388608
    %v3470 = vsub.s32 0, %v3469
    %v3471 = vadd.s32 %v3466, 1
    %vm3472 = vcmp.gt.s32.totalorder %v3471, 0
    %v3473 = vsel %vm3472, %v3471, 0
    %v3474 = vshrl.u32 %v3473, 5
    %v3475 = vand.u32 %v3473, 31
    %v3476 = vsub.s32 32, %v3475
    %v3477 = vshrl.u32 683565275, %v3476
    %v3478 = vshll.u32 683565275, %v3475
    %v3479 = vshrl.u32 2475754826, %v3476
    %v3480 = vor.u32 %v3478, %v3479
    %v3481 = vshll.u32 2475754826, %v3475
    %v3482 = vshrl.u32 2131351028, %v3476
    %v3483 = vor.u32 %v3481, %v3482
    %v3484 = vshll.u32 2131351028, %v3475
    %v3485 = vshrl.u32 2102212464, %v3476
    %v3486 = vor.u32 %v3484, %v3485
    %v3487 = vshll.u32 2102212464, %v3475
    %v3488 = vshrl.u32 920167782, %v3476
    %v3489 = vor.u32 %v3487, %v3488
    %v3490 = vshll.u32 920167782, %v3475
    %v3491 = vshrl.u32 1326507024, %v3476
    %v3492 = vor.u32 %v3490, %v3491
    %vm3493 = vcmp.lt.s32.totalorder %v3474, 1
    %vm3494 = vcmp.lt.s32.totalorder %v3474, 2
    %vm3495 = vcmp.lt.s32.totalorder %v3474, 3
    %vm3496 = vcmp.lt.s32.totalorder %v3474, 4
    %v3497 = vsel %vm3493, %v3477, %v3480
    %v3498 = vsel %vm3496, %v3486, 2102212464
    %v3499 = vsel %vm3495, %v3483, %v3498
    %v3500 = vsel %vm3494, %v3497, %v3499
    %v3501 = vsel %vm3493, %v3480, %v3483
    %v3502 = vsel %vm3496, %v3489, 920167782
    %v3503 = vsel %vm3495, %v3486, %v3502
    %v3504 = vsel %vm3494, %v3501, %v3503
    %v3505 = vsel %vm3493, %v3483, %v3486
    %v3506 = vsel %vm3496, %v3492, 1326507024
    %v3507 = vsel %vm3495, %v3489, %v3506
    %v3508 = vsel %vm3494, %v3505, %v3507
    %v3509 = vshll.u32 %v3469, 8
    %v3510 = vmul.u32.u64.compose %v3509, %v3508
    %v3511 = vextract.low.u32 %v3510
    %v3512 = vextract.high.u32 %v3510
    %v3513 = vmul.u32.u64.compose %v3509, %v3504
    %v3514 = vextract.low.u32 %v3513
    %v3515 = vextract.high.u32 %v3513
    %v3516 = vmul.u32 %v3509, %v3500
    %v3517 = vadd.s32 %v3512, %v3514
    %vm3518 = vc.u32 %v3512, %v3514
    %v3519 = vadd.s32 %v3515, 1
    %v3520 = vsel %vm3518, %v3519, %v3515
    %v3521 = vadd.s32 %v3516, %v3520
    %v3522 = vadd.s32 %v3521, 536870912
    %v3523 = vshrl.u32 %v3522, 30
    %v3524 = vshll.u32 %v3523, 30
    %v3525 = vsub.s32 %v3521, %v3524
    %vm3526 = vcmp.lt.s32.totalorder %v3525, 0
    %v3527 = vsub.s32 0, %v3525
    %v3528 = vsel %vm3526, %v3527, %v3525
    %v3529 = vclz %v3528
    %v3530 = vsub.s32 %v3529, 2
    %vm3531 = vcmp.gt.s32.totalorder 0, %v3530
    %v3532 = vsel %vm3531, 0, %v3530
    %v3533 = vsub.s32 32, %v3532
    %v3534 = vshll.u32 %v3525, %v3532
    %v3535 = vshrl.u32 %v3517, %v3533
    %v3536 = vor.u32 %v3534, %v3535
    %v3537 = vsub.s32 4294967266, %v3532
    %v3538 = vadd.s32 %v3537, 127
    %v3539 = vshll.u32 %v3538, 23
    %v3540 = vor.u32 4788187, %v3539
    %v3541 = vand.u32 2147483647, %v3540
    %v3543 = vcvt.s32.f32 %v3536
    %v3544 = vmul.f32 %v3543, %v3541
    %v3545 = vxor.u32 %v3544, 2147483648
    %v3546 = vsel %vm3463, %v3545, %v3544
    %v3547 = vsub.s32 4, %v3523
    %v3548 = vsel %vm3463, %v3547, %v3523
    %v3549 = vsel %vm3462, %v1663, %v3546
    %v3550 = vsel %vm3462, 0, %v3548
    %v3551 = vcosq.f32.pop %v3549
    %v3552 = vsinq.f32.pop %v3549
    %vm3553 = vweird.f32 %v1663
    %v3554 = vand.u32 %v3550, 3
    %vm3555 = vcmp.lt.s32.totalorder %v3554, 2
    %vm3556 = vcmp.eq.s32.totalorder %v3554, 0
    %v3557 = vxor.u32 %v3552, 2147483648
    %v3558 = vsel %vm3556, %v3551, %v3557
    %vm3559 = vcmp.eq.s32.totalorder %v3554, 2
    %v3560 = vxor.u32 %v3551, 2147483648
    %v3561 = vsel %vm3559, %v3560, %v3552
    %v3562 = vsel %vm3555, %v3558, %v3561
    %v3563 = vsel %vm3553, nan, %v3562
    %v3564 = vand.u32 2147483647, %v1664
    %vm3565 = vcmp.le.f32.partialorder %v3564, 0.7853982
    %vm3566 = vcmp.lt.s32.totalorder %v1664, 0
    %v3567 = vand.u32 %v1664, 2139095040
    %v3568 = vshrl.u32 %v3567, 23
    %v3569 = vsub.s32 %v3568, 127
    %v3570 = vand.u32 2147483647, %v1664
    %v3571 = vand.u32 %v3570, 8388607
    %v3572 = vor.u32 %v3571, 8388608
    %v3573 = vsub.s32 0, %v3572
    %v3574 = vadd.s32 %v3569, 1
    %vm3575 = vcmp.gt.s32.totalorder %v3574, 0
    %v3576 = vsel %vm3575, %v3574, 0
    %v3577 = vshrl.u32 %v3576, 5
    %v3578 = vand.u32 %v3576, 31
    %v3579 = vsub.s32 32, %v3578
    %v3580 = vshrl.u32 683565275, %v3579
    %v3581 = vshll.u32 683565275, %v3578
    %v3582 = vshrl.u32 2475754826, %v3579
    %v3583 = vor.u32 %v3581, %v3582
    %v3584 = vshll.u32 2475754826, %v3578
    %v3585 = vshrl.u32 2131351028, %v3579
    %v3586 = vor.u32 %v3584, %v3585
    %v3587 = vshll.u32 2131351028, %v3578
    %v3588 = vshrl.u32 2102212464, %v3579
    %v3589 = vor.u32 %v3587, %v3588
    %v3590 = vshll.u32 2102212464, %v3578
    %v3591 = vshrl.u32 920167782, %v3579
    %v3592 = vor.u32 %v3590, %v3591
    %v3593 = vshll.u32 920167782, %v3578
    %v3594 = vshrl.u32 1326507024, %v3579
    %v3595 = vor.u32 %v3593, %v3594
    %vm3596 = vcmp.lt.s32.totalorder %v3577, 1
    %vm3597 = vcmp.lt.s32.totalorder %v3577, 2
    %vm3598 = vcmp.lt.s32.totalorder %v3577, 3
    %vm3599 = vcmp.lt.s32.totalorder %v3577, 4
    %v3600 = vsel %vm3596, %v3580, %v3583
    %v3601 = vsel %vm3599, %v3589, 2102212464
    %v3602 = vsel %vm3598, %v3586, %v3601
    %v3603 = vsel %vm3597, %v3600, %v3602
    %v3604 = vsel %vm3596, %v3583, %v3586
    %v3605 = vsel %vm3599, %v3592, 920167782
    %v3606 = vsel %vm3598, %v3589, %v3605
    %v3607 = vsel %vm3597, %v3604, %v3606
    %v3608 = vsel %vm3596, %v3586, %v3589
    %v3609 = vsel %vm3599, %v3595, 1326507024
    %v3610 = vsel %vm3598, %v3592, %v3609
    %v3611 = vsel %vm3597, %v3608, %v3610
    %v3612 = vshll.u32 %v3572, 8
    %v3613 = vmul.u32.u64.compose %v3612, %v3611
    %v3614 = vextract.low.u32 %v3613
    %v3615 = vextract.high.u32 %v3613
    %v3616 = vmul.u32.u64.compose %v3612, %v3607
    %v3617 = vextract.low.u32 %v3616
    %v3618 = vextract.high.u32 %v3616
    %v3619 = vmul.u32 %v3612, %v3603
    %v3620 = vadd.s32 %v3615, %v3617
    %vm3621 = vc.u32 %v3615, %v3617
    %v3622 = vadd.s32 %v3618, 1
    %v3623 = vsel %vm3621, %v3622, %v3618
    %v3624 = vadd.s32 %v3619, %v3623
    %v3625 = vadd.s32 %v3624, 536870912
    %v3626 = vshrl.u32 %v3625, 30
    %v3627 = vshll.u32 %v3626, 30
    %v3628 = vsub.s32 %v3624, %v3627
    %vm3629 = vcmp.lt.s32.totalorder %v3628, 0
    %v3630 = vsub.s32 0, %v3628
    %v3631 = vsel %vm3629, %v3630, %v3628
    %v3632 = vclz %v3631
    %v3633 = vsub.s32 %v3632, 2
    %vm3634 = vcmp.gt.s32.totalorder 0, %v3633
    %v3635 = vsel %vm3634, 0, %v3633
    %v3636 = vsub.s32 32, %v3635
    %v3637 = vshll.u32 %v3628, %v3635
    %v3638 = vshrl.u32 %v3620, %v3636
    %v3639 = vor.u32 %v3637, %v3638
    %v3640 = vsub.s32 4294967266, %v3635
    %v3641 = vadd.s32 %v3640, 127
    %v3642 = vshll.u32 %v3641, 23
    %v3643 = vor.u32 4788187, %v3642
    %v3644 = vand.u32 2147483647, %v3643
    %v3646 = vcvt.s32.f32 %v3639
    %v3647 = vmul.f32 %v3646, %v3644
    %v3648 = vxor.u32 %v3647, 2147483648
    %v3649 = vsel %vm3566, %v3648, %v3647
    %v3650 = vsub.s32 4, %v3626
    %v3651 = vsel %vm3566, %v3650, %v3626
    %v3652 = vsel %vm3565, %v1664, %v3649
    %v3653 = vsel %vm3565, 0, %v3651
    %v3654 = vcosq.f32.pop %v3652
    %v3655 = vsinq.f32.pop %v3652
    %vm3656 = vweird.f32 %v1664
    %v3657 = vand.u32 %v3653, 3
    %vm3658 = vcmp.lt.s32.totalorder %v3657, 2
    %vm3659 = vcmp.eq.s32.totalorder %v3657, 0
    %v3660 = vxor.u32 %v3655, 2147483648
    %v3661 = vsel %vm3659, %v3654, %v3660
    %vm3662 = vcmp.eq.s32.totalorder %v3657, 2
    %v3663 = vxor.u32 %v3654, 2147483648
    %v3664 = vsel %vm3662, %v3663, %v3655
    %v3665 = vsel %vm3658, %v3661, %v3664
    %v3666 = vsel %vm3656, nan, %v3665
    %v3667 = vand.u32 2147483647, %v1665
    %vm3668 = vcmp.le.f32.partialorder %v3667, 0.7853982
    %vm3669 = vcmp.lt.s32.totalorder %v1665, 0
    %v3670 = vand.u32 %v1665, 2139095040
    %v3671 = vshrl.u32 %v3670, 23
    %v3672 = vsub.s32 %v3671, 127
    %v3673 = vand.u32 2147483647, %v1665
    %v3674 = vand.u32 %v3673, 8388607
    %v3675 = vor.u32 %v3674, 8388608
    %v3676 = vsub.s32 0, %v3675
    %v3677 = vadd.s32 %v3672, 1
    %vm3678 = vcmp.gt.s32.totalorder %v3677, 0
    %v3679 = vsel %vm3678, %v3677, 0
    %v3680 = vshrl.u32 %v3679, 5
    %v3681 = vand.u32 %v3679, 31
    %v3682 = vsub.s32 32, %v3681
    %v3683 = vshrl.u32 683565275, %v3682
    %v3684 = vshll.u32 683565275, %v3681
    %v3685 = vshrl.u32 2475754826, %v3682
    %v3686 = vor.u32 %v3684, %v3685
    %v3687 = vshll.u32 2475754826, %v3681
    %v3688 = vshrl.u32 2131351028, %v3682
    %v3689 = vor.u32 %v3687, %v3688
    %v3690 = vshll.u32 2131351028, %v3681
    %v3691 = vshrl.u32 2102212464, %v3682
    %v3692 = vor.u32 %v3690, %v3691
    %v3693 = vshll.u32 2102212464, %v3681
    %v3694 = vshrl.u32 920167782, %v3682
    %v3695 = vor.u32 %v3693, %v3694
    %v3696 = vshll.u32 920167782, %v3681
    %v3697 = vshrl.u32 1326507024, %v3682
    %v3698 = vor.u32 %v3696, %v3697
    %vm3699 = vcmp.lt.s32.totalorder %v3680, 1
    %vm3700 = vcmp.lt.s32.totalorder %v3680, 2
    %vm3701 = vcmp.lt.s32.totalorder %v3680, 3
    %vm3702 = vcmp.lt.s32.totalorder %v3680, 4
    %v3703 = vsel %vm3699, %v3683, %v3686
    %v3704 = vsel %vm3702, %v3692, 2102212464
    %v3705 = vsel %vm3701, %v3689, %v3704
    %v3706 = vsel %vm3700, %v3703, %v3705
    %v3707 = vsel %vm3699, %v3686, %v3689
    %v3708 = vsel %vm3702, %v3695, 920167782
    %v3709 = vsel %vm3701, %v3692, %v3708
    %v3710 = vsel %vm3700, %v3707, %v3709
    %v3711 = vsel %vm3699, %v3689, %v3692
    %v3712 = vsel %vm3702, %v3698, 1326507024
    %v3713 = vsel %vm3701, %v3695, %v3712
    %v3714 = vsel %vm3700, %v3711, %v3713
    %v3715 = vshll.u32 %v3675, 8
    %v3716 = vmul.u32.u64.compose %v3715, %v3714
    %v3717 = vextract.low.u32 %v3716
    %v3718 = vextract.high.u32 %v3716
    %v3719 = vmul.u32.u64.compose %v3715, %v3710
    %v3720 = vextract.low.u32 %v3719
    %v3721 = vextract.high.u32 %v3719
    %v3722 = vmul.u32 %v3715, %v3706
    %v3723 = vadd.s32 %v3718, %v3720
    %vm3724 = vc.u32 %v3718, %v3720
    %v3725 = vadd.s32 %v3721, 1
    %v3726 = vsel %vm3724, %v3725, %v3721
    %v3727 = vadd.s32 %v3722, %v3726
    %v3728 = vadd.s32 %v3727, 536870912
    %v3729 = vshrl.u32 %v3728, 30
    %v3730 = vshll.u32 %v3729, 30
    %v3731 = vsub.s32 %v3727, %v3730
    %vm3732 = vcmp.lt.s32.totalorder %v3731, 0
    %v3733 = vsub.s32 0, %v3731
    %v3734 = vsel %vm3732, %v3733, %v3731
    %v3735 = vclz %v3734
    %v3736 = vsub.s32 %v3735, 2
    %vm3737 = vcmp.gt.s32.totalorder 0, %v3736
    %v3738 = vsel %vm3737, 0, %v3736
    %v3739 = vsub.s32 32, %v3738
    %v3740 = vshll.u32 %v3731, %v3738
    %v3741 = vshrl.u32 %v3723, %v3739
    %v3742 = vor.u32 %v3740, %v3741
    %v3743 = vsub.s32 4294967266, %v3738
    %v3744 = vadd.s32 %v3743, 127
    %v3745 = vshll.u32 %v3744, 23
    %v3746 = vor.u32 4788187, %v3745
    %v3747 = vand.u32 2147483647, %v3746
    %v3749 = vcvt.s32.f32 %v3742
    %v3750 = vmul.f32 %v3749, %v3747
    %v3751 = vxor.u32 %v3750, 2147483648
    %v3752 = vsel %vm3669, %v3751, %v3750
    %v3753 = vsub.s32 4, %v3729
    %v3754 = vsel %vm3669, %v3753, %v3729
    %v3755 = vsel %vm3668, %v1665, %v3752
    %v3756 = vsel %vm3668, 0, %v3754
    %v3757 = vcosq.f32.pop %v3755
    %v3758 = vsinq.f32.pop %v3755
    %vm3759 = vweird.f32 %v1665
    %v3760 = vand.u32 %v3756, 3
    %vm3761 = vcmp.lt.s32.totalorder %v3760, 2
    %vm3762 = vcmp.eq.s32.totalorder %v3760, 0
    %v3763 = vxor.u32 %v3758, 2147483648
    %v3764 = vsel %vm3762, %v3757, %v3763
    %vm3765 = vcmp.eq.s32.totalorder %v3760, 2
    %v3766 = vxor.u32 %v3757, 2147483648
    %v3767 = vsel %vm3765, %v3766, %v3758
    %v3768 = vsel %vm3761, %v3764, %v3767
    %v3769 = vsel %vm3759, nan, %v3768
    %v3770 = vand.u32 2147483647, %v1666
    %vm3771 = vcmp.le.f32.partialorder %v3770, 0.7853982
    %vm3772 = vcmp.lt.s32.totalorder %v1666, 0
    %v3773 = vand.u32 %v1666, 2139095040
    %v3774 = vshrl.u32 %v3773, 23
    %v3775 = vsub.s32 %v3774, 127
    %v3776 = vand.u32 2147483647, %v1666
    %v3777 = vand.u32 %v3776, 8388607
    %v3778 = vor.u32 %v3777, 8388608
    %v3779 = vsub.s32 0, %v3778
    %v3780 = vadd.s32 %v3775, 1
    %vm3781 = vcmp.gt.s32.totalorder %v3780, 0
    %v3782 = vsel %vm3781, %v3780, 0
    %v3783 = vshrl.u32 %v3782, 5
    %v3784 = vand.u32 %v3782, 31
    %v3785 = vsub.s32 32, %v3784
    %v3786 = vshrl.u32 683565275, %v3785
    %v3787 = vshll.u32 683565275, %v3784
    %v3788 = vshrl.u32 2475754826, %v3785
    %v3789 = vor.u32 %v3787, %v3788
    %v3790 = vshll.u32 2475754826, %v3784
    %v3791 = vshrl.u32 2131351028, %v3785
    %v3792 = vor.u32 %v3790, %v3791
    %v3793 = vshll.u32 2131351028, %v3784
    %v3794 = vshrl.u32 2102212464, %v3785
    %v3795 = vor.u32 %v3793, %v3794
    %v3796 = vshll.u32 2102212464, %v3784
    %v3797 = vshrl.u32 920167782, %v3785
    %v3798 = vor.u32 %v3796, %v3797
    %v3799 = vshll.u32 920167782, %v3784
    %v3800 = vshrl.u32 1326507024, %v3785
    %v3801 = vor.u32 %v3799, %v3800
    %vm3802 = vcmp.lt.s32.totalorder %v3783, 1
    %vm3803 = vcmp.lt.s32.totalorder %v3783, 2
    %vm3804 = vcmp.lt.s32.totalorder %v3783, 3
    %vm3805 = vcmp.lt.s32.totalorder %v3783, 4
    %v3806 = vsel %vm3802, %v3786, %v3789
    %v3807 = vsel %vm3805, %v3795, 2102212464
    %v3808 = vsel %vm3804, %v3792, %v3807
    %v3809 = vsel %vm3803, %v3806, %v3808
    %v3810 = vsel %vm3802, %v3789, %v3792
    %v3811 = vsel %vm3805, %v3798, 920167782
    %v3812 = vsel %vm3804, %v3795, %v3811
    %v3813 = vsel %vm3803, %v3810, %v3812
    %v3814 = vsel %vm3802, %v3792, %v3795
    %v3815 = vsel %vm3805, %v3801, 1326507024
    %v3816 = vsel %vm3804, %v3798, %v3815
    %v3817 = vsel %vm3803, %v3814, %v3816
    %v3818 = vshll.u32 %v3778, 8
    %v3819 = vmul.u32.u64.compose %v3818, %v3817
    %v3820 = vextract.low.u32 %v3819
    %v3821 = vextract.high.u32 %v3819
    %v3822 = vmul.u32.u64.compose %v3818, %v3813
    %v3823 = vextract.low.u32 %v3822
    %v3824 = vextract.high.u32 %v3822
    %v3825 = vmul.u32 %v3818, %v3809
    %v3826 = vadd.s32 %v3821, %v3823
    %vm3827 = vc.u32 %v3821, %v3823
    %v3828 = vadd.s32 %v3824, 1
    %v3829 = vsel %vm3827, %v3828, %v3824
    %v3830 = vadd.s32 %v3825, %v3829
    %v3831 = vadd.s32 %v3830, 536870912
    %v3832 = vshrl.u32 %v3831, 30
    %v3833 = vshll.u32 %v3832, 30
    %v3834 = vsub.s32 %v3830, %v3833
    %vm3835 = vcmp.lt.s32.totalorder %v3834, 0
    %v3836 = vsub.s32 0, %v3834
    %v3837 = vsel %vm3835, %v3836, %v3834
    %v3838 = vclz %v3837
    %v3839 = vsub.s32 %v3838, 2
    %vm3840 = vcmp.gt.s32.totalorder 0, %v3839
    %v3841 = vsel %vm3840, 0, %v3839
    %v3842 = vsub.s32 32, %v3841
    %v3843 = vshll.u32 %v3834, %v3841
    %v3844 = vshrl.u32 %v3826, %v3842
    %v3845 = vor.u32 %v3843, %v3844
    %v3846 = vsub.s32 4294967266, %v3841
    %v3847 = vadd.s32 %v3846, 127
    %v3848 = vshll.u32 %v3847, 23
    %v3849 = vor.u32 4788187, %v3848
    %v3850 = vand.u32 2147483647, %v3849
    %v3852 = vcvt.s32.f32 %v3845
    %v3853 = vmul.f32 %v3852, %v3850
    %v3854 = vxor.u32 %v3853, 2147483648
    %v3855 = vsel %vm3772, %v3854, %v3853
    %v3856 = vsub.s32 4, %v3832
    %v3857 = vsel %vm3772, %v3856, %v3832
    %v3858 = vsel %vm3771, %v1666, %v3855
    %v3859 = vsel %vm3771, 0, %v3857
    %v3860 = vcosq.f32.pop %v3858
    %v3861 = vsinq.f32.pop %v3858
    %vm3862 = vweird.f32 %v1666
    %v3863 = vand.u32 %v3859, 3
    %vm3864 = vcmp.lt.s32.totalorder %v3863, 2
    %vm3865 = vcmp.eq.s32.totalorder %v3863, 0
    %v3866 = vxor.u32 %v3861, 2147483648
    %v3867 = vsel %vm3865, %v3860, %v3866
    %vm3868 = vcmp.eq.s32.totalorder %v3863, 2
    %v3869 = vxor.u32 %v3860, 2147483648
    %v3870 = vsel %vm3868, %v3869, %v3861
    %v3871 = vsel %vm3864, %v3867, %v3870
    %v3872 = vsel %vm3862, nan, %v3871
    %v3873 = vand.u32 2147483647, %v1667
    %vm3874 = vcmp.le.f32.partialorder %v3873, 0.7853982
    %vm3875 = vcmp.lt.s32.totalorder %v1667, 0
    %v3876 = vand.u32 %v1667, 2139095040
    %v3877 = vshrl.u32 %v3876, 23
    %v3878 = vsub.s32 %v3877, 127
    %v3879 = vand.u32 2147483647, %v1667
    %v3880 = vand.u32 %v3879, 8388607
    %v3881 = vor.u32 %v3880, 8388608
    %v3882 = vsub.s32 0, %v3881
    %v3883 = vadd.s32 %v3878, 1
    %vm3884 = vcmp.gt.s32.totalorder %v3883, 0
    %v3885 = vsel %vm3884, %v3883, 0
    %v3886 = vshrl.u32 %v3885, 5
    %v3887 = vand.u32 %v3885, 31
    %v3888 = vsub.s32 32, %v3887
    %v3889 = vshrl.u32 683565275, %v3888
    %v3890 = vshll.u32 683565275, %v3887
    %v3891 = vshrl.u32 2475754826, %v3888
    %v3892 = vor.u32 %v3890, %v3891
    %v3893 = vshll.u32 2475754826, %v3887
    %v3894 = vshrl.u32 2131351028, %v3888
    %v3895 = vor.u32 %v3893, %v3894
    %v3896 = vshll.u32 2131351028, %v3887
    %v3897 = vshrl.u32 2102212464, %v3888
    %v3898 = vor.u32 %v3896, %v3897
    %v3899 = vshll.u32 2102212464, %v3887
    %v3900 = vshrl.u32 920167782, %v3888
    %v3901 = vor.u32 %v3899, %v3900
    %v3902 = vshll.u32 920167782, %v3887
    %v3903 = vshrl.u32 1326507024, %v3888
    %v3904 = vor.u32 %v3902, %v3903
    %vm3905 = vcmp.lt.s32.totalorder %v3886, 1
    %vm3906 = vcmp.lt.s32.totalorder %v3886, 2
    %vm3907 = vcmp.lt.s32.totalorder %v3886, 3
    %vm3908 = vcmp.lt.s32.totalorder %v3886, 4
    %v3909 = vsel %vm3905, %v3889, %v3892
    %v3910 = vsel %vm3908, %v3898, 2102212464
    %v3911 = vsel %vm3907, %v3895, %v3910
    %v3912 = vsel %vm3906, %v3909, %v3911
    %v3913 = vsel %vm3905, %v3892, %v3895
    %v3914 = vsel %vm3908, %v3901, 920167782
    %v3915 = vsel %vm3907, %v3898, %v3914
    %v3916 = vsel %vm3906, %v3913, %v3915
    %v3917 = vsel %vm3905, %v3895, %v3898
    %v3918 = vsel %vm3908, %v3904, 1326507024
    %v3919 = vsel %vm3907, %v3901, %v3918
    %v3920 = vsel %vm3906, %v3917, %v3919
    %v3921 = vshll.u32 %v3881, 8
    %v3922 = vmul.u32.u64.compose %v3921, %v3920
    %v3923 = vextract.low.u32 %v3922
    %v3924 = vextract.high.u32 %v3922
    %v3925 = vmul.u32.u64.compose %v3921, %v3916
    %v3926 = vextract.low.u32 %v3925
    %v3927 = vextract.high.u32 %v3925
    %v3928 = vmul.u32 %v3921, %v3912
    %v3929 = vadd.s32 %v3924, %v3926
    %vm3930 = vc.u32 %v3924, %v3926
    %v3931 = vadd.s32 %v3927, 1
    %v3932 = vsel %vm3930, %v3931, %v3927
    %v3933 = vadd.s32 %v3928, %v3932
    %v3934 = vadd.s32 %v3933, 536870912
    %v3935 = vshrl.u32 %v3934, 30
    %v3936 = vshll.u32 %v3935, 30
    %v3937 = vsub.s32 %v3933, %v3936
    %vm3938 = vcmp.lt.s32.totalorder %v3937, 0
    %v3939 = vsub.s32 0, %v3937
    %v3940 = vsel %vm3938, %v3939, %v3937
    %v3941 = vclz %v3940
    %v3942 = vsub.s32 %v3941, 2
    %vm3943 = vcmp.gt.s32.totalorder 0, %v3942
    %v3944 = vsel %vm3943, 0, %v3942
    %v3945 = vsub.s32 32, %v3944
    %v3946 = vshll.u32 %v3937, %v3944
    %v3947 = vshrl.u32 %v3929, %v3945
    %v3948 = vor.u32 %v3946, %v3947
    %v3949 = vsub.s32 4294967266, %v3944
    %v3950 = vadd.s32 %v3949, 127
    %v3951 = vshll.u32 %v3950, 23
    %v3952 = vor.u32 4788187, %v3951
    %v3953 = vand.u32 2147483647, %v3952
    %v3955 = vcvt.s32.f32 %v3948
    %v3956 = vmul.f32 %v3955, %v3953
    %v3957 = vxor.u32 %v3956, 2147483648
    %v3958 = vsel %vm3875, %v3957, %v3956
    %v3959 = vsub.s32 4, %v3935
    %v3960 = vsel %vm3875, %v3959, %v3935
    %v3961 = vsel %vm3874, %v1667, %v3958
    %v3962 = vsel %vm3874, 0, %v3960
    %v3963 = vcosq.f32.pop %v3961
    %v3964 = vsinq.f32.pop %v3961
    %vm3965 = vweird.f32 %v1667
    %v3966 = vand.u32 %v3962, 3
    %vm3967 = vcmp.lt.s32.totalorder %v3966, 2
    %vm3968 = vcmp.eq.s32.totalorder %v3966, 0
    %v3969 = vxor.u32 %v3964, 2147483648
    %v3970 = vsel %vm3968, %v3963, %v3969
    %vm3971 = vcmp.eq.s32.totalorder %v3966, 2
    %v3972 = vxor.u32 %v3963, 2147483648
    %v3973 = vsel %vm3971, %v3972, %v3964
    %v3974 = vsel %vm3967, %v3970, %v3973
    %v3975 = vsel %vm3965, nan, %v3974
    %v3976 = vand.u32 2147483647, %v1668
    %vm3977 = vcmp.le.f32.partialorder %v3976, 0.7853982
    %vm3978 = vcmp.lt.s32.totalorder %v1668, 0
    %v3979 = vand.u32 %v1668, 2139095040
    %v3980 = vshrl.u32 %v3979, 23
    %v3981 = vsub.s32 %v3980, 127
    %v3982 = vand.u32 2147483647, %v1668
    %v3983 = vand.u32 %v3982, 8388607
    %v3984 = vor.u32 %v3983, 8388608
    %v3985 = vsub.s32 0, %v3984
    %v3986 = vadd.s32 %v3981, 1
    %vm3987 = vcmp.gt.s32.totalorder %v3986, 0
    %v3988 = vsel %vm3987, %v3986, 0
    %v3989 = vshrl.u32 %v3988, 5
    %v3990 = vand.u32 %v3988, 31
    %v3991 = vsub.s32 32, %v3990
    %v3992 = vshrl.u32 683565275, %v3991
    %v3993 = vshll.u32 683565275, %v3990
    %v3994 = vshrl.u32 2475754826, %v3991
    %v3995 = vor.u32 %v3993, %v3994
    %v3996 = vshll.u32 2475754826, %v3990
    %v3997 = vshrl.u32 2131351028, %v3991
    %v3998 = vor.u32 %v3996, %v3997
    %v3999 = vshll.u32 2131351028, %v3990
    %v4000 = vshrl.u32 2102212464, %v3991
    %v4001 = vor.u32 %v3999, %v4000
    %v4002 = vshll.u32 2102212464, %v3990
    %v4003 = vshrl.u32 920167782, %v3991
    %v4004 = vor.u32 %v4002, %v4003
    %v4005 = vshll.u32 920167782, %v3990
    %v4006 = vshrl.u32 1326507024, %v3991
    %v4007 = vor.u32 %v4005, %v4006
    %vm4008 = vcmp.lt.s32.totalorder %v3989, 1
    %vm4009 = vcmp.lt.s32.totalorder %v3989, 2
    %vm4010 = vcmp.lt.s32.totalorder %v3989, 3
    %vm4011 = vcmp.lt.s32.totalorder %v3989, 4
    %v4012 = vsel %vm4008, %v3992, %v3995
    %v4013 = vsel %vm4011, %v4001, 2102212464
    %v4014 = vsel %vm4010, %v3998, %v4013
    %v4015 = vsel %vm4009, %v4012, %v4014
    %v4016 = vsel %vm4008, %v3995, %v3998
    %v4017 = vsel %vm4011, %v4004, 920167782
    %v4018 = vsel %vm4010, %v4001, %v4017
    %v4019 = vsel %vm4009, %v4016, %v4018
    %v4020 = vsel %vm4008, %v3998, %v4001
    %v4021 = vsel %vm4011, %v4007, 1326507024
    %v4022 = vsel %vm4010, %v4004, %v4021
    %v4023 = vsel %vm4009, %v4020, %v4022
    %v4024 = vshll.u32 %v3984, 8
    %v4025 = vmul.u32.u64.compose %v4024, %v4023
    %v4026 = vextract.low.u32 %v4025
    %v4027 = vextract.high.u32 %v4025
    %v4028 = vmul.u32.u64.compose %v4024, %v4019
    %v4029 = vextract.low.u32 %v4028
    %v4030 = vextract.high.u32 %v4028
    %v4031 = vmul.u32 %v4024, %v4015
    %v4032 = vadd.s32 %v4027, %v4029
    %vm4033 = vc.u32 %v4027, %v4029
    %v4034 = vadd.s32 %v4030, 1
    %v4035 = vsel %vm4033, %v4034, %v4030
    %v4036 = vadd.s32 %v4031, %v4035
    %v4037 = vadd.s32 %v4036, 536870912
    %v4038 = vshrl.u32 %v4037, 30
    %v4039 = vshll.u32 %v4038, 30
    %v4040 = vsub.s32 %v4036, %v4039
    %vm4041 = vcmp.lt.s32.totalorder %v4040, 0
    %v4042 = vsub.s32 0, %v4040
    %v4043 = vsel %vm4041, %v4042, %v4040
    %v4044 = vclz %v4043
    %v4045 = vsub.s32 %v4044, 2
    %vm4046 = vcmp.gt.s32.totalorder 0, %v4045
    %v4047 = vsel %vm4046, 0, %v4045
    %v4048 = vsub.s32 32, %v4047
    %v4049 = vshll.u32 %v4040, %v4047
    %v4050 = vshrl.u32 %v4032, %v4048
    %v4051 = vor.u32 %v4049, %v4050
    %v4052 = vsub.s32 4294967266, %v4047
    %v4053 = vadd.s32 %v4052, 127
    %v4054 = vshll.u32 %v4053, 23
    %v4055 = vor.u32 4788187, %v4054
    %v4056 = vand.u32 2147483647, %v4055
    %v4058 = vcvt.s32.f32 %v4051
    %v4059 = vmul.f32 %v4058, %v4056
    %v4060 = vxor.u32 %v4059, 2147483648
    %v4061 = vsel %vm3978, %v4060, %v4059
    %v4062 = vsub.s32 4, %v4038
    %v4063 = vsel %vm3978, %v4062, %v4038
    %v4064 = vsel %vm3977, %v1668, %v4061
    %v4065 = vsel %vm3977, 0, %v4063
    %v4066 = vcosq.f32.pop %v4064
    %v4067 = vsinq.f32.pop %v4064
    %vm4068 = vweird.f32 %v1668
    %v4069 = vand.u32 %v4065, 3
    %vm4070 = vcmp.lt.s32.totalorder %v4069, 2
    %vm4071 = vcmp.eq.s32.totalorder %v4069, 0
    %v4072 = vxor.u32 %v4067, 2147483648
    %v4073 = vsel %vm4071, %v4066, %v4072
    %vm4074 = vcmp.eq.s32.totalorder %v4069, 2
    %v4075 = vxor.u32 %v4066, 2147483648
    %v4076 = vsel %vm4074, %v4075, %v4067
    %v4077 = vsel %vm4070, %v4073, %v4076
    %v4078 = vsel %vm4068, nan, %v4077
    %v4079 = vand.u32 2147483647, %v1669
    %vm4080 = vcmp.le.f32.partialorder %v4079, 0.7853982
    %vm4081 = vcmp.lt.s32.totalorder %v1669, 0
    %v4082 = vand.u32 %v1669, 2139095040
    %v4083 = vshrl.u32 %v4082, 23
    %v4084 = vsub.s32 %v4083, 127
    %v4085 = vand.u32 2147483647, %v1669
    %v4086 = vand.u32 %v4085, 8388607
    %v4087 = vor.u32 %v4086, 8388608
    %v4088 = vsub.s32 0, %v4087
    %v4089 = vadd.s32 %v4084, 1
    %vm4090 = vcmp.gt.s32.totalorder %v4089, 0
    %v4091 = vsel %vm4090, %v4089, 0
    %v4092 = vshrl.u32 %v4091, 5
    %v4093 = vand.u32 %v4091, 31
    %v4094 = vsub.s32 32, %v4093
    %v4095 = vshrl.u32 683565275, %v4094
    %v4096 = vshll.u32 683565275, %v4093
    %v4097 = vshrl.u32 2475754826, %v4094
    %v4098 = vor.u32 %v4096, %v4097
    %v4099 = vshll.u32 2475754826, %v4093
    %v4100 = vshrl.u32 2131351028, %v4094
    %v4101 = vor.u32 %v4099, %v4100
    %v4102 = vshll.u32 2131351028, %v4093
    %v4103 = vshrl.u32 2102212464, %v4094
    %v4104 = vor.u32 %v4102, %v4103
    %v4105 = vshll.u32 2102212464, %v4093
    %v4106 = vshrl.u32 920167782, %v4094
    %v4107 = vor.u32 %v4105, %v4106
    %v4108 = vshll.u32 920167782, %v4093
    %v4109 = vshrl.u32 1326507024, %v4094
    %v4110 = vor.u32 %v4108, %v4109
    %vm4111 = vcmp.lt.s32.totalorder %v4092, 1
    %vm4112 = vcmp.lt.s32.totalorder %v4092, 2
    %vm4113 = vcmp.lt.s32.totalorder %v4092, 3
    %vm4114 = vcmp.lt.s32.totalorder %v4092, 4
    %v4115 = vsel %vm4111, %v4095, %v4098
    %v4116 = vsel %vm4114, %v4104, 2102212464
    %v4117 = vsel %vm4113, %v4101, %v4116
    %v4118 = vsel %vm4112, %v4115, %v4117
    %v4119 = vsel %vm4111, %v4098, %v4101
    %v4120 = vsel %vm4114, %v4107, 920167782
    %v4121 = vsel %vm4113, %v4104, %v4120
    %v4122 = vsel %vm4112, %v4119, %v4121
    %v4123 = vsel %vm4111, %v4101, %v4104
    %v4124 = vsel %vm4114, %v4110, 1326507024
    %v4125 = vsel %vm4113, %v4107, %v4124
    %v4126 = vsel %vm4112, %v4123, %v4125
    %v4127 = vshll.u32 %v4087, 8
    %v4128 = vmul.u32.u64.compose %v4127, %v4126
    %v4129 = vextract.low.u32 %v4128
    %v4130 = vextract.high.u32 %v4128
    %v4131 = vmul.u32.u64.compose %v4127, %v4122
    %v4132 = vextract.low.u32 %v4131
    %v4133 = vextract.high.u32 %v4131
    %v4134 = vmul.u32 %v4127, %v4118
    %v4135 = vadd.s32 %v4130, %v4132
    %vm4136 = vc.u32 %v4130, %v4132
    %v4137 = vadd.s32 %v4133, 1
    %v4138 = vsel %vm4136, %v4137, %v4133
    %v4139 = vadd.s32 %v4134, %v4138
    %v4140 = vadd.s32 %v4139, 536870912
    %v4141 = vshrl.u32 %v4140, 30
    %v4142 = vshll.u32 %v4141, 30
    %v4143 = vsub.s32 %v4139, %v4142
    %vm4144 = vcmp.lt.s32.totalorder %v4143, 0
    %v4145 = vsub.s32 0, %v4143
    %v4146 = vsel %vm4144, %v4145, %v4143
    %v4147 = vclz %v4146
    %v4148 = vsub.s32 %v4147, 2
    %vm4149 = vcmp.gt.s32.totalorder 0, %v4148
    %v4150 = vsel %vm4149, 0, %v4148
    %v4151 = vsub.s32 32, %v4150
    %v4152 = vshll.u32 %v4143, %v4150
    %v4153 = vshrl.u32 %v4135, %v4151
    %v4154 = vor.u32 %v4152, %v4153
    %v4155 = vsub.s32 4294967266, %v4150
    %v4156 = vadd.s32 %v4155, 127
    %v4157 = vshll.u32 %v4156, 23
    %v4158 = vor.u32 4788187, %v4157
    %v4159 = vand.u32 2147483647, %v4158
    %v4161 = vcvt.s32.f32 %v4154
    %v4162 = vmul.f32 %v4161, %v4159
    %v4163 = vxor.u32 %v4162, 2147483648
    %v4164 = vsel %vm4081, %v4163, %v4162
    %v4165 = vsub.s32 4, %v4141
    %v4166 = vsel %vm4081, %v4165, %v4141
    %v4167 = vsel %vm4080, %v1669, %v4164
    %v4168 = vsel %vm4080, 0, %v4166
    %v4169 = vcosq.f32.pop %v4167
    %v4170 = vsinq.f32.pop %v4167
    %vm4171 = vweird.f32 %v1669
    %v4172 = vand.u32 %v4168, 3
    %vm4173 = vcmp.lt.s32.totalorder %v4172, 2
    %vm4174 = vcmp.eq.s32.totalorder %v4172, 0
    %v4175 = vxor.u32 %v4170, 2147483648
    %v4176 = vsel %vm4174, %v4169, %v4175
    %vm4177 = vcmp.eq.s32.totalorder %v4172, 2
    %v4178 = vxor.u32 %v4169, 2147483648
    %v4179 = vsel %vm4177, %v4178, %v4170
    %v4180 = vsel %vm4173, %v4176, %v4179
    %v4181 = vsel %vm4171, nan, %v4180
    %v4182 = vand.u32 2147483647, %v1670
    %vm4183 = vcmp.le.f32.partialorder %v4182, 0.7853982
    %vm4184 = vcmp.lt.s32.totalorder %v1670, 0
    %v4185 = vand.u32 %v1670, 2139095040
    %v4186 = vshrl.u32 %v4185, 23
    %v4187 = vsub.s32 %v4186, 127
    %v4188 = vand.u32 2147483647, %v1670
    %v4189 = vand.u32 %v4188, 8388607
    %v4190 = vor.u32 %v4189, 8388608
    %v4191 = vsub.s32 0, %v4190
    %v4192 = vadd.s32 %v4187, 1
    %vm4193 = vcmp.gt.s32.totalorder %v4192, 0
    %v4194 = vsel %vm4193, %v4192, 0
    %v4195 = vshrl.u32 %v4194, 5
    %v4196 = vand.u32 %v4194, 31
    %v4197 = vsub.s32 32, %v4196
    %v4198 = vshrl.u32 683565275, %v4197
    %v4199 = vshll.u32 683565275, %v4196
    %v4200 = vshrl.u32 2475754826, %v4197
    %v4201 = vor.u32 %v4199, %v4200
    %v4202 = vshll.u32 2475754826, %v4196
    %v4203 = vshrl.u32 2131351028, %v4197
    %v4204 = vor.u32 %v4202, %v4203
    %v4205 = vshll.u32 2131351028, %v4196
    %v4206 = vshrl.u32 2102212464, %v4197
    %v4207 = vor.u32 %v4205, %v4206
    %v4208 = vshll.u32 2102212464, %v4196
    %v4209 = vshrl.u32 920167782, %v4197
    %v4210 = vor.u32 %v4208, %v4209
    %v4211 = vshll.u32 920167782, %v4196
    %v4212 = vshrl.u32 1326507024, %v4197
    %v4213 = vor.u32 %v4211, %v4212
    %vm4214 = vcmp.lt.s32.totalorder %v4195, 1
    %vm4215 = vcmp.lt.s32.totalorder %v4195, 2
    %vm4216 = vcmp.lt.s32.totalorder %v4195, 3
    %vm4217 = vcmp.lt.s32.totalorder %v4195, 4
    %v4218 = vsel %vm4214, %v4198, %v4201
    %v4219 = vsel %vm4217, %v4207, 2102212464
    %v4220 = vsel %vm4216, %v4204, %v4219
    %v4221 = vsel %vm4215, %v4218, %v4220
    %v4222 = vsel %vm4214, %v4201, %v4204
    %v4223 = vsel %vm4217, %v4210, 920167782
    %v4224 = vsel %vm4216, %v4207, %v4223
    %v4225 = vsel %vm4215, %v4222, %v4224
    %v4226 = vsel %vm4214, %v4204, %v4207
    %v4227 = vsel %vm4217, %v4213, 1326507024
    %v4228 = vsel %vm4216, %v4210, %v4227
    %v4229 = vsel %vm4215, %v4226, %v4228
    %v4230 = vshll.u32 %v4190, 8
    %v4231 = vmul.u32.u64.compose %v4230, %v4229
    %v4232 = vextract.low.u32 %v4231
    %v4233 = vextract.high.u32 %v4231
    %v4234 = vmul.u32.u64.compose %v4230, %v4225
    %v4235 = vextract.low.u32 %v4234
    %v4236 = vextract.high.u32 %v4234
    %v4237 = vmul.u32 %v4230, %v4221
    %v4238 = vadd.s32 %v4233, %v4235
    %vm4239 = vc.u32 %v4233, %v4235
    %v4240 = vadd.s32 %v4236, 1
    %v4241 = vsel %vm4239, %v4240, %v4236
    %v4242 = vadd.s32 %v4237, %v4241
    %v4243 = vadd.s32 %v4242, 536870912
    %v4244 = vshrl.u32 %v4243, 30
    %v4245 = vshll.u32 %v4244, 30
    %v4246 = vsub.s32 %v4242, %v4245
    %vm4247 = vcmp.lt.s32.totalorder %v4246, 0
    %v4248 = vsub.s32 0, %v4246
    %v4249 = vsel %vm4247, %v4248, %v4246
    %v4250 = vclz %v4249
    %v4251 = vsub.s32 %v4250, 2
    %vm4252 = vcmp.gt.s32.totalorder 0, %v4251
    %v4253 = vsel %vm4252, 0, %v4251
    %v4254 = vsub.s32 32, %v4253
    %v4255 = vshll.u32 %v4246, %v4253
    %v4256 = vshrl.u32 %v4238, %v4254
    %v4257 = vor.u32 %v4255, %v4256
    %v4258 = vsub.s32 4294967266, %v4253
    %v4259 = vadd.s32 %v4258, 127
    %v4260 = vshll.u32 %v4259, 23
    %v4261 = vor.u32 4788187, %v4260
    %v4262 = vand.u32 2147483647, %v4261
    %v4264 = vcvt.s32.f32 %v4257
    %v4265 = vmul.f32 %v4264, %v4262
    %v4266 = vxor.u32 %v4265, 2147483648
    %v4267 = vsel %vm4184, %v4266, %v4265
    %v4268 = vsub.s32 4, %v4244
    %v4269 = vsel %vm4184, %v4268, %v4244
    %v4270 = vsel %vm4183, %v1670, %v4267
    %v4271 = vsel %vm4183, 0, %v4269
    %v4272 = vcosq.f32.pop %v4270
    %v4273 = vsinq.f32.pop %v4270
    %vm4274 = vweird.f32 %v1670
    %v4275 = vand.u32 %v4271, 3
    %vm4276 = vcmp.lt.s32.totalorder %v4275, 2
    %vm4277 = vcmp.eq.s32.totalorder %v4275, 0
    %v4278 = vxor.u32 %v4273, 2147483648
    %v4279 = vsel %vm4277, %v4272, %v4278
    %vm4280 = vcmp.eq.s32.totalorder %v4275, 2
    %v4281 = vxor.u32 %v4272, 2147483648
    %v4282 = vsel %vm4280, %v4281, %v4273
    %v4283 = vsel %vm4276, %v4279, %v4282
    %v4284 = vsel %vm4274, nan, %v4283
    %v4285 = vand.u32 2147483647, %v1671
    %vm4286 = vcmp.le.f32.partialorder %v4285, 0.7853982
    %vm4287 = vcmp.lt.s32.totalorder %v1671, 0
    %v4288 = vand.u32 %v1671, 2139095040
    %v4289 = vshrl.u32 %v4288, 23
    %v4290 = vsub.s32 %v4289, 127
    %v4291 = vand.u32 2147483647, %v1671
    %v4292 = vand.u32 %v4291, 8388607
    %v4293 = vor.u32 %v4292, 8388608
    %v4294 = vsub.s32 0, %v4293
    %v4295 = vadd.s32 %v4290, 1
    %vm4296 = vcmp.gt.s32.totalorder %v4295, 0
    %v4297 = vsel %vm4296, %v4295, 0
    %v4298 = vshrl.u32 %v4297, 5
    %v4299 = vand.u32 %v4297, 31
    %v4300 = vsub.s32 32, %v4299
    %v4301 = vshrl.u32 683565275, %v4300
    %v4302 = vshll.u32 683565275, %v4299
    %v4303 = vshrl.u32 2475754826, %v4300
    %v4304 = vor.u32 %v4302, %v4303
    %v4305 = vshll.u32 2475754826, %v4299
    %v4306 = vshrl.u32 2131351028, %v4300
    %v4307 = vor.u32 %v4305, %v4306
    %v4308 = vshll.u32 2131351028, %v4299
    %v4309 = vshrl.u32 2102212464, %v4300
    %v4310 = vor.u32 %v4308, %v4309
    %v4311 = vshll.u32 2102212464, %v4299
    %v4312 = vshrl.u32 920167782, %v4300
    %v4313 = vor.u32 %v4311, %v4312
    %v4314 = vshll.u32 920167782, %v4299
    %v4315 = vshrl.u32 1326507024, %v4300
    %v4316 = vor.u32 %v4314, %v4315
    %vm4317 = vcmp.lt.s32.totalorder %v4298, 1
    %vm4318 = vcmp.lt.s32.totalorder %v4298, 2
    %vm4319 = vcmp.lt.s32.totalorder %v4298, 3
    %vm4320 = vcmp.lt.s32.totalorder %v4298, 4
    %v4321 = vsel %vm4317, %v4301, %v4304
    %v4322 = vsel %vm4320, %v4310, 2102212464
    %v4323 = vsel %vm4319, %v4307, %v4322
    %v4324 = vsel %vm4318, %v4321, %v4323
    %v4325 = vsel %vm4317, %v4304, %v4307
    %v4326 = vsel %vm4320, %v4313, 920167782
    %v4327 = vsel %vm4319, %v4310, %v4326
    %v4328 = vsel %vm4318, %v4325, %v4327
    %v4329 = vsel %vm4317, %v4307, %v4310
    %v4330 = vsel %vm4320, %v4316, 1326507024
    %v4331 = vsel %vm4319, %v4313, %v4330
    %v4332 = vsel %vm4318, %v4329, %v4331
    %v4333 = vshll.u32 %v4293, 8
    %v4334 = vmul.u32.u64.compose %v4333, %v4332
    %v4335 = vextract.low.u32 %v4334
    %v4336 = vextract.high.u32 %v4334
    %v4337 = vmul.u32.u64.compose %v4333, %v4328
    %v4338 = vextract.low.u32 %v4337
    %v4339 = vextract.high.u32 %v4337
    %v4340 = vmul.u32 %v4333, %v4324
    %v4341 = vadd.s32 %v4336, %v4338
    %vm4342 = vc.u32 %v4336, %v4338
    %v4343 = vadd.s32 %v4339, 1
    %v4344 = vsel %vm4342, %v4343, %v4339
    %v4345 = vadd.s32 %v4340, %v4344
    %v4346 = vadd.s32 %v4345, 536870912
    %v4347 = vshrl.u32 %v4346, 30
    %v4348 = vshll.u32 %v4347, 30
    %v4349 = vsub.s32 %v4345, %v4348
    %vm4350 = vcmp.lt.s32.totalorder %v4349, 0
    %v4351 = vsub.s32 0, %v4349
    %v4352 = vsel %vm4350, %v4351, %v4349
    %v4353 = vclz %v4352
    %v4354 = vsub.s32 %v4353, 2
    %vm4355 = vcmp.gt.s32.totalorder 0, %v4354
    %v4356 = vsel %vm4355, 0, %v4354
    %v4357 = vsub.s32 32, %v4356
    %v4358 = vshll.u32 %v4349, %v4356
    %v4359 = vshrl.u32 %v4341, %v4357
    %v4360 = vor.u32 %v4358, %v4359
    %v4361 = vsub.s32 4294967266, %v4356
    %v4362 = vadd.s32 %v4361, 127
    %v4363 = vshll.u32 %v4362, 23
    %v4364 = vor.u32 4788187, %v4363
    %v4365 = vand.u32 2147483647, %v4364
    %v4367 = vcvt.s32.f32 %v4360
    %v4368 = vmul.f32 %v4367, %v4365
    %v4369 = vxor.u32 %v4368, 2147483648
    %v4370 = vsel %vm4287, %v4369, %v4368
    %v4371 = vsub.s32 4, %v4347
    %v4372 = vsel %vm4287, %v4371, %v4347
    %v4373 = vsel %vm4286, %v1671, %v4370
    %v4374 = vsel %vm4286, 0, %v4372
    %v4375 = vcosq.f32.pop %v4373
    %v4376 = vsinq.f32.pop %v4373
    %vm4377 = vweird.f32 %v1671
    %v4378 = vand.u32 %v4374, 3
    %vm4379 = vcmp.lt.s32.totalorder %v4378, 2
    %vm4380 = vcmp.eq.s32.totalorder %v4378, 0
    %v4381 = vxor.u32 %v4376, 2147483648
    %v4382 = vsel %vm4380, %v4375, %v4381
    %vm4383 = vcmp.eq.s32.totalorder %v4378, 2
    %v4384 = vxor.u32 %v4375, 2147483648
    %v4385 = vsel %vm4383, %v4384, %v4376
    %v4386 = vsel %vm4379, %v4382, %v4385
    %v4387 = vsel %vm4377, nan, %v4386
    %v4388 = vand.u32 2147483647, %v1672
    %vm4389 = vcmp.le.f32.partialorder %v4388, 0.7853982
    %vm4390 = vcmp.lt.s32.totalorder %v1672, 0
    %v4391 = vand.u32 %v1672, 2139095040
    %v4392 = vshrl.u32 %v4391, 23
    %v4393 = vsub.s32 %v4392, 127
    %v4394 = vand.u32 2147483647, %v1672
    %v4395 = vand.u32 %v4394, 8388607
    %v4396 = vor.u32 %v4395, 8388608
    %v4397 = vsub.s32 0, %v4396
    %v4398 = vadd.s32 %v4393, 1
    %vm4399 = vcmp.gt.s32.totalorder %v4398, 0
    %v4400 = vsel %vm4399, %v4398, 0
    %v4401 = vshrl.u32 %v4400, 5
    %v4402 = vand.u32 %v4400, 31
    %v4403 = vsub.s32 32, %v4402
    %v4404 = vshrl.u32 683565275, %v4403
    %v4405 = vshll.u32 683565275, %v4402
    %v4406 = vshrl.u32 2475754826, %v4403
    %v4407 = vor.u32 %v4405, %v4406
    %v4408 = vshll.u32 2475754826, %v4402
    %v4409 = vshrl.u32 2131351028, %v4403
    %v4410 = vor.u32 %v4408, %v4409
    %v4411 = vshll.u32 2131351028, %v4402
    %v4412 = vshrl.u32 2102212464, %v4403
    %v4413 = vor.u32 %v4411, %v4412
    %v4414 = vshll.u32 2102212464, %v4402
    %v4415 = vshrl.u32 920167782, %v4403
    %v4416 = vor.u32 %v4414, %v4415
    %v4417 = vshll.u32 920167782, %v4402
    %v4418 = vshrl.u32 1326507024, %v4403
    %v4419 = vor.u32 %v4417, %v4418
    %vm4420 = vcmp.lt.s32.totalorder %v4401, 1
    %vm4421 = vcmp.lt.s32.totalorder %v4401, 2
    %vm4422 = vcmp.lt.s32.totalorder %v4401, 3
    %vm4423 = vcmp.lt.s32.totalorder %v4401, 4
    %v4424 = vsel %vm4420, %v4404, %v4407
    %v4425 = vsel %vm4423, %v4413, 2102212464
    %v4426 = vsel %vm4422, %v4410, %v4425
    %v4427 = vsel %vm4421, %v4424, %v4426
    %v4428 = vsel %vm4420, %v4407, %v4410
    %v4429 = vsel %vm4423, %v4416, 920167782
    %v4430 = vsel %vm4422, %v4413, %v4429
    %v4431 = vsel %vm4421, %v4428, %v4430
    %v4432 = vsel %vm4420, %v4410, %v4413
    %v4433 = vsel %vm4423, %v4419, 1326507024
    %v4434 = vsel %vm4422, %v4416, %v4433
    %v4435 = vsel %vm4421, %v4432, %v4434
    %v4436 = vshll.u32 %v4396, 8
    %v4437 = vmul.u32.u64.compose %v4436, %v4435
    %v4438 = vextract.low.u32 %v4437
    %v4439 = vextract.high.u32 %v4437
    %v4440 = vmul.u32.u64.compose %v4436, %v4431
    %v4441 = vextract.low.u32 %v4440
    %v4442 = vextract.high.u32 %v4440
    %v4443 = vmul.u32 %v4436, %v4427
    %v4444 = vadd.s32 %v4439, %v4441
    %vm4445 = vc.u32 %v4439, %v4441
    %v4446 = vadd.s32 %v4442, 1
    %v4447 = vsel %vm4445, %v4446, %v4442
    %v4448 = vadd.s32 %v4443, %v4447
    %v4449 = vadd.s32 %v4448, 536870912
    %v4450 = vshrl.u32 %v4449, 30
    %v4451 = vshll.u32 %v4450, 30
    %v4452 = vsub.s32 %v4448, %v4451
    %vm4453 = vcmp.lt.s32.totalorder %v4452, 0
    %v4454 = vsub.s32 0, %v4452
    %v4455 = vsel %vm4453, %v4454, %v4452
    %v4456 = vclz %v4455
    %v4457 = vsub.s32 %v4456, 2
    %vm4458 = vcmp.gt.s32.totalorder 0, %v4457
    %v4459 = vsel %vm4458, 0, %v4457
    %v4460 = vsub.s32 32, %v4459
    %v4461 = vshll.u32 %v4452, %v4459
    %v4462 = vshrl.u32 %v4444, %v4460
    %v4463 = vor.u32 %v4461, %v4462
    %v4464 = vsub.s32 4294967266, %v4459
    %v4465 = vadd.s32 %v4464, 127
    %v4466 = vshll.u32 %v4465, 23
    %v4467 = vor.u32 4788187, %v4466
    %v4468 = vand.u32 2147483647, %v4467
    %v4470 = vcvt.s32.f32 %v4463
    %v4471 = vmul.f32 %v4470, %v4468
    %v4472 = vxor.u32 %v4471, 2147483648
    %v4473 = vsel %vm4390, %v4472, %v4471
    %v4474 = vsub.s32 4, %v4450
    %v4475 = vsel %vm4390, %v4474, %v4450
    %v4476 = vsel %vm4389, %v1672, %v4473
    %v4477 = vsel %vm4389, 0, %v4475
    %v4478 = vcosq.f32.pop %v4476
    %v4479 = vsinq.f32.pop %v4476
    %vm4480 = vweird.f32 %v1672
    %v4481 = vand.u32 %v4477, 3
    %vm4482 = vcmp.lt.s32.totalorder %v4481, 2
    %vm4483 = vcmp.eq.s32.totalorder %v4481, 0
    %v4484 = vxor.u32 %v4479, 2147483648
    %v4485 = vsel %vm4483, %v4478, %v4484
    %vm4486 = vcmp.eq.s32.totalorder %v4481, 2
    %v4487 = vxor.u32 %v4478, 2147483648
    %v4488 = vsel %vm4486, %v4487, %v4479
    %v4489 = vsel %vm4482, %v4485, %v4488
    %v4490 = vsel %vm4480, nan, %v4489
    %v4491 = vand.u32 2147483647, %v1673
    %vm4492 = vcmp.le.f32.partialorder %v4491, 0.7853982
    %vm4493 = vcmp.lt.s32.totalorder %v1673, 0
    %v4494 = vand.u32 %v1673, 2139095040
    %v4495 = vshrl.u32 %v4494, 23
    %v4496 = vsub.s32 %v4495, 127
    %v4497 = vand.u32 2147483647, %v1673
    %v4498 = vand.u32 %v4497, 8388607
    %v4499 = vor.u32 %v4498, 8388608
    %v4500 = vsub.s32 0, %v4499
    %v4501 = vadd.s32 %v4496, 1
    %vm4502 = vcmp.gt.s32.totalorder %v4501, 0
    %v4503 = vsel %vm4502, %v4501, 0
    %v4504 = vshrl.u32 %v4503, 5
    %v4505 = vand.u32 %v4503, 31
    %v4506 = vsub.s32 32, %v4505
    %v4507 = vshrl.u32 683565275, %v4506
    %v4508 = vshll.u32 683565275, %v4505
    %v4509 = vshrl.u32 2475754826, %v4506
    %v4510 = vor.u32 %v4508, %v4509
    %v4511 = vshll.u32 2475754826, %v4505
    %v4512 = vshrl.u32 2131351028, %v4506
    %v4513 = vor.u32 %v4511, %v4512
    %v4514 = vshll.u32 2131351028, %v4505
    %v4515 = vshrl.u32 2102212464, %v4506
    %v4516 = vor.u32 %v4514, %v4515
    %v4517 = vshll.u32 2102212464, %v4505
    %v4518 = vshrl.u32 920167782, %v4506
    %v4519 = vor.u32 %v4517, %v4518
    %v4520 = vshll.u32 920167782, %v4505
    %v4521 = vshrl.u32 1326507024, %v4506
    %v4522 = vor.u32 %v4520, %v4521
    %vm4523 = vcmp.lt.s32.totalorder %v4504, 1
    %vm4524 = vcmp.lt.s32.totalorder %v4504, 2
    %vm4525 = vcmp.lt.s32.totalorder %v4504, 3
    %vm4526 = vcmp.lt.s32.totalorder %v4504, 4
    %v4527 = vsel %vm4523, %v4507, %v4510
    %v4528 = vsel %vm4526, %v4516, 2102212464
    %v4529 = vsel %vm4525, %v4513, %v4528
    %v4530 = vsel %vm4524, %v4527, %v4529
    %v4531 = vsel %vm4523, %v4510, %v4513
    %v4532 = vsel %vm4526, %v4519, 920167782
    %v4533 = vsel %vm4525, %v4516, %v4532
    %v4534 = vsel %vm4524, %v4531, %v4533
    %v4535 = vsel %vm4523, %v4513, %v4516
    %v4536 = vsel %vm4526, %v4522, 1326507024
    %v4537 = vsel %vm4525, %v4519, %v4536
    %v4538 = vsel %vm4524, %v4535, %v4537
    %v4539 = vshll.u32 %v4499, 8
    %v4540 = vmul.u32.u64.compose %v4539, %v4538
    %v4541 = vextract.low.u32 %v4540
    %v4542 = vextract.high.u32 %v4540
    %v4543 = vmul.u32.u64.compose %v4539, %v4534
    %v4544 = vextract.low.u32 %v4543
    %v4545 = vextract.high.u32 %v4543
    %v4546 = vmul.u32 %v4539, %v4530
    %v4547 = vadd.s32 %v4542, %v4544
    %vm4548 = vc.u32 %v4542, %v4544
    %v4549 = vadd.s32 %v4545, 1
    %v4550 = vsel %vm4548, %v4549, %v4545
    %v4551 = vadd.s32 %v4546, %v4550
    %v4552 = vadd.s32 %v4551, 536870912
    %v4553 = vshrl.u32 %v4552, 30
    %v4554 = vshll.u32 %v4553, 30
    %v4555 = vsub.s32 %v4551, %v4554
    %vm4556 = vcmp.lt.s32.totalorder %v4555, 0
    %v4557 = vsub.s32 0, %v4555
    %v4558 = vsel %vm4556, %v4557, %v4555
    %v4559 = vclz %v4558
    %v4560 = vsub.s32 %v4559, 2
    %vm4561 = vcmp.gt.s32.totalorder 0, %v4560
    %v4562 = vsel %vm4561, 0, %v4560
    %v4563 = vsub.s32 32, %v4562
    %v4564 = vshll.u32 %v4555, %v4562
    %v4565 = vshrl.u32 %v4547, %v4563
    %v4566 = vor.u32 %v4564, %v4565
    %v4567 = vsub.s32 4294967266, %v4562
    %v4568 = vadd.s32 %v4567, 127
    %v4569 = vshll.u32 %v4568, 23
    %v4570 = vor.u32 4788187, %v4569
    %v4571 = vand.u32 2147483647, %v4570
    %v4573 = vcvt.s32.f32 %v4566
    %v4574 = vmul.f32 %v4573, %v4571
    %v4575 = vxor.u32 %v4574, 2147483648
    %v4576 = vsel %vm4493, %v4575, %v4574
    %v4577 = vsub.s32 4, %v4553
    %v4578 = vsel %vm4493, %v4577, %v4553
    %v4579 = vsel %vm4492, %v1673, %v4576
    %v4580 = vsel %vm4492, 0, %v4578
    %v4581 = vcosq.f32.pop %v4579
    %v4582 = vsinq.f32.pop %v4579
    %vm4583 = vweird.f32 %v1673
    %v4584 = vand.u32 %v4580, 3
    %vm4585 = vcmp.lt.s32.totalorder %v4584, 2
    %vm4586 = vcmp.eq.s32.totalorder %v4584, 0
    %v4587 = vxor.u32 %v4582, 2147483648
    %v4588 = vsel %vm4586, %v4581, %v4587
    %vm4589 = vcmp.eq.s32.totalorder %v4584, 2
    %v4590 = vxor.u32 %v4581, 2147483648
    %v4591 = vsel %vm4589, %v4590, %v4582
    %v4592 = vsel %vm4585, %v4588, %v4591
    %v4593 = vsel %vm4583, nan, %v4592
    %v4594 = vand.u32 2147483647, %v1674
    %vm4595 = vcmp.le.f32.partialorder %v4594, 0.7853982
    %vm4596 = vcmp.lt.s32.totalorder %v1674, 0
    %v4597 = vand.u32 %v1674, 2139095040
    %v4598 = vshrl.u32 %v4597, 23
    %v4599 = vsub.s32 %v4598, 127
    %v4600 = vand.u32 2147483647, %v1674
    %v4601 = vand.u32 %v4600, 8388607
    %v4602 = vor.u32 %v4601, 8388608
    %v4603 = vsub.s32 0, %v4602
    %v4604 = vadd.s32 %v4599, 1
    %vm4605 = vcmp.gt.s32.totalorder %v4604, 0
    %v4606 = vsel %vm4605, %v4604, 0
    %v4607 = vshrl.u32 %v4606, 5
    %v4608 = vand.u32 %v4606, 31
    %v4609 = vsub.s32 32, %v4608
    %v4610 = vshrl.u32 683565275, %v4609
    %v4611 = vshll.u32 683565275, %v4608
    %v4612 = vshrl.u32 2475754826, %v4609
    %v4613 = vor.u32 %v4611, %v4612
    %v4614 = vshll.u32 2475754826, %v4608
    %v4615 = vshrl.u32 2131351028, %v4609
    %v4616 = vor.u32 %v4614, %v4615
    %v4617 = vshll.u32 2131351028, %v4608
    %v4618 = vshrl.u32 2102212464, %v4609
    %v4619 = vor.u32 %v4617, %v4618
    %v4620 = vshll.u32 2102212464, %v4608
    %v4621 = vshrl.u32 920167782, %v4609
    %v4622 = vor.u32 %v4620, %v4621
    %v4623 = vshll.u32 920167782, %v4608
    %v4624 = vshrl.u32 1326507024, %v4609
    %v4625 = vor.u32 %v4623, %v4624
    %vm4626 = vcmp.lt.s32.totalorder %v4607, 1
    %vm4627 = vcmp.lt.s32.totalorder %v4607, 2
    %vm4628 = vcmp.lt.s32.totalorder %v4607, 3
    %vm4629 = vcmp.lt.s32.totalorder %v4607, 4
    %v4630 = vsel %vm4626, %v4610, %v4613
    %v4631 = vsel %vm4629, %v4619, 2102212464
    %v4632 = vsel %vm4628, %v4616, %v4631
    %v4633 = vsel %vm4627, %v4630, %v4632
    %v4634 = vsel %vm4626, %v4613, %v4616
    %v4635 = vsel %vm4629, %v4622, 920167782
    %v4636 = vsel %vm4628, %v4619, %v4635
    %v4637 = vsel %vm4627, %v4634, %v4636
    %v4638 = vsel %vm4626, %v4616, %v4619
    %v4639 = vsel %vm4629, %v4625, 1326507024
    %v4640 = vsel %vm4628, %v4622, %v4639
    %v4641 = vsel %vm4627, %v4638, %v4640
    %v4642 = vshll.u32 %v4602, 8
    %v4643 = vmul.u32.u64.compose %v4642, %v4641
    %v4644 = vextract.low.u32 %v4643
    %v4645 = vextract.high.u32 %v4643
    %v4646 = vmul.u32.u64.compose %v4642, %v4637
    %v4647 = vextract.low.u32 %v4646
    %v4648 = vextract.high.u32 %v4646
    %v4649 = vmul.u32 %v4642, %v4633
    %v4650 = vadd.s32 %v4645, %v4647
    %vm4651 = vc.u32 %v4645, %v4647
    %v4652 = vadd.s32 %v4648, 1
    %v4653 = vsel %vm4651, %v4652, %v4648
    %v4654 = vadd.s32 %v4649, %v4653
    %v4655 = vadd.s32 %v4654, 536870912
    %v4656 = vshrl.u32 %v4655, 30
    %v4657 = vshll.u32 %v4656, 30
    %v4658 = vsub.s32 %v4654, %v4657
    %vm4659 = vcmp.lt.s32.totalorder %v4658, 0
    %v4660 = vsub.s32 0, %v4658
    %v4661 = vsel %vm4659, %v4660, %v4658
    %v4662 = vclz %v4661
    %v4663 = vsub.s32 %v4662, 2
    %vm4664 = vcmp.gt.s32.totalorder 0, %v4663
    %v4665 = vsel %vm4664, 0, %v4663
    %v4666 = vsub.s32 32, %v4665
    %v4667 = vshll.u32 %v4658, %v4665
    %v4668 = vshrl.u32 %v4650, %v4666
    %v4669 = vor.u32 %v4667, %v4668
    %v4670 = vsub.s32 4294967266, %v4665
    %v4671 = vadd.s32 %v4670, 127
    %v4672 = vshll.u32 %v4671, 23
    %v4673 = vor.u32 4788187, %v4672
    %v4674 = vand.u32 2147483647, %v4673
    %v4676 = vcvt.s32.f32 %v4669
    %v4677 = vmul.f32 %v4676, %v4674
    %v4678 = vxor.u32 %v4677, 2147483648
    %v4679 = vsel %vm4596, %v4678, %v4677
    %v4680 = vsub.s32 4, %v4656
    %v4681 = vsel %vm4596, %v4680, %v4656
    %v4682 = vsel %vm4595, %v1674, %v4679
    %v4683 = vsel %vm4595, 0, %v4681
    %v4684 = vcosq.f32.pop %v4682
    %v4685 = vsinq.f32.pop %v4682
    %vm4686 = vweird.f32 %v1674
    %v4687 = vand.u32 %v4683, 3
    %vm4688 = vcmp.lt.s32.totalorder %v4687, 2
    %vm4689 = vcmp.eq.s32.totalorder %v4687, 0
    %v4690 = vxor.u32 %v4685, 2147483648
    %v4691 = vsel %vm4689, %v4684, %v4690
    %vm4692 = vcmp.eq.s32.totalorder %v4687, 2
    %v4693 = vxor.u32 %v4684, 2147483648
    %v4694 = vsel %vm4692, %v4693, %v4685
    %v4695 = vsel %vm4688, %v4691, %v4694
    %v4696 = vsel %vm4686, nan, %v4695
    %v4697 = vand.u32 2147483647, %v1675
    %vm4698 = vcmp.le.f32.partialorder %v4697, 0.7853982
    %vm4699 = vcmp.lt.s32.totalorder %v1675, 0
    %v4700 = vand.u32 %v1675, 2139095040
    %v4701 = vshrl.u32 %v4700, 23
    %v4702 = vsub.s32 %v4701, 127
    %v4703 = vand.u32 2147483647, %v1675
    %v4704 = vand.u32 %v4703, 8388607
    %v4705 = vor.u32 %v4704, 8388608
    %v4706 = vsub.s32 0, %v4705
    %v4707 = vadd.s32 %v4702, 1
    %vm4708 = vcmp.gt.s32.totalorder %v4707, 0
    %v4709 = vsel %vm4708, %v4707, 0
    %v4710 = vshrl.u32 %v4709, 5
    %v4711 = vand.u32 %v4709, 31
    %v4712 = vsub.s32 32, %v4711
    %v4713 = vshrl.u32 683565275, %v4712
    %v4714 = vshll.u32 683565275, %v4711
    %v4715 = vshrl.u32 2475754826, %v4712
    %v4716 = vor.u32 %v4714, %v4715
    %v4717 = vshll.u32 2475754826, %v4711
    %v4718 = vshrl.u32 2131351028, %v4712
    %v4719 = vor.u32 %v4717, %v4718
    %v4720 = vshll.u32 2131351028, %v4711
    %v4721 = vshrl.u32 2102212464, %v4712
    %v4722 = vor.u32 %v4720, %v4721
    %v4723 = vshll.u32 2102212464, %v4711
    %v4724 = vshrl.u32 920167782, %v4712
    %v4725 = vor.u32 %v4723, %v4724
    %v4726 = vshll.u32 920167782, %v4711
    %v4727 = vshrl.u32 1326507024, %v4712
    %v4728 = vor.u32 %v4726, %v4727
    %vm4729 = vcmp.lt.s32.totalorder %v4710, 1
    %vm4730 = vcmp.lt.s32.totalorder %v4710, 2
    %vm4731 = vcmp.lt.s32.totalorder %v4710, 3
    %vm4732 = vcmp.lt.s32.totalorder %v4710, 4
    %v4733 = vsel %vm4729, %v4713, %v4716
    %v4734 = vsel %vm4732, %v4722, 2102212464
    %v4735 = vsel %vm4731, %v4719, %v4734
    %v4736 = vsel %vm4730, %v4733, %v4735
    %v4737 = vsel %vm4729, %v4716, %v4719
    %v4738 = vsel %vm4732, %v4725, 920167782
    %v4739 = vsel %vm4731, %v4722, %v4738
    %v4740 = vsel %vm4730, %v4737, %v4739
    %v4741 = vsel %vm4729, %v4719, %v4722
    %v4742 = vsel %vm4732, %v4728, 1326507024
    %v4743 = vsel %vm4731, %v4725, %v4742
    %v4744 = vsel %vm4730, %v4741, %v4743
    %v4745 = vshll.u32 %v4705, 8
    %v4746 = vmul.u32.u64.compose %v4745, %v4744
    %v4747 = vextract.low.u32 %v4746
    %v4748 = vextract.high.u32 %v4746
    %v4749 = vmul.u32.u64.compose %v4745, %v4740
    %v4750 = vextract.low.u32 %v4749
    %v4751 = vextract.high.u32 %v4749
    %v4752 = vmul.u32 %v4745, %v4736
    %v4753 = vadd.s32 %v4748, %v4750
    %vm4754 = vc.u32 %v4748, %v4750
    %v4755 = vadd.s32 %v4751, 1
    %v4756 = vsel %vm4754, %v4755, %v4751
    %v4757 = vadd.s32 %v4752, %v4756
    %v4758 = vadd.s32 %v4757, 536870912
    %v4759 = vshrl.u32 %v4758, 30
    %v4760 = vshll.u32 %v4759, 30
    %v4761 = vsub.s32 %v4757, %v4760
    %vm4762 = vcmp.lt.s32.totalorder %v4761, 0
    %v4763 = vsub.s32 0, %v4761
    %v4764 = vsel %vm4762, %v4763, %v4761
    %v4765 = vclz %v4764
    %v4766 = vsub.s32 %v4765, 2
    %vm4767 = vcmp.gt.s32.totalorder 0, %v4766
    %v4768 = vsel %vm4767, 0, %v4766
    %v4769 = vsub.s32 32, %v4768
    %v4770 = vshll.u32 %v4761, %v4768
    %v4771 = vshrl.u32 %v4753, %v4769
    %v4772 = vor.u32 %v4770, %v4771
    %v4773 = vsub.s32 4294967266, %v4768
    %v4774 = vadd.s32 %v4773, 127
    %v4775 = vshll.u32 %v4774, 23
    %v4776 = vor.u32 4788187, %v4775
    %v4777 = vand.u32 2147483647, %v4776
    %v4779 = vcvt.s32.f32 %v4772
    %v4780 = vmul.f32 %v4779, %v4777
    %v4781 = vxor.u32 %v4780, 2147483648
    %v4782 = vsel %vm4699, %v4781, %v4780
    %v4783 = vsub.s32 4, %v4759
    %v4784 = vsel %vm4699, %v4783, %v4759
    %v4785 = vsel %vm4698, %v1675, %v4782
    %v4786 = vsel %vm4698, 0, %v4784
    %v4787 = vcosq.f32.pop %v4785
    %v4788 = vsinq.f32.pop %v4785
    %vm4789 = vweird.f32 %v1675
    %v4790 = vand.u32 %v4786, 3
    %vm4791 = vcmp.lt.s32.totalorder %v4790, 2
    %vm4792 = vcmp.eq.s32.totalorder %v4790, 0
    %v4793 = vxor.u32 %v4788, 2147483648
    %v4794 = vsel %vm4792, %v4787, %v4793
    %vm4795 = vcmp.eq.s32.totalorder %v4790, 2
    %v4796 = vxor.u32 %v4787, 2147483648
    %v4797 = vsel %vm4795, %v4796, %v4788
    %v4798 = vsel %vm4791, %v4794, %v4797
    %v4799 = vsel %vm4789, nan, %v4798
    %v4800 = vand.u32 2147483647, %v1676
    %vm4801 = vcmp.le.f32.partialorder %v4800, 0.7853982
    %vm4802 = vcmp.lt.s32.totalorder %v1676, 0
    %v4803 = vand.u32 %v1676, 2139095040
    %v4804 = vshrl.u32 %v4803, 23
    %v4805 = vsub.s32 %v4804, 127
    %v4806 = vand.u32 2147483647, %v1676
    %v4807 = vand.u32 %v4806, 8388607
    %v4808 = vor.u32 %v4807, 8388608
    %v4809 = vsub.s32 0, %v4808
    %v4810 = vadd.s32 %v4805, 1
    %vm4811 = vcmp.gt.s32.totalorder %v4810, 0
    %v4812 = vsel %vm4811, %v4810, 0
    %v4813 = vshrl.u32 %v4812, 5
    %v4814 = vand.u32 %v4812, 31
    %v4815 = vsub.s32 32, %v4814
    %v4816 = vshrl.u32 683565275, %v4815
    %v4817 = vshll.u32 683565275, %v4814
    %v4818 = vshrl.u32 2475754826, %v4815
    %v4819 = vor.u32 %v4817, %v4818
    %v4820 = vshll.u32 2475754826, %v4814
    %v4821 = vshrl.u32 2131351028, %v4815
    %v4822 = vor.u32 %v4820, %v4821
    %v4823 = vshll.u32 2131351028, %v4814
    %v4824 = vshrl.u32 2102212464, %v4815
    %v4825 = vor.u32 %v4823, %v4824
    %v4826 = vshll.u32 2102212464, %v4814
    %v4827 = vshrl.u32 920167782, %v4815
    %v4828 = vor.u32 %v4826, %v4827
    %v4829 = vshll.u32 920167782, %v4814
    %v4830 = vshrl.u32 1326507024, %v4815
    %v4831 = vor.u32 %v4829, %v4830
    %vm4832 = vcmp.lt.s32.totalorder %v4813, 1
    %vm4833 = vcmp.lt.s32.totalorder %v4813, 2
    %vm4834 = vcmp.lt.s32.totalorder %v4813, 3
    %vm4835 = vcmp.lt.s32.totalorder %v4813, 4
    %v4836 = vsel %vm4832, %v4816, %v4819
    %v4837 = vsel %vm4835, %v4825, 2102212464
    %v4838 = vsel %vm4834, %v4822, %v4837
    %v4839 = vsel %vm4833, %v4836, %v4838
    %v4840 = vsel %vm4832, %v4819, %v4822
    %v4841 = vsel %vm4835, %v4828, 920167782
    %v4842 = vsel %vm4834, %v4825, %v4841
    %v4843 = vsel %vm4833, %v4840, %v4842
    %v4844 = vsel %vm4832, %v4822, %v4825
    %v4845 = vsel %vm4835, %v4831, 1326507024
    %v4846 = vsel %vm4834, %v4828, %v4845
    %v4847 = vsel %vm4833, %v4844, %v4846
    %v4848 = vshll.u32 %v4808, 8
    %v4849 = vmul.u32.u64.compose %v4848, %v4847
    %v4850 = vextract.low.u32 %v4849
    %v4851 = vextract.high.u32 %v4849
    %v4852 = vmul.u32.u64.compose %v4848, %v4843
    %v4853 = vextract.low.u32 %v4852
    %v4854 = vextract.high.u32 %v4852
    %v4855 = vmul.u32 %v4848, %v4839
    %v4856 = vadd.s32 %v4851, %v4853
    %vm4857 = vc.u32 %v4851, %v4853
    %v4858 = vadd.s32 %v4854, 1
    %v4859 = vsel %vm4857, %v4858, %v4854
    %v4860 = vadd.s32 %v4855, %v4859
    %v4861 = vadd.s32 %v4860, 536870912
    %v4862 = vshrl.u32 %v4861, 30
    %v4863 = vshll.u32 %v4862, 30
    %v4864 = vsub.s32 %v4860, %v4863
    %vm4865 = vcmp.lt.s32.totalorder %v4864, 0
    %v4866 = vsub.s32 0, %v4864
    %v4867 = vsel %vm4865, %v4866, %v4864
    %v4868 = vclz %v4867
    %v4869 = vsub.s32 %v4868, 2
    %vm4870 = vcmp.gt.s32.totalorder 0, %v4869
    %v4871 = vsel %vm4870, 0, %v4869
    %v4872 = vsub.s32 32, %v4871
    %v4873 = vshll.u32 %v4864, %v4871
    %v4874 = vshrl.u32 %v4856, %v4872
    %v4875 = vor.u32 %v4873, %v4874
    %v4876 = vsub.s32 4294967266, %v4871
    %v4877 = vadd.s32 %v4876, 127
    %v4878 = vshll.u32 %v4877, 23
    %v4879 = vor.u32 4788187, %v4878
    %v4880 = vand.u32 2147483647, %v4879
    %v4882 = vcvt.s32.f32 %v4875
    %v4883 = vmul.f32 %v4882, %v4880
    %v4884 = vxor.u32 %v4883, 2147483648
    %v4885 = vsel %vm4802, %v4884, %v4883
    %v4886 = vsub.s32 4, %v4862
    %v4887 = vsel %vm4802, %v4886, %v4862
    %v4888 = vsel %vm4801, %v1676, %v4885
    %v4889 = vsel %vm4801, 0, %v4887
    %v4890 = vcosq.f32.pop %v4888
    %v4891 = vsinq.f32.pop %v4888
    %vm4892 = vweird.f32 %v1676
    %v4893 = vand.u32 %v4889, 3
    %vm4894 = vcmp.lt.s32.totalorder %v4893, 2
    %vm4895 = vcmp.eq.s32.totalorder %v4893, 0
    %v4896 = vxor.u32 %v4891, 2147483648
    %v4897 = vsel %vm4895, %v4890, %v4896
    %vm4898 = vcmp.eq.s32.totalorder %v4893, 2
    %v4899 = vxor.u32 %v4890, 2147483648
    %v4900 = vsel %vm4898, %v4899, %v4891
    %v4901 = vsel %vm4894, %v4897, %v4900
    %v4902 = vsel %vm4892, nan, %v4901
    %v4903 = vand.u32 2147483647, %v1677
    %vm4904 = vcmp.le.f32.partialorder %v4903, 0.7853982
    %vm4905 = vcmp.lt.s32.totalorder %v1677, 0
    %v4906 = vand.u32 %v1677, 2139095040
    %v4907 = vshrl.u32 %v4906, 23
    %v4908 = vsub.s32 %v4907, 127
    %v4909 = vand.u32 2147483647, %v1677
    %v4910 = vand.u32 %v4909, 8388607
    %v4911 = vor.u32 %v4910, 8388608
    %v4912 = vsub.s32 0, %v4911
    %v4913 = vadd.s32 %v4908, 1
    %vm4914 = vcmp.gt.s32.totalorder %v4913, 0
    %v4915 = vsel %vm4914, %v4913, 0
    %v4916 = vshrl.u32 %v4915, 5
    %v4917 = vand.u32 %v4915, 31
    %v4918 = vsub.s32 32, %v4917
    %v4919 = vshrl.u32 683565275, %v4918
    %v4920 = vshll.u32 683565275, %v4917
    %v4921 = vshrl.u32 2475754826, %v4918
    %v4922 = vor.u32 %v4920, %v4921
    %v4923 = vshll.u32 2475754826, %v4917
    %v4924 = vshrl.u32 2131351028, %v4918
    %v4925 = vor.u32 %v4923, %v4924
    %v4926 = vshll.u32 2131351028, %v4917
    %v4927 = vshrl.u32 2102212464, %v4918
    %v4928 = vor.u32 %v4926, %v4927
    %v4929 = vshll.u32 2102212464, %v4917
    %v4930 = vshrl.u32 920167782, %v4918
    %v4931 = vor.u32 %v4929, %v4930
    %v4932 = vshll.u32 920167782, %v4917
    %v4933 = vshrl.u32 1326507024, %v4918
    %v4934 = vor.u32 %v4932, %v4933
    %vm4935 = vcmp.lt.s32.totalorder %v4916, 1
    %vm4936 = vcmp.lt.s32.totalorder %v4916, 2
    %vm4937 = vcmp.lt.s32.totalorder %v4916, 3
    %vm4938 = vcmp.lt.s32.totalorder %v4916, 4
    %v4939 = vsel %vm4935, %v4919, %v4922
    %v4940 = vsel %vm4938, %v4928, 2102212464
    %v4941 = vsel %vm4937, %v4925, %v4940
    %v4942 = vsel %vm4936, %v4939, %v4941
    %v4943 = vsel %vm4935, %v4922, %v4925
    %v4944 = vsel %vm4938, %v4931, 920167782
    %v4945 = vsel %vm4937, %v4928, %v4944
    %v4946 = vsel %vm4936, %v4943, %v4945
    %v4947 = vsel %vm4935, %v4925, %v4928
    %v4948 = vsel %vm4938, %v4934, 1326507024
    %v4949 = vsel %vm4937, %v4931, %v4948
    %v4950 = vsel %vm4936, %v4947, %v4949
    %v4951 = vshll.u32 %v4911, 8
    %v4952 = vmul.u32.u64.compose %v4951, %v4950
    %v4953 = vextract.low.u32 %v4952
    %v4954 = vextract.high.u32 %v4952
    %v4955 = vmul.u32.u64.compose %v4951, %v4946
    %v4956 = vextract.low.u32 %v4955
    %v4957 = vextract.high.u32 %v4955
    %v4958 = vmul.u32 %v4951, %v4942
    %v4959 = vadd.s32 %v4954, %v4956
    %vm4960 = vc.u32 %v4954, %v4956
    %v4961 = vadd.s32 %v4957, 1
    %v4962 = vsel %vm4960, %v4961, %v4957
    %v4963 = vadd.s32 %v4958, %v4962
    %v4964 = vadd.s32 %v4963, 536870912
    %v4965 = vshrl.u32 %v4964, 30
    %v4966 = vshll.u32 %v4965, 30
    %v4967 = vsub.s32 %v4963, %v4966
    %vm4968 = vcmp.lt.s32.totalorder %v4967, 0
    %v4969 = vsub.s32 0, %v4967
    %v4970 = vsel %vm4968, %v4969, %v4967
    %v4971 = vclz %v4970
    %v4972 = vsub.s32 %v4971, 2
    %vm4973 = vcmp.gt.s32.totalorder 0, %v4972
    %v4974 = vsel %vm4973, 0, %v4972
    %v4975 = vsub.s32 32, %v4974
    %v4976 = vshll.u32 %v4967, %v4974
    %v4977 = vshrl.u32 %v4959, %v4975
    %v4978 = vor.u32 %v4976, %v4977
    %v4979 = vsub.s32 4294967266, %v4974
    %v4980 = vadd.s32 %v4979, 127
    %v4981 = vshll.u32 %v4980, 23
    %v4982 = vor.u32 4788187, %v4981
    %v4983 = vand.u32 2147483647, %v4982
    %v4985 = vcvt.s32.f32 %v4978
    %v4986 = vmul.f32 %v4985, %v4983
    %v4987 = vxor.u32 %v4986, 2147483648
    %v4988 = vsel %vm4905, %v4987, %v4986
    %v4989 = vsub.s32 4, %v4965
    %v4990 = vsel %vm4905, %v4989, %v4965
    %v4991 = vsel %vm4904, %v1677, %v4988
    %v4992 = vsel %vm4904, 0, %v4990
    %v4993 = vcosq.f32.pop %v4991
    %v4994 = vsinq.f32.pop %v4991
    %vm4995 = vweird.f32 %v1677
    %v4996 = vand.u32 %v4992, 3
    %vm4997 = vcmp.lt.s32.totalorder %v4996, 2
    %vm4998 = vcmp.eq.s32.totalorder %v4996, 0
    %v4999 = vxor.u32 %v4994, 2147483648
    %v5000 = vsel %vm4998, %v4993, %v4999
    %vm5001 = vcmp.eq.s32.totalorder %v4996, 2
    %v5002 = vxor.u32 %v4993, 2147483648
    %v5003 = vsel %vm5001, %v5002, %v4994
    %v5004 = vsel %vm4997, %v5000, %v5003
    %v5005 = vsel %vm4995, nan, %v5004
    %v5006 = vand.u32 2147483647, %v1678
    %vm5007 = vcmp.le.f32.partialorder %v5006, 0.7853982
    %vm5008 = vcmp.lt.s32.totalorder %v1678, 0
    %v5009 = vand.u32 %v1678, 2139095040
    %v5010 = vshrl.u32 %v5009, 23
    %v5011 = vsub.s32 %v5010, 127
    %v5012 = vand.u32 2147483647, %v1678
    %v5013 = vand.u32 %v5012, 8388607
    %v5014 = vor.u32 %v5013, 8388608
    %v5015 = vsub.s32 0, %v5014
    %v5016 = vadd.s32 %v5011, 1
    %vm5017 = vcmp.gt.s32.totalorder %v5016, 0
    %v5018 = vsel %vm5017, %v5016, 0
    %v5019 = vshrl.u32 %v5018, 5
    %v5020 = vand.u32 %v5018, 31
    %v5021 = vsub.s32 32, %v5020
    %v5022 = vshrl.u32 683565275, %v5021
    %v5023 = vshll.u32 683565275, %v5020
    %v5024 = vshrl.u32 2475754826, %v5021
    %v5025 = vor.u32 %v5023, %v5024
    %v5026 = vshll.u32 2475754826, %v5020
    %v5027 = vshrl.u32 2131351028, %v5021
    %v5028 = vor.u32 %v5026, %v5027
    %v5029 = vshll.u32 2131351028, %v5020
    %v5030 = vshrl.u32 2102212464, %v5021
    %v5031 = vor.u32 %v5029, %v5030
    %v5032 = vshll.u32 2102212464, %v5020
    %v5033 = vshrl.u32 920167782, %v5021
    %v5034 = vor.u32 %v5032, %v5033
    %v5035 = vshll.u32 920167782, %v5020
    %v5036 = vshrl.u32 1326507024, %v5021
    %v5037 = vor.u32 %v5035, %v5036
    %vm5038 = vcmp.lt.s32.totalorder %v5019, 1
    %vm5039 = vcmp.lt.s32.totalorder %v5019, 2
    %vm5040 = vcmp.lt.s32.totalorder %v5019, 3
    %vm5041 = vcmp.lt.s32.totalorder %v5019, 4
    %v5042 = vsel %vm5038, %v5022, %v5025
    %v5043 = vsel %vm5041, %v5031, 2102212464
    %v5044 = vsel %vm5040, %v5028, %v5043
    %v5045 = vsel %vm5039, %v5042, %v5044
    %v5046 = vsel %vm5038, %v5025, %v5028
    %v5047 = vsel %vm5041, %v5034, 920167782
    %v5048 = vsel %vm5040, %v5031, %v5047
    %v5049 = vsel %vm5039, %v5046, %v5048
    %v5050 = vsel %vm5038, %v5028, %v5031
    %v5051 = vsel %vm5041, %v5037, 1326507024
    %v5052 = vsel %vm5040, %v5034, %v5051
    %v5053 = vsel %vm5039, %v5050, %v5052
    %v5054 = vshll.u32 %v5014, 8
    %v5055 = vmul.u32.u64.compose %v5054, %v5053
    %v5056 = vextract.low.u32 %v5055
    %v5057 = vextract.high.u32 %v5055
    %v5058 = vmul.u32.u64.compose %v5054, %v5049
    %v5059 = vextract.low.u32 %v5058
    %v5060 = vextract.high.u32 %v5058
    %v5061 = vmul.u32 %v5054, %v5045
    %v5062 = vadd.s32 %v5057, %v5059
    %vm5063 = vc.u32 %v5057, %v5059
    %v5064 = vadd.s32 %v5060, 1
    %v5065 = vsel %vm5063, %v5064, %v5060
    %v5066 = vadd.s32 %v5061, %v5065
    %v5067 = vadd.s32 %v5066, 536870912
    %v5068 = vshrl.u32 %v5067, 30
    %v5069 = vshll.u32 %v5068, 30
    %v5070 = vsub.s32 %v5066, %v5069
    %vm5071 = vcmp.lt.s32.totalorder %v5070, 0
    %v5072 = vsub.s32 0, %v5070
    %v5073 = vsel %vm5071, %v5072, %v5070
    %v5074 = vclz %v5073
    %v5075 = vsub.s32 %v5074, 2
    %vm5076 = vcmp.gt.s32.totalorder 0, %v5075
    %v5077 = vsel %vm5076, 0, %v5075
    %v5078 = vsub.s32 32, %v5077
    %v5079 = vshll.u32 %v5070, %v5077
    %v5080 = vshrl.u32 %v5062, %v5078
    %v5081 = vor.u32 %v5079, %v5080
    %v5082 = vsub.s32 4294967266, %v5077
    %v5083 = vadd.s32 %v5082, 127
    %v5084 = vshll.u32 %v5083, 23
    %v5085 = vor.u32 4788187, %v5084
    %v5086 = vand.u32 2147483647, %v5085
    %v5088 = vcvt.s32.f32 %v5081
    %v5089 = vmul.f32 %v5088, %v5086
    %v5090 = vxor.u32 %v5089, 2147483648
    %v5091 = vsel %vm5008, %v5090, %v5089
    %v5092 = vsub.s32 4, %v5068
    %v5093 = vsel %vm5008, %v5092, %v5068
    %v5094 = vsel %vm5007, %v1678, %v5091
    %v5095 = vsel %vm5007, 0, %v5093
    %v5096 = vcosq.f32.pop %v5094
    %v5097 = vsinq.f32.pop %v5094
    %vm5098 = vweird.f32 %v1678
    %v5099 = vand.u32 %v5095, 3
    %vm5100 = vcmp.lt.s32.totalorder %v5099, 2
    %vm5101 = vcmp.eq.s32.totalorder %v5099, 0
    %v5102 = vxor.u32 %v5097, 2147483648
    %v5103 = vsel %vm5101, %v5096, %v5102
    %vm5104 = vcmp.eq.s32.totalorder %v5099, 2
    %v5105 = vxor.u32 %v5096, 2147483648
    %v5106 = vsel %vm5104, %v5105, %v5097
    %v5107 = vsel %vm5100, %v5103, %v5106
    %v5108 = vsel %vm5098, nan, %v5107
    %v5109 = vand.u32 2147483647, %v1679
    %vm5110 = vcmp.le.f32.partialorder %v5109, 0.7853982
    %vm5111 = vcmp.lt.s32.totalorder %v1679, 0
    %v5112 = vand.u32 %v1679, 2139095040
    %v5113 = vshrl.u32 %v5112, 23
    %v5114 = vsub.s32 %v5113, 127
    %v5115 = vand.u32 2147483647, %v1679
    %v5116 = vand.u32 %v5115, 8388607
    %v5117 = vor.u32 %v5116, 8388608
    %v5118 = vsub.s32 0, %v5117
    %v5119 = vadd.s32 %v5114, 1
    %vm5120 = vcmp.gt.s32.totalorder %v5119, 0
    %v5121 = vsel %vm5120, %v5119, 0
    %v5122 = vshrl.u32 %v5121, 5
    %v5123 = vand.u32 %v5121, 31
    %v5124 = vsub.s32 32, %v5123
    %v5125 = vshrl.u32 683565275, %v5124
    %v5126 = vshll.u32 683565275, %v5123
    %v5127 = vshrl.u32 2475754826, %v5124
    %v5128 = vor.u32 %v5126, %v5127
    %v5129 = vshll.u32 2475754826, %v5123
    %v5130 = vshrl.u32 2131351028, %v5124
    %v5131 = vor.u32 %v5129, %v5130
    %v5132 = vshll.u32 2131351028, %v5123
    %v5133 = vshrl.u32 2102212464, %v5124
    %v5134 = vor.u32 %v5132, %v5133
    %v5135 = vshll.u32 2102212464, %v5123
    %v5136 = vshrl.u32 920167782, %v5124
    %v5137 = vor.u32 %v5135, %v5136
    %v5138 = vshll.u32 920167782, %v5123
    %v5139 = vshrl.u32 1326507024, %v5124
    %v5140 = vor.u32 %v5138, %v5139
    %vm5141 = vcmp.lt.s32.totalorder %v5122, 1
    %vm5142 = vcmp.lt.s32.totalorder %v5122, 2
    %vm5143 = vcmp.lt.s32.totalorder %v5122, 3
    %vm5144 = vcmp.lt.s32.totalorder %v5122, 4
    %v5145 = vsel %vm5141, %v5125, %v5128
    %v5146 = vsel %vm5144, %v5134, 2102212464
    %v5147 = vsel %vm5143, %v5131, %v5146
    %v5148 = vsel %vm5142, %v5145, %v5147
    %v5149 = vsel %vm5141, %v5128, %v5131
    %v5150 = vsel %vm5144, %v5137, 920167782
    %v5151 = vsel %vm5143, %v5134, %v5150
    %v5152 = vsel %vm5142, %v5149, %v5151
    %v5153 = vsel %vm5141, %v5131, %v5134
    %v5154 = vsel %vm5144, %v5140, 1326507024
    %v5155 = vsel %vm5143, %v5137, %v5154
    %v5156 = vsel %vm5142, %v5153, %v5155
    %v5157 = vshll.u32 %v5117, 8
    %v5158 = vmul.u32.u64.compose %v5157, %v5156
    %v5159 = vextract.low.u32 %v5158
    %v5160 = vextract.high.u32 %v5158
    %v5161 = vmul.u32.u64.compose %v5157, %v5152
    %v5162 = vextract.low.u32 %v5161
    %v5163 = vextract.high.u32 %v5161
    %v5164 = vmul.u32 %v5157, %v5148
    %v5165 = vadd.s32 %v5160, %v5162
    %vm5166 = vc.u32 %v5160, %v5162
    %v5167 = vadd.s32 %v5163, 1
    %v5168 = vsel %vm5166, %v5167, %v5163
    %v5169 = vadd.s32 %v5164, %v5168
    %v5170 = vadd.s32 %v5169, 536870912
    %v5171 = vshrl.u32 %v5170, 30
    %v5172 = vshll.u32 %v5171, 30
    %v5173 = vsub.s32 %v5169, %v5172
    %vm5174 = vcmp.lt.s32.totalorder %v5173, 0
    %v5175 = vsub.s32 0, %v5173
    %v5176 = vsel %vm5174, %v5175, %v5173
    %v5177 = vclz %v5176
    %v5178 = vsub.s32 %v5177, 2
    %vm5179 = vcmp.gt.s32.totalorder 0, %v5178
    %v5180 = vsel %vm5179, 0, %v5178
    %v5181 = vsub.s32 32, %v5180
    %v5182 = vshll.u32 %v5173, %v5180
    %v5183 = vshrl.u32 %v5165, %v5181
    %v5184 = vor.u32 %v5182, %v5183
    %v5185 = vsub.s32 4294967266, %v5180
    %v5186 = vadd.s32 %v5185, 127
    %v5187 = vshll.u32 %v5186, 23
    %v5188 = vor.u32 4788187, %v5187
    %v5189 = vand.u32 2147483647, %v5188
    %v5191 = vcvt.s32.f32 %v5184
    %v5192 = vmul.f32 %v5191, %v5189
    %v5193 = vxor.u32 %v5192, 2147483648
    %v5194 = vsel %vm5111, %v5193, %v5192
    %v5195 = vsub.s32 4, %v5171
    %v5196 = vsel %vm5111, %v5195, %v5171
    %v5197 = vsel %vm5110, %v1679, %v5194
    %v5198 = vsel %vm5110, 0, %v5196
    %v5199 = vcosq.f32.pop %v5197
    %v5200 = vsinq.f32.pop %v5197
    %vm5201 = vweird.f32 %v1679
    %v5202 = vand.u32 %v5198, 3
    %vm5203 = vcmp.lt.s32.totalorder %v5202, 2
    %vm5204 = vcmp.eq.s32.totalorder %v5202, 0
    %v5205 = vxor.u32 %v5200, 2147483648
    %v5206 = vsel %vm5204, %v5199, %v5205
    %vm5207 = vcmp.eq.s32.totalorder %v5202, 2
    %v5208 = vxor.u32 %v5199, 2147483648
    %v5209 = vsel %vm5207, %v5208, %v5200
    %v5210 = vsel %vm5203, %v5206, %v5209
    %v5211 = vsel %vm5201, nan, %v5210
    %v5212 = vand.u32 2147483647, %v1680
    %vm5213 = vcmp.le.f32.partialorder %v5212, 0.7853982
    %vm5214 = vcmp.lt.s32.totalorder %v1680, 0
    %v5215 = vand.u32 %v1680, 2139095040
    %v5216 = vshrl.u32 %v5215, 23
    %v5217 = vsub.s32 %v5216, 127
    %v5218 = vand.u32 2147483647, %v1680
    %v5219 = vand.u32 %v5218, 8388607
    %v5220 = vor.u32 %v5219, 8388608
    %v5221 = vsub.s32 0, %v5220
    %v5222 = vadd.s32 %v5217, 1
    %vm5223 = vcmp.gt.s32.totalorder %v5222, 0
    %v5224 = vsel %vm5223, %v5222, 0
    %v5225 = vshrl.u32 %v5224, 5
    %v5226 = vand.u32 %v5224, 31
    %v5227 = vsub.s32 32, %v5226
    %v5228 = vshrl.u32 683565275, %v5227
    %v5229 = vshll.u32 683565275, %v5226
    %v5230 = vshrl.u32 2475754826, %v5227
    %v5231 = vor.u32 %v5229, %v5230
    %v5232 = vshll.u32 2475754826, %v5226
    %v5233 = vshrl.u32 2131351028, %v5227
    %v5234 = vor.u32 %v5232, %v5233
    %v5235 = vshll.u32 2131351028, %v5226
    %v5236 = vshrl.u32 2102212464, %v5227
    %v5237 = vor.u32 %v5235, %v5236
    %v5238 = vshll.u32 2102212464, %v5226
    %v5239 = vshrl.u32 920167782, %v5227
    %v5240 = vor.u32 %v5238, %v5239
    %v5241 = vshll.u32 920167782, %v5226
    %v5242 = vshrl.u32 1326507024, %v5227
    %v5243 = vor.u32 %v5241, %v5242
    %vm5244 = vcmp.lt.s32.totalorder %v5225, 1
    %vm5245 = vcmp.lt.s32.totalorder %v5225, 2
    %vm5246 = vcmp.lt.s32.totalorder %v5225, 3
    %vm5247 = vcmp.lt.s32.totalorder %v5225, 4
    %v5248 = vsel %vm5244, %v5228, %v5231
    %v5249 = vsel %vm5247, %v5237, 2102212464
    %v5250 = vsel %vm5246, %v5234, %v5249
    %v5251 = vsel %vm5245, %v5248, %v5250
    %v5252 = vsel %vm5244, %v5231, %v5234
    %v5253 = vsel %vm5247, %v5240, 920167782
    %v5254 = vsel %vm5246, %v5237, %v5253
    %v5255 = vsel %vm5245, %v5252, %v5254
    %v5256 = vsel %vm5244, %v5234, %v5237
    %v5257 = vsel %vm5247, %v5243, 1326507024
    %v5258 = vsel %vm5246, %v5240, %v5257
    %v5259 = vsel %vm5245, %v5256, %v5258
    %v5260 = vshll.u32 %v5220, 8
    %v5261 = vmul.u32.u64.compose %v5260, %v5259
    %v5262 = vextract.low.u32 %v5261
    %v5263 = vextract.high.u32 %v5261
    %v5264 = vmul.u32.u64.compose %v5260, %v5255
    %v5265 = vextract.low.u32 %v5264
    %v5266 = vextract.high.u32 %v5264
    %v5267 = vmul.u32 %v5260, %v5251
    %v5268 = vadd.s32 %v5263, %v5265
    %vm5269 = vc.u32 %v5263, %v5265
    %v5270 = vadd.s32 %v5266, 1
    %v5271 = vsel %vm5269, %v5270, %v5266
    %v5272 = vadd.s32 %v5267, %v5271
    %v5273 = vadd.s32 %v5272, 536870912
    %v5274 = vshrl.u32 %v5273, 30
    %v5275 = vshll.u32 %v5274, 30
    %v5276 = vsub.s32 %v5272, %v5275
    %vm5277 = vcmp.lt.s32.totalorder %v5276, 0
    %v5278 = vsub.s32 0, %v5276
    %v5279 = vsel %vm5277, %v5278, %v5276
    %v5280 = vclz %v5279
    %v5281 = vsub.s32 %v5280, 2
    %vm5282 = vcmp.gt.s32.totalorder 0, %v5281
    %v5283 = vsel %vm5282, 0, %v5281
    %v5284 = vsub.s32 32, %v5283
    %v5285 = vshll.u32 %v5276, %v5283
    %v5286 = vshrl.u32 %v5268, %v5284
    %v5287 = vor.u32 %v5285, %v5286
    %v5288 = vsub.s32 4294967266, %v5283
    %v5289 = vadd.s32 %v5288, 127
    %v5290 = vshll.u32 %v5289, 23
    %v5291 = vor.u32 4788187, %v5290
    %v5292 = vand.u32 2147483647, %v5291
    %v5294 = vcvt.s32.f32 %v5287
    %v5295 = vmul.f32 %v5294, %v5292
    %v5296 = vxor.u32 %v5295, 2147483648
    %v5297 = vsel %vm5214, %v5296, %v5295
    %v5298 = vsub.s32 4, %v5274
    %v5299 = vsel %vm5214, %v5298, %v5274
    %v5300 = vsel %vm5213, %v1680, %v5297
    %v5301 = vsel %vm5213, 0, %v5299
    %v5302 = vcosq.f32.pop %v5300
    %v5303 = vsinq.f32.pop %v5300
    %vm5304 = vweird.f32 %v1680
    %v5305 = vand.u32 %v5301, 3
    %vm5306 = vcmp.lt.s32.totalorder %v5305, 2
    %vm5307 = vcmp.eq.s32.totalorder %v5305, 0
    %v5308 = vxor.u32 %v5303, 2147483648
    %v5309 = vsel %vm5307, %v5302, %v5308
    %vm5310 = vcmp.eq.s32.totalorder %v5305, 2
    %v5311 = vxor.u32 %v5302, 2147483648
    %v5312 = vsel %vm5310, %v5311, %v5303
    %v5313 = vsel %vm5306, %v5309, %v5312
    %v5314 = vsel %vm5304, nan, %v5313
    %v5315 = vand.u32 2147483647, %v1681
    %vm5316 = vcmp.le.f32.partialorder %v5315, 0.7853982
    %vm5317 = vcmp.lt.s32.totalorder %v1681, 0
    %v5318 = vand.u32 %v1681, 2139095040
    %v5319 = vshrl.u32 %v5318, 23
    %v5320 = vsub.s32 %v5319, 127
    %v5321 = vand.u32 2147483647, %v1681
    %v5322 = vand.u32 %v5321, 8388607
    %v5323 = vor.u32 %v5322, 8388608
    %v5324 = vsub.s32 0, %v5323
    %v5325 = vadd.s32 %v5320, 1
    %vm5326 = vcmp.gt.s32.totalorder %v5325, 0
    %v5327 = vsel %vm5326, %v5325, 0
    %v5328 = vshrl.u32 %v5327, 5
    %v5329 = vand.u32 %v5327, 31
    %v5330 = vsub.s32 32, %v5329
    %v5331 = vshrl.u32 683565275, %v5330
    %v5332 = vshll.u32 683565275, %v5329
    %v5333 = vshrl.u32 2475754826, %v5330
    %v5334 = vor.u32 %v5332, %v5333
    %v5335 = vshll.u32 2475754826, %v5329
    %v5336 = vshrl.u32 2131351028, %v5330
    %v5337 = vor.u32 %v5335, %v5336
    %v5338 = vshll.u32 2131351028, %v5329
    %v5339 = vshrl.u32 2102212464, %v5330
    %v5340 = vor.u32 %v5338, %v5339
    %v5341 = vshll.u32 2102212464, %v5329
    %v5342 = vshrl.u32 920167782, %v5330
    %v5343 = vor.u32 %v5341, %v5342
    %v5344 = vshll.u32 920167782, %v5329
    %v5345 = vshrl.u32 1326507024, %v5330
    %v5346 = vor.u32 %v5344, %v5345
    %vm5347 = vcmp.lt.s32.totalorder %v5328, 1
    %vm5348 = vcmp.lt.s32.totalorder %v5328, 2
    %vm5349 = vcmp.lt.s32.totalorder %v5328, 3
    %vm5350 = vcmp.lt.s32.totalorder %v5328, 4
    %v5351 = vsel %vm5347, %v5331, %v5334
    %v5352 = vsel %vm5350, %v5340, 2102212464
    %v5353 = vsel %vm5349, %v5337, %v5352
    %v5354 = vsel %vm5348, %v5351, %v5353
    %v5355 = vsel %vm5347, %v5334, %v5337
    %v5356 = vsel %vm5350, %v5343, 920167782
    %v5357 = vsel %vm5349, %v5340, %v5356
    %v5358 = vsel %vm5348, %v5355, %v5357
    %v5359 = vsel %vm5347, %v5337, %v5340
    %v5360 = vsel %vm5350, %v5346, 1326507024
    %v5361 = vsel %vm5349, %v5343, %v5360
    %v5362 = vsel %vm5348, %v5359, %v5361
    %v5363 = vshll.u32 %v5323, 8
    %v5364 = vmul.u32.u64.compose %v5363, %v5362
    %v5365 = vextract.low.u32 %v5364
    %v5366 = vextract.high.u32 %v5364
    %v5367 = vmul.u32.u64.compose %v5363, %v5358
    %v5368 = vextract.low.u32 %v5367
    %v5369 = vextract.high.u32 %v5367
    %v5370 = vmul.u32 %v5363, %v5354
    %v5371 = vadd.s32 %v5366, %v5368
    %vm5372 = vc.u32 %v5366, %v5368
    %v5373 = vadd.s32 %v5369, 1
    %v5374 = vsel %vm5372, %v5373, %v5369
    %v5375 = vadd.s32 %v5370, %v5374
    %v5376 = vadd.s32 %v5375, 536870912
    %v5377 = vshrl.u32 %v5376, 30
    %v5378 = vshll.u32 %v5377, 30
    %v5379 = vsub.s32 %v5375, %v5378
    %vm5380 = vcmp.lt.s32.totalorder %v5379, 0
    %v5381 = vsub.s32 0, %v5379
    %v5382 = vsel %vm5380, %v5381, %v5379
    %v5383 = vclz %v5382
    %v5384 = vsub.s32 %v5383, 2
    %vm5385 = vcmp.gt.s32.totalorder 0, %v5384
    %v5386 = vsel %vm5385, 0, %v5384
    %v5387 = vsub.s32 32, %v5386
    %v5388 = vshll.u32 %v5379, %v5386
    %v5389 = vshrl.u32 %v5371, %v5387
    %v5390 = vor.u32 %v5388, %v5389
    %v5391 = vsub.s32 4294967266, %v5386
    %v5392 = vadd.s32 %v5391, 127
    %v5393 = vshll.u32 %v5392, 23
    %v5394 = vor.u32 4788187, %v5393
    %v5395 = vand.u32 2147483647, %v5394
    %v5397 = vcvt.s32.f32 %v5390
    %v5398 = vmul.f32 %v5397, %v5395
    %v5399 = vxor.u32 %v5398, 2147483648
    %v5400 = vsel %vm5317, %v5399, %v5398
    %v5401 = vsub.s32 4, %v5377
    %v5402 = vsel %vm5317, %v5401, %v5377
    %v5403 = vsel %vm5316, %v1681, %v5400
    %v5404 = vsel %vm5316, 0, %v5402
    %v5405 = vcosq.f32.pop %v5403
    %v5406 = vsinq.f32.pop %v5403
    %vm5407 = vweird.f32 %v1681
    %v5408 = vand.u32 %v5404, 3
    %vm5409 = vcmp.lt.s32.totalorder %v5408, 2
    %vm5410 = vcmp.eq.s32.totalorder %v5408, 0
    %v5411 = vxor.u32 %v5406, 2147483648
    %v5412 = vsel %vm5410, %v5405, %v5411
    %vm5413 = vcmp.eq.s32.totalorder %v5408, 2
    %v5414 = vxor.u32 %v5405, 2147483648
    %v5415 = vsel %vm5413, %v5414, %v5406
    %v5416 = vsel %vm5409, %v5412, %v5415
    %v5417 = vsel %vm5407, nan, %v5416
    %v5418 = vand.u32 2147483647, %v1682
    %vm5419 = vcmp.le.f32.partialorder %v5418, 0.7853982
    %vm5420 = vcmp.lt.s32.totalorder %v1682, 0
    %v5421 = vand.u32 %v1682, 2139095040
    %v5422 = vshrl.u32 %v5421, 23
    %v5423 = vsub.s32 %v5422, 127
    %v5424 = vand.u32 2147483647, %v1682
    %v5425 = vand.u32 %v5424, 8388607
    %v5426 = vor.u32 %v5425, 8388608
    %v5427 = vsub.s32 0, %v5426
    %v5428 = vadd.s32 %v5423, 1
    %vm5429 = vcmp.gt.s32.totalorder %v5428, 0
    %v5430 = vsel %vm5429, %v5428, 0
    %v5431 = vshrl.u32 %v5430, 5
    %v5432 = vand.u32 %v5430, 31
    %v5433 = vsub.s32 32, %v5432
    %v5434 = vshrl.u32 683565275, %v5433
    %v5435 = vshll.u32 683565275, %v5432
    %v5436 = vshrl.u32 2475754826, %v5433
    %v5437 = vor.u32 %v5435, %v5436
    %v5438 = vshll.u32 2475754826, %v5432
    %v5439 = vshrl.u32 2131351028, %v5433
    %v5440 = vor.u32 %v5438, %v5439
    %v5441 = vshll.u32 2131351028, %v5432
    %v5442 = vshrl.u32 2102212464, %v5433
    %v5443 = vor.u32 %v5441, %v5442
    %v5444 = vshll.u32 2102212464, %v5432
    %v5445 = vshrl.u32 920167782, %v5433
    %v5446 = vor.u32 %v5444, %v5445
    %v5447 = vshll.u32 920167782, %v5432
    %v5448 = vshrl.u32 1326507024, %v5433
    %v5449 = vor.u32 %v5447, %v5448
    %vm5450 = vcmp.lt.s32.totalorder %v5431, 1
    %vm5451 = vcmp.lt.s32.totalorder %v5431, 2
    %vm5452 = vcmp.lt.s32.totalorder %v5431, 3
    %vm5453 = vcmp.lt.s32.totalorder %v5431, 4
    %v5454 = vsel %vm5450, %v5434, %v5437
    %v5455 = vsel %vm5453, %v5443, 2102212464
    %v5456 = vsel %vm5452, %v5440, %v5455
    %v5457 = vsel %vm5451, %v5454, %v5456
    %v5458 = vsel %vm5450, %v5437, %v5440
    %v5459 = vsel %vm5453, %v5446, 920167782
    %v5460 = vsel %vm5452, %v5443, %v5459
    %v5461 = vsel %vm5451, %v5458, %v5460
    %v5462 = vsel %vm5450, %v5440, %v5443
    %v5463 = vsel %vm5453, %v5449, 1326507024
    %v5464 = vsel %vm5452, %v5446, %v5463
    %v5465 = vsel %vm5451, %v5462, %v5464
    %v5466 = vshll.u32 %v5426, 8
    %v5467 = vmul.u32.u64.compose %v5466, %v5465
    %v5468 = vextract.low.u32 %v5467
    %v5469 = vextract.high.u32 %v5467
    %v5470 = vmul.u32.u64.compose %v5466, %v5461
    %v5471 = vextract.low.u32 %v5470
    %v5472 = vextract.high.u32 %v5470
    %v5473 = vmul.u32 %v5466, %v5457
    %v5474 = vadd.s32 %v5469, %v5471
    %vm5475 = vc.u32 %v5469, %v5471
    %v5476 = vadd.s32 %v5472, 1
    %v5477 = vsel %vm5475, %v5476, %v5472
    %v5478 = vadd.s32 %v5473, %v5477
    %v5479 = vadd.s32 %v5478, 536870912
    %v5480 = vshrl.u32 %v5479, 30
    %v5481 = vshll.u32 %v5480, 30
    %v5482 = vsub.s32 %v5478, %v5481
    %vm5483 = vcmp.lt.s32.totalorder %v5482, 0
    %v5484 = vsub.s32 0, %v5482
    %v5485 = vsel %vm5483, %v5484, %v5482
    %v5486 = vclz %v5485
    %v5487 = vsub.s32 %v5486, 2
    %vm5488 = vcmp.gt.s32.totalorder 0, %v5487
    %v5489 = vsel %vm5488, 0, %v5487
    %v5490 = vsub.s32 32, %v5489
    %v5491 = vshll.u32 %v5482, %v5489
    %v5492 = vshrl.u32 %v5474, %v5490
    %v5493 = vor.u32 %v5491, %v5492
    %v5494 = vsub.s32 4294967266, %v5489
    %v5495 = vadd.s32 %v5494, 127
    %v5496 = vshll.u32 %v5495, 23
    %v5497 = vor.u32 4788187, %v5496
    %v5498 = vand.u32 2147483647, %v5497
    %v5500 = vcvt.s32.f32 %v5493
    %v5501 = vmul.f32 %v5500, %v5498
    %v5502 = vxor.u32 %v5501, 2147483648
    %v5503 = vsel %vm5420, %v5502, %v5501
    %v5504 = vsub.s32 4, %v5480
    %v5505 = vsel %vm5420, %v5504, %v5480
    %v5506 = vsel %vm5419, %v1682, %v5503
    %v5507 = vsel %vm5419, 0, %v5505
    %v5508 = vcosq.f32.pop %v5506
    %v5509 = vsinq.f32.pop %v5506
    %vm5510 = vweird.f32 %v1682
    %v5511 = vand.u32 %v5507, 3
    %vm5512 = vcmp.lt.s32.totalorder %v5511, 2
    %vm5513 = vcmp.eq.s32.totalorder %v5511, 0
    %v5514 = vxor.u32 %v5509, 2147483648
    %v5515 = vsel %vm5513, %v5508, %v5514
    %vm5516 = vcmp.eq.s32.totalorder %v5511, 2
    %v5517 = vxor.u32 %v5508, 2147483648
    %v5518 = vsel %vm5516, %v5517, %v5509
    %v5519 = vsel %vm5512, %v5515, %v5518
    %v5520 = vsel %vm5510, nan, %v5519
    %v5521 = vand.u32 2147483647, %v1683
    %vm5522 = vcmp.le.f32.partialorder %v5521, 0.7853982
    %vm5523 = vcmp.lt.s32.totalorder %v1683, 0
    %v5524 = vand.u32 %v1683, 2139095040
    %v5525 = vshrl.u32 %v5524, 23
    %v5526 = vsub.s32 %v5525, 127
    %v5527 = vand.u32 2147483647, %v1683
    %v5528 = vand.u32 %v5527, 8388607
    %v5529 = vor.u32 %v5528, 8388608
    %v5530 = vsub.s32 0, %v5529
    %v5531 = vadd.s32 %v5526, 1
    %vm5532 = vcmp.gt.s32.totalorder %v5531, 0
    %v5533 = vsel %vm5532, %v5531, 0
    %v5534 = vshrl.u32 %v5533, 5
    %v5535 = vand.u32 %v5533, 31
    %v5536 = vsub.s32 32, %v5535
    %v5537 = vshrl.u32 683565275, %v5536
    %v5538 = vshll.u32 683565275, %v5535
    %v5539 = vshrl.u32 2475754826, %v5536
    %v5540 = vor.u32 %v5538, %v5539
    %v5541 = vshll.u32 2475754826, %v5535
    %v5542 = vshrl.u32 2131351028, %v5536
    %v5543 = vor.u32 %v5541, %v5542
    %v5544 = vshll.u32 2131351028, %v5535
    %v5545 = vshrl.u32 2102212464, %v5536
    %v5546 = vor.u32 %v5544, %v5545
    %v5547 = vshll.u32 2102212464, %v5535
    %v5548 = vshrl.u32 920167782, %v5536
    %v5549 = vor.u32 %v5547, %v5548
    %v5550 = vshll.u32 920167782, %v5535
    %v5551 = vshrl.u32 1326507024, %v5536
    %v5552 = vor.u32 %v5550, %v5551
    %vm5553 = vcmp.lt.s32.totalorder %v5534, 1
    %vm5554 = vcmp.lt.s32.totalorder %v5534, 2
    %vm5555 = vcmp.lt.s32.totalorder %v5534, 3
    %vm5556 = vcmp.lt.s32.totalorder %v5534, 4
    %v5557 = vsel %vm5553, %v5537, %v5540
    %v5558 = vsel %vm5556, %v5546, 2102212464
    %v5559 = vsel %vm5555, %v5543, %v5558
    %v5560 = vsel %vm5554, %v5557, %v5559
    %v5561 = vsel %vm5553, %v5540, %v5543
    %v5562 = vsel %vm5556, %v5549, 920167782
    %v5563 = vsel %vm5555, %v5546, %v5562
    %v5564 = vsel %vm5554, %v5561, %v5563
    %v5565 = vsel %vm5553, %v5543, %v5546
    %v5566 = vsel %vm5556, %v5552, 1326507024
    %v5567 = vsel %vm5555, %v5549, %v5566
    %v5568 = vsel %vm5554, %v5565, %v5567
    %v5569 = vshll.u32 %v5529, 8
    %v5570 = vmul.u32.u64.compose %v5569, %v5568
    %v5571 = vextract.low.u32 %v5570
    %v5572 = vextract.high.u32 %v5570
    %v5573 = vmul.u32.u64.compose %v5569, %v5564
    %v5574 = vextract.low.u32 %v5573
    %v5575 = vextract.high.u32 %v5573
    %v5576 = vmul.u32 %v5569, %v5560
    %v5577 = vadd.s32 %v5572, %v5574
    %vm5578 = vc.u32 %v5572, %v5574
    %v5579 = vadd.s32 %v5575, 1
    %v5580 = vsel %vm5578, %v5579, %v5575
    %v5581 = vadd.s32 %v5576, %v5580
    %v5582 = vadd.s32 %v5581, 536870912
    %v5583 = vshrl.u32 %v5582, 30
    %v5584 = vshll.u32 %v5583, 30
    %v5585 = vsub.s32 %v5581, %v5584
    %vm5586 = vcmp.lt.s32.totalorder %v5585, 0
    %v5587 = vsub.s32 0, %v5585
    %v5588 = vsel %vm5586, %v5587, %v5585
    %v5589 = vclz %v5588
    %v5590 = vsub.s32 %v5589, 2
    %vm5591 = vcmp.gt.s32.totalorder 0, %v5590
    %v5592 = vsel %vm5591, 0, %v5590
    %v5593 = vsub.s32 32, %v5592
    %v5594 = vshll.u32 %v5585, %v5592
    %v5595 = vshrl.u32 %v5577, %v5593
    %v5596 = vor.u32 %v5594, %v5595
    %v5597 = vsub.s32 4294967266, %v5592
    %v5598 = vadd.s32 %v5597, 127
    %v5599 = vshll.u32 %v5598, 23
    %v5600 = vor.u32 4788187, %v5599
    %v5601 = vand.u32 2147483647, %v5600
    %v5603 = vcvt.s32.f32 %v5596
    %v5604 = vmul.f32 %v5603, %v5601
    %v5605 = vxor.u32 %v5604, 2147483648
    %v5606 = vsel %vm5523, %v5605, %v5604
    %v5607 = vsub.s32 4, %v5583
    %v5608 = vsel %vm5523, %v5607, %v5583
    %v5609 = vsel %vm5522, %v1683, %v5606
    %v5610 = vsel %vm5522, 0, %v5608
    %v5611 = vcosq.f32.pop %v5609
    %v5612 = vsinq.f32.pop %v5609
    %vm5613 = vweird.f32 %v1683
    %v5614 = vand.u32 %v5610, 3
    %vm5615 = vcmp.lt.s32.totalorder %v5614, 2
    %vm5616 = vcmp.eq.s32.totalorder %v5614, 0
    %v5617 = vxor.u32 %v5612, 2147483648
    %v5618 = vsel %vm5616, %v5611, %v5617
    %vm5619 = vcmp.eq.s32.totalorder %v5614, 2
    %v5620 = vxor.u32 %v5611, 2147483648
    %v5621 = vsel %vm5619, %v5620, %v5612
    %v5622 = vsel %vm5615, %v5618, %v5621
    %v5623 = vsel %vm5613, nan, %v5622
    %v5624 = vand.u32 2147483647, %v1684
    %vm5625 = vcmp.le.f32.partialorder %v5624, 0.7853982
    %vm5626 = vcmp.lt.s32.totalorder %v1684, 0
    %v5627 = vand.u32 %v1684, 2139095040
    %v5628 = vshrl.u32 %v5627, 23
    %v5629 = vsub.s32 %v5628, 127
    %v5630 = vand.u32 2147483647, %v1684
    %v5631 = vand.u32 %v5630, 8388607
    %v5632 = vor.u32 %v5631, 8388608
    %v5633 = vsub.s32 0, %v5632
    %v5634 = vadd.s32 %v5629, 1
    %vm5635 = vcmp.gt.s32.totalorder %v5634, 0
    %v5636 = vsel %vm5635, %v5634, 0
    %v5637 = vshrl.u32 %v5636, 5
    %v5638 = vand.u32 %v5636, 31
    %v5639 = vsub.s32 32, %v5638
    %v5640 = vshrl.u32 683565275, %v5639
    %v5641 = vshll.u32 683565275, %v5638
    %v5642 = vshrl.u32 2475754826, %v5639
    %v5643 = vor.u32 %v5641, %v5642
    %v5644 = vshll.u32 2475754826, %v5638
    %v5645 = vshrl.u32 2131351028, %v5639
    %v5646 = vor.u32 %v5644, %v5645
    %v5647 = vshll.u32 2131351028, %v5638
    %v5648 = vshrl.u32 2102212464, %v5639
    %v5649 = vor.u32 %v5647, %v5648
    %v5650 = vshll.u32 2102212464, %v5638
    %v5651 = vshrl.u32 920167782, %v5639
    %v5652 = vor.u32 %v5650, %v5651
    %v5653 = vshll.u32 920167782, %v5638
    %v5654 = vshrl.u32 1326507024, %v5639
    %v5655 = vor.u32 %v5653, %v5654
    %vm5656 = vcmp.lt.s32.totalorder %v5637, 1
    %vm5657 = vcmp.lt.s32.totalorder %v5637, 2
    %vm5658 = vcmp.lt.s32.totalorder %v5637, 3
    %vm5659 = vcmp.lt.s32.totalorder %v5637, 4
    %v5660 = vsel %vm5656, %v5640, %v5643
    %v5661 = vsel %vm5659, %v5649, 2102212464
    %v5662 = vsel %vm5658, %v5646, %v5661
    %v5663 = vsel %vm5657, %v5660, %v5662
    %v5664 = vsel %vm5656, %v5643, %v5646
    %v5665 = vsel %vm5659, %v5652, 920167782
    %v5666 = vsel %vm5658, %v5649, %v5665
    %v5667 = vsel %vm5657, %v5664, %v5666
    %v5668 = vsel %vm5656, %v5646, %v5649
    %v5669 = vsel %vm5659, %v5655, 1326507024
    %v5670 = vsel %vm5658, %v5652, %v5669
    %v5671 = vsel %vm5657, %v5668, %v5670
    %v5672 = vshll.u32 %v5632, 8
    %v5673 = vmul.u32.u64.compose %v5672, %v5671
    %v5674 = vextract.low.u32 %v5673
    %v5675 = vextract.high.u32 %v5673
    %v5676 = vmul.u32.u64.compose %v5672, %v5667
    %v5677 = vextract.low.u32 %v5676
    %v5678 = vextract.high.u32 %v5676
    %v5679 = vmul.u32 %v5672, %v5663
    %v5680 = vadd.s32 %v5675, %v5677
    %vm5681 = vc.u32 %v5675, %v5677
    %v5682 = vadd.s32 %v5678, 1
    %v5683 = vsel %vm5681, %v5682, %v5678
    %v5684 = vadd.s32 %v5679, %v5683
    %v5685 = vadd.s32 %v5684, 536870912
    %v5686 = vshrl.u32 %v5685, 30
    %v5687 = vshll.u32 %v5686, 30
    %v5688 = vsub.s32 %v5684, %v5687
    %vm5689 = vcmp.lt.s32.totalorder %v5688, 0
    %v5690 = vsub.s32 0, %v5688
    %v5691 = vsel %vm5689, %v5690, %v5688
    %v5692 = vclz %v5691
    %v5693 = vsub.s32 %v5692, 2
    %vm5694 = vcmp.gt.s32.totalorder 0, %v5693
    %v5695 = vsel %vm5694, 0, %v5693
    %v5696 = vsub.s32 32, %v5695
    %v5697 = vshll.u32 %v5688, %v5695
    %v5698 = vshrl.u32 %v5680, %v5696
    %v5699 = vor.u32 %v5697, %v5698
    %v5700 = vsub.s32 4294967266, %v5695
    %v5701 = vadd.s32 %v5700, 127
    %v5702 = vshll.u32 %v5701, 23
    %v5703 = vor.u32 4788187, %v5702
    %v5704 = vand.u32 2147483647, %v5703
    %v5706 = vcvt.s32.f32 %v5699
    %v5707 = vmul.f32 %v5706, %v5704
    %v5708 = vxor.u32 %v5707, 2147483648
    %v5709 = vsel %vm5626, %v5708, %v5707
    %v5710 = vsub.s32 4, %v5686
    %v5711 = vsel %vm5626, %v5710, %v5686
    %v5712 = vsel %vm5625, %v1684, %v5709
    %v5713 = vsel %vm5625, 0, %v5711
    %v5714 = vcosq.f32.pop %v5712
    %v5715 = vsinq.f32.pop %v5712
    %vm5716 = vweird.f32 %v1684
    %v5717 = vand.u32 %v5713, 3
    %vm5718 = vcmp.lt.s32.totalorder %v5717, 2
    %vm5719 = vcmp.eq.s32.totalorder %v5717, 0
    %v5720 = vxor.u32 %v5715, 2147483648
    %v5721 = vsel %vm5719, %v5714, %v5720
    %vm5722 = vcmp.eq.s32.totalorder %v5717, 2
    %v5723 = vxor.u32 %v5714, 2147483648
    %v5724 = vsel %vm5722, %v5723, %v5715
    %v5725 = vsel %vm5718, %v5721, %v5724
    %v5726 = vsel %vm5716, nan, %v5725
    %v5727 = vand.u32 2147483647, %v1685
    %vm5728 = vcmp.le.f32.partialorder %v5727, 0.7853982
    %vm5729 = vcmp.lt.s32.totalorder %v1685, 0
    %v5730 = vand.u32 %v1685, 2139095040
    %v5731 = vshrl.u32 %v5730, 23
    %v5732 = vsub.s32 %v5731, 127
    %v5733 = vand.u32 2147483647, %v1685
    %v5734 = vand.u32 %v5733, 8388607
    %v5735 = vor.u32 %v5734, 8388608
    %v5736 = vsub.s32 0, %v5735
    %v5737 = vadd.s32 %v5732, 1
    %vm5738 = vcmp.gt.s32.totalorder %v5737, 0
    %v5739 = vsel %vm5738, %v5737, 0
    %v5740 = vshrl.u32 %v5739, 5
    %v5741 = vand.u32 %v5739, 31
    %v5742 = vsub.s32 32, %v5741
    %v5743 = vshrl.u32 683565275, %v5742
    %v5744 = vshll.u32 683565275, %v5741
    %v5745 = vshrl.u32 2475754826, %v5742
    %v5746 = vor.u32 %v5744, %v5745
    %v5747 = vshll.u32 2475754826, %v5741
    %v5748 = vshrl.u32 2131351028, %v5742
    %v5749 = vor.u32 %v5747, %v5748
    %v5750 = vshll.u32 2131351028, %v5741
    %v5751 = vshrl.u32 2102212464, %v5742
    %v5752 = vor.u32 %v5750, %v5751
    %v5753 = vshll.u32 2102212464, %v5741
    %v5754 = vshrl.u32 920167782, %v5742
    %v5755 = vor.u32 %v5753, %v5754
    %v5756 = vshll.u32 920167782, %v5741
    %v5757 = vshrl.u32 1326507024, %v5742
    %v5758 = vor.u32 %v5756, %v5757
    %vm5759 = vcmp.lt.s32.totalorder %v5740, 1
    %vm5760 = vcmp.lt.s32.totalorder %v5740, 2
    %vm5761 = vcmp.lt.s32.totalorder %v5740, 3
    %vm5762 = vcmp.lt.s32.totalorder %v5740, 4
    %v5763 = vsel %vm5759, %v5743, %v5746
    %v5764 = vsel %vm5762, %v5752, 2102212464
    %v5765 = vsel %vm5761, %v5749, %v5764
    %v5766 = vsel %vm5760, %v5763, %v5765
    %v5767 = vsel %vm5759, %v5746, %v5749
    %v5768 = vsel %vm5762, %v5755, 920167782
    %v5769 = vsel %vm5761, %v5752, %v5768
    %v5770 = vsel %vm5760, %v5767, %v5769
    %v5771 = vsel %vm5759, %v5749, %v5752
    %v5772 = vsel %vm5762, %v5758, 1326507024
    %v5773 = vsel %vm5761, %v5755, %v5772
    %v5774 = vsel %vm5760, %v5771, %v5773
    %v5775 = vshll.u32 %v5735, 8
    %v5776 = vmul.u32.u64.compose %v5775, %v5774
    %v5777 = vextract.low.u32 %v5776
    %v5778 = vextract.high.u32 %v5776
    %v5779 = vmul.u32.u64.compose %v5775, %v5770
    %v5780 = vextract.low.u32 %v5779
    %v5781 = vextract.high.u32 %v5779
    %v5782 = vmul.u32 %v5775, %v5766
    %v5783 = vadd.s32 %v5778, %v5780
    %vm5784 = vc.u32 %v5778, %v5780
    %v5785 = vadd.s32 %v5781, 1
    %v5786 = vsel %vm5784, %v5785, %v5781
    %v5787 = vadd.s32 %v5782, %v5786
    %v5788 = vadd.s32 %v5787, 536870912
    %v5789 = vshrl.u32 %v5788, 30
    %v5790 = vshll.u32 %v5789, 30
    %v5791 = vsub.s32 %v5787, %v5790
    %vm5792 = vcmp.lt.s32.totalorder %v5791, 0
    %v5793 = vsub.s32 0, %v5791
    %v5794 = vsel %vm5792, %v5793, %v5791
    %v5795 = vclz %v5794
    %v5796 = vsub.s32 %v5795, 2
    %vm5797 = vcmp.gt.s32.totalorder 0, %v5796
    %v5798 = vsel %vm5797, 0, %v5796
    %v5799 = vsub.s32 32, %v5798
    %v5800 = vshll.u32 %v5791, %v5798
    %v5801 = vshrl.u32 %v5783, %v5799
    %v5802 = vor.u32 %v5800, %v5801
    %v5803 = vsub.s32 4294967266, %v5798
    %v5804 = vadd.s32 %v5803, 127
    %v5805 = vshll.u32 %v5804, 23
    %v5806 = vor.u32 4788187, %v5805
    %v5807 = vand.u32 2147483647, %v5806
    %v5809 = vcvt.s32.f32 %v5802
    %v5810 = vmul.f32 %v5809, %v5807
    %v5811 = vxor.u32 %v5810, 2147483648
    %v5812 = vsel %vm5729, %v5811, %v5810
    %v5813 = vsub.s32 4, %v5789
    %v5814 = vsel %vm5729, %v5813, %v5789
    %v5815 = vsel %vm5728, %v1685, %v5812
    %v5816 = vsel %vm5728, 0, %v5814
    %v5817 = vcosq.f32.pop %v5815
    %v5818 = vsinq.f32.pop %v5815
    %vm5819 = vweird.f32 %v1685
    %v5820 = vand.u32 %v5816, 3
    %vm5821 = vcmp.lt.s32.totalorder %v5820, 2
    %vm5822 = vcmp.eq.s32.totalorder %v5820, 0
    %v5823 = vxor.u32 %v5818, 2147483648
    %v5824 = vsel %vm5822, %v5817, %v5823
    %vm5825 = vcmp.eq.s32.totalorder %v5820, 2
    %v5826 = vxor.u32 %v5817, 2147483648
    %v5827 = vsel %vm5825, %v5826, %v5818
    %v5828 = vsel %vm5821, %v5824, %v5827
    %v5829 = vsel %vm5819, nan, %v5828
    %v5830 = vand.u32 2147483647, %v1686
    %vm5831 = vcmp.le.f32.partialorder %v5830, 0.7853982
    %vm5832 = vcmp.lt.s32.totalorder %v1686, 0
    %v5833 = vand.u32 %v1686, 2139095040
    %v5834 = vshrl.u32 %v5833, 23
    %v5835 = vsub.s32 %v5834, 127
    %v5836 = vand.u32 2147483647, %v1686
    %v5837 = vand.u32 %v5836, 8388607
    %v5838 = vor.u32 %v5837, 8388608
    %v5839 = vsub.s32 0, %v5838
    %v5840 = vadd.s32 %v5835, 1
    %vm5841 = vcmp.gt.s32.totalorder %v5840, 0
    %v5842 = vsel %vm5841, %v5840, 0
    %v5843 = vshrl.u32 %v5842, 5
    %v5844 = vand.u32 %v5842, 31
    %v5845 = vsub.s32 32, %v5844
    %v5846 = vshrl.u32 683565275, %v5845
    %v5847 = vshll.u32 683565275, %v5844
    %v5848 = vshrl.u32 2475754826, %v5845
    %v5849 = vor.u32 %v5847, %v5848
    %v5850 = vshll.u32 2475754826, %v5844
    %v5851 = vshrl.u32 2131351028, %v5845
    %v5852 = vor.u32 %v5850, %v5851
    %v5853 = vshll.u32 2131351028, %v5844
    %v5854 = vshrl.u32 2102212464, %v5845
    %v5855 = vor.u32 %v5853, %v5854
    %v5856 = vshll.u32 2102212464, %v5844
    %v5857 = vshrl.u32 920167782, %v5845
    %v5858 = vor.u32 %v5856, %v5857
    %v5859 = vshll.u32 920167782, %v5844
    %v5860 = vshrl.u32 1326507024, %v5845
    %v5861 = vor.u32 %v5859, %v5860
    %vm5862 = vcmp.lt.s32.totalorder %v5843, 1
    %vm5863 = vcmp.lt.s32.totalorder %v5843, 2
    %vm5864 = vcmp.lt.s32.totalorder %v5843, 3
    %vm5865 = vcmp.lt.s32.totalorder %v5843, 4
    %v5866 = vsel %vm5862, %v5846, %v5849
    %v5867 = vsel %vm5865, %v5855, 2102212464
    %v5868 = vsel %vm5864, %v5852, %v5867
    %v5869 = vsel %vm5863, %v5866, %v5868
    %v5870 = vsel %vm5862, %v5849, %v5852
    %v5871 = vsel %vm5865, %v5858, 920167782
    %v5872 = vsel %vm5864, %v5855, %v5871
    %v5873 = vsel %vm5863, %v5870, %v5872
    %v5874 = vsel %vm5862, %v5852, %v5855
    %v5875 = vsel %vm5865, %v5861, 1326507024
    %v5876 = vsel %vm5864, %v5858, %v5875
    %v5877 = vsel %vm5863, %v5874, %v5876
    %v5878 = vshll.u32 %v5838, 8
    %v5879 = vmul.u32.u64.compose %v5878, %v5877
    %v5880 = vextract.low.u32 %v5879
    %v5881 = vextract.high.u32 %v5879
    %v5882 = vmul.u32.u64.compose %v5878, %v5873
    %v5883 = vextract.low.u32 %v5882
    %v5884 = vextract.high.u32 %v5882
    %v5885 = vmul.u32 %v5878, %v5869
    %v5886 = vadd.s32 %v5881, %v5883
    %vm5887 = vc.u32 %v5881, %v5883
    %v5888 = vadd.s32 %v5884, 1
    %v5889 = vsel %vm5887, %v5888, %v5884
    %v5890 = vadd.s32 %v5885, %v5889
    %v5891 = vadd.s32 %v5890, 536870912
    %v5892 = vshrl.u32 %v5891, 30
    %v5893 = vshll.u32 %v5892, 30
    %v5894 = vsub.s32 %v5890, %v5893
    %vm5895 = vcmp.lt.s32.totalorder %v5894, 0
    %v5896 = vsub.s32 0, %v5894
    %v5897 = vsel %vm5895, %v5896, %v5894
    %v5898 = vclz %v5897
    %v5899 = vsub.s32 %v5898, 2
    %vm5900 = vcmp.gt.s32.totalorder 0, %v5899
    %v5901 = vsel %vm5900, 0, %v5899
    %v5902 = vsub.s32 32, %v5901
    %v5903 = vshll.u32 %v5894, %v5901
    %v5904 = vshrl.u32 %v5886, %v5902
    %v5905 = vor.u32 %v5903, %v5904
    %v5906 = vsub.s32 4294967266, %v5901
    %v5907 = vadd.s32 %v5906, 127
    %v5908 = vshll.u32 %v5907, 23
    %v5909 = vor.u32 4788187, %v5908
    %v5910 = vand.u32 2147483647, %v5909
    %v5912 = vcvt.s32.f32 %v5905
    %v5913 = vmul.f32 %v5912, %v5910
    %v5914 = vxor.u32 %v5913, 2147483648
    %v5915 = vsel %vm5832, %v5914, %v5913
    %v5916 = vsub.s32 4, %v5892
    %v5917 = vsel %vm5832, %v5916, %v5892
    %v5918 = vsel %vm5831, %v1686, %v5915
    %v5919 = vsel %vm5831, 0, %v5917
    %v5920 = vcosq.f32.pop %v5918
    %v5921 = vsinq.f32.pop %v5918
    %vm5922 = vweird.f32 %v1686
    %v5923 = vand.u32 %v5919, 3
    %vm5924 = vcmp.lt.s32.totalorder %v5923, 2
    %vm5925 = vcmp.eq.s32.totalorder %v5923, 0
    %v5926 = vxor.u32 %v5921, 2147483648
    %v5927 = vsel %vm5925, %v5920, %v5926
    %vm5928 = vcmp.eq.s32.totalorder %v5923, 2
    %v5929 = vxor.u32 %v5920, 2147483648
    %v5930 = vsel %vm5928, %v5929, %v5921
    %v5931 = vsel %vm5924, %v5927, %v5930
    %v5932 = vsel %vm5922, nan, %v5931
    %v5933 = vand.u32 2147483647, %v1687
    %vm5934 = vcmp.le.f32.partialorder %v5933, 0.7853982
    %vm5935 = vcmp.lt.s32.totalorder %v1687, 0
    %v5936 = vand.u32 %v1687, 2139095040
    %v5937 = vshrl.u32 %v5936, 23
    %v5938 = vsub.s32 %v5937, 127
    %v5939 = vand.u32 2147483647, %v1687
    %v5940 = vand.u32 %v5939, 8388607
    %v5941 = vor.u32 %v5940, 8388608
    %v5942 = vsub.s32 0, %v5941
    %v5943 = vadd.s32 %v5938, 1
    %vm5944 = vcmp.gt.s32.totalorder %v5943, 0
    %v5945 = vsel %vm5944, %v5943, 0
    %v5946 = vshrl.u32 %v5945, 5
    %v5947 = vand.u32 %v5945, 31
    %v5948 = vsub.s32 32, %v5947
    %v5949 = vshrl.u32 683565275, %v5948
    %v5950 = vshll.u32 683565275, %v5947
    %v5951 = vshrl.u32 2475754826, %v5948
    %v5952 = vor.u32 %v5950, %v5951
    %v5953 = vshll.u32 2475754826, %v5947
    %v5954 = vshrl.u32 2131351028, %v5948
    %v5955 = vor.u32 %v5953, %v5954
    %v5956 = vshll.u32 2131351028, %v5947
    %v5957 = vshrl.u32 2102212464, %v5948
    %v5958 = vor.u32 %v5956, %v5957
    %v5959 = vshll.u32 2102212464, %v5947
    %v5960 = vshrl.u32 920167782, %v5948
    %v5961 = vor.u32 %v5959, %v5960
    %v5962 = vshll.u32 920167782, %v5947
    %v5963 = vshrl.u32 1326507024, %v5948
    %v5964 = vor.u32 %v5962, %v5963
    %vm5965 = vcmp.lt.s32.totalorder %v5946, 1
    %vm5966 = vcmp.lt.s32.totalorder %v5946, 2
    %vm5967 = vcmp.lt.s32.totalorder %v5946, 3
    %vm5968 = vcmp.lt.s32.totalorder %v5946, 4
    %v5969 = vsel %vm5965, %v5949, %v5952
    %v5970 = vsel %vm5968, %v5958, 2102212464
    %v5971 = vsel %vm5967, %v5955, %v5970
    %v5972 = vsel %vm5966, %v5969, %v5971
    %v5973 = vsel %vm5965, %v5952, %v5955
    %v5974 = vsel %vm5968, %v5961, 920167782
    %v5975 = vsel %vm5967, %v5958, %v5974
    %v5976 = vsel %vm5966, %v5973, %v5975
    %v5977 = vsel %vm5965, %v5955, %v5958
    %v5978 = vsel %vm5968, %v5964, 1326507024
    %v5979 = vsel %vm5967, %v5961, %v5978
    %v5980 = vsel %vm5966, %v5977, %v5979
    %v5981 = vshll.u32 %v5941, 8
    %v5982 = vmul.u32.u64.compose %v5981, %v5980
    %v5983 = vextract.low.u32 %v5982
    %v5984 = vextract.high.u32 %v5982
    %v5985 = vmul.u32.u64.compose %v5981, %v5976
    %v5986 = vextract.low.u32 %v5985
    %v5987 = vextract.high.u32 %v5985
    %v5988 = vmul.u32 %v5981, %v5972
    %v5989 = vadd.s32 %v5984, %v5986
    %vm5990 = vc.u32 %v5984, %v5986
    %v5991 = vadd.s32 %v5987, 1
    %v5992 = vsel %vm5990, %v5991, %v5987
    %v5993 = vadd.s32 %v5988, %v5992
    %v5994 = vadd.s32 %v5993, 536870912
    %v5995 = vshrl.u32 %v5994, 30
    %v5996 = vshll.u32 %v5995, 30
    %v5997 = vsub.s32 %v5993, %v5996
    %vm5998 = vcmp.lt.s32.totalorder %v5997, 0
    %v5999 = vsub.s32 0, %v5997
    %v6000 = vsel %vm5998, %v5999, %v5997
    %v6001 = vclz %v6000
    %v6002 = vsub.s32 %v6001, 2
    %vm6003 = vcmp.gt.s32.totalorder 0, %v6002
    %v6004 = vsel %vm6003, 0, %v6002
    %v6005 = vsub.s32 32, %v6004
    %v6006 = vshll.u32 %v5997, %v6004
    %v6007 = vshrl.u32 %v5989, %v6005
    %v6008 = vor.u32 %v6006, %v6007
    %v6009 = vsub.s32 4294967266, %v6004
    %v6010 = vadd.s32 %v6009, 127
    %v6011 = vshll.u32 %v6010, 23
    %v6012 = vor.u32 4788187, %v6011
    %v6013 = vand.u32 2147483647, %v6012
    %v6015 = vcvt.s32.f32 %v6008
    %v6016 = vmul.f32 %v6015, %v6013
    %v6017 = vxor.u32 %v6016, 2147483648
    %v6018 = vsel %vm5935, %v6017, %v6016
    %v6019 = vsub.s32 4, %v5995
    %v6020 = vsel %vm5935, %v6019, %v5995
    %v6021 = vsel %vm5934, %v1687, %v6018
    %v6022 = vsel %vm5934, 0, %v6020
    %v6023 = vcosq.f32.pop %v6021
    %v6024 = vsinq.f32.pop %v6021
    %vm6025 = vweird.f32 %v1687
    %v6026 = vand.u32 %v6022, 3
    %vm6027 = vcmp.lt.s32.totalorder %v6026, 2
    %vm6028 = vcmp.eq.s32.totalorder %v6026, 0
    %v6029 = vxor.u32 %v6024, 2147483648
    %v6030 = vsel %vm6028, %v6023, %v6029
    %vm6031 = vcmp.eq.s32.totalorder %v6026, 2
    %v6032 = vxor.u32 %v6023, 2147483648
    %v6033 = vsel %vm6031, %v6032, %v6024
    %v6034 = vsel %vm6027, %v6030, %v6033
    %v6035 = vsel %vm6025, nan, %v6034
    %v6036 = vand.u32 2147483647, %v1688
    %vm6037 = vcmp.le.f32.partialorder %v6036, 0.7853982
    %vm6038 = vcmp.lt.s32.totalorder %v1688, 0
    %v6039 = vand.u32 %v1688, 2139095040
    %v6040 = vshrl.u32 %v6039, 23
    %v6041 = vsub.s32 %v6040, 127
    %v6042 = vand.u32 2147483647, %v1688
    %v6043 = vand.u32 %v6042, 8388607
    %v6044 = vor.u32 %v6043, 8388608
    %v6045 = vsub.s32 0, %v6044
    %v6046 = vadd.s32 %v6041, 1
    %vm6047 = vcmp.gt.s32.totalorder %v6046, 0
    %v6048 = vsel %vm6047, %v6046, 0
    %v6049 = vshrl.u32 %v6048, 5
    %v6050 = vand.u32 %v6048, 31
    %v6051 = vsub.s32 32, %v6050
    %v6052 = vshrl.u32 683565275, %v6051
    %v6053 = vshll.u32 683565275, %v6050
    %v6054 = vshrl.u32 2475754826, %v6051
    %v6055 = vor.u32 %v6053, %v6054
    %v6056 = vshll.u32 2475754826, %v6050
    %v6057 = vshrl.u32 2131351028, %v6051
    %v6058 = vor.u32 %v6056, %v6057
    %v6059 = vshll.u32 2131351028, %v6050
    %v6060 = vshrl.u32 2102212464, %v6051
    %v6061 = vor.u32 %v6059, %v6060
    %v6062 = vshll.u32 2102212464, %v6050
    %v6063 = vshrl.u32 920167782, %v6051
    %v6064 = vor.u32 %v6062, %v6063
    %v6065 = vshll.u32 920167782, %v6050
    %v6066 = vshrl.u32 1326507024, %v6051
    %v6067 = vor.u32 %v6065, %v6066
    %vm6068 = vcmp.lt.s32.totalorder %v6049, 1
    %vm6069 = vcmp.lt.s32.totalorder %v6049, 2
    %vm6070 = vcmp.lt.s32.totalorder %v6049, 3
    %vm6071 = vcmp.lt.s32.totalorder %v6049, 4
    %v6072 = vsel %vm6068, %v6052, %v6055
    %v6073 = vsel %vm6071, %v6061, 2102212464
    %v6074 = vsel %vm6070, %v6058, %v6073
    %v6075 = vsel %vm6069, %v6072, %v6074
    %v6076 = vsel %vm6068, %v6055, %v6058
    %v6077 = vsel %vm6071, %v6064, 920167782
    %v6078 = vsel %vm6070, %v6061, %v6077
    %v6079 = vsel %vm6069, %v6076, %v6078
    %v6080 = vsel %vm6068, %v6058, %v6061
    %v6081 = vsel %vm6071, %v6067, 1326507024
    %v6082 = vsel %vm6070, %v6064, %v6081
    %v6083 = vsel %vm6069, %v6080, %v6082
    %v6084 = vshll.u32 %v6044, 8
    %v6085 = vmul.u32.u64.compose %v6084, %v6083
    %v6086 = vextract.low.u32 %v6085
    %v6087 = vextract.high.u32 %v6085
    %v6088 = vmul.u32.u64.compose %v6084, %v6079
    %v6089 = vextract.low.u32 %v6088
    %v6090 = vextract.high.u32 %v6088
    %v6091 = vmul.u32 %v6084, %v6075
    %v6092 = vadd.s32 %v6087, %v6089
    %vm6093 = vc.u32 %v6087, %v6089
    %v6094 = vadd.s32 %v6090, 1
    %v6095 = vsel %vm6093, %v6094, %v6090
    %v6096 = vadd.s32 %v6091, %v6095
    %v6097 = vadd.s32 %v6096, 536870912
    %v6098 = vshrl.u32 %v6097, 30
    %v6099 = vshll.u32 %v6098, 30
    %v6100 = vsub.s32 %v6096, %v6099
    %vm6101 = vcmp.lt.s32.totalorder %v6100, 0
    %v6102 = vsub.s32 0, %v6100
    %v6103 = vsel %vm6101, %v6102, %v6100
    %v6104 = vclz %v6103
    %v6105 = vsub.s32 %v6104, 2
    %vm6106 = vcmp.gt.s32.totalorder 0, %v6105
    %v6107 = vsel %vm6106, 0, %v6105
    %v6108 = vsub.s32 32, %v6107
    %v6109 = vshll.u32 %v6100, %v6107
    %v6110 = vshrl.u32 %v6092, %v6108
    %v6111 = vor.u32 %v6109, %v6110
    %v6112 = vsub.s32 4294967266, %v6107
    %v6113 = vadd.s32 %v6112, 127
    %v6114 = vshll.u32 %v6113, 23
    %v6115 = vor.u32 4788187, %v6114
    %v6116 = vand.u32 2147483647, %v6115
    %v6118 = vcvt.s32.f32 %v6111
    %v6119 = vmul.f32 %v6118, %v6116
    %v6120 = vxor.u32 %v6119, 2147483648
    %v6121 = vsel %vm6038, %v6120, %v6119
    %v6122 = vsub.s32 4, %v6098
    %v6123 = vsel %vm6038, %v6122, %v6098
    %v6124 = vsel %vm6037, %v1688, %v6121
    %v6125 = vsel %vm6037, 0, %v6123
    %v6126 = vcosq.f32.pop %v6124
    %v6127 = vsinq.f32.pop %v6124
    %vm6128 = vweird.f32 %v1688
    %v6129 = vand.u32 %v6125, 3
    %vm6130 = vcmp.lt.s32.totalorder %v6129, 2
    %vm6131 = vcmp.eq.s32.totalorder %v6129, 0
    %v6132 = vxor.u32 %v6127, 2147483648
    %v6133 = vsel %vm6131, %v6126, %v6132
    %vm6134 = vcmp.eq.s32.totalorder %v6129, 2
    %v6135 = vxor.u32 %v6126, 2147483648
    %v6136 = vsel %vm6134, %v6135, %v6127
    %v6137 = vsel %vm6130, %v6133, %v6136
    %v6138 = vsel %vm6128, nan, %v6137
    %v6139 = vand.u32 2147483647, %v1689
    %vm6140 = vcmp.le.f32.partialorder %v6139, 0.7853982
    %vm6141 = vcmp.lt.s32.totalorder %v1689, 0
    %v6142 = vand.u32 %v1689, 2139095040
    %v6143 = vshrl.u32 %v6142, 23
    %v6144 = vsub.s32 %v6143, 127
    %v6145 = vand.u32 2147483647, %v1689
    %v6146 = vand.u32 %v6145, 8388607
    %v6147 = vor.u32 %v6146, 8388608
    %v6148 = vsub.s32 0, %v6147
    %v6149 = vadd.s32 %v6144, 1
    %vm6150 = vcmp.gt.s32.totalorder %v6149, 0
    %v6151 = vsel %vm6150, %v6149, 0
    %v6152 = vshrl.u32 %v6151, 5
    %v6153 = vand.u32 %v6151, 31
    %v6154 = vsub.s32 32, %v6153
    %v6155 = vshrl.u32 683565275, %v6154
    %v6156 = vshll.u32 683565275, %v6153
    %v6157 = vshrl.u32 2475754826, %v6154
    %v6158 = vor.u32 %v6156, %v6157
    %v6159 = vshll.u32 2475754826, %v6153
    %v6160 = vshrl.u32 2131351028, %v6154
    %v6161 = vor.u32 %v6159, %v6160
    %v6162 = vshll.u32 2131351028, %v6153
    %v6163 = vshrl.u32 2102212464, %v6154
    %v6164 = vor.u32 %v6162, %v6163
    %v6165 = vshll.u32 2102212464, %v6153
    %v6166 = vshrl.u32 920167782, %v6154
    %v6167 = vor.u32 %v6165, %v6166
    %v6168 = vshll.u32 920167782, %v6153
    %v6169 = vshrl.u32 1326507024, %v6154
    %v6170 = vor.u32 %v6168, %v6169
    %vm6171 = vcmp.lt.s32.totalorder %v6152, 1
    %vm6172 = vcmp.lt.s32.totalorder %v6152, 2
    %vm6173 = vcmp.lt.s32.totalorder %v6152, 3
    %vm6174 = vcmp.lt.s32.totalorder %v6152, 4
    %v6175 = vsel %vm6171, %v6155, %v6158
    %v6176 = vsel %vm6174, %v6164, 2102212464
    %v6177 = vsel %vm6173, %v6161, %v6176
    %v6178 = vsel %vm6172, %v6175, %v6177
    %v6179 = vsel %vm6171, %v6158, %v6161
    %v6180 = vsel %vm6174, %v6167, 920167782
    %v6181 = vsel %vm6173, %v6164, %v6180
    %v6182 = vsel %vm6172, %v6179, %v6181
    %v6183 = vsel %vm6171, %v6161, %v6164
    %v6184 = vsel %vm6174, %v6170, 1326507024
    %v6185 = vsel %vm6173, %v6167, %v6184
    %v6186 = vsel %vm6172, %v6183, %v6185
    %v6187 = vshll.u32 %v6147, 8
    %v6188 = vmul.u32.u64.compose %v6187, %v6186
    %v6189 = vextract.low.u32 %v6188
    %v6190 = vextract.high.u32 %v6188
    %v6191 = vmul.u32.u64.compose %v6187, %v6182
    %v6192 = vextract.low.u32 %v6191
    %v6193 = vextract.high.u32 %v6191
    %v6194 = vmul.u32 %v6187, %v6178
    %v6195 = vadd.s32 %v6190, %v6192
    %vm6196 = vc.u32 %v6190, %v6192
    %v6197 = vadd.s32 %v6193, 1
    %v6198 = vsel %vm6196, %v6197, %v6193
    %v6199 = vadd.s32 %v6194, %v6198
    %v6200 = vadd.s32 %v6199, 536870912
    %v6201 = vshrl.u32 %v6200, 30
    %v6202 = vshll.u32 %v6201, 30
    %v6203 = vsub.s32 %v6199, %v6202
    %vm6204 = vcmp.lt.s32.totalorder %v6203, 0
    %v6205 = vsub.s32 0, %v6203
    %v6206 = vsel %vm6204, %v6205, %v6203
    %v6207 = vclz %v6206
    %v6208 = vsub.s32 %v6207, 2
    %vm6209 = vcmp.gt.s32.totalorder 0, %v6208
    %v6210 = vsel %vm6209, 0, %v6208
    %v6211 = vsub.s32 32, %v6210
    %v6212 = vshll.u32 %v6203, %v6210
    %v6213 = vshrl.u32 %v6195, %v6211
    %v6214 = vor.u32 %v6212, %v6213
    %v6215 = vsub.s32 4294967266, %v6210
    %v6216 = vadd.s32 %v6215, 127
    %v6217 = vshll.u32 %v6216, 23
    %v6218 = vor.u32 4788187, %v6217
    %v6219 = vand.u32 2147483647, %v6218
    %v6221 = vcvt.s32.f32 %v6214
    %v6222 = vmul.f32 %v6221, %v6219
    %v6223 = vxor.u32 %v6222, 2147483648
    %v6224 = vsel %vm6141, %v6223, %v6222
    %v6225 = vsub.s32 4, %v6201
    %v6226 = vsel %vm6141, %v6225, %v6201
    %v6227 = vsel %vm6140, %v1689, %v6224
    %v6228 = vsel %vm6140, 0, %v6226
    %v6229 = vcosq.f32.pop %v6227
    %v6230 = vsinq.f32.pop %v6227
    %vm6231 = vweird.f32 %v1689
    %v6232 = vand.u32 %v6228, 3
    %vm6233 = vcmp.lt.s32.totalorder %v6232, 2
    %vm6234 = vcmp.eq.s32.totalorder %v6232, 0
    %v6235 = vxor.u32 %v6230, 2147483648
    %v6236 = vsel %vm6234, %v6229, %v6235
    %vm6237 = vcmp.eq.s32.totalorder %v6232, 2
    %v6238 = vxor.u32 %v6229, 2147483648
    %v6239 = vsel %vm6237, %v6238, %v6230
    %v6240 = vsel %vm6233, %v6236, %v6239
    %v6241 = vsel %vm6231, nan, %v6240
    %v6242 = vand.u32 2147483647, %v1690
    %vm6243 = vcmp.le.f32.partialorder %v6242, 0.7853982
    %vm6244 = vcmp.lt.s32.totalorder %v1690, 0
    %v6245 = vand.u32 %v1690, 2139095040
    %v6246 = vshrl.u32 %v6245, 23
    %v6247 = vsub.s32 %v6246, 127
    %v6248 = vand.u32 2147483647, %v1690
    %v6249 = vand.u32 %v6248, 8388607
    %v6250 = vor.u32 %v6249, 8388608
    %v6251 = vsub.s32 0, %v6250
    %v6252 = vadd.s32 %v6247, 1
    %vm6253 = vcmp.gt.s32.totalorder %v6252, 0
    %v6254 = vsel %vm6253, %v6252, 0
    %v6255 = vshrl.u32 %v6254, 5
    %v6256 = vand.u32 %v6254, 31
    %v6257 = vsub.s32 32, %v6256
    %v6258 = vshrl.u32 683565275, %v6257
    %v6259 = vshll.u32 683565275, %v6256
    %v6260 = vshrl.u32 2475754826, %v6257
    %v6261 = vor.u32 %v6259, %v6260
    %v6262 = vshll.u32 2475754826, %v6256
    %v6263 = vshrl.u32 2131351028, %v6257
    %v6264 = vor.u32 %v6262, %v6263
    %v6265 = vshll.u32 2131351028, %v6256
    %v6266 = vshrl.u32 2102212464, %v6257
    %v6267 = vor.u32 %v6265, %v6266
    %v6268 = vshll.u32 2102212464, %v6256
    %v6269 = vshrl.u32 920167782, %v6257
    %v6270 = vor.u32 %v6268, %v6269
    %v6271 = vshll.u32 920167782, %v6256
    %v6272 = vshrl.u32 1326507024, %v6257
    %v6273 = vor.u32 %v6271, %v6272
    %vm6274 = vcmp.lt.s32.totalorder %v6255, 1
    %vm6275 = vcmp.lt.s32.totalorder %v6255, 2
    %vm6276 = vcmp.lt.s32.totalorder %v6255, 3
    %vm6277 = vcmp.lt.s32.totalorder %v6255, 4
    %v6278 = vsel %vm6274, %v6258, %v6261
    %v6279 = vsel %vm6277, %v6267, 2102212464
    %v6280 = vsel %vm6276, %v6264, %v6279
    %v6281 = vsel %vm6275, %v6278, %v6280
    %v6282 = vsel %vm6274, %v6261, %v6264
    %v6283 = vsel %vm6277, %v6270, 920167782
    %v6284 = vsel %vm6276, %v6267, %v6283
    %v6285 = vsel %vm6275, %v6282, %v6284
    %v6286 = vsel %vm6274, %v6264, %v6267
    %v6287 = vsel %vm6277, %v6273, 1326507024
    %v6288 = vsel %vm6276, %v6270, %v6287
    %v6289 = vsel %vm6275, %v6286, %v6288
    %v6290 = vshll.u32 %v6250, 8
    %v6291 = vmul.u32.u64.compose %v6290, %v6289
    %v6292 = vextract.low.u32 %v6291
    %v6293 = vextract.high.u32 %v6291
    %v6294 = vmul.u32.u64.compose %v6290, %v6285
    %v6295 = vextract.low.u32 %v6294
    %v6296 = vextract.high.u32 %v6294
    %v6297 = vmul.u32 %v6290, %v6281
    %v6298 = vadd.s32 %v6293, %v6295
    %vm6299 = vc.u32 %v6293, %v6295
    %v6300 = vadd.s32 %v6296, 1
    %v6301 = vsel %vm6299, %v6300, %v6296
    %v6302 = vadd.s32 %v6297, %v6301
    %v6303 = vadd.s32 %v6302, 536870912
    %v6304 = vshrl.u32 %v6303, 30
    %v6305 = vshll.u32 %v6304, 30
    %v6306 = vsub.s32 %v6302, %v6305
    %vm6307 = vcmp.lt.s32.totalorder %v6306, 0
    %v6308 = vsub.s32 0, %v6306
    %v6309 = vsel %vm6307, %v6308, %v6306
    %v6310 = vclz %v6309
    %v6311 = vsub.s32 %v6310, 2
    %vm6312 = vcmp.gt.s32.totalorder 0, %v6311
    %v6313 = vsel %vm6312, 0, %v6311
    %v6314 = vsub.s32 32, %v6313
    %v6315 = vshll.u32 %v6306, %v6313
    %v6316 = vshrl.u32 %v6298, %v6314
    %v6317 = vor.u32 %v6315, %v6316
    %v6318 = vsub.s32 4294967266, %v6313
    %v6319 = vadd.s32 %v6318, 127
    %v6320 = vshll.u32 %v6319, 23
    %v6321 = vor.u32 4788187, %v6320
    %v6322 = vand.u32 2147483647, %v6321
    %v6324 = vcvt.s32.f32 %v6317
    %v6325 = vmul.f32 %v6324, %v6322
    %v6326 = vxor.u32 %v6325, 2147483648
    %v6327 = vsel %vm6244, %v6326, %v6325
    %v6328 = vsub.s32 4, %v6304
    %v6329 = vsel %vm6244, %v6328, %v6304
    %v6330 = vsel %vm6243, %v1690, %v6327
    %v6331 = vsel %vm6243, 0, %v6329
    %v6332 = vcosq.f32.pop %v6330
    %v6333 = vsinq.f32.pop %v6330
    %vm6334 = vweird.f32 %v1690
    %v6335 = vand.u32 %v6331, 3
    %vm6336 = vcmp.lt.s32.totalorder %v6335, 2
    %vm6337 = vcmp.eq.s32.totalorder %v6335, 0
    %v6338 = vxor.u32 %v6333, 2147483648
    %v6339 = vsel %vm6337, %v6332, %v6338
    %vm6340 = vcmp.eq.s32.totalorder %v6335, 2
    %v6341 = vxor.u32 %v6332, 2147483648
    %v6342 = vsel %vm6340, %v6341, %v6333
    %v6343 = vsel %vm6336, %v6339, %v6342
    %v6344 = vsel %vm6334, nan, %v6343
    %v6345 = vand.u32 2147483647, %v1691
    %vm6346 = vcmp.le.f32.partialorder %v6345, 0.7853982
    %vm6347 = vcmp.lt.s32.totalorder %v1691, 0
    %v6348 = vand.u32 %v1691, 2139095040
    %v6349 = vshrl.u32 %v6348, 23
    %v6350 = vsub.s32 %v6349, 127
    %v6351 = vand.u32 2147483647, %v1691
    %v6352 = vand.u32 %v6351, 8388607
    %v6353 = vor.u32 %v6352, 8388608
    %v6354 = vsub.s32 0, %v6353
    %v6355 = vadd.s32 %v6350, 1
    %vm6356 = vcmp.gt.s32.totalorder %v6355, 0
    %v6357 = vsel %vm6356, %v6355, 0
    %v6358 = vshrl.u32 %v6357, 5
    %v6359 = vand.u32 %v6357, 31
    %v6360 = vsub.s32 32, %v6359
    %v6361 = vshrl.u32 683565275, %v6360
    %v6362 = vshll.u32 683565275, %v6359
    %v6363 = vshrl.u32 2475754826, %v6360
    %v6364 = vor.u32 %v6362, %v6363
    %v6365 = vshll.u32 2475754826, %v6359
    %v6366 = vshrl.u32 2131351028, %v6360
    %v6367 = vor.u32 %v6365, %v6366
    %v6368 = vshll.u32 2131351028, %v6359
    %v6369 = vshrl.u32 2102212464, %v6360
    %v6370 = vor.u32 %v6368, %v6369
    %v6371 = vshll.u32 2102212464, %v6359
    %v6372 = vshrl.u32 920167782, %v6360
    %v6373 = vor.u32 %v6371, %v6372
    %v6374 = vshll.u32 920167782, %v6359
    %v6375 = vshrl.u32 1326507024, %v6360
    %v6376 = vor.u32 %v6374, %v6375
    %vm6377 = vcmp.lt.s32.totalorder %v6358, 1
    %vm6378 = vcmp.lt.s32.totalorder %v6358, 2
    %vm6379 = vcmp.lt.s32.totalorder %v6358, 3
    %vm6380 = vcmp.lt.s32.totalorder %v6358, 4
    %v6381 = vsel %vm6377, %v6361, %v6364
    %v6382 = vsel %vm6380, %v6370, 2102212464
    %v6383 = vsel %vm6379, %v6367, %v6382
    %v6384 = vsel %vm6378, %v6381, %v6383
    %v6385 = vsel %vm6377, %v6364, %v6367
    %v6386 = vsel %vm6380, %v6373, 920167782
    %v6387 = vsel %vm6379, %v6370, %v6386
    %v6388 = vsel %vm6378, %v6385, %v6387
    %v6389 = vsel %vm6377, %v6367, %v6370
    %v6390 = vsel %vm6380, %v6376, 1326507024
    %v6391 = vsel %vm6379, %v6373, %v6390
    %v6392 = vsel %vm6378, %v6389, %v6391
    %v6393 = vshll.u32 %v6353, 8
    %v6394 = vmul.u32.u64.compose %v6393, %v6392
    %v6395 = vextract.low.u32 %v6394
    %v6396 = vextract.high.u32 %v6394
    %v6397 = vmul.u32.u64.compose %v6393, %v6388
    %v6398 = vextract.low.u32 %v6397
    %v6399 = vextract.high.u32 %v6397
    %v6400 = vmul.u32 %v6393, %v6384
    %v6401 = vadd.s32 %v6396, %v6398
    %vm6402 = vc.u32 %v6396, %v6398
    %v6403 = vadd.s32 %v6399, 1
    %v6404 = vsel %vm6402, %v6403, %v6399
    %v6405 = vadd.s32 %v6400, %v6404
    %v6406 = vadd.s32 %v6405, 536870912
    %v6407 = vshrl.u32 %v6406, 30
    %v6408 = vshll.u32 %v6407, 30
    %v6409 = vsub.s32 %v6405, %v6408
    %vm6410 = vcmp.lt.s32.totalorder %v6409, 0
    %v6411 = vsub.s32 0, %v6409
    %v6412 = vsel %vm6410, %v6411, %v6409
    %v6413 = vclz %v6412
    %v6414 = vsub.s32 %v6413, 2
    %vm6415 = vcmp.gt.s32.totalorder 0, %v6414
    %v6416 = vsel %vm6415, 0, %v6414
    %v6417 = vsub.s32 32, %v6416
    %v6418 = vshll.u32 %v6409, %v6416
    %v6419 = vshrl.u32 %v6401, %v6417
    %v6420 = vor.u32 %v6418, %v6419
    %v6421 = vsub.s32 4294967266, %v6416
    %v6422 = vadd.s32 %v6421, 127
    %v6423 = vshll.u32 %v6422, 23
    %v6424 = vor.u32 4788187, %v6423
    %v6425 = vand.u32 2147483647, %v6424
    %v6427 = vcvt.s32.f32 %v6420
    %v6428 = vmul.f32 %v6427, %v6425
    %v6429 = vxor.u32 %v6428, 2147483648
    %v6430 = vsel %vm6347, %v6429, %v6428
    %v6431 = vsub.s32 4, %v6407
    %v6432 = vsel %vm6347, %v6431, %v6407
    %v6433 = vsel %vm6346, %v1691, %v6430
    %v6434 = vsel %vm6346, 0, %v6432
    %v6435 = vcosq.f32.pop %v6433
    %v6436 = vsinq.f32.pop %v6433
    %vm6437 = vweird.f32 %v1691
    %v6438 = vand.u32 %v6434, 3
    %vm6439 = vcmp.lt.s32.totalorder %v6438, 2
    %vm6440 = vcmp.eq.s32.totalorder %v6438, 0
    %v6441 = vxor.u32 %v6436, 2147483648
    %v6442 = vsel %vm6440, %v6435, %v6441
    %vm6443 = vcmp.eq.s32.totalorder %v6438, 2
    %v6444 = vxor.u32 %v6435, 2147483648
    %v6445 = vsel %vm6443, %v6444, %v6436
    %v6446 = vsel %vm6439, %v6442, %v6445
    %v6447 = vsel %vm6437, nan, %v6446
    %v6448 = vand.u32 2147483647, %v1692
    %vm6449 = vcmp.le.f32.partialorder %v6448, 0.7853982
    %vm6450 = vcmp.lt.s32.totalorder %v1692, 0
    %v6451 = vand.u32 %v1692, 2139095040
    %v6452 = vshrl.u32 %v6451, 23
    %v6453 = vsub.s32 %v6452, 127
    %v6454 = vand.u32 2147483647, %v1692
    %v6455 = vand.u32 %v6454, 8388607
    %v6456 = vor.u32 %v6455, 8388608
    %v6457 = vsub.s32 0, %v6456
    %v6458 = vadd.s32 %v6453, 1
    %vm6459 = vcmp.gt.s32.totalorder %v6458, 0
    %v6460 = vsel %vm6459, %v6458, 0
    %v6461 = vshrl.u32 %v6460, 5
    %v6462 = vand.u32 %v6460, 31
    %v6463 = vsub.s32 32, %v6462
    %v6464 = vshrl.u32 683565275, %v6463
    %v6465 = vshll.u32 683565275, %v6462
    %v6466 = vshrl.u32 2475754826, %v6463
    %v6467 = vor.u32 %v6465, %v6466
    %v6468 = vshll.u32 2475754826, %v6462
    %v6469 = vshrl.u32 2131351028, %v6463
    %v6470 = vor.u32 %v6468, %v6469
    %v6471 = vshll.u32 2131351028, %v6462
    %v6472 = vshrl.u32 2102212464, %v6463
    %v6473 = vor.u32 %v6471, %v6472
    %v6474 = vshll.u32 2102212464, %v6462
    %v6475 = vshrl.u32 920167782, %v6463
    %v6476 = vor.u32 %v6474, %v6475
    %v6477 = vshll.u32 920167782, %v6462
    %v6478 = vshrl.u32 1326507024, %v6463
    %v6479 = vor.u32 %v6477, %v6478
    %vm6480 = vcmp.lt.s32.totalorder %v6461, 1
    %vm6481 = vcmp.lt.s32.totalorder %v6461, 2
    %vm6482 = vcmp.lt.s32.totalorder %v6461, 3
    %vm6483 = vcmp.lt.s32.totalorder %v6461, 4
    %v6484 = vsel %vm6480, %v6464, %v6467
    %v6485 = vsel %vm6483, %v6473, 2102212464
    %v6486 = vsel %vm6482, %v6470, %v6485
    %v6487 = vsel %vm6481, %v6484, %v6486
    %v6488 = vsel %vm6480, %v6467, %v6470
    %v6489 = vsel %vm6483, %v6476, 920167782
    %v6490 = vsel %vm6482, %v6473, %v6489
    %v6491 = vsel %vm6481, %v6488, %v6490
    %v6492 = vsel %vm6480, %v6470, %v6473
    %v6493 = vsel %vm6483, %v6479, 1326507024
    %v6494 = vsel %vm6482, %v6476, %v6493
    %v6495 = vsel %vm6481, %v6492, %v6494
    %v6496 = vshll.u32 %v6456, 8
    %v6497 = vmul.u32.u64.compose %v6496, %v6495
    %v6498 = vextract.low.u32 %v6497
    %v6499 = vextract.high.u32 %v6497
    %v6500 = vmul.u32.u64.compose %v6496, %v6491
    %v6501 = vextract.low.u32 %v6500
    %v6502 = vextract.high.u32 %v6500
    %v6503 = vmul.u32 %v6496, %v6487
    %v6504 = vadd.s32 %v6499, %v6501
    %vm6505 = vc.u32 %v6499, %v6501
    %v6506 = vadd.s32 %v6502, 1
    %v6507 = vsel %vm6505, %v6506, %v6502
    %v6508 = vadd.s32 %v6503, %v6507
    %v6509 = vadd.s32 %v6508, 536870912
    %v6510 = vshrl.u32 %v6509, 30
    %v6511 = vshll.u32 %v6510, 30
    %v6512 = vsub.s32 %v6508, %v6511
    %vm6513 = vcmp.lt.s32.totalorder %v6512, 0
    %v6514 = vsub.s32 0, %v6512
    %v6515 = vsel %vm6513, %v6514, %v6512
    %v6516 = vclz %v6515
    %v6517 = vsub.s32 %v6516, 2
    %vm6518 = vcmp.gt.s32.totalorder 0, %v6517
    %v6519 = vsel %vm6518, 0, %v6517
    %v6520 = vsub.s32 32, %v6519
    %v6521 = vshll.u32 %v6512, %v6519
    %v6522 = vshrl.u32 %v6504, %v6520
    %v6523 = vor.u32 %v6521, %v6522
    %v6524 = vsub.s32 4294967266, %v6519
    %v6525 = vadd.s32 %v6524, 127
    %v6526 = vshll.u32 %v6525, 23
    %v6527 = vor.u32 4788187, %v6526
    %v6528 = vand.u32 2147483647, %v6527
    %v6530 = vcvt.s32.f32 %v6523
    %v6531 = vmul.f32 %v6530, %v6528
    %v6532 = vxor.u32 %v6531, 2147483648
    %v6533 = vsel %vm6450, %v6532, %v6531
    %v6534 = vsub.s32 4, %v6510
    %v6535 = vsel %vm6450, %v6534, %v6510
    %v6536 = vsel %vm6449, %v1692, %v6533
    %v6537 = vsel %vm6449, 0, %v6535
    %v6538 = vcosq.f32.pop %v6536
    %v6539 = vsinq.f32.pop %v6536
    %vm6540 = vweird.f32 %v1692
    %v6541 = vand.u32 %v6537, 3
    %vm6542 = vcmp.lt.s32.totalorder %v6541, 2
    %vm6543 = vcmp.eq.s32.totalorder %v6541, 0
    %v6544 = vxor.u32 %v6539, 2147483648
    %v6545 = vsel %vm6543, %v6538, %v6544
    %vm6546 = vcmp.eq.s32.totalorder %v6541, 2
    %v6547 = vxor.u32 %v6538, 2147483648
    %v6548 = vsel %vm6546, %v6547, %v6539
    %v6549 = vsel %vm6542, %v6545, %v6548
    %v6550 = vsel %vm6540, nan, %v6549
    %v6551 = vand.u32 2147483647, %v1693
    %vm6552 = vcmp.le.f32.partialorder %v6551, 0.7853982
    %vm6553 = vcmp.lt.s32.totalorder %v1693, 0
    %v6554 = vand.u32 %v1693, 2139095040
    %v6555 = vshrl.u32 %v6554, 23
    %v6556 = vsub.s32 %v6555, 127
    %v6557 = vand.u32 2147483647, %v1693
    %v6558 = vand.u32 %v6557, 8388607
    %v6559 = vor.u32 %v6558, 8388608
    %v6560 = vsub.s32 0, %v6559
    %v6561 = vadd.s32 %v6556, 1
    %vm6562 = vcmp.gt.s32.totalorder %v6561, 0
    %v6563 = vsel %vm6562, %v6561, 0
    %v6564 = vshrl.u32 %v6563, 5
    %v6565 = vand.u32 %v6563, 31
    %v6566 = vsub.s32 32, %v6565
    %v6567 = vshrl.u32 683565275, %v6566
    %v6568 = vshll.u32 683565275, %v6565
    %v6569 = vshrl.u32 2475754826, %v6566
    %v6570 = vor.u32 %v6568, %v6569
    %v6571 = vshll.u32 2475754826, %v6565
    %v6572 = vshrl.u32 2131351028, %v6566
    %v6573 = vor.u32 %v6571, %v6572
    %v6574 = vshll.u32 2131351028, %v6565
    %v6575 = vshrl.u32 2102212464, %v6566
    %v6576 = vor.u32 %v6574, %v6575
    %v6577 = vshll.u32 2102212464, %v6565
    %v6578 = vshrl.u32 920167782, %v6566
    %v6579 = vor.u32 %v6577, %v6578
    %v6580 = vshll.u32 920167782, %v6565
    %v6581 = vshrl.u32 1326507024, %v6566
    %v6582 = vor.u32 %v6580, %v6581
    %vm6583 = vcmp.lt.s32.totalorder %v6564, 1
    %vm6584 = vcmp.lt.s32.totalorder %v6564, 2
    %vm6585 = vcmp.lt.s32.totalorder %v6564, 3
    %vm6586 = vcmp.lt.s32.totalorder %v6564, 4
    %v6587 = vsel %vm6583, %v6567, %v6570
    %v6588 = vsel %vm6586, %v6576, 2102212464
    %v6589 = vsel %vm6585, %v6573, %v6588
    %v6590 = vsel %vm6584, %v6587, %v6589
    %v6591 = vsel %vm6583, %v6570, %v6573
    %v6592 = vsel %vm6586, %v6579, 920167782
    %v6593 = vsel %vm6585, %v6576, %v6592
    %v6594 = vsel %vm6584, %v6591, %v6593
    %v6595 = vsel %vm6583, %v6573, %v6576
    %v6596 = vsel %vm6586, %v6582, 1326507024
    %v6597 = vsel %vm6585, %v6579, %v6596
    %v6598 = vsel %vm6584, %v6595, %v6597
    %v6599 = vshll.u32 %v6559, 8
    %v6600 = vmul.u32.u64.compose %v6599, %v6598
    %v6601 = vextract.low.u32 %v6600
    %v6602 = vextract.high.u32 %v6600
    %v6603 = vmul.u32.u64.compose %v6599, %v6594
    %v6604 = vextract.low.u32 %v6603
    %v6605 = vextract.high.u32 %v6603
    %v6606 = vmul.u32 %v6599, %v6590
    %v6607 = vadd.s32 %v6602, %v6604
    %vm6608 = vc.u32 %v6602, %v6604
    %v6609 = vadd.s32 %v6605, 1
    %v6610 = vsel %vm6608, %v6609, %v6605
    %v6611 = vadd.s32 %v6606, %v6610
    %v6612 = vadd.s32 %v6611, 536870912
    %v6613 = vshrl.u32 %v6612, 30
    %v6614 = vshll.u32 %v6613, 30
    %v6615 = vsub.s32 %v6611, %v6614
    %vm6616 = vcmp.lt.s32.totalorder %v6615, 0
    %v6617 = vsub.s32 0, %v6615
    %v6618 = vsel %vm6616, %v6617, %v6615
    %v6619 = vclz %v6618
    %v6620 = vsub.s32 %v6619, 2
    %vm6621 = vcmp.gt.s32.totalorder 0, %v6620
    %v6622 = vsel %vm6621, 0, %v6620
    %v6623 = vsub.s32 32, %v6622
    %v6624 = vshll.u32 %v6615, %v6622
    %v6625 = vshrl.u32 %v6607, %v6623
    %v6626 = vor.u32 %v6624, %v6625
    %v6627 = vsub.s32 4294967266, %v6622
    %v6628 = vadd.s32 %v6627, 127
    %v6629 = vshll.u32 %v6628, 23
    %v6630 = vor.u32 4788187, %v6629
    %v6631 = vand.u32 2147483647, %v6630
    %v6633 = vcvt.s32.f32 %v6626
    %v6634 = vmul.f32 %v6633, %v6631
    %v6635 = vxor.u32 %v6634, 2147483648
    %v6636 = vsel %vm6553, %v6635, %v6634
    %v6637 = vsub.s32 4, %v6613
    %v6638 = vsel %vm6553, %v6637, %v6613
    %v6639 = vsel %vm6552, %v1693, %v6636
    %v6640 = vsel %vm6552, 0, %v6638
    %v6641 = vcosq.f32.pop %v6639
    %v6642 = vsinq.f32.pop %v6639
    %vm6643 = vweird.f32 %v1693
    %v6644 = vand.u32 %v6640, 3
    %vm6645 = vcmp.lt.s32.totalorder %v6644, 2
    %vm6646 = vcmp.eq.s32.totalorder %v6644, 0
    %v6647 = vxor.u32 %v6642, 2147483648
    %v6648 = vsel %vm6646, %v6641, %v6647
    %vm6649 = vcmp.eq.s32.totalorder %v6644, 2
    %v6650 = vxor.u32 %v6641, 2147483648
    %v6651 = vsel %vm6649, %v6650, %v6642
    %v6652 = vsel %vm6645, %v6648, %v6651
    %v6653 = vsel %vm6643, nan, %v6652
    %v6654 = vand.u32 2147483647, %v1694
    %vm6655 = vcmp.le.f32.partialorder %v6654, 0.7853982
    %vm6656 = vcmp.lt.s32.totalorder %v1694, 0
    %v6657 = vand.u32 %v1694, 2139095040
    %v6658 = vshrl.u32 %v6657, 23
    %v6659 = vsub.s32 %v6658, 127
    %v6660 = vand.u32 2147483647, %v1694
    %v6661 = vand.u32 %v6660, 8388607
    %v6662 = vor.u32 %v6661, 8388608
    %v6663 = vsub.s32 0, %v6662
    %v6664 = vadd.s32 %v6659, 1
    %vm6665 = vcmp.gt.s32.totalorder %v6664, 0
    %v6666 = vsel %vm6665, %v6664, 0
    %v6667 = vshrl.u32 %v6666, 5
    %v6668 = vand.u32 %v6666, 31
    %v6669 = vsub.s32 32, %v6668
    %v6670 = vshrl.u32 683565275, %v6669
    %v6671 = vshll.u32 683565275, %v6668
    %v6672 = vshrl.u32 2475754826, %v6669
    %v6673 = vor.u32 %v6671, %v6672
    %v6674 = vshll.u32 2475754826, %v6668
    %v6675 = vshrl.u32 2131351028, %v6669
    %v6676 = vor.u32 %v6674, %v6675
    %v6677 = vshll.u32 2131351028, %v6668
    %v6678 = vshrl.u32 2102212464, %v6669
    %v6679 = vor.u32 %v6677, %v6678
    %v6680 = vshll.u32 2102212464, %v6668
    %v6681 = vshrl.u32 920167782, %v6669
    %v6682 = vor.u32 %v6680, %v6681
    %v6683 = vshll.u32 920167782, %v6668
    %v6684 = vshrl.u32 1326507024, %v6669
    %v6685 = vor.u32 %v6683, %v6684
    %vm6686 = vcmp.lt.s32.totalorder %v6667, 1
    %vm6687 = vcmp.lt.s32.totalorder %v6667, 2
    %vm6688 = vcmp.lt.s32.totalorder %v6667, 3
    %vm6689 = vcmp.lt.s32.totalorder %v6667, 4
    %v6690 = vsel %vm6686, %v6670, %v6673
    %v6691 = vsel %vm6689, %v6679, 2102212464
    %v6692 = vsel %vm6688, %v6676, %v6691
    %v6693 = vsel %vm6687, %v6690, %v6692
    %v6694 = vsel %vm6686, %v6673, %v6676
    %v6695 = vsel %vm6689, %v6682, 920167782
    %v6696 = vsel %vm6688, %v6679, %v6695
    %v6697 = vsel %vm6687, %v6694, %v6696
    %v6698 = vsel %vm6686, %v6676, %v6679
    %v6699 = vsel %vm6689, %v6685, 1326507024
    %v6700 = vsel %vm6688, %v6682, %v6699
    %v6701 = vsel %vm6687, %v6698, %v6700
    %v6702 = vshll.u32 %v6662, 8
    %v6703 = vmul.u32.u64.compose %v6702, %v6701
    %v6704 = vextract.low.u32 %v6703
    %v6705 = vextract.high.u32 %v6703
    %v6706 = vmul.u32.u64.compose %v6702, %v6697
    %v6707 = vextract.low.u32 %v6706
    %v6708 = vextract.high.u32 %v6706
    %v6709 = vmul.u32 %v6702, %v6693
    %v6710 = vadd.s32 %v6705, %v6707
    %vm6711 = vc.u32 %v6705, %v6707
    %v6712 = vadd.s32 %v6708, 1
    %v6713 = vsel %vm6711, %v6712, %v6708
    %v6714 = vadd.s32 %v6709, %v6713
    %v6715 = vadd.s32 %v6714, 536870912
    %v6716 = vshrl.u32 %v6715, 30
    %v6717 = vshll.u32 %v6716, 30
    %v6718 = vsub.s32 %v6714, %v6717
    %vm6719 = vcmp.lt.s32.totalorder %v6718, 0
    %v6720 = vsub.s32 0, %v6718
    %v6721 = vsel %vm6719, %v6720, %v6718
    %v6722 = vclz %v6721
    %v6723 = vsub.s32 %v6722, 2
    %vm6724 = vcmp.gt.s32.totalorder 0, %v6723
    %v6725 = vsel %vm6724, 0, %v6723
    %v6726 = vsub.s32 32, %v6725
    %v6727 = vshll.u32 %v6718, %v6725
    %v6728 = vshrl.u32 %v6710, %v6726
    %v6729 = vor.u32 %v6727, %v6728
    %v6730 = vsub.s32 4294967266, %v6725
    %v6731 = vadd.s32 %v6730, 127
    %v6732 = vshll.u32 %v6731, 23
    %v6733 = vor.u32 4788187, %v6732
    %v6734 = vand.u32 2147483647, %v6733
    %v6736 = vcvt.s32.f32 %v6729
    %v6737 = vmul.f32 %v6736, %v6734
    %v6738 = vxor.u32 %v6737, 2147483648
    %v6739 = vsel %vm6656, %v6738, %v6737
    %v6740 = vsub.s32 4, %v6716
    %v6741 = vsel %vm6656, %v6740, %v6716
    %v6742 = vsel %vm6655, %v1694, %v6739
    %v6743 = vsel %vm6655, 0, %v6741
    %v6744 = vcosq.f32.pop %v6742
    %v6745 = vsinq.f32.pop %v6742
    %vm6746 = vweird.f32 %v1694
    %v6747 = vand.u32 %v6743, 3
    %vm6748 = vcmp.lt.s32.totalorder %v6747, 2
    %vm6749 = vcmp.eq.s32.totalorder %v6747, 0
    %v6750 = vxor.u32 %v6745, 2147483648
    %v6751 = vsel %vm6749, %v6744, %v6750
    %vm6752 = vcmp.eq.s32.totalorder %v6747, 2
    %v6753 = vxor.u32 %v6744, 2147483648
    %v6754 = vsel %vm6752, %v6753, %v6745
    %v6755 = vsel %vm6748, %v6751, %v6754
    %v6756 = vsel %vm6746, nan, %v6755
    %v6757 = vand.u32 2147483647, %v1695
    %vm6758 = vcmp.le.f32.partialorder %v6757, 0.7853982
    %vm6759 = vcmp.lt.s32.totalorder %v1695, 0
    %v6760 = vand.u32 %v1695, 2139095040
    %v6761 = vshrl.u32 %v6760, 23
    %v6762 = vsub.s32 %v6761, 127
    %v6763 = vand.u32 2147483647, %v1695
    %v6764 = vand.u32 %v6763, 8388607
    %v6765 = vor.u32 %v6764, 8388608
    %v6766 = vsub.s32 0, %v6765
    %v6767 = vadd.s32 %v6762, 1
    %vm6768 = vcmp.gt.s32.totalorder %v6767, 0
    %v6769 = vsel %vm6768, %v6767, 0
    %v6770 = vshrl.u32 %v6769, 5
    %v6771 = vand.u32 %v6769, 31
    %v6772 = vsub.s32 32, %v6771
    %v6773 = vshrl.u32 683565275, %v6772
    %v6774 = vshll.u32 683565275, %v6771
    %v6775 = vshrl.u32 2475754826, %v6772
    %v6776 = vor.u32 %v6774, %v6775
    %v6777 = vshll.u32 2475754826, %v6771
    %v6778 = vshrl.u32 2131351028, %v6772
    %v6779 = vor.u32 %v6777, %v6778
    %v6780 = vshll.u32 2131351028, %v6771
    %v6781 = vshrl.u32 2102212464, %v6772
    %v6782 = vor.u32 %v6780, %v6781
    %v6783 = vshll.u32 2102212464, %v6771
    %v6784 = vshrl.u32 920167782, %v6772
    %v6785 = vor.u32 %v6783, %v6784
    %v6786 = vshll.u32 920167782, %v6771
    %v6787 = vshrl.u32 1326507024, %v6772
    %v6788 = vor.u32 %v6786, %v6787
    %vm6789 = vcmp.lt.s32.totalorder %v6770, 1
    %vm6790 = vcmp.lt.s32.totalorder %v6770, 2
    %vm6791 = vcmp.lt.s32.totalorder %v6770, 3
    %vm6792 = vcmp.lt.s32.totalorder %v6770, 4
    %v6793 = vsel %vm6789, %v6773, %v6776
    %v6794 = vsel %vm6792, %v6782, 2102212464
    %v6795 = vsel %vm6791, %v6779, %v6794
    %v6796 = vsel %vm6790, %v6793, %v6795
    %v6797 = vsel %vm6789, %v6776, %v6779
    %v6798 = vsel %vm6792, %v6785, 920167782
    %v6799 = vsel %vm6791, %v6782, %v6798
    %v6800 = vsel %vm6790, %v6797, %v6799
    %v6801 = vsel %vm6789, %v6779, %v6782
    %v6802 = vsel %vm6792, %v6788, 1326507024
    %v6803 = vsel %vm6791, %v6785, %v6802
    %v6804 = vsel %vm6790, %v6801, %v6803
    %v6805 = vshll.u32 %v6765, 8
    %v6806 = vmul.u32.u64.compose %v6805, %v6804
    %v6807 = vextract.low.u32 %v6806
    %v6808 = vextract.high.u32 %v6806
    %v6809 = vmul.u32.u64.compose %v6805, %v6800
    %v6810 = vextract.low.u32 %v6809
    %v6811 = vextract.high.u32 %v6809
    %v6812 = vmul.u32 %v6805, %v6796
    %v6813 = vadd.s32 %v6808, %v6810
    %vm6814 = vc.u32 %v6808, %v6810
    %v6815 = vadd.s32 %v6811, 1
    %v6816 = vsel %vm6814, %v6815, %v6811
    %v6817 = vadd.s32 %v6812, %v6816
    %v6818 = vadd.s32 %v6817, 536870912
    %v6819 = vshrl.u32 %v6818, 30
    %v6820 = vshll.u32 %v6819, 30
    %v6821 = vsub.s32 %v6817, %v6820
    %vm6822 = vcmp.lt.s32.totalorder %v6821, 0
    %v6823 = vsub.s32 0, %v6821
    %v6824 = vsel %vm6822, %v6823, %v6821
    %v6825 = vclz %v6824
    %v6826 = vsub.s32 %v6825, 2
    %vm6827 = vcmp.gt.s32.totalorder 0, %v6826
    %v6828 = vsel %vm6827, 0, %v6826
    %v6829 = vsub.s32 32, %v6828
    %v6830 = vshll.u32 %v6821, %v6828
    %v6831 = vshrl.u32 %v6813, %v6829
    %v6832 = vor.u32 %v6830, %v6831
    %v6833 = vsub.s32 4294967266, %v6828
    %v6834 = vadd.s32 %v6833, 127
    %v6835 = vshll.u32 %v6834, 23
    %v6836 = vor.u32 4788187, %v6835
    %v6837 = vand.u32 2147483647, %v6836
    %v6839 = vcvt.s32.f32 %v6832
    %v6840 = vmul.f32 %v6839, %v6837
    %v6841 = vxor.u32 %v6840, 2147483648
    %v6842 = vsel %vm6759, %v6841, %v6840
    %v6843 = vsub.s32 4, %v6819
    %v6844 = vsel %vm6759, %v6843, %v6819
    %v6845 = vsel %vm6758, %v1695, %v6842
    %v6846 = vsel %vm6758, 0, %v6844
    %v6847 = vcosq.f32.pop %v6845
    %v6848 = vsinq.f32.pop %v6845
    %vm6849 = vweird.f32 %v1695
    %v6850 = vand.u32 %v6846, 3
    %vm6851 = vcmp.lt.s32.totalorder %v6850, 2
    %vm6852 = vcmp.eq.s32.totalorder %v6850, 0
    %v6853 = vxor.u32 %v6848, 2147483648
    %v6854 = vsel %vm6852, %v6847, %v6853
    %vm6855 = vcmp.eq.s32.totalorder %v6850, 2
    %v6856 = vxor.u32 %v6847, 2147483648
    %v6857 = vsel %vm6855, %v6856, %v6848
    %v6858 = vsel %vm6851, %v6854, %v6857
    %v6859 = vsel %vm6849, nan, %v6858
    %v6860 = vand.u32 2147483647, %v1696
    %vm6861 = vcmp.le.f32.partialorder %v6860, 0.7853982
    %vm6862 = vcmp.lt.s32.totalorder %v1696, 0
    %v6863 = vand.u32 %v1696, 2139095040
    %v6864 = vshrl.u32 %v6863, 23
    %v6865 = vsub.s32 %v6864, 127
    %v6866 = vand.u32 2147483647, %v1696
    %v6867 = vand.u32 %v6866, 8388607
    %v6868 = vor.u32 %v6867, 8388608
    %v6869 = vsub.s32 0, %v6868
    %v6870 = vadd.s32 %v6865, 1
    %vm6871 = vcmp.gt.s32.totalorder %v6870, 0
    %v6872 = vsel %vm6871, %v6870, 0
    %v6873 = vshrl.u32 %v6872, 5
    %v6874 = vand.u32 %v6872, 31
    %v6875 = vsub.s32 32, %v6874
    %v6876 = vshrl.u32 683565275, %v6875
    %v6877 = vshll.u32 683565275, %v6874
    %v6878 = vshrl.u32 2475754826, %v6875
    %v6879 = vor.u32 %v6877, %v6878
    %v6880 = vshll.u32 2475754826, %v6874
    %v6881 = vshrl.u32 2131351028, %v6875
    %v6882 = vor.u32 %v6880, %v6881
    %v6883 = vshll.u32 2131351028, %v6874
    %v6884 = vshrl.u32 2102212464, %v6875
    %v6885 = vor.u32 %v6883, %v6884
    %v6886 = vshll.u32 2102212464, %v6874
    %v6887 = vshrl.u32 920167782, %v6875
    %v6888 = vor.u32 %v6886, %v6887
    %v6889 = vshll.u32 920167782, %v6874
    %v6890 = vshrl.u32 1326507024, %v6875
    %v6891 = vor.u32 %v6889, %v6890
    %vm6892 = vcmp.lt.s32.totalorder %v6873, 1
    %vm6893 = vcmp.lt.s32.totalorder %v6873, 2
    %vm6894 = vcmp.lt.s32.totalorder %v6873, 3
    %vm6895 = vcmp.lt.s32.totalorder %v6873, 4
    %v6896 = vsel %vm6892, %v6876, %v6879
    %v6897 = vsel %vm6895, %v6885, 2102212464
    %v6898 = vsel %vm6894, %v6882, %v6897
    %v6899 = vsel %vm6893, %v6896, %v6898
    %v6900 = vsel %vm6892, %v6879, %v6882
    %v6901 = vsel %vm6895, %v6888, 920167782
    %v6902 = vsel %vm6894, %v6885, %v6901
    %v6903 = vsel %vm6893, %v6900, %v6902
    %v6904 = vsel %vm6892, %v6882, %v6885
    %v6905 = vsel %vm6895, %v6891, 1326507024
    %v6906 = vsel %vm6894, %v6888, %v6905
    %v6907 = vsel %vm6893, %v6904, %v6906
    %v6908 = vshll.u32 %v6868, 8
    %v6909 = vmul.u32.u64.compose %v6908, %v6907
    %v6910 = vextract.low.u32 %v6909
    %v6911 = vextract.high.u32 %v6909
    %v6912 = vmul.u32.u64.compose %v6908, %v6903
    %v6913 = vextract.low.u32 %v6912
    %v6914 = vextract.high.u32 %v6912
    %v6915 = vmul.u32 %v6908, %v6899
    %v6916 = vadd.s32 %v6911, %v6913
    %vm6917 = vc.u32 %v6911, %v6913
    %v6918 = vadd.s32 %v6914, 1
    %v6919 = vsel %vm6917, %v6918, %v6914
    %v6920 = vadd.s32 %v6915, %v6919
    %v6921 = vadd.s32 %v6920, 536870912
    %v6922 = vshrl.u32 %v6921, 30
    %v6923 = vshll.u32 %v6922, 30
    %v6924 = vsub.s32 %v6920, %v6923
    %vm6925 = vcmp.lt.s32.totalorder %v6924, 0
    %v6926 = vsub.s32 0, %v6924
    %v6927 = vsel %vm6925, %v6926, %v6924
    %v6928 = vclz %v6927
    %v6929 = vsub.s32 %v6928, 2
    %vm6930 = vcmp.gt.s32.totalorder 0, %v6929
    %v6931 = vsel %vm6930, 0, %v6929
    %v6932 = vsub.s32 32, %v6931
    %v6933 = vshll.u32 %v6924, %v6931
    %v6934 = vshrl.u32 %v6916, %v6932
    %v6935 = vor.u32 %v6933, %v6934
    %v6936 = vsub.s32 4294967266, %v6931
    %v6937 = vadd.s32 %v6936, 127
    %v6938 = vshll.u32 %v6937, 23
    %v6939 = vor.u32 4788187, %v6938
    %v6940 = vand.u32 2147483647, %v6939
    %v6942 = vcvt.s32.f32 %v6935
    %v6943 = vmul.f32 %v6942, %v6940
    %v6944 = vxor.u32 %v6943, 2147483648
    %v6945 = vsel %vm6862, %v6944, %v6943
    %v6946 = vsub.s32 4, %v6922
    %v6947 = vsel %vm6862, %v6946, %v6922
    %v6948 = vsel %vm6861, %v1696, %v6945
    %v6949 = vsel %vm6861, 0, %v6947
    %v6950 = vcosq.f32.pop %v6948
    %v6951 = vsinq.f32.pop %v6948
    %vm6952 = vweird.f32 %v1696
    %v6953 = vand.u32 %v6949, 3
    %vm6954 = vcmp.lt.s32.totalorder %v6953, 2
    %vm6955 = vcmp.eq.s32.totalorder %v6953, 0
    %v6956 = vxor.u32 %v6951, 2147483648
    %v6957 = vsel %vm6955, %v6950, %v6956
    %vm6958 = vcmp.eq.s32.totalorder %v6953, 2
    %v6959 = vxor.u32 %v6950, 2147483648
    %v6960 = vsel %vm6958, %v6959, %v6951
    %v6961 = vsel %vm6954, %v6957, %v6960
    %v6962 = vsel %vm6952, nan, %v6961
    %v6963 = vand.u32 2147483647, %v1697
    %vm6964 = vcmp.le.f32.partialorder %v6963, 0.7853982
    %vm6965 = vcmp.lt.s32.totalorder %v1697, 0
    %v6966 = vand.u32 %v1697, 2139095040
    %v6967 = vshrl.u32 %v6966, 23
    %v6968 = vsub.s32 %v6967, 127
    %v6969 = vand.u32 2147483647, %v1697
    %v6970 = vand.u32 %v6969, 8388607
    %v6971 = vor.u32 %v6970, 8388608
    %v6972 = vsub.s32 0, %v6971
    %v6973 = vadd.s32 %v6968, 1
    %vm6974 = vcmp.gt.s32.totalorder %v6973, 0
    %v6975 = vsel %vm6974, %v6973, 0
    %v6976 = vshrl.u32 %v6975, 5
    %v6977 = vand.u32 %v6975, 31
    %v6978 = vsub.s32 32, %v6977
    %v6979 = vshrl.u32 683565275, %v6978
    %v6980 = vshll.u32 683565275, %v6977
    %v6981 = vshrl.u32 2475754826, %v6978
    %v6982 = vor.u32 %v6980, %v6981
    %v6983 = vshll.u32 2475754826, %v6977
    %v6984 = vshrl.u32 2131351028, %v6978
    %v6985 = vor.u32 %v6983, %v6984
    %v6986 = vshll.u32 2131351028, %v6977
    %v6987 = vshrl.u32 2102212464, %v6978
    %v6988 = vor.u32 %v6986, %v6987
    %v6989 = vshll.u32 2102212464, %v6977
    %v6990 = vshrl.u32 920167782, %v6978
    %v6991 = vor.u32 %v6989, %v6990
    %v6992 = vshll.u32 920167782, %v6977
    %v6993 = vshrl.u32 1326507024, %v6978
    %v6994 = vor.u32 %v6992, %v6993
    %vm6995 = vcmp.lt.s32.totalorder %v6976, 1
    %vm6996 = vcmp.lt.s32.totalorder %v6976, 2
    %vm6997 = vcmp.lt.s32.totalorder %v6976, 3
    %vm6998 = vcmp.lt.s32.totalorder %v6976, 4
    %v6999 = vsel %vm6995, %v6979, %v6982
    %v7000 = vsel %vm6998, %v6988, 2102212464
    %v7001 = vsel %vm6997, %v6985, %v7000
    %v7002 = vsel %vm6996, %v6999, %v7001
    %v7003 = vsel %vm6995, %v6982, %v6985
    %v7004 = vsel %vm6998, %v6991, 920167782
    %v7005 = vsel %vm6997, %v6988, %v7004
    %v7006 = vsel %vm6996, %v7003, %v7005
    %v7007 = vsel %vm6995, %v6985, %v6988
    %v7008 = vsel %vm6998, %v6994, 1326507024
    %v7009 = vsel %vm6997, %v6991, %v7008
    %v7010 = vsel %vm6996, %v7007, %v7009
    %v7011 = vshll.u32 %v6971, 8
    %v7012 = vmul.u32.u64.compose %v7011, %v7010
    %v7013 = vextract.low.u32 %v7012
    %v7014 = vextract.high.u32 %v7012
    %v7015 = vmul.u32.u64.compose %v7011, %v7006
    %v7016 = vextract.low.u32 %v7015
    %v7017 = vextract.high.u32 %v7015
    %v7018 = vmul.u32 %v7011, %v7002
    %v7019 = vadd.s32 %v7014, %v7016
    %vm7020 = vc.u32 %v7014, %v7016
    %v7021 = vadd.s32 %v7017, 1
    %v7022 = vsel %vm7020, %v7021, %v7017
    %v7023 = vadd.s32 %v7018, %v7022
    %v7024 = vadd.s32 %v7023, 536870912
    %v7025 = vshrl.u32 %v7024, 30
    %v7026 = vshll.u32 %v7025, 30
    %v7027 = vsub.s32 %v7023, %v7026
    %vm7028 = vcmp.lt.s32.totalorder %v7027, 0
    %v7029 = vsub.s32 0, %v7027
    %v7030 = vsel %vm7028, %v7029, %v7027
    %v7031 = vclz %v7030
    %v7032 = vsub.s32 %v7031, 2
    %vm7033 = vcmp.gt.s32.totalorder 0, %v7032
    %v7034 = vsel %vm7033, 0, %v7032
    %v7035 = vsub.s32 32, %v7034
    %v7036 = vshll.u32 %v7027, %v7034
    %v7037 = vshrl.u32 %v7019, %v7035
    %v7038 = vor.u32 %v7036, %v7037
    %v7039 = vsub.s32 4294967266, %v7034
    %v7040 = vadd.s32 %v7039, 127
    %v7041 = vshll.u32 %v7040, 23
    %v7042 = vor.u32 4788187, %v7041
    %v7043 = vand.u32 2147483647, %v7042
    %v7045 = vcvt.s32.f32 %v7038
    %v7046 = vmul.f32 %v7045, %v7043
    %v7047 = vxor.u32 %v7046, 2147483648
    %v7048 = vsel %vm6965, %v7047, %v7046
    %v7049 = vsub.s32 4, %v7025
    %v7050 = vsel %vm6965, %v7049, %v7025
    %v7051 = vsel %vm6964, %v1697, %v7048
    %v7052 = vsel %vm6964, 0, %v7050
    %v7053 = vcosq.f32.pop %v7051
    %v7054 = vsinq.f32.pop %v7051
    %vm7055 = vweird.f32 %v1697
    %v7056 = vand.u32 %v7052, 3
    %vm7057 = vcmp.lt.s32.totalorder %v7056, 2
    %vm7058 = vcmp.eq.s32.totalorder %v7056, 0
    %v7059 = vxor.u32 %v7054, 2147483648
    %v7060 = vsel %vm7058, %v7053, %v7059
    %vm7061 = vcmp.eq.s32.totalorder %v7056, 2
    %v7062 = vxor.u32 %v7053, 2147483648
    %v7063 = vsel %vm7061, %v7062, %v7054
    %v7064 = vsel %vm7057, %v7060, %v7063
    %v7065 = vsel %vm7055, nan, %v7064
    %v7066 = vand.u32 2147483647, %v1698
    %vm7067 = vcmp.le.f32.partialorder %v7066, 0.7853982
    %vm7068 = vcmp.lt.s32.totalorder %v1698, 0
    %v7069 = vand.u32 %v1698, 2139095040
    %v7070 = vshrl.u32 %v7069, 23
    %v7071 = vsub.s32 %v7070, 127
    %v7072 = vand.u32 2147483647, %v1698
    %v7073 = vand.u32 %v7072, 8388607
    %v7074 = vor.u32 %v7073, 8388608
    %v7075 = vsub.s32 0, %v7074
    %v7076 = vadd.s32 %v7071, 1
    %vm7077 = vcmp.gt.s32.totalorder %v7076, 0
    %v7078 = vsel %vm7077, %v7076, 0
    %v7079 = vshrl.u32 %v7078, 5
    %v7080 = vand.u32 %v7078, 31
    %v7081 = vsub.s32 32, %v7080
    %v7082 = vshrl.u32 683565275, %v7081
    %v7083 = vshll.u32 683565275, %v7080
    %v7084 = vshrl.u32 2475754826, %v7081
    %v7085 = vor.u32 %v7083, %v7084
    %v7086 = vshll.u32 2475754826, %v7080
    %v7087 = vshrl.u32 2131351028, %v7081
    %v7088 = vor.u32 %v7086, %v7087
    %v7089 = vshll.u32 2131351028, %v7080
    %v7090 = vshrl.u32 2102212464, %v7081
    %v7091 = vor.u32 %v7089, %v7090
    %v7092 = vshll.u32 2102212464, %v7080
    %v7093 = vshrl.u32 920167782, %v7081
    %v7094 = vor.u32 %v7092, %v7093
    %v7095 = vshll.u32 920167782, %v7080
    %v7096 = vshrl.u32 1326507024, %v7081
    %v7097 = vor.u32 %v7095, %v7096
    %vm7098 = vcmp.lt.s32.totalorder %v7079, 1
    %vm7099 = vcmp.lt.s32.totalorder %v7079, 2
    %vm7100 = vcmp.lt.s32.totalorder %v7079, 3
    %vm7101 = vcmp.lt.s32.totalorder %v7079, 4
    %v7102 = vsel %vm7098, %v7082, %v7085
    %v7103 = vsel %vm7101, %v7091, 2102212464
    %v7104 = vsel %vm7100, %v7088, %v7103
    %v7105 = vsel %vm7099, %v7102, %v7104
    %v7106 = vsel %vm7098, %v7085, %v7088
    %v7107 = vsel %vm7101, %v7094, 920167782
    %v7108 = vsel %vm7100, %v7091, %v7107
    %v7109 = vsel %vm7099, %v7106, %v7108
    %v7110 = vsel %vm7098, %v7088, %v7091
    %v7111 = vsel %vm7101, %v7097, 1326507024
    %v7112 = vsel %vm7100, %v7094, %v7111
    %v7113 = vsel %vm7099, %v7110, %v7112
    %v7114 = vshll.u32 %v7074, 8
    %v7115 = vmul.u32.u64.compose %v7114, %v7113
    %v7116 = vextract.low.u32 %v7115
    %v7117 = vextract.high.u32 %v7115
    %v7118 = vmul.u32.u64.compose %v7114, %v7109
    %v7119 = vextract.low.u32 %v7118
    %v7120 = vextract.high.u32 %v7118
    %v7121 = vmul.u32 %v7114, %v7105
    %v7122 = vadd.s32 %v7117, %v7119
    %vm7123 = vc.u32 %v7117, %v7119
    %v7124 = vadd.s32 %v7120, 1
    %v7125 = vsel %vm7123, %v7124, %v7120
    %v7126 = vadd.s32 %v7121, %v7125
    %v7127 = vadd.s32 %v7126, 536870912
    %v7128 = vshrl.u32 %v7127, 30
    %v7129 = vshll.u32 %v7128, 30
    %v7130 = vsub.s32 %v7126, %v7129
    %vm7131 = vcmp.lt.s32.totalorder %v7130, 0
    %v7132 = vsub.s32 0, %v7130
    %v7133 = vsel %vm7131, %v7132, %v7130
    %v7134 = vclz %v7133
    %v7135 = vsub.s32 %v7134, 2
    %vm7136 = vcmp.gt.s32.totalorder 0, %v7135
    %v7137 = vsel %vm7136, 0, %v7135
    %v7138 = vsub.s32 32, %v7137
    %v7139 = vshll.u32 %v7130, %v7137
    %v7140 = vshrl.u32 %v7122, %v7138
    %v7141 = vor.u32 %v7139, %v7140
    %v7142 = vsub.s32 4294967266, %v7137
    %v7143 = vadd.s32 %v7142, 127
    %v7144 = vshll.u32 %v7143, 23
    %v7145 = vor.u32 4788187, %v7144
    %v7146 = vand.u32 2147483647, %v7145
    %v7148 = vcvt.s32.f32 %v7141
    %v7149 = vmul.f32 %v7148, %v7146
    %v7150 = vxor.u32 %v7149, 2147483648
    %v7151 = vsel %vm7068, %v7150, %v7149
    %v7152 = vsub.s32 4, %v7128
    %v7153 = vsel %vm7068, %v7152, %v7128
    %v7154 = vsel %vm7067, %v1698, %v7151
    %v7155 = vsel %vm7067, 0, %v7153
    %v7156 = vcosq.f32.pop %v7154
    %v7157 = vsinq.f32.pop %v7154
    %vm7158 = vweird.f32 %v1698
    %v7159 = vand.u32 %v7155, 3
    %vm7160 = vcmp.lt.s32.totalorder %v7159, 2
    %vm7161 = vcmp.eq.s32.totalorder %v7159, 0
    %v7162 = vxor.u32 %v7157, 2147483648
    %v7163 = vsel %vm7161, %v7156, %v7162
    %vm7164 = vcmp.eq.s32.totalorder %v7159, 2
    %v7165 = vxor.u32 %v7156, 2147483648
    %v7166 = vsel %vm7164, %v7165, %v7157
    %v7167 = vsel %vm7160, %v7163, %v7166
    %v7168 = vsel %vm7158, nan, %v7167
    %v7169 = vand.u32 2147483647, %v1699
    %vm7170 = vcmp.le.f32.partialorder %v7169, 0.7853982
    %vm7171 = vcmp.lt.s32.totalorder %v1699, 0
    %v7172 = vand.u32 %v1699, 2139095040
    %v7173 = vshrl.u32 %v7172, 23
    %v7174 = vsub.s32 %v7173, 127
    %v7175 = vand.u32 2147483647, %v1699
    %v7176 = vand.u32 %v7175, 8388607
    %v7177 = vor.u32 %v7176, 8388608
    %v7178 = vsub.s32 0, %v7177
    %v7179 = vadd.s32 %v7174, 1
    %vm7180 = vcmp.gt.s32.totalorder %v7179, 0
    %v7181 = vsel %vm7180, %v7179, 0
    %v7182 = vshrl.u32 %v7181, 5
    %v7183 = vand.u32 %v7181, 31
    %v7184 = vsub.s32 32, %v7183
    %v7185 = vshrl.u32 683565275, %v7184
    %v7186 = vshll.u32 683565275, %v7183
    %v7187 = vshrl.u32 2475754826, %v7184
    %v7188 = vor.u32 %v7186, %v7187
    %v7189 = vshll.u32 2475754826, %v7183
    %v7190 = vshrl.u32 2131351028, %v7184
    %v7191 = vor.u32 %v7189, %v7190
    %v7192 = vshll.u32 2131351028, %v7183
    %v7193 = vshrl.u32 2102212464, %v7184
    %v7194 = vor.u32 %v7192, %v7193
    %v7195 = vshll.u32 2102212464, %v7183
    %v7196 = vshrl.u32 920167782, %v7184
    %v7197 = vor.u32 %v7195, %v7196
    %v7198 = vshll.u32 920167782, %v7183
    %v7199 = vshrl.u32 1326507024, %v7184
    %v7200 = vor.u32 %v7198, %v7199
    %vm7201 = vcmp.lt.s32.totalorder %v7182, 1
    %vm7202 = vcmp.lt.s32.totalorder %v7182, 2
    %vm7203 = vcmp.lt.s32.totalorder %v7182, 3
    %vm7204 = vcmp.lt.s32.totalorder %v7182, 4
    %v7205 = vsel %vm7201, %v7185, %v7188
    %v7206 = vsel %vm7204, %v7194, 2102212464
    %v7207 = vsel %vm7203, %v7191, %v7206
    %v7208 = vsel %vm7202, %v7205, %v7207
    %v7209 = vsel %vm7201, %v7188, %v7191
    %v7210 = vsel %vm7204, %v7197, 920167782
    %v7211 = vsel %vm7203, %v7194, %v7210
    %v7212 = vsel %vm7202, %v7209, %v7211
    %v7213 = vsel %vm7201, %v7191, %v7194
    %v7214 = vsel %vm7204, %v7200, 1326507024
    %v7215 = vsel %vm7203, %v7197, %v7214
    %v7216 = vsel %vm7202, %v7213, %v7215
    %v7217 = vshll.u32 %v7177, 8
    %v7218 = vmul.u32.u64.compose %v7217, %v7216
    %v7219 = vextract.low.u32 %v7218
    %v7220 = vextract.high.u32 %v7218
    %v7221 = vmul.u32.u64.compose %v7217, %v7212
    %v7222 = vextract.low.u32 %v7221
    %v7223 = vextract.high.u32 %v7221
    %v7224 = vmul.u32 %v7217, %v7208
    %v7225 = vadd.s32 %v7220, %v7222
    %vm7226 = vc.u32 %v7220, %v7222
    %v7227 = vadd.s32 %v7223, 1
    %v7228 = vsel %vm7226, %v7227, %v7223
    %v7229 = vadd.s32 %v7224, %v7228
    %v7230 = vadd.s32 %v7229, 536870912
    %v7231 = vshrl.u32 %v7230, 30
    %v7232 = vshll.u32 %v7231, 30
    %v7233 = vsub.s32 %v7229, %v7232
    %vm7234 = vcmp.lt.s32.totalorder %v7233, 0
    %v7235 = vsub.s32 0, %v7233
    %v7236 = vsel %vm7234, %v7235, %v7233
    %v7237 = vclz %v7236
    %v7238 = vsub.s32 %v7237, 2
    %vm7239 = vcmp.gt.s32.totalorder 0, %v7238
    %v7240 = vsel %vm7239, 0, %v7238
    %v7241 = vsub.s32 32, %v7240
    %v7242 = vshll.u32 %v7233, %v7240
    %v7243 = vshrl.u32 %v7225, %v7241
    %v7244 = vor.u32 %v7242, %v7243
    %v7245 = vsub.s32 4294967266, %v7240
    %v7246 = vadd.s32 %v7245, 127
    %v7247 = vshll.u32 %v7246, 23
    %v7248 = vor.u32 4788187, %v7247
    %v7249 = vand.u32 2147483647, %v7248
    %v7251 = vcvt.s32.f32 %v7244
    %v7252 = vmul.f32 %v7251, %v7249
    %v7253 = vxor.u32 %v7252, 2147483648
    %v7254 = vsel %vm7171, %v7253, %v7252
    %v7255 = vsub.s32 4, %v7231
    %v7256 = vsel %vm7171, %v7255, %v7231
    %v7257 = vsel %vm7170, %v1699, %v7254
    %v7258 = vsel %vm7170, 0, %v7256
    %v7259 = vcosq.f32.pop %v7257
    %v7260 = vsinq.f32.pop %v7257
    %vm7261 = vweird.f32 %v1699
    %v7262 = vand.u32 %v7258, 3
    %vm7263 = vcmp.lt.s32.totalorder %v7262, 2
    %vm7264 = vcmp.eq.s32.totalorder %v7262, 0
    %v7265 = vxor.u32 %v7260, 2147483648
    %v7266 = vsel %vm7264, %v7259, %v7265
    %vm7267 = vcmp.eq.s32.totalorder %v7262, 2
    %v7268 = vxor.u32 %v7259, 2147483648
    %v7269 = vsel %vm7267, %v7268, %v7260
    %v7270 = vsel %vm7263, %v7266, %v7269
    %v7271 = vsel %vm7261, nan, %v7270
    %v7272 = vand.u32 2147483647, %v1700
    %vm7273 = vcmp.le.f32.partialorder %v7272, 0.7853982
    %vm7274 = vcmp.lt.s32.totalorder %v1700, 0
    %v7275 = vand.u32 %v1700, 2139095040
    %v7276 = vshrl.u32 %v7275, 23
    %v7277 = vsub.s32 %v7276, 127
    %v7278 = vand.u32 2147483647, %v1700
    %v7279 = vand.u32 %v7278, 8388607
    %v7280 = vor.u32 %v7279, 8388608
    %v7281 = vsub.s32 0, %v7280
    %v7282 = vadd.s32 %v7277, 1
    %vm7283 = vcmp.gt.s32.totalorder %v7282, 0
    %v7284 = vsel %vm7283, %v7282, 0
    %v7285 = vshrl.u32 %v7284, 5
    %v7286 = vand.u32 %v7284, 31
    %v7287 = vsub.s32 32, %v7286
    %v7288 = vshrl.u32 683565275, %v7287
    %v7289 = vshll.u32 683565275, %v7286
    %v7290 = vshrl.u32 2475754826, %v7287
    %v7291 = vor.u32 %v7289, %v7290
    %v7292 = vshll.u32 2475754826, %v7286
    %v7293 = vshrl.u32 2131351028, %v7287
    %v7294 = vor.u32 %v7292, %v7293
    %v7295 = vshll.u32 2131351028, %v7286
    %v7296 = vshrl.u32 2102212464, %v7287
    %v7297 = vor.u32 %v7295, %v7296
    %v7298 = vshll.u32 2102212464, %v7286
    %v7299 = vshrl.u32 920167782, %v7287
    %v7300 = vor.u32 %v7298, %v7299
    %v7301 = vshll.u32 920167782, %v7286
    %v7302 = vshrl.u32 1326507024, %v7287
    %v7303 = vor.u32 %v7301, %v7302
    %vm7304 = vcmp.lt.s32.totalorder %v7285, 1
    %vm7305 = vcmp.lt.s32.totalorder %v7285, 2
    %vm7306 = vcmp.lt.s32.totalorder %v7285, 3
    %vm7307 = vcmp.lt.s32.totalorder %v7285, 4
    %v7308 = vsel %vm7304, %v7288, %v7291
    %v7309 = vsel %vm7307, %v7297, 2102212464
    %v7310 = vsel %vm7306, %v7294, %v7309
    %v7311 = vsel %vm7305, %v7308, %v7310
    %v7312 = vsel %vm7304, %v7291, %v7294
    %v7313 = vsel %vm7307, %v7300, 920167782
    %v7314 = vsel %vm7306, %v7297, %v7313
    %v7315 = vsel %vm7305, %v7312, %v7314
    %v7316 = vsel %vm7304, %v7294, %v7297
    %v7317 = vsel %vm7307, %v7303, 1326507024
    %v7318 = vsel %vm7306, %v7300, %v7317
    %v7319 = vsel %vm7305, %v7316, %v7318
    %v7320 = vshll.u32 %v7280, 8
    %v7321 = vmul.u32.u64.compose %v7320, %v7319
    %v7322 = vextract.low.u32 %v7321
    %v7323 = vextract.high.u32 %v7321
    %v7324 = vmul.u32.u64.compose %v7320, %v7315
    %v7325 = vextract.low.u32 %v7324
    %v7326 = vextract.high.u32 %v7324
    %v7327 = vmul.u32 %v7320, %v7311
    %v7328 = vadd.s32 %v7323, %v7325
    %vm7329 = vc.u32 %v7323, %v7325
    %v7330 = vadd.s32 %v7326, 1
    %v7331 = vsel %vm7329, %v7330, %v7326
    %v7332 = vadd.s32 %v7327, %v7331
    %v7333 = vadd.s32 %v7332, 536870912
    %v7334 = vshrl.u32 %v7333, 30
    %v7335 = vshll.u32 %v7334, 30
    %v7336 = vsub.s32 %v7332, %v7335
    %vm7337 = vcmp.lt.s32.totalorder %v7336, 0
    %v7338 = vsub.s32 0, %v7336
    %v7339 = vsel %vm7337, %v7338, %v7336
    %v7340 = vclz %v7339
    %v7341 = vsub.s32 %v7340, 2
    %vm7342 = vcmp.gt.s32.totalorder 0, %v7341
    %v7343 = vsel %vm7342, 0, %v7341
    %v7344 = vsub.s32 32, %v7343
    %v7345 = vshll.u32 %v7336, %v7343
    %v7346 = vshrl.u32 %v7328, %v7344
    %v7347 = vor.u32 %v7345, %v7346
    %v7348 = vsub.s32 4294967266, %v7343
    %v7349 = vadd.s32 %v7348, 127
    %v7350 = vshll.u32 %v7349, 23
    %v7351 = vor.u32 4788187, %v7350
    %v7352 = vand.u32 2147483647, %v7351
    %v7354 = vcvt.s32.f32 %v7347
    %v7355 = vmul.f32 %v7354, %v7352
    %v7356 = vxor.u32 %v7355, 2147483648
    %v7357 = vsel %vm7274, %v7356, %v7355
    %v7358 = vsub.s32 4, %v7334
    %v7359 = vsel %vm7274, %v7358, %v7334
    %v7360 = vsel %vm7273, %v1700, %v7357
    %v7361 = vsel %vm7273, 0, %v7359
    %v7362 = vcosq.f32.pop %v7360
    %v7363 = vsinq.f32.pop %v7360
    %vm7364 = vweird.f32 %v1700
    %v7365 = vand.u32 %v7361, 3
    %vm7366 = vcmp.lt.s32.totalorder %v7365, 2
    %vm7367 = vcmp.eq.s32.totalorder %v7365, 0
    %v7368 = vxor.u32 %v7363, 2147483648
    %v7369 = vsel %vm7367, %v7362, %v7368
    %vm7370 = vcmp.eq.s32.totalorder %v7365, 2
    %v7371 = vxor.u32 %v7362, 2147483648
    %v7372 = vsel %vm7370, %v7371, %v7363
    %v7373 = vsel %vm7366, %v7369, %v7372
    %v7374 = vsel %vm7364, nan, %v7373
    %v7375 = vand.u32 2147483647, %v1701
    %vm7376 = vcmp.le.f32.partialorder %v7375, 0.7853982
    %vm7377 = vcmp.lt.s32.totalorder %v1701, 0
    %v7378 = vand.u32 %v1701, 2139095040
    %v7379 = vshrl.u32 %v7378, 23
    %v7380 = vsub.s32 %v7379, 127
    %v7381 = vand.u32 2147483647, %v1701
    %v7382 = vand.u32 %v7381, 8388607
    %v7383 = vor.u32 %v7382, 8388608
    %v7384 = vsub.s32 0, %v7383
    %v7385 = vadd.s32 %v7380, 1
    %vm7386 = vcmp.gt.s32.totalorder %v7385, 0
    %v7387 = vsel %vm7386, %v7385, 0
    %v7388 = vshrl.u32 %v7387, 5
    %v7389 = vand.u32 %v7387, 31
    %v7390 = vsub.s32 32, %v7389
    %v7391 = vshrl.u32 683565275, %v7390
    %v7392 = vshll.u32 683565275, %v7389
    %v7393 = vshrl.u32 2475754826, %v7390
    %v7394 = vor.u32 %v7392, %v7393
    %v7395 = vshll.u32 2475754826, %v7389
    %v7396 = vshrl.u32 2131351028, %v7390
    %v7397 = vor.u32 %v7395, %v7396
    %v7398 = vshll.u32 2131351028, %v7389
    %v7399 = vshrl.u32 2102212464, %v7390
    %v7400 = vor.u32 %v7398, %v7399
    %v7401 = vshll.u32 2102212464, %v7389
    %v7402 = vshrl.u32 920167782, %v7390
    %v7403 = vor.u32 %v7401, %v7402
    %v7404 = vshll.u32 920167782, %v7389
    %v7405 = vshrl.u32 1326507024, %v7390
    %v7406 = vor.u32 %v7404, %v7405
    %vm7407 = vcmp.lt.s32.totalorder %v7388, 1
    %vm7408 = vcmp.lt.s32.totalorder %v7388, 2
    %vm7409 = vcmp.lt.s32.totalorder %v7388, 3
    %vm7410 = vcmp.lt.s32.totalorder %v7388, 4
    %v7411 = vsel %vm7407, %v7391, %v7394
    %v7412 = vsel %vm7410, %v7400, 2102212464
    %v7413 = vsel %vm7409, %v7397, %v7412
    %v7414 = vsel %vm7408, %v7411, %v7413
    %v7415 = vsel %vm7407, %v7394, %v7397
    %v7416 = vsel %vm7410, %v7403, 920167782
    %v7417 = vsel %vm7409, %v7400, %v7416
    %v7418 = vsel %vm7408, %v7415, %v7417
    %v7419 = vsel %vm7407, %v7397, %v7400
    %v7420 = vsel %vm7410, %v7406, 1326507024
    %v7421 = vsel %vm7409, %v7403, %v7420
    %v7422 = vsel %vm7408, %v7419, %v7421
    %v7423 = vshll.u32 %v7383, 8
    %v7424 = vmul.u32.u64.compose %v7423, %v7422
    %v7425 = vextract.low.u32 %v7424
    %v7426 = vextract.high.u32 %v7424
    %v7427 = vmul.u32.u64.compose %v7423, %v7418
    %v7428 = vextract.low.u32 %v7427
    %v7429 = vextract.high.u32 %v7427
    %v7430 = vmul.u32 %v7423, %v7414
    %v7431 = vadd.s32 %v7426, %v7428
    %vm7432 = vc.u32 %v7426, %v7428
    %v7433 = vadd.s32 %v7429, 1
    %v7434 = vsel %vm7432, %v7433, %v7429
    %v7435 = vadd.s32 %v7430, %v7434
    %v7436 = vadd.s32 %v7435, 536870912
    %v7437 = vshrl.u32 %v7436, 30
    %v7438 = vshll.u32 %v7437, 30
    %v7439 = vsub.s32 %v7435, %v7438
    %vm7440 = vcmp.lt.s32.totalorder %v7439, 0
    %v7441 = vsub.s32 0, %v7439
    %v7442 = vsel %vm7440, %v7441, %v7439
    %v7443 = vclz %v7442
    %v7444 = vsub.s32 %v7443, 2
    %vm7445 = vcmp.gt.s32.totalorder 0, %v7444
    %v7446 = vsel %vm7445, 0, %v7444
    %v7447 = vsub.s32 32, %v7446
    %v7448 = vshll.u32 %v7439, %v7446
    %v7449 = vshrl.u32 %v7431, %v7447
    %v7450 = vor.u32 %v7448, %v7449
    %v7451 = vsub.s32 4294967266, %v7446
    %v7452 = vadd.s32 %v7451, 127
    %v7453 = vshll.u32 %v7452, 23
    %v7454 = vor.u32 4788187, %v7453
    %v7455 = vand.u32 2147483647, %v7454
    %v7457 = vcvt.s32.f32 %v7450
    %v7458 = vmul.f32 %v7457, %v7455
    %v7459 = vxor.u32 %v7458, 2147483648
    %v7460 = vsel %vm7377, %v7459, %v7458
    %v7461 = vsub.s32 4, %v7437
    %v7462 = vsel %vm7377, %v7461, %v7437
    %v7463 = vsel %vm7376, %v1701, %v7460
    %v7464 = vsel %vm7376, 0, %v7462
    %v7465 = vcosq.f32.pop %v7463
    %v7466 = vsinq.f32.pop %v7463
    %vm7467 = vweird.f32 %v1701
    %v7468 = vand.u32 %v7464, 3
    %vm7469 = vcmp.lt.s32.totalorder %v7468, 2
    %vm7470 = vcmp.eq.s32.totalorder %v7468, 0
    %v7471 = vxor.u32 %v7466, 2147483648
    %v7472 = vsel %vm7470, %v7465, %v7471
    %vm7473 = vcmp.eq.s32.totalorder %v7468, 2
    %v7474 = vxor.u32 %v7465, 2147483648
    %v7475 = vsel %vm7473, %v7474, %v7466
    %v7476 = vsel %vm7469, %v7472, %v7475
    %v7477 = vsel %vm7467, nan, %v7476
    %v7478 = vand.u32 2147483647, %v1702
    %vm7479 = vcmp.le.f32.partialorder %v7478, 0.7853982
    %vm7480 = vcmp.lt.s32.totalorder %v1702, 0
    %v7481 = vand.u32 %v1702, 2139095040
    %v7482 = vshrl.u32 %v7481, 23
    %v7483 = vsub.s32 %v7482, 127
    %v7484 = vand.u32 2147483647, %v1702
    %v7485 = vand.u32 %v7484, 8388607
    %v7486 = vor.u32 %v7485, 8388608
    %v7487 = vsub.s32 0, %v7486
    %v7488 = vadd.s32 %v7483, 1
    %vm7489 = vcmp.gt.s32.totalorder %v7488, 0
    %v7490 = vsel %vm7489, %v7488, 0
    %v7491 = vshrl.u32 %v7490, 5
    %v7492 = vand.u32 %v7490, 31
    %v7493 = vsub.s32 32, %v7492
    %v7494 = vshrl.u32 683565275, %v7493
    %v7495 = vshll.u32 683565275, %v7492
    %v7496 = vshrl.u32 2475754826, %v7493
    %v7497 = vor.u32 %v7495, %v7496
    %v7498 = vshll.u32 2475754826, %v7492
    %v7499 = vshrl.u32 2131351028, %v7493
    %v7500 = vor.u32 %v7498, %v7499
    %v7501 = vshll.u32 2131351028, %v7492
    %v7502 = vshrl.u32 2102212464, %v7493
    %v7503 = vor.u32 %v7501, %v7502
    %v7504 = vshll.u32 2102212464, %v7492
    %v7505 = vshrl.u32 920167782, %v7493
    %v7506 = vor.u32 %v7504, %v7505
    %v7507 = vshll.u32 920167782, %v7492
    %v7508 = vshrl.u32 1326507024, %v7493
    %v7509 = vor.u32 %v7507, %v7508
    %vm7510 = vcmp.lt.s32.totalorder %v7491, 1
    %vm7511 = vcmp.lt.s32.totalorder %v7491, 2
    %vm7512 = vcmp.lt.s32.totalorder %v7491, 3
    %vm7513 = vcmp.lt.s32.totalorder %v7491, 4
    %v7514 = vsel %vm7510, %v7494, %v7497
    %v7515 = vsel %vm7513, %v7503, 2102212464
    %v7516 = vsel %vm7512, %v7500, %v7515
    %v7517 = vsel %vm7511, %v7514, %v7516
    %v7518 = vsel %vm7510, %v7497, %v7500
    %v7519 = vsel %vm7513, %v7506, 920167782
    %v7520 = vsel %vm7512, %v7503, %v7519
    %v7521 = vsel %vm7511, %v7518, %v7520
    %v7522 = vsel %vm7510, %v7500, %v7503
    %v7523 = vsel %vm7513, %v7509, 1326507024
    %v7524 = vsel %vm7512, %v7506, %v7523
    %v7525 = vsel %vm7511, %v7522, %v7524
    %v7526 = vshll.u32 %v7486, 8
    %v7527 = vmul.u32.u64.compose %v7526, %v7525
    %v7528 = vextract.low.u32 %v7527
    %v7529 = vextract.high.u32 %v7527
    %v7530 = vmul.u32.u64.compose %v7526, %v7521
    %v7531 = vextract.low.u32 %v7530
    %v7532 = vextract.high.u32 %v7530
    %v7533 = vmul.u32 %v7526, %v7517
    %v7534 = vadd.s32 %v7529, %v7531
    %vm7535 = vc.u32 %v7529, %v7531
    %v7536 = vadd.s32 %v7532, 1
    %v7537 = vsel %vm7535, %v7536, %v7532
    %v7538 = vadd.s32 %v7533, %v7537
    %v7539 = vadd.s32 %v7538, 536870912
    %v7540 = vshrl.u32 %v7539, 30
    %v7541 = vshll.u32 %v7540, 30
    %v7542 = vsub.s32 %v7538, %v7541
    %vm7543 = vcmp.lt.s32.totalorder %v7542, 0
    %v7544 = vsub.s32 0, %v7542
    %v7545 = vsel %vm7543, %v7544, %v7542
    %v7546 = vclz %v7545
    %v7547 = vsub.s32 %v7546, 2
    %vm7548 = vcmp.gt.s32.totalorder 0, %v7547
    %v7549 = vsel %vm7548, 0, %v7547
    %v7550 = vsub.s32 32, %v7549
    %v7551 = vshll.u32 %v7542, %v7549
    %v7552 = vshrl.u32 %v7534, %v7550
    %v7553 = vor.u32 %v7551, %v7552
    %v7554 = vsub.s32 4294967266, %v7549
    %v7555 = vadd.s32 %v7554, 127
    %v7556 = vshll.u32 %v7555, 23
    %v7557 = vor.u32 4788187, %v7556
    %v7558 = vand.u32 2147483647, %v7557
    %v7560 = vcvt.s32.f32 %v7553
    %v7561 = vmul.f32 %v7560, %v7558
    %v7562 = vxor.u32 %v7561, 2147483648
    %v7563 = vsel %vm7480, %v7562, %v7561
    %v7564 = vsub.s32 4, %v7540
    %v7565 = vsel %vm7480, %v7564, %v7540
    %v7566 = vsel %vm7479, %v1702, %v7563
    %v7567 = vsel %vm7479, 0, %v7565
    %v7568 = vcosq.f32.pop %v7566
    %v7569 = vsinq.f32.pop %v7566
    %vm7570 = vweird.f32 %v1702
    %v7571 = vand.u32 %v7567, 3
    %vm7572 = vcmp.lt.s32.totalorder %v7571, 2
    %vm7573 = vcmp.eq.s32.totalorder %v7571, 0
    %v7574 = vxor.u32 %v7569, 2147483648
    %v7575 = vsel %vm7573, %v7568, %v7574
    %vm7576 = vcmp.eq.s32.totalorder %v7571, 2
    %v7577 = vxor.u32 %v7568, 2147483648
    %v7578 = vsel %vm7576, %v7577, %v7569
    %v7579 = vsel %vm7572, %v7575, %v7578
    %v7580 = vsel %vm7570, nan, %v7579
    %v7581 = vand.u32 2147483647, %v1703
    %vm7582 = vcmp.le.f32.partialorder %v7581, 0.7853982
    %vm7583 = vcmp.lt.s32.totalorder %v1703, 0
    %v7584 = vand.u32 %v1703, 2139095040
    %v7585 = vshrl.u32 %v7584, 23
    %v7586 = vsub.s32 %v7585, 127
    %v7587 = vand.u32 2147483647, %v1703
    %v7588 = vand.u32 %v7587, 8388607
    %v7589 = vor.u32 %v7588, 8388608
    %v7590 = vsub.s32 0, %v7589
    %v7591 = vadd.s32 %v7586, 1
    %vm7592 = vcmp.gt.s32.totalorder %v7591, 0
    %v7593 = vsel %vm7592, %v7591, 0
    %v7594 = vshrl.u32 %v7593, 5
    %v7595 = vand.u32 %v7593, 31
    %v7596 = vsub.s32 32, %v7595
    %v7597 = vshrl.u32 683565275, %v7596
    %v7598 = vshll.u32 683565275, %v7595
    %v7599 = vshrl.u32 2475754826, %v7596
    %v7600 = vor.u32 %v7598, %v7599
    %v7601 = vshll.u32 2475754826, %v7595
    %v7602 = vshrl.u32 2131351028, %v7596
    %v7603 = vor.u32 %v7601, %v7602
    %v7604 = vshll.u32 2131351028, %v7595
    %v7605 = vshrl.u32 2102212464, %v7596
    %v7606 = vor.u32 %v7604, %v7605
    %v7607 = vshll.u32 2102212464, %v7595
    %v7608 = vshrl.u32 920167782, %v7596
    %v7609 = vor.u32 %v7607, %v7608
    %v7610 = vshll.u32 920167782, %v7595
    %v7611 = vshrl.u32 1326507024, %v7596
    %v7612 = vor.u32 %v7610, %v7611
    %vm7613 = vcmp.lt.s32.totalorder %v7594, 1
    %vm7614 = vcmp.lt.s32.totalorder %v7594, 2
    %vm7615 = vcmp.lt.s32.totalorder %v7594, 3
    %vm7616 = vcmp.lt.s32.totalorder %v7594, 4
    %v7617 = vsel %vm7613, %v7597, %v7600
    %v7618 = vsel %vm7616, %v7606, 2102212464
    %v7619 = vsel %vm7615, %v7603, %v7618
    %v7620 = vsel %vm7614, %v7617, %v7619
    %v7621 = vsel %vm7613, %v7600, %v7603
    %v7622 = vsel %vm7616, %v7609, 920167782
    %v7623 = vsel %vm7615, %v7606, %v7622
    %v7624 = vsel %vm7614, %v7621, %v7623
    %v7625 = vsel %vm7613, %v7603, %v7606
    %v7626 = vsel %vm7616, %v7612, 1326507024
    %v7627 = vsel %vm7615, %v7609, %v7626
    %v7628 = vsel %vm7614, %v7625, %v7627
    %v7629 = vshll.u32 %v7589, 8
    %v7630 = vmul.u32.u64.compose %v7629, %v7628
    %v7631 = vextract.low.u32 %v7630
    %v7632 = vextract.high.u32 %v7630
    %v7633 = vmul.u32.u64.compose %v7629, %v7624
    %v7634 = vextract.low.u32 %v7633
    %v7635 = vextract.high.u32 %v7633
    %v7636 = vmul.u32 %v7629, %v7620
    %v7637 = vadd.s32 %v7632, %v7634
    %vm7638 = vc.u32 %v7632, %v7634
    %v7639 = vadd.s32 %v7635, 1
    %v7640 = vsel %vm7638, %v7639, %v7635
    %v7641 = vadd.s32 %v7636, %v7640
    %v7642 = vadd.s32 %v7641, 536870912
    %v7643 = vshrl.u32 %v7642, 30
    %v7644 = vshll.u32 %v7643, 30
    %v7645 = vsub.s32 %v7641, %v7644
    %vm7646 = vcmp.lt.s32.totalorder %v7645, 0
    %v7647 = vsub.s32 0, %v7645
    %v7648 = vsel %vm7646, %v7647, %v7645
    %v7649 = vclz %v7648
    %v7650 = vsub.s32 %v7649, 2
    %vm7651 = vcmp.gt.s32.totalorder 0, %v7650
    %v7652 = vsel %vm7651, 0, %v7650
    %v7653 = vsub.s32 32, %v7652
    %v7654 = vshll.u32 %v7645, %v7652
    %v7655 = vshrl.u32 %v7637, %v7653
    %v7656 = vor.u32 %v7654, %v7655
    %v7657 = vsub.s32 4294967266, %v7652
    %v7658 = vadd.s32 %v7657, 127
    %v7659 = vshll.u32 %v7658, 23
    %v7660 = vor.u32 4788187, %v7659
    %v7661 = vand.u32 2147483647, %v7660
    %v7663 = vcvt.s32.f32 %v7656
    %v7664 = vmul.f32 %v7663, %v7661
    %v7665 = vxor.u32 %v7664, 2147483648
    %v7666 = vsel %vm7583, %v7665, %v7664
    %v7667 = vsub.s32 4, %v7643
    %v7668 = vsel %vm7583, %v7667, %v7643
    %v7669 = vsel %vm7582, %v1703, %v7666
    %v7670 = vsel %vm7582, 0, %v7668
    %v7671 = vcosq.f32.pop %v7669
    %v7672 = vsinq.f32.pop %v7669
    %vm7673 = vweird.f32 %v1703
    %v7674 = vand.u32 %v7670, 3
    %vm7675 = vcmp.lt.s32.totalorder %v7674, 2
    %vm7676 = vcmp.eq.s32.totalorder %v7674, 0
    %v7677 = vxor.u32 %v7672, 2147483648
    %v7678 = vsel %vm7676, %v7671, %v7677
    %vm7679 = vcmp.eq.s32.totalorder %v7674, 2
    %v7680 = vxor.u32 %v7671, 2147483648
    %v7681 = vsel %vm7679, %v7680, %v7672
    %v7682 = vsel %vm7675, %v7678, %v7681
    %v7683 = vsel %vm7673, nan, %v7682
    %v7684 = vand.u32 2147483647, %v1704
    %vm7685 = vcmp.le.f32.partialorder %v7684, 0.7853982
    %vm7686 = vcmp.lt.s32.totalorder %v1704, 0
    %v7687 = vand.u32 %v1704, 2139095040
    %v7688 = vshrl.u32 %v7687, 23
    %v7689 = vsub.s32 %v7688, 127
    %v7690 = vand.u32 2147483647, %v1704
    %v7691 = vand.u32 %v7690, 8388607
    %v7692 = vor.u32 %v7691, 8388608
    %v7693 = vsub.s32 0, %v7692
    %v7694 = vadd.s32 %v7689, 1
    %vm7695 = vcmp.gt.s32.totalorder %v7694, 0
    %v7696 = vsel %vm7695, %v7694, 0
    %v7697 = vshrl.u32 %v7696, 5
    %v7698 = vand.u32 %v7696, 31
    %v7699 = vsub.s32 32, %v7698
    %v7700 = vshrl.u32 683565275, %v7699
    %v7701 = vshll.u32 683565275, %v7698
    %v7702 = vshrl.u32 2475754826, %v7699
    %v7703 = vor.u32 %v7701, %v7702
    %v7704 = vshll.u32 2475754826, %v7698
    %v7705 = vshrl.u32 2131351028, %v7699
    %v7706 = vor.u32 %v7704, %v7705
    %v7707 = vshll.u32 2131351028, %v7698
    %v7708 = vshrl.u32 2102212464, %v7699
    %v7709 = vor.u32 %v7707, %v7708
    %v7710 = vshll.u32 2102212464, %v7698
    %v7711 = vshrl.u32 920167782, %v7699
    %v7712 = vor.u32 %v7710, %v7711
    %v7713 = vshll.u32 920167782, %v7698
    %v7714 = vshrl.u32 1326507024, %v7699
    %v7715 = vor.u32 %v7713, %v7714
    %vm7716 = vcmp.lt.s32.totalorder %v7697, 1
    %vm7717 = vcmp.lt.s32.totalorder %v7697, 2
    %vm7718 = vcmp.lt.s32.totalorder %v7697, 3
    %vm7719 = vcmp.lt.s32.totalorder %v7697, 4
    %v7720 = vsel %vm7716, %v7700, %v7703
    %v7721 = vsel %vm7719, %v7709, 2102212464
    %v7722 = vsel %vm7718, %v7706, %v7721
    %v7723 = vsel %vm7717, %v7720, %v7722
    %v7724 = vsel %vm7716, %v7703, %v7706
    %v7725 = vsel %vm7719, %v7712, 920167782
    %v7726 = vsel %vm7718, %v7709, %v7725
    %v7727 = vsel %vm7717, %v7724, %v7726
    %v7728 = vsel %vm7716, %v7706, %v7709
    %v7729 = vsel %vm7719, %v7715, 1326507024
    %v7730 = vsel %vm7718, %v7712, %v7729
    %v7731 = vsel %vm7717, %v7728, %v7730
    %v7732 = vshll.u32 %v7692, 8
    %v7733 = vmul.u32.u64.compose %v7732, %v7731
    %v7734 = vextract.low.u32 %v7733
    %v7735 = vextract.high.u32 %v7733
    %v7736 = vmul.u32.u64.compose %v7732, %v7727
    %v7737 = vextract.low.u32 %v7736
    %v7738 = vextract.high.u32 %v7736
    %v7739 = vmul.u32 %v7732, %v7723
    %v7740 = vadd.s32 %v7735, %v7737
    %vm7741 = vc.u32 %v7735, %v7737
    %v7742 = vadd.s32 %v7738, 1
    %v7743 = vsel %vm7741, %v7742, %v7738
    %v7744 = vadd.s32 %v7739, %v7743
    %v7745 = vadd.s32 %v7744, 536870912
    %v7746 = vshrl.u32 %v7745, 30
    %v7747 = vshll.u32 %v7746, 30
    %v7748 = vsub.s32 %v7744, %v7747
    %vm7749 = vcmp.lt.s32.totalorder %v7748, 0
    %v7750 = vsub.s32 0, %v7748
    %v7751 = vsel %vm7749, %v7750, %v7748
    %v7752 = vclz %v7751
    %v7753 = vsub.s32 %v7752, 2
    %vm7754 = vcmp.gt.s32.totalorder 0, %v7753
    %v7755 = vsel %vm7754, 0, %v7753
    %v7756 = vsub.s32 32, %v7755
    %v7757 = vshll.u32 %v7748, %v7755
    %v7758 = vshrl.u32 %v7740, %v7756
    %v7759 = vor.u32 %v7757, %v7758
    %v7760 = vsub.s32 4294967266, %v7755
    %v7761 = vadd.s32 %v7760, 127
    %v7762 = vshll.u32 %v7761, 23
    %v7763 = vor.u32 4788187, %v7762
    %v7764 = vand.u32 2147483647, %v7763
    %v7766 = vcvt.s32.f32 %v7759
    %v7767 = vmul.f32 %v7766, %v7764
    %v7768 = vxor.u32 %v7767, 2147483648
    %v7769 = vsel %vm7686, %v7768, %v7767
    %v7770 = vsub.s32 4, %v7746
    %v7771 = vsel %vm7686, %v7770, %v7746
    %v7772 = vsel %vm7685, %v1704, %v7769
    %v7773 = vsel %vm7685, 0, %v7771
    %v7774 = vcosq.f32.pop %v7772
    %v7775 = vsinq.f32.pop %v7772
    %vm7776 = vweird.f32 %v1704
    %v7777 = vand.u32 %v7773, 3
    %vm7778 = vcmp.lt.s32.totalorder %v7777, 2
    %vm7779 = vcmp.eq.s32.totalorder %v7777, 0
    %v7780 = vxor.u32 %v7775, 2147483648
    %v7781 = vsel %vm7779, %v7774, %v7780
    %vm7782 = vcmp.eq.s32.totalorder %v7777, 2
    %v7783 = vxor.u32 %v7774, 2147483648
    %v7784 = vsel %vm7782, %v7783, %v7775
    %v7785 = vsel %vm7778, %v7781, %v7784
    %v7786 = vsel %vm7776, nan, %v7785
    %v7787 = vand.u32 2147483647, %v1705
    %vm7788 = vcmp.le.f32.partialorder %v7787, 0.7853982
    %vm7789 = vcmp.lt.s32.totalorder %v1705, 0
    %v7790 = vand.u32 %v1705, 2139095040
    %v7791 = vshrl.u32 %v7790, 23
    %v7792 = vsub.s32 %v7791, 127
    %v7793 = vand.u32 2147483647, %v1705
    %v7794 = vand.u32 %v7793, 8388607
    %v7795 = vor.u32 %v7794, 8388608
    %v7796 = vsub.s32 0, %v7795
    %v7797 = vadd.s32 %v7792, 1
    %vm7798 = vcmp.gt.s32.totalorder %v7797, 0
    %v7799 = vsel %vm7798, %v7797, 0
    %v7800 = vshrl.u32 %v7799, 5
    %v7801 = vand.u32 %v7799, 31
    %v7802 = vsub.s32 32, %v7801
    %v7803 = vshrl.u32 683565275, %v7802
    %v7804 = vshll.u32 683565275, %v7801
    %v7805 = vshrl.u32 2475754826, %v7802
    %v7806 = vor.u32 %v7804, %v7805
    %v7807 = vshll.u32 2475754826, %v7801
    %v7808 = vshrl.u32 2131351028, %v7802
    %v7809 = vor.u32 %v7807, %v7808
    %v7810 = vshll.u32 2131351028, %v7801
    %v7811 = vshrl.u32 2102212464, %v7802
    %v7812 = vor.u32 %v7810, %v7811
    %v7813 = vshll.u32 2102212464, %v7801
    %v7814 = vshrl.u32 920167782, %v7802
    %v7815 = vor.u32 %v7813, %v7814
    %v7816 = vshll.u32 920167782, %v7801
    %v7817 = vshrl.u32 1326507024, %v7802
    %v7818 = vor.u32 %v7816, %v7817
    %vm7819 = vcmp.lt.s32.totalorder %v7800, 1
    %vm7820 = vcmp.lt.s32.totalorder %v7800, 2
    %vm7821 = vcmp.lt.s32.totalorder %v7800, 3
    %vm7822 = vcmp.lt.s32.totalorder %v7800, 4
    %v7823 = vsel %vm7819, %v7803, %v7806
    %v7824 = vsel %vm7822, %v7812, 2102212464
    %v7825 = vsel %vm7821, %v7809, %v7824
    %v7826 = vsel %vm7820, %v7823, %v7825
    %v7827 = vsel %vm7819, %v7806, %v7809
    %v7828 = vsel %vm7822, %v7815, 920167782
    %v7829 = vsel %vm7821, %v7812, %v7828
    %v7830 = vsel %vm7820, %v7827, %v7829
    %v7831 = vsel %vm7819, %v7809, %v7812
    %v7832 = vsel %vm7822, %v7818, 1326507024
    %v7833 = vsel %vm7821, %v7815, %v7832
    %v7834 = vsel %vm7820, %v7831, %v7833
    %v7835 = vshll.u32 %v7795, 8
    %v7836 = vmul.u32.u64.compose %v7835, %v7834
    %v7837 = vextract.low.u32 %v7836
    %v7838 = vextract.high.u32 %v7836
    %v7839 = vmul.u32.u64.compose %v7835, %v7830
    %v7840 = vextract.low.u32 %v7839
    %v7841 = vextract.high.u32 %v7839
    %v7842 = vmul.u32 %v7835, %v7826
    %v7843 = vadd.s32 %v7838, %v7840
    %vm7844 = vc.u32 %v7838, %v7840
    %v7845 = vadd.s32 %v7841, 1
    %v7846 = vsel %vm7844, %v7845, %v7841
    %v7847 = vadd.s32 %v7842, %v7846
    %v7848 = vadd.s32 %v7847, 536870912
    %v7849 = vshrl.u32 %v7848, 30
    %v7850 = vshll.u32 %v7849, 30
    %v7851 = vsub.s32 %v7847, %v7850
    %vm7852 = vcmp.lt.s32.totalorder %v7851, 0
    %v7853 = vsub.s32 0, %v7851
    %v7854 = vsel %vm7852, %v7853, %v7851
    %v7855 = vclz %v7854
    %v7856 = vsub.s32 %v7855, 2
    %vm7857 = vcmp.gt.s32.totalorder 0, %v7856
    %v7858 = vsel %vm7857, 0, %v7856
    %v7859 = vsub.s32 32, %v7858
    %v7860 = vshll.u32 %v7851, %v7858
    %v7861 = vshrl.u32 %v7843, %v7859
    %v7862 = vor.u32 %v7860, %v7861
    %v7863 = vsub.s32 4294967266, %v7858
    %v7864 = vadd.s32 %v7863, 127
    %v7865 = vshll.u32 %v7864, 23
    %v7866 = vor.u32 4788187, %v7865
    %v7867 = vand.u32 2147483647, %v7866
    %v7869 = vcvt.s32.f32 %v7862
    %v7870 = vmul.f32 %v7869, %v7867
    %v7871 = vxor.u32 %v7870, 2147483648
    %v7872 = vsel %vm7789, %v7871, %v7870
    %v7873 = vsub.s32 4, %v7849
    %v7874 = vsel %vm7789, %v7873, %v7849
    %v7875 = vsel %vm7788, %v1705, %v7872
    %v7876 = vsel %vm7788, 0, %v7874
    %v7877 = vcosq.f32.pop %v7875
    %v7878 = vsinq.f32.pop %v7875
    %vm7879 = vweird.f32 %v1705
    %v7880 = vand.u32 %v7876, 3
    %vm7881 = vcmp.lt.s32.totalorder %v7880, 2
    %vm7882 = vcmp.eq.s32.totalorder %v7880, 0
    %v7883 = vxor.u32 %v7878, 2147483648
    %v7884 = vsel %vm7882, %v7877, %v7883
    %vm7885 = vcmp.eq.s32.totalorder %v7880, 2
    %v7886 = vxor.u32 %v7877, 2147483648
    %v7887 = vsel %vm7885, %v7886, %v7878
    %v7888 = vsel %vm7881, %v7884, %v7887
    %v7889 = vsel %vm7879, nan, %v7888
    %v7890 = vand.u32 2147483647, %v1706
    %vm7891 = vcmp.le.f32.partialorder %v7890, 0.7853982
    %vm7892 = vcmp.lt.s32.totalorder %v1706, 0
    %v7893 = vand.u32 %v1706, 2139095040
    %v7894 = vshrl.u32 %v7893, 23
    %v7895 = vsub.s32 %v7894, 127
    %v7896 = vand.u32 2147483647, %v1706
    %v7897 = vand.u32 %v7896, 8388607
    %v7898 = vor.u32 %v7897, 8388608
    %v7899 = vsub.s32 0, %v7898
    %v7900 = vadd.s32 %v7895, 1
    %vm7901 = vcmp.gt.s32.totalorder %v7900, 0
    %v7902 = vsel %vm7901, %v7900, 0
    %v7903 = vshrl.u32 %v7902, 5
    %v7904 = vand.u32 %v7902, 31
    %v7905 = vsub.s32 32, %v7904
    %v7906 = vshrl.u32 683565275, %v7905
    %v7907 = vshll.u32 683565275, %v7904
    %v7908 = vshrl.u32 2475754826, %v7905
    %v7909 = vor.u32 %v7907, %v7908
    %v7910 = vshll.u32 2475754826, %v7904
    %v7911 = vshrl.u32 2131351028, %v7905
    %v7912 = vor.u32 %v7910, %v7911
    %v7913 = vshll.u32 2131351028, %v7904
    %v7914 = vshrl.u32 2102212464, %v7905
    %v7915 = vor.u32 %v7913, %v7914
    %v7916 = vshll.u32 2102212464, %v7904
    %v7917 = vshrl.u32 920167782, %v7905
    %v7918 = vor.u32 %v7916, %v7917
    %v7919 = vshll.u32 920167782, %v7904
    %v7920 = vshrl.u32 1326507024, %v7905
    %v7921 = vor.u32 %v7919, %v7920
    %vm7922 = vcmp.lt.s32.totalorder %v7903, 1
    %vm7923 = vcmp.lt.s32.totalorder %v7903, 2
    %vm7924 = vcmp.lt.s32.totalorder %v7903, 3
    %vm7925 = vcmp.lt.s32.totalorder %v7903, 4
    %v7926 = vsel %vm7922, %v7906, %v7909
    %v7927 = vsel %vm7925, %v7915, 2102212464
    %v7928 = vsel %vm7924, %v7912, %v7927
    %v7929 = vsel %vm7923, %v7926, %v7928
    %v7930 = vsel %vm7922, %v7909, %v7912
    %v7931 = vsel %vm7925, %v7918, 920167782
    %v7932 = vsel %vm7924, %v7915, %v7931
    %v7933 = vsel %vm7923, %v7930, %v7932
    %v7934 = vsel %vm7922, %v7912, %v7915
    %v7935 = vsel %vm7925, %v7921, 1326507024
    %v7936 = vsel %vm7924, %v7918, %v7935
    %v7937 = vsel %vm7923, %v7934, %v7936
    %v7938 = vshll.u32 %v7898, 8
    %v7939 = vmul.u32.u64.compose %v7938, %v7937
    %v7940 = vextract.low.u32 %v7939
    %v7941 = vextract.high.u32 %v7939
    %v7942 = vmul.u32.u64.compose %v7938, %v7933
    %v7943 = vextract.low.u32 %v7942
    %v7944 = vextract.high.u32 %v7942
    %v7945 = vmul.u32 %v7938, %v7929
    %v7946 = vadd.s32 %v7941, %v7943
    %vm7947 = vc.u32 %v7941, %v7943
    %v7948 = vadd.s32 %v7944, 1
    %v7949 = vsel %vm7947, %v7948, %v7944
    %v7950 = vadd.s32 %v7945, %v7949
    %v7951 = vadd.s32 %v7950, 536870912
    %v7952 = vshrl.u32 %v7951, 30
    %v7953 = vshll.u32 %v7952, 30
    %v7954 = vsub.s32 %v7950, %v7953
    %vm7955 = vcmp.lt.s32.totalorder %v7954, 0
    %v7956 = vsub.s32 0, %v7954
    %v7957 = vsel %vm7955, %v7956, %v7954
    %v7958 = vclz %v7957
    %v7959 = vsub.s32 %v7958, 2
    %vm7960 = vcmp.gt.s32.totalorder 0, %v7959
    %v7961 = vsel %vm7960, 0, %v7959
    %v7962 = vsub.s32 32, %v7961
    %v7963 = vshll.u32 %v7954, %v7961
    %v7964 = vshrl.u32 %v7946, %v7962
    %v7965 = vor.u32 %v7963, %v7964
    %v7966 = vsub.s32 4294967266, %v7961
    %v7967 = vadd.s32 %v7966, 127
    %v7968 = vshll.u32 %v7967, 23
    %v7969 = vor.u32 4788187, %v7968
    %v7970 = vand.u32 2147483647, %v7969
    %v7972 = vcvt.s32.f32 %v7965
    %v7973 = vmul.f32 %v7972, %v7970
    %v7974 = vxor.u32 %v7973, 2147483648
    %v7975 = vsel %vm7892, %v7974, %v7973
    %v7976 = vsub.s32 4, %v7952
    %v7977 = vsel %vm7892, %v7976, %v7952
    %v7978 = vsel %vm7891, %v1706, %v7975
    %v7979 = vsel %vm7891, 0, %v7977
    %v7980 = vcosq.f32.pop %v7978
    %v7981 = vsinq.f32.pop %v7978
    %vm7982 = vweird.f32 %v1706
    %v7983 = vand.u32 %v7979, 3
    %vm7984 = vcmp.lt.s32.totalorder %v7983, 2
    %vm7985 = vcmp.eq.s32.totalorder %v7983, 0
    %v7986 = vxor.u32 %v7981, 2147483648
    %v7987 = vsel %vm7985, %v7980, %v7986
    %vm7988 = vcmp.eq.s32.totalorder %v7983, 2
    %v7989 = vxor.u32 %v7980, 2147483648
    %v7990 = vsel %vm7988, %v7989, %v7981
    %v7991 = vsel %vm7984, %v7987, %v7990
    %v7992 = vsel %vm7982, nan, %v7991
    %v7993 = vand.u32 2147483647, %v1707
    %vm7994 = vcmp.le.f32.partialorder %v7993, 0.7853982
    %vm7995 = vcmp.lt.s32.totalorder %v1707, 0
    %v7996 = vand.u32 %v1707, 2139095040
    %v7997 = vshrl.u32 %v7996, 23
    %v7998 = vsub.s32 %v7997, 127
    %v7999 = vand.u32 2147483647, %v1707
    %v8000 = vand.u32 %v7999, 8388607
    %v8001 = vor.u32 %v8000, 8388608
    %v8002 = vsub.s32 0, %v8001
    %v8003 = vadd.s32 %v7998, 1
    %vm8004 = vcmp.gt.s32.totalorder %v8003, 0
    %v8005 = vsel %vm8004, %v8003, 0
    %v8006 = vshrl.u32 %v8005, 5
    %v8007 = vand.u32 %v8005, 31
    %v8008 = vsub.s32 32, %v8007
    %v8009 = vshrl.u32 683565275, %v8008
    %v8010 = vshll.u32 683565275, %v8007
    %v8011 = vshrl.u32 2475754826, %v8008
    %v8012 = vor.u32 %v8010, %v8011
    %v8013 = vshll.u32 2475754826, %v8007
    %v8014 = vshrl.u32 2131351028, %v8008
    %v8015 = vor.u32 %v8013, %v8014
    %v8016 = vshll.u32 2131351028, %v8007
    %v8017 = vshrl.u32 2102212464, %v8008
    %v8018 = vor.u32 %v8016, %v8017
    %v8019 = vshll.u32 2102212464, %v8007
    %v8020 = vshrl.u32 920167782, %v8008
    %v8021 = vor.u32 %v8019, %v8020
    %v8022 = vshll.u32 920167782, %v8007
    %v8023 = vshrl.u32 1326507024, %v8008
    %v8024 = vor.u32 %v8022, %v8023
    %vm8025 = vcmp.lt.s32.totalorder %v8006, 1
    %vm8026 = vcmp.lt.s32.totalorder %v8006, 2
    %vm8027 = vcmp.lt.s32.totalorder %v8006, 3
    %vm8028 = vcmp.lt.s32.totalorder %v8006, 4
    %v8029 = vsel %vm8025, %v8009, %v8012
    %v8030 = vsel %vm8028, %v8018, 2102212464
    %v8031 = vsel %vm8027, %v8015, %v8030
    %v8032 = vsel %vm8026, %v8029, %v8031
    %v8033 = vsel %vm8025, %v8012, %v8015
    %v8034 = vsel %vm8028, %v8021, 920167782
    %v8035 = vsel %vm8027, %v8018, %v8034
    %v8036 = vsel %vm8026, %v8033, %v8035
    %v8037 = vsel %vm8025, %v8015, %v8018
    %v8038 = vsel %vm8028, %v8024, 1326507024
    %v8039 = vsel %vm8027, %v8021, %v8038
    %v8040 = vsel %vm8026, %v8037, %v8039
    %v8041 = vshll.u32 %v8001, 8
    %v8042 = vmul.u32.u64.compose %v8041, %v8040
    %v8043 = vextract.low.u32 %v8042
    %v8044 = vextract.high.u32 %v8042
    %v8045 = vmul.u32.u64.compose %v8041, %v8036
    %v8046 = vextract.low.u32 %v8045
    %v8047 = vextract.high.u32 %v8045
    %v8048 = vmul.u32 %v8041, %v8032
    %v8049 = vadd.s32 %v8044, %v8046
    %vm8050 = vc.u32 %v8044, %v8046
    %v8051 = vadd.s32 %v8047, 1
    %v8052 = vsel %vm8050, %v8051, %v8047
    %v8053 = vadd.s32 %v8048, %v8052
    %v8054 = vadd.s32 %v8053, 536870912
    %v8055 = vshrl.u32 %v8054, 30
    %v8056 = vshll.u32 %v8055, 30
    %v8057 = vsub.s32 %v8053, %v8056
    %vm8058 = vcmp.lt.s32.totalorder %v8057, 0
    %v8059 = vsub.s32 0, %v8057
    %v8060 = vsel %vm8058, %v8059, %v8057
    %v8061 = vclz %v8060
    %v8062 = vsub.s32 %v8061, 2
    %vm8063 = vcmp.gt.s32.totalorder 0, %v8062
    %v8064 = vsel %vm8063, 0, %v8062
    %v8065 = vsub.s32 32, %v8064
    %v8066 = vshll.u32 %v8057, %v8064
    %v8067 = vshrl.u32 %v8049, %v8065
    %v8068 = vor.u32 %v8066, %v8067
    %v8069 = vsub.s32 4294967266, %v8064
    %v8070 = vadd.s32 %v8069, 127
    %v8071 = vshll.u32 %v8070, 23
    %v8072 = vor.u32 4788187, %v8071
    %v8073 = vand.u32 2147483647, %v8072
    %v8075 = vcvt.s32.f32 %v8068
    %v8076 = vmul.f32 %v8075, %v8073
    %v8077 = vxor.u32 %v8076, 2147483648
    %v8078 = vsel %vm7995, %v8077, %v8076
    %v8079 = vsub.s32 4, %v8055
    %v8080 = vsel %vm7995, %v8079, %v8055
    %v8081 = vsel %vm7994, %v1707, %v8078
    %v8082 = vsel %vm7994, 0, %v8080
    %v8083 = vcosq.f32.pop %v8081
    %v8084 = vsinq.f32.pop %v8081
    %vm8085 = vweird.f32 %v1707
    %v8086 = vand.u32 %v8082, 3
    %vm8087 = vcmp.lt.s32.totalorder %v8086, 2
    %vm8088 = vcmp.eq.s32.totalorder %v8086, 0
    %v8089 = vxor.u32 %v8084, 2147483648
    %v8090 = vsel %vm8088, %v8083, %v8089
    %vm8091 = vcmp.eq.s32.totalorder %v8086, 2
    %v8092 = vxor.u32 %v8083, 2147483648
    %v8093 = vsel %vm8091, %v8092, %v8084
    %v8094 = vsel %vm8087, %v8090, %v8093
    %v8095 = vsel %vm8085, nan, %v8094
    %v8096 = vand.u32 2147483647, %v1708
    %vm8097 = vcmp.le.f32.partialorder %v8096, 0.7853982
    %vm8098 = vcmp.lt.s32.totalorder %v1708, 0
    %v8099 = vand.u32 %v1708, 2139095040
    %v8100 = vshrl.u32 %v8099, 23
    %v8101 = vsub.s32 %v8100, 127
    %v8102 = vand.u32 2147483647, %v1708
    %v8103 = vand.u32 %v8102, 8388607
    %v8104 = vor.u32 %v8103, 8388608
    %v8105 = vsub.s32 0, %v8104
    %v8106 = vadd.s32 %v8101, 1
    %vm8107 = vcmp.gt.s32.totalorder %v8106, 0
    %v8108 = vsel %vm8107, %v8106, 0
    %v8109 = vshrl.u32 %v8108, 5
    %v8110 = vand.u32 %v8108, 31
    %v8111 = vsub.s32 32, %v8110
    %v8112 = vshrl.u32 683565275, %v8111
    %v8113 = vshll.u32 683565275, %v8110
    %v8114 = vshrl.u32 2475754826, %v8111
    %v8115 = vor.u32 %v8113, %v8114
    %v8116 = vshll.u32 2475754826, %v8110
    %v8117 = vshrl.u32 2131351028, %v8111
    %v8118 = vor.u32 %v8116, %v8117
    %v8119 = vshll.u32 2131351028, %v8110
    %v8120 = vshrl.u32 2102212464, %v8111
    %v8121 = vor.u32 %v8119, %v8120
    %v8122 = vshll.u32 2102212464, %v8110
    %v8123 = vshrl.u32 920167782, %v8111
    %v8124 = vor.u32 %v8122, %v8123
    %v8125 = vshll.u32 920167782, %v8110
    %v8126 = vshrl.u32 1326507024, %v8111
    %v8127 = vor.u32 %v8125, %v8126
    %vm8128 = vcmp.lt.s32.totalorder %v8109, 1
    %vm8129 = vcmp.lt.s32.totalorder %v8109, 2
    %vm8130 = vcmp.lt.s32.totalorder %v8109, 3
    %vm8131 = vcmp.lt.s32.totalorder %v8109, 4
    %v8132 = vsel %vm8128, %v8112, %v8115
    %v8133 = vsel %vm8131, %v8121, 2102212464
    %v8134 = vsel %vm8130, %v8118, %v8133
    %v8135 = vsel %vm8129, %v8132, %v8134
    %v8136 = vsel %vm8128, %v8115, %v8118
    %v8137 = vsel %vm8131, %v8124, 920167782
    %v8138 = vsel %vm8130, %v8121, %v8137
    %v8139 = vsel %vm8129, %v8136, %v8138
    %v8140 = vsel %vm8128, %v8118, %v8121
    %v8141 = vsel %vm8131, %v8127, 1326507024
    %v8142 = vsel %vm8130, %v8124, %v8141
    %v8143 = vsel %vm8129, %v8140, %v8142
    %v8144 = vshll.u32 %v8104, 8
    %v8145 = vmul.u32.u64.compose %v8144, %v8143
    %v8146 = vextract.low.u32 %v8145
    %v8147 = vextract.high.u32 %v8145
    %v8148 = vmul.u32.u64.compose %v8144, %v8139
    %v8149 = vextract.low.u32 %v8148
    %v8150 = vextract.high.u32 %v8148
    %v8151 = vmul.u32 %v8144, %v8135
    %v8152 = vadd.s32 %v8147, %v8149
    %vm8153 = vc.u32 %v8147, %v8149
    %v8154 = vadd.s32 %v8150, 1
    %v8155 = vsel %vm8153, %v8154, %v8150
    %v8156 = vadd.s32 %v8151, %v8155
    %v8157 = vadd.s32 %v8156, 536870912
    %v8158 = vshrl.u32 %v8157, 30
    %v8159 = vshll.u32 %v8158, 30
    %v8160 = vsub.s32 %v8156, %v8159
    %vm8161 = vcmp.lt.s32.totalorder %v8160, 0
    %v8162 = vsub.s32 0, %v8160
    %v8163 = vsel %vm8161, %v8162, %v8160
    %v8164 = vclz %v8163
    %v8165 = vsub.s32 %v8164, 2
    %vm8166 = vcmp.gt.s32.totalorder 0, %v8165
    %v8167 = vsel %vm8166, 0, %v8165
    %v8168 = vsub.s32 32, %v8167
    %v8169 = vshll.u32 %v8160, %v8167
    %v8170 = vshrl.u32 %v8152, %v8168
    %v8171 = vor.u32 %v8169, %v8170
    %v8172 = vsub.s32 4294967266, %v8167
    %v8173 = vadd.s32 %v8172, 127
    %v8174 = vshll.u32 %v8173, 23
    %v8175 = vor.u32 4788187, %v8174
    %v8176 = vand.u32 2147483647, %v8175
    %v8178 = vcvt.s32.f32 %v8171
    %v8179 = vmul.f32 %v8178, %v8176
    %v8180 = vxor.u32 %v8179, 2147483648
    %v8181 = vsel %vm8098, %v8180, %v8179
    %v8182 = vsub.s32 4, %v8158
    %v8183 = vsel %vm8098, %v8182, %v8158
    %v8184 = vsel %vm8097, %v1708, %v8181
    %v8185 = vsel %vm8097, 0, %v8183
    %v8186 = vcosq.f32.pop %v8184
    %v8187 = vsinq.f32.pop %v8184
    %vm8188 = vweird.f32 %v1708
    %v8189 = vand.u32 %v8185, 3
    %vm8190 = vcmp.lt.s32.totalorder %v8189, 2
    %vm8191 = vcmp.eq.s32.totalorder %v8189, 0
    %v8192 = vxor.u32 %v8187, 2147483648
    %v8193 = vsel %vm8191, %v8186, %v8192
    %vm8194 = vcmp.eq.s32.totalorder %v8189, 2
    %v8195 = vxor.u32 %v8186, 2147483648
    %v8196 = vsel %vm8194, %v8195, %v8187
    %v8197 = vsel %vm8190, %v8193, %v8196
    %v8198 = vsel %vm8188, nan, %v8197
    %v8199 = vand.u32 2147483647, %v1709
    %vm8200 = vcmp.le.f32.partialorder %v8199, 0.7853982
    %vm8201 = vcmp.lt.s32.totalorder %v1709, 0
    %v8202 = vand.u32 %v1709, 2139095040
    %v8203 = vshrl.u32 %v8202, 23
    %v8204 = vsub.s32 %v8203, 127
    %v8205 = vand.u32 2147483647, %v1709
    %v8206 = vand.u32 %v8205, 8388607
    %v8207 = vor.u32 %v8206, 8388608
    %v8208 = vsub.s32 0, %v8207
    %v8209 = vadd.s32 %v8204, 1
    %vm8210 = vcmp.gt.s32.totalorder %v8209, 0
    %v8211 = vsel %vm8210, %v8209, 0
    %v8212 = vshrl.u32 %v8211, 5
    %v8213 = vand.u32 %v8211, 31
    %v8214 = vsub.s32 32, %v8213
    %v8215 = vshrl.u32 683565275, %v8214
    %v8216 = vshll.u32 683565275, %v8213
    %v8217 = vshrl.u32 2475754826, %v8214
    %v8218 = vor.u32 %v8216, %v8217
    %v8219 = vshll.u32 2475754826, %v8213
    %v8220 = vshrl.u32 2131351028, %v8214
    %v8221 = vor.u32 %v8219, %v8220
    %v8222 = vshll.u32 2131351028, %v8213
    %v8223 = vshrl.u32 2102212464, %v8214
    %v8224 = vor.u32 %v8222, %v8223
    %v8225 = vshll.u32 2102212464, %v8213
    %v8226 = vshrl.u32 920167782, %v8214
    %v8227 = vor.u32 %v8225, %v8226
    %v8228 = vshll.u32 920167782, %v8213
    %v8229 = vshrl.u32 1326507024, %v8214
    %v8230 = vor.u32 %v8228, %v8229
    %vm8231 = vcmp.lt.s32.totalorder %v8212, 1
    %vm8232 = vcmp.lt.s32.totalorder %v8212, 2
    %vm8233 = vcmp.lt.s32.totalorder %v8212, 3
    %vm8234 = vcmp.lt.s32.totalorder %v8212, 4
    %v8235 = vsel %vm8231, %v8215, %v8218
    %v8236 = vsel %vm8234, %v8224, 2102212464
    %v8237 = vsel %vm8233, %v8221, %v8236
    %v8238 = vsel %vm8232, %v8235, %v8237
    %v8239 = vsel %vm8231, %v8218, %v8221
    %v8240 = vsel %vm8234, %v8227, 920167782
    %v8241 = vsel %vm8233, %v8224, %v8240
    %v8242 = vsel %vm8232, %v8239, %v8241
    %v8243 = vsel %vm8231, %v8221, %v8224
    %v8244 = vsel %vm8234, %v8230, 1326507024
    %v8245 = vsel %vm8233, %v8227, %v8244
    %v8246 = vsel %vm8232, %v8243, %v8245
    %v8247 = vshll.u32 %v8207, 8
    %v8248 = vmul.u32.u64.compose %v8247, %v8246
    %v8249 = vextract.low.u32 %v8248
    %v8250 = vextract.high.u32 %v8248
    %v8251 = vmul.u32.u64.compose %v8247, %v8242
    %v8252 = vextract.low.u32 %v8251
    %v8253 = vextract.high.u32 %v8251
    %v8254 = vmul.u32 %v8247, %v8238
    %v8255 = vadd.s32 %v8250, %v8252
    %vm8256 = vc.u32 %v8250, %v8252
    %v8257 = vadd.s32 %v8253, 1
    %v8258 = vsel %vm8256, %v8257, %v8253
    %v8259 = vadd.s32 %v8254, %v8258
    %v8260 = vadd.s32 %v8259, 536870912
    %v8261 = vshrl.u32 %v8260, 30
    %v8262 = vshll.u32 %v8261, 30
    %v8263 = vsub.s32 %v8259, %v8262
    %vm8264 = vcmp.lt.s32.totalorder %v8263, 0
    %v8265 = vsub.s32 0, %v8263
    %v8266 = vsel %vm8264, %v8265, %v8263
    %v8267 = vclz %v8266
    %v8268 = vsub.s32 %v8267, 2
    %vm8269 = vcmp.gt.s32.totalorder 0, %v8268
    %v8270 = vsel %vm8269, 0, %v8268
    %v8271 = vsub.s32 32, %v8270
    %v8272 = vshll.u32 %v8263, %v8270
    %v8273 = vshrl.u32 %v8255, %v8271
    %v8274 = vor.u32 %v8272, %v8273
    %v8275 = vsub.s32 4294967266, %v8270
    %v8276 = vadd.s32 %v8275, 127
    %v8277 = vshll.u32 %v8276, 23
    %v8278 = vor.u32 4788187, %v8277
    %v8279 = vand.u32 2147483647, %v8278
    %v8281 = vcvt.s32.f32 %v8274
    %v8282 = vmul.f32 %v8281, %v8279
    %v8283 = vxor.u32 %v8282, 2147483648
    %v8284 = vsel %vm8201, %v8283, %v8282
    %v8285 = vsub.s32 4, %v8261
    %v8286 = vsel %vm8201, %v8285, %v8261
    %v8287 = vsel %vm8200, %v1709, %v8284
    %v8288 = vsel %vm8200, 0, %v8286
    %v8289 = vcosq.f32.pop %v8287
    %v8290 = vsinq.f32.pop %v8287
    %vm8291 = vweird.f32 %v1709
    %v8292 = vand.u32 %v8288, 3
    %vm8293 = vcmp.lt.s32.totalorder %v8292, 2
    %vm8294 = vcmp.eq.s32.totalorder %v8292, 0
    %v8295 = vxor.u32 %v8290, 2147483648
    %v8296 = vsel %vm8294, %v8289, %v8295
    %vm8297 = vcmp.eq.s32.totalorder %v8292, 2
    %v8298 = vxor.u32 %v8289, 2147483648
    %v8299 = vsel %vm8297, %v8298, %v8290
    %v8300 = vsel %vm8293, %v8296, %v8299
    %v8301 = vsel %vm8291, nan, %v8300
    %v8302 = vld [vmem:[%s3] sm:$0xff]
    %v8303 = vld [vmem:[%s3 + $0x8] sm:$0xff]
    %v8304 = vld [vmem:[%s3 + $0x10] sm:$0xff]
    %v8305 = vld [vmem:[%s3 + $0x18] sm:$0xff]
    %v8306 = vld [vmem:[%s3 + $0x20] sm:$0xff]
    %v8307 = vld [vmem:[%s3 + $0x28] sm:$0xff]
    %v8308 = vld [vmem:[%s3 + $0x30] sm:$0xff]
    %v8309 = vld [vmem:[%s3 + $0x38] sm:$0xff]
    %v8310 = vld [vmem:[%s3 + $0x40] sm:$0xff]
    %v8311 = vld [vmem:[%s3 + $0x48] sm:$0xff]
    %v8312 = vld [vmem:[%s3 + $0x50] sm:$0xff]
    %v8313 = vld [vmem:[%s3 + $0x58] sm:$0xff]
    %v8314 = vld [vmem:[%s3 + $0x60] sm:$0xff]
    %v8315 = vld [vmem:[%s3 + $0x68] sm:$0xff]
    %v8316 = vld [vmem:[%s3 + $0x70] sm:$0xff]
    %v8317 = vld [vmem:[%s3 + $0x78] sm:$0xff]
    %v8318 = vld [vmem:[%s3 + $0x80] sm:$0xff]
    %v8319 = vld [vmem:[%s3 + $0x88] sm:$0xff]
    %v8320 = vld [vmem:[%s3 + $0x90] sm:$0xff]
    %v8321 = vld [vmem:[%s3 + $0x98] sm:$0xff]
    %v8322 = vld [vmem:[%s3 + $0xa0] sm:$0xff]
    %v8323 = vld [vmem:[%s3 + $0xa8] sm:$0xff]
    %v8324 = vld [vmem:[%s3 + $0xb0] sm:$0xff]
    %v8325 = vld [vmem:[%s3 + $0xb8] sm:$0xff]
    %v8326 = vld [vmem:[%s3 + $0xc0] sm:$0xff]
    %v8327 = vld [vmem:[%s3 + $0xc8] sm:$0xff]
    %v8328 = vld [vmem:[%s3 + $0xd0] sm:$0xff]
    %v8329 = vld [vmem:[%s3 + $0xd8] sm:$0xff]
    %v8330 = vld [vmem:[%s3 + $0xe0] sm:$0xff]
    %v8331 = vld [vmem:[%s3 + $0xe8] sm:$0xff]
    %v8332 = vld [vmem:[%s3 + $0xf0] sm:$0xff]
    %v8333 = vld [vmem:[%s3 + $0xf8] sm:$0xff]
    %v8334 = vld [vmem:[%s3 + $0x100] sm:$0xff]
    %v8335 = vld [vmem:[%s3 + $0x108] sm:$0xff]
    %v8336 = vld [vmem:[%s3 + $0x110] sm:$0xff]
    %v8337 = vld [vmem:[%s3 + $0x118] sm:$0xff]
    %v8338 = vld [vmem:[%s3 + $0x120] sm:$0xff]
    %v8339 = vld [vmem:[%s3 + $0x128] sm:$0xff]
    %v8340 = vld [vmem:[%s3 + $0x130] sm:$0xff]
    %v8341 = vld [vmem:[%s3 + $0x138] sm:$0xff]
    %v8342 = vld [vmem:[%s3 + $0x140] sm:$0xff]
    %v8343 = vld [vmem:[%s3 + $0x148] sm:$0xff]
    %v8344 = vld [vmem:[%s3 + $0x150] sm:$0xff]
    %v8345 = vld [vmem:[%s3 + $0x158] sm:$0xff]
    %v8346 = vld [vmem:[%s3 + $0x160] sm:$0xff]
    %v8347 = vld [vmem:[%s3 + $0x168] sm:$0xff]
    %v8348 = vld [vmem:[%s3 + $0x170] sm:$0xff]
    %v8349 = vld [vmem:[%s3 + $0x178] sm:$0xff]
    %v8350 = vld [vmem:[%s3 + $0x180] sm:$0xff]
    %v8351 = vld [vmem:[%s3 + $0x188] sm:$0xff]
    %v8352 = vld [vmem:[%s3 + $0x190] sm:$0xff]
    %v8353 = vld [vmem:[%s3 + $0x198] sm:$0xff]
    %v8354 = vld [vmem:[%s3 + $0x1a0] sm:$0xff]
    %v8355 = vld [vmem:[%s3 + $0x1a8] sm:$0xff]
    %v8356 = vld [vmem:[%s3 + $0x1b0] sm:$0xff]
    %v8357 = vld [vmem:[%s3 + $0x1b8] sm:$0xff]
    %v8358 = vld [vmem:[%s3 + $0x1c0] sm:$0xff]
    %v8359 = vld [vmem:[%s3 + $0x1c8] sm:$0xff]
    %v8360 = vld [vmem:[%s3 + $0x1d0] sm:$0xff]
    %v8361 = vld [vmem:[%s3 + $0x1d8] sm:$0xff]
    %v8362 = vld [vmem:[%s3 + $0x1e0] sm:$0xff]
    %v8363 = vld [vmem:[%s3 + $0x1e8] sm:$0xff]
    %v8364 = vld [vmem:[%s3 + $0x1f0] sm:$0xff]
    %v8365 = vld [vmem:[%s3 + $0x1f8] sm:$0xff]
    %s8366 = sld [smem:[#allocation2]]
    %s8367 = sld [smem:[#allocation2 + $0x2]]
    %vm8368 = vcmask 64512
    %v8369 = vsel %vm8368, %v1812, 0.0
    %v8370 = vsel %vm8368, %v1915, 0.0
    %v8371 = vadd.f32 %v8369, %v8370
    %v8372 = vsel %vm8368, %v2018, 0.0
    %v8373 = vadd.f32 %v8371, %v8372
    %v8374 = vsel %vm8368, %v2121, 0.0
    %v8375 = vadd.f32 %v8373, %v8374
    %v8376 = vsel %vm8368, %v2224, 0.0
    %v8377 = vadd.f32 %v8375, %v8376
    %v8378 = vsel %vm8368, %v2327, 0.0
    %v8379 = vadd.f32 %v8377, %v8378
    %v8380 = vsel %vm8368, %v2430, 0.0
    %v8381 = vadd.f32 %v8379, %v8380
    %v8382 = vsel %vm8368, %v2533, 0.0
    %v8383 = vadd.f32 %v8381, %v8382
    %v8384 = vsel %vm8368, %v2636, 0.0
    %v8385 = vadd.f32 %v8383, %v8384
    %v8386 = vsel %vm8368, %v2739, 0.0
    %v8387 = vadd.f32 %v8385, %v8386
    %v8388 = vsel %vm8368, %v2842, 0.0
    %v8389 = vadd.f32 %v8387, %v8388
    %v8390 = vsel %vm8368, %v2945, 0.0
    %v8391 = vadd.f32 %v8389, %v8390
    %v8392 = vsel %vm8368, %v3048, 0.0
    %v8393 = vadd.f32 %v8391, %v8392
    %v8394 = vsel %vm8368, %v3151, 0.0
    %v8395 = vadd.f32 %v8393, %v8394
    %v8396 = vsel %vm8368, %v3254, 0.0
    %v8397 = vadd.f32 %v8395, %v8396
    %v8398 = vsel %vm8368, %v3357, 0.0
    %v8399 = vadd.f32 %v8397, %v8398
    %v8400 = vsel %vm8368, %v3460, 0.0
    %v8401 = vadd.f32 %v8399, %v8400
    %v8402 = vsel %vm8368, %v3563, 0.0
    %v8403 = vadd.f32 %v8401, %v8402
    %v8404 = vsel %vm8368, %v3666, 0.0
    %v8405 = vadd.f32 %v8403, %v8404
    %v8406 = vsel %vm8368, %v3769, 0.0
    %v8407 = vadd.f32 %v8405, %v8406
    %v8408 = vsel %vm8368, %v3872, 0.0
    %v8409 = vadd.f32 %v8407, %v8408
    %v8410 = vsel %vm8368, %v3975, 0.0
    %v8411 = vadd.f32 %v8409, %v8410
    %v8412 = vsel %vm8368, %v4078, 0.0
    %v8413 = vadd.f32 %v8411, %v8412
    %v8414 = vsel %vm8368, %v4181, 0.0
    %v8415 = vadd.f32 %v8413, %v8414
    %v8416 = vsel %vm8368, %v4284, 0.0
    %v8417 = vadd.f32 %v8415, %v8416
    %v8418 = vsel %vm8368, %v4387, 0.0
    %v8419 = vadd.f32 %v8417, %v8418
    %v8420 = vsel %vm8368, %v4490, 0.0
    %v8421 = vadd.f32 %v8419, %v8420
    %v8422 = vsel %vm8368, %v4593, 0.0
    %v8423 = vadd.f32 %v8421, %v8422
    %v8424 = vsel %vm8368, %v4696, 0.0
    %v8425 = vadd.f32 %v8423, %v8424
    %v8426 = vsel %vm8368, %v4799, 0.0
    %v8427 = vadd.f32 %v8425, %v8426
    %v8428 = vsel %vm8368, %v4902, 0.0
    %v8429 = vadd.f32 %v8427, %v8428
    %v8430 = vsel %vm8368, %v5005, 0.0
    %v8431 = vadd.f32 %v8429, %v8430
    %v8432 = vrot.slane %v8431, 4
    %v8433 = vadd.f32 %v8431, %v8432
    %v8434 = vrot.slane %v8433, 2
    %v8435 = vadd.f32 %v8433, %v8434
    %v8436 = vrot.slane %v8435, 1
    %v8437 = vadd.f32 %v8435, %v8436
    %v8438 = vmul.f32 %v1812, %v1812
    %v8439 = vmul.f32 %v1915, %v1915
    %v8440 = vmul.f32 %v2018, %v2018
    %v8441 = vmul.f32 %v2121, %v2121
    %v8442 = vmul.f32 %v2224, %v2224
    %v8443 = vmul.f32 %v2327, %v2327
    %v8444 = vmul.f32 %v2430, %v2430
    %v8445 = vmul.f32 %v2533, %v2533
    %v8446 = vmul.f32 %v2636, %v2636
    %v8447 = vmul.f32 %v2739, %v2739
    %v8448 = vmul.f32 %v2842, %v2842
    %v8449 = vmul.f32 %v2945, %v2945
    %v8450 = vmul.f32 %v3048, %v3048
    %v8451 = vmul.f32 %v3151, %v3151
    %v8452 = vmul.f32 %v3254, %v3254
    %v8453 = vmul.f32 %v3357, %v3357
    %v8454 = vmul.f32 %v3460, %v3460
    %v8455 = vmul.f32 %v3563, %v3563
    %v8456 = vmul.f32 %v3666, %v3666
    %v8457 = vmul.f32 %v3769, %v3769
    %v8458 = vmul.f32 %v3872, %v3872
    %v8459 = vmul.f32 %v3975, %v3975
    %v8460 = vmul.f32 %v4078, %v4078
    %v8461 = vmul.f32 %v4181, %v4181
    %v8462 = vmul.f32 %v4284, %v4284
    %v8463 = vmul.f32 %v4387, %v4387
    %v8464 = vmul.f32 %v4490, %v4490
    %v8465 = vmul.f32 %v4593, %v4593
    %v8466 = vmul.f32 %v4696, %v4696
    %v8467 = vmul.f32 %v4799, %v4799
    %v8468 = vmul.f32 %v4902, %v4902
    %v8469 = vmul.f32 %v5005, %v5005
    %v8470 = vsel %vm8368, %v8438, 0.0
    %v8471 = vsel %vm8368, %v8439, 0.0
    %v8472 = vadd.f32 %v8470, %v8471
    %v8473 = vsel %vm8368, %v8440, 0.0
    %v8474 = vadd.f32 %v8472, %v8473
    %v8475 = vsel %vm8368, %v8441, 0.0
    %v8476 = vadd.f32 %v8474, %v8475
    %v8477 = vsel %vm8368, %v8442, 0.0
    %v8478 = vadd.f32 %v8476, %v8477
    %v8479 = vsel %vm8368, %v8443, 0.0
    %v8480 = vadd.f32 %v8478, %v8479
    %v8481 = vsel %vm8368, %v8444, 0.0
    %v8482 = vadd.f32 %v8480, %v8481
    %v8483 = vsel %vm8368, %v8445, 0.0
    %v8484 = vadd.f32 %v8482, %v8483
    %v8485 = vsel %vm8368, %v8446, 0.0
    %v8486 = vadd.f32 %v8484, %v8485
    %v8487 = vsel %vm8368, %v8447, 0.0
    %v8488 = vadd.f32 %v8486, %v8487
    %v8489 = vsel %vm8368, %v8448, 0.0
    %v8490 = vadd.f32 %v8488, %v8489
    %v8491 = vsel %vm8368, %v8449, 0.0
    %v8492 = vadd.f32 %v8490, %v8491
    %v8493 = vsel %vm8368, %v8450, 0.0
    %v8494 = vadd.f32 %v8492, %v8493
    %v8495 = vsel %vm8368, %v8451, 0.0
    %v8496 = vadd.f32 %v8494, %v8495
    %v8497 = vsel %vm8368, %v8452, 0.0
    %v8498 = vadd.f32 %v8496, %v8497
    %v8499 = vsel %vm8368, %v8453, 0.0
    %v8500 = vadd.f32 %v8498, %v8499
    %v8501 = vsel %vm8368, %v8454, 0.0
    %v8502 = vadd.f32 %v8500, %v8501
    %v8503 = vsel %vm8368, %v8455, 0.0
    %v8504 = vadd.f32 %v8502, %v8503
    %v8505 = vsel %vm8368, %v8456, 0.0
    %v8506 = vadd.f32 %v8504, %v8505
    %v8507 = vsel %vm8368, %v8457, 0.0
    %v8508 = vadd.f32 %v8506, %v8507
    %v8509 = vsel %vm8368, %v8458, 0.0
    %v8510 = vadd.f32 %v8508, %v8509
    %v8511 = vsel %vm8368, %v8459, 0.0
    %v8512 = vadd.f32 %v8510, %v8511
    %v8513 = vsel %vm8368, %v8460, 0.0
    %v8514 = vadd.f32 %v8512, %v8513
    %v8515 = vsel %vm8368, %v8461, 0.0
    %v8516 = vadd.f32 %v8514, %v8515
    %v8517 = vsel %vm8368, %v8462, 0.0
    %v8518 = vadd.f32 %v8516, %v8517
    %v8519 = vsel %vm8368, %v8463, 0.0
    %v8520 = vadd.f32 %v8518, %v8519
    %v8521 = vsel %vm8368, %v8464, 0.0
    %v8522 = vadd.f32 %v8520, %v8521
    %v8523 = vsel %vm8368, %v8465, 0.0
    %v8524 = vadd.f32 %v8522, %v8523
    %v8525 = vsel %vm8368, %v8466, 0.0
    %v8526 = vadd.f32 %v8524, %v8525
    %v8527 = vsel %vm8368, %v8467, 0.0
    %v8528 = vadd.f32 %v8526, %v8527
    %v8529 = vsel %vm8368, %v8468, 0.0
    %v8530 = vadd.f32 %v8528, %v8529
    %v8531 = vsel %vm8368, %v8469, 0.0
    %v8532 = vadd.f32 %v8530, %v8531
    %v8533 = vrot.slane %v8532, 4
    %v8534 = vadd.f32 %v8532, %v8533
    %v8535 = vrot.slane %v8534, 2
    %v8536 = vadd.f32 %v8534, %v8535
    %v8537 = vrot.slane %v8536, 1
    %v8538 = vadd.f32 %v8536, %v8537
    %8540 = vset.pattern.permute.xlu0 0
    %8541 = vperm.xlu0 %8540, %v8302
    %v8542 = vpop.permute.xlu0 %8541
    %8545 = vset.pattern.permute.xlu0 0
    %8546 = vperm.xlu0 %8545, %v8303
    %v8547 = vpop.permute.xlu0 %8546
    %8550 = vset.pattern.permute.xlu0 0
    %8551 = vperm.xlu0 %8550, %v8304
    %v8552 = vpop.permute.xlu0 %8551
    %8555 = vset.pattern.permute.xlu0 0
    %8556 = vperm.xlu0 %8555, %v8305
    %v8557 = vpop.permute.xlu0 %8556
    %8560 = vset.pattern.permute.xlu0 0
    %8561 = vperm.xlu0 %8560, %v8306
    %v8562 = vpop.permute.xlu0 %8561
    %8565 = vset.pattern.permute.xlu0 0
    %8566 = vperm.xlu0 %8565, %v8307
    %v8567 = vpop.permute.xlu0 %8566
    %8570 = vset.pattern.permute.xlu0 0
    %8571 = vperm.xlu0 %8570, %v8308
    %v8572 = vpop.permute.xlu0 %8571
    %8575 = vset.pattern.permute.xlu0 0
    %8576 = vperm.xlu0 %8575, %v8309
    %v8577 = vpop.permute.xlu0 %8576
    %8580 = vset.pattern.permute.xlu0 0
    %8581 = vperm.xlu0 %8580, %v8310
    %v8582 = vpop.permute.xlu0 %8581
    %8585 = vset.pattern.permute.xlu0 0
    %8586 = vperm.xlu0 %8585, %v8311
    %v8587 = vpop.permute.xlu0 %8586
    %8590 = vset.pattern.permute.xlu0 0
    %8591 = vperm.xlu0 %8590, %v8312
    %v8592 = vpop.permute.xlu0 %8591
    %8595 = vset.pattern.permute.xlu0 0
    %8596 = vperm.xlu0 %8595, %v8313
    %v8597 = vpop.permute.xlu0 %8596
    %8600 = vset.pattern.permute.xlu0 0
    %8601 = vperm.xlu0 %8600, %v8314
    %v8602 = vpop.permute.xlu0 %8601
    %8605 = vset.pattern.permute.xlu0 0
    %8606 = vperm.xlu0 %8605, %v8315
    %v8607 = vpop.permute.xlu0 %8606
    %8610 = vset.pattern.permute.xlu0 0
    %8611 = vperm.xlu0 %8610, %v8316
    %v8612 = vpop.permute.xlu0 %8611
    %8615 = vset.pattern.permute.xlu0 0
    %8616 = vperm.xlu0 %8615, %v8317
    %v8617 = vpop.permute.xlu0 %8616
    %8620 = vset.pattern.permute.xlu0 0
    %8621 = vperm.xlu0 %8620, %v8318
    %v8622 = vpop.permute.xlu0 %8621
    %8625 = vset.pattern.permute.xlu0 0
    %8626 = vperm.xlu0 %8625, %v8319
    %v8627 = vpop.permute.xlu0 %8626
    %8630 = vset.pattern.permute.xlu0 0
    %8631 = vperm.xlu0 %8630, %v8320
    %v8632 = vpop.permute.xlu0 %8631
    %8635 = vset.pattern.permute.xlu0 0
    %8636 = vperm.xlu0 %8635, %v8321
    %v8637 = vpop.permute.xlu0 %8636
    %8640 = vset.pattern.permute.xlu0 0
    %8641 = vperm.xlu0 %8640, %v8322
    %v8642 = vpop.permute.xlu0 %8641
    %8645 = vset.pattern.permute.xlu0 0
    %8646 = vperm.xlu0 %8645, %v8323
    %v8647 = vpop.permute.xlu0 %8646
    %8650 = vset.pattern.permute.xlu0 0
    %8651 = vperm.xlu0 %8650, %v8324
    %v8652 = vpop.permute.xlu0 %8651
    %8655 = vset.pattern.permute.xlu0 0
    %8656 = vperm.xlu0 %8655, %v8325
    %v8657 = vpop.permute.xlu0 %8656
    %8660 = vset.pattern.permute.xlu0 0
    %8661 = vperm.xlu0 %8660, %v8326
    %v8662 = vpop.permute.xlu0 %8661
    %8665 = vset.pattern.permute.xlu0 0
    %8666 = vperm.xlu0 %8665, %v8327
    %v8667 = vpop.permute.xlu0 %8666
    %8670 = vset.pattern.permute.xlu0 0
    %8671 = vperm.xlu0 %8670, %v8328
    %v8672 = vpop.permute.xlu0 %8671
    %8675 = vset.pattern.permute.xlu0 0
    %8676 = vperm.xlu0 %8675, %v8329
    %v8677 = vpop.permute.xlu0 %8676
    %8680 = vset.pattern.permute.xlu0 0
    %8681 = vperm.xlu0 %8680, %v8330
    %v8682 = vpop.permute.xlu0 %8681
    %8685 = vset.pattern.permute.xlu0 0
    %8686 = vperm.xlu0 %8685, %v8331
    %v8687 = vpop.permute.xlu0 %8686
    %8690 = vset.pattern.permute.xlu0 0
    %8691 = vperm.xlu0 %8690, %v8332
    %v8692 = vpop.permute.xlu0 %8691
    %8695 = vset.pattern.permute.xlu0 0
    %8696 = vperm.xlu0 %8695, %v8333
    %v8697 = vpop.permute.xlu0 %8696
    %v8699 = vmul.f32 %v1812, %v8542
    %v8700 = vmul.f32 %v1915, %v8547
    %v8701 = vmul.f32 %v2018, %v8552
    %v8702 = vmul.f32 %v2121, %v8557
    %v8703 = vmul.f32 %v2224, %v8562
    %v8704 = vmul.f32 %v2327, %v8567
    %v8705 = vmul.f32 %v2430, %v8572
    %v8706 = vmul.f32 %v2533, %v8577
    %v8707 = vmul.f32 %v2636, %v8582
    %v8708 = vmul.f32 %v2739, %v8587
    %v8709 = vmul.f32 %v2842, %v8592
    %v8710 = vmul.f32 %v2945, %v8597
    %v8711 = vmul.f32 %v3048, %v8602
    %v8712 = vmul.f32 %v3151, %v8607
    %v8713 = vmul.f32 %v3254, %v8612
    %v8714 = vmul.f32 %v3357, %v8617
    %v8715 = vmul.f32 %v3460, %v8622
    %v8716 = vmul.f32 %v3563, %v8627
    %v8717 = vmul.f32 %v3666, %v8632
    %v8718 = vmul.f32 %v3769, %v8637
    %v8719 = vmul.f32 %v3872, %v8642
    %v8720 = vmul.f32 %v3975, %v8647
    %v8721 = vmul.f32 %v4078, %v8652
    %v8722 = vmul.f32 %v4181, %v8657
    %v8723 = vmul.f32 %v4284, %v8662
    %v8724 = vmul.f32 %v4387, %v8667
    %v8725 = vmul.f32 %v4490, %v8672
    %v8726 = vmul.f32 %v4593, %v8677
    %v8727 = vmul.f32 %v4696, %v8682
    %v8728 = vmul.f32 %v4799, %v8687
    %v8729 = vmul.f32 %v4902, %v8692
    %v8730 = vmul.f32 %v5005, %v8697
    %v8731 = vsel %vm8368, %v8699, 0.0
    %v8732 = vsel %vm8368, %v8700, 0.0
    %v8733 = vadd.f32 %v8731, %v8732
    %v8734 = vsel %vm8368, %v8701, 0.0
    %v8735 = vadd.f32 %v8733, %v8734
    %v8736 = vsel %vm8368, %v8702, 0.0
    %v8737 = vadd.f32 %v8735, %v8736
    %v8738 = vsel %vm8368, %v8703, 0.0
    %v8739 = vadd.f32 %v8737, %v8738
    %v8740 = vsel %vm8368, %v8704, 0.0
    %v8741 = vadd.f32 %v8739, %v8740
    %v8742 = vsel %vm8368, %v8705, 0.0
    %v8743 = vadd.f32 %v8741, %v8742
    %v8744 = vsel %vm8368, %v8706, 0.0
    %v8745 = vadd.f32 %v8743, %v8744
    %v8746 = vsel %vm8368, %v8707, 0.0
    %v8747 = vadd.f32 %v8745, %v8746
    %v8748 = vsel %vm8368, %v8708, 0.0
    %v8749 = vadd.f32 %v8747, %v8748
    %v8750 = vsel %vm8368, %v8709, 0.0
    %v8751 = vadd.f32 %v8749, %v8750
    %v8752 = vsel %vm8368, %v8710, 0.0
    %v8753 = vadd.f32 %v8751, %v8752
    %v8754 = vsel %vm8368, %v8711, 0.0
    %v8755 = vadd.f32 %v8753, %v8754
    %v8756 = vsel %vm8368, %v8712, 0.0
    %v8757 = vadd.f32 %v8755, %v8756
    %v8758 = vsel %vm8368, %v8713, 0.0
    %v8759 = vadd.f32 %v8757, %v8758
    %v8760 = vsel %vm8368, %v8714, 0.0
    %v8761 = vadd.f32 %v8759, %v8760
    %v8762 = vsel %vm8368, %v8715, 0.0
    %v8763 = vadd.f32 %v8761, %v8762
    %v8764 = vsel %vm8368, %v8716, 0.0
    %v8765 = vadd.f32 %v8763, %v8764
    %v8766 = vsel %vm8368, %v8717, 0.0
    %v8767 = vadd.f32 %v8765, %v8766
    %v8768 = vsel %vm8368, %v8718, 0.0
    %v8769 = vadd.f32 %v8767, %v8768
    %v8770 = vsel %vm8368, %v8719, 0.0
    %v8771 = vadd.f32 %v8769, %v8770
    %v8772 = vsel %vm8368, %v8720, 0.0
    %v8773 = vadd.f32 %v8771, %v8772
    %v8774 = vsel %vm8368, %v8721, 0.0
    %v8775 = vadd.f32 %v8773, %v8774
    %v8776 = vsel %vm8368, %v8722, 0.0
    %v8777 = vadd.f32 %v8775, %v8776
    %v8778 = vsel %vm8368, %v8723, 0.0
    %v8779 = vadd.f32 %v8777, %v8778
    %v8780 = vsel %vm8368, %v8724, 0.0
    %v8781 = vadd.f32 %v8779, %v8780
    %v8782 = vsel %vm8368, %v8725, 0.0
    %v8783 = vadd.f32 %v8781, %v8782
    %v8784 = vsel %vm8368, %v8726, 0.0
    %v8785 = vadd.f32 %v8783, %v8784
    %v8786 = vsel %vm8368, %v8727, 0.0
    %v8787 = vadd.f32 %v8785, %v8786
    %v8788 = vsel %vm8368, %v8728, 0.0
    %v8789 = vadd.f32 %v8787, %v8788
    %v8790 = vsel %vm8368, %v8729, 0.0
    %v8791 = vadd.f32 %v8789, %v8790
    %v8792 = vsel %vm8368, %v8730, 0.0
    %v8793 = vadd.f32 %v8791, %v8792
    %v8794 = vrot.slane %v8793, 4
    %v8795 = vadd.f32 %v8793, %v8794
    %v8796 = vrot.slane %v8795, 2
    %v8797 = vadd.f32 %v8795, %v8796
    %v8798 = vrot.slane %v8797, 1
    %v8799 = vadd.f32 %v8797, %v8798
    %v8800 = vmul.f32 %v8437, 0.00390625
    %v8801 = vmul.f32 %v8538, 0.00390625
    %v8802 = vmul.f32 %v8800, %v8800
    %v8803 = vsub.f32 %v8801, %v8802
    %v8804 = vadd.f32 %v8803, 1e-05
    %v8805 = vrsqrt.pop %v8804
    %v8806 = vstv %s8366
    %v8807 = vmul.f32 %v8800, %v8806
    %v8808 = vsub.f32 %v8799, %v8807
    %v8809 = vmul.f32 %v8805, %v8808
    %v8810 = vstv %s8367
    %v8811 = vadd.f32 %v8809, %v8810
    %s8812 = sld [smem:[#allocation2 + $0x1]]
    %s8813 = sld [smem:[#allocation2 + $0x3]]
    %v8814 = vsel %vm8368, %v5108, 0.0
    %v8815 = vsel %vm8368, %v5211, 0.0
    %v8816 = vadd.f32 %v8814, %v8815
    %v8817 = vsel %vm8368, %v5314, 0.0
    %v8818 = vadd.f32 %v8816, %v8817
    %v8819 = vsel %vm8368, %v5417, 0.0
    %v8820 = vadd.f32 %v8818, %v8819
    %v8821 = vsel %vm8368, %v5520, 0.0
    %v8822 = vadd.f32 %v8820, %v8821
    %v8823 = vsel %vm8368, %v5623, 0.0
    %v8824 = vadd.f32 %v8822, %v8823
    %v8825 = vsel %vm8368, %v5726, 0.0
    %v8826 = vadd.f32 %v8824, %v8825
    %v8827 = vsel %vm8368, %v5829, 0.0
    %v8828 = vadd.f32 %v8826, %v8827
    %v8829 = vsel %vm8368, %v5932, 0.0
    %v8830 = vadd.f32 %v8828, %v8829
    %v8831 = vsel %vm8368, %v6035, 0.0
    %v8832 = vadd.f32 %v8830, %v8831
    %v8833 = vsel %vm8368, %v6138, 0.0
    %v8834 = vadd.f32 %v8832, %v8833
    %v8835 = vsel %vm8368, %v6241, 0.0
    %v8836 = vadd.f32 %v8834, %v8835
    %v8837 = vsel %vm8368, %v6344, 0.0
    %v8838 = vadd.f32 %v8836, %v8837
    %v8839 = vsel %vm8368, %v6447, 0.0
    %v8840 = vadd.f32 %v8838, %v8839
    %v8841 = vsel %vm8368, %v6550, 0.0
    %v8842 = vadd.f32 %v8840, %v8841
    %v8843 = vsel %vm8368, %v6653, 0.0
    %v8844 = vadd.f32 %v8842, %v8843
    %v8845 = vsel %vm8368, %v6756, 0.0
    %v8846 = vadd.f32 %v8844, %v8845
    %v8847 = vsel %vm8368, %v6859, 0.0
    %v8848 = vadd.f32 %v8846, %v8847
    %v8849 = vsel %vm8368, %v6962, 0.0
    %v8850 = vadd.f32 %v8848, %v8849
    %v8851 = vsel %vm8368, %v7065, 0.0
    %v8852 = vadd.f32 %v8850, %v8851
    %v8853 = vsel %vm8368, %v7168, 0.0
    %v8854 = vadd.f32 %v8852, %v8853
    %v8855 = vsel %vm8368, %v7271, 0.0
    %v8856 = vadd.f32 %v8854, %v8855
    %v8857 = vsel %vm8368, %v7374, 0.0
    %v8858 = vadd.f32 %v8856, %v8857
    %v8859 = vsel %vm8368, %v7477, 0.0
    %v8860 = vadd.f32 %v8858, %v8859
    %v8861 = vsel %vm8368, %v7580, 0.0
    %v8862 = vadd.f32 %v8860, %v8861
    %v8863 = vsel %vm8368, %v7683, 0.0
    %v8864 = vadd.f32 %v8862, %v8863
    %v8865 = vsel %vm8368, %v7786, 0.0
    %v8866 = vadd.f32 %v8864, %v8865
    %v8867 = vsel %vm8368, %v7889, 0.0
    %v8868 = vadd.f32 %v8866, %v8867
    %v8869 = vsel %vm8368, %v7992, 0.0
    %v8870 = vadd.f32 %v8868, %v8869
    %v8871 = vsel %vm8368, %v8095, 0.0
    %v8872 = vadd.f32 %v8870, %v8871
    %v8873 = vsel %vm8368, %v8198, 0.0
    %v8874 = vadd.f32 %v8872, %v8873
    %v8875 = vsel %vm8368, %v8301, 0.0
    %v8876 = vadd.f32 %v8874, %v8875
    %v8877 = vrot.slane %v8876, 4
    %v8878 = vadd.f32 %v8876, %v8877
    %v8879 = vrot.slane %v8878, 2
    %v8880 = vadd.f32 %v8878, %v8879
    %v8881 = vrot.slane %v8880, 1
    %v8882 = vadd.f32 %v8880, %v8881
    %v8883 = vmul.f32 %v5108, %v5108
    %v8884 = vmul.f32 %v5211, %v5211
    %v8885 = vmul.f32 %v5314, %v5314
    %v8886 = vmul.f32 %v5417, %v5417
    %v8887 = vmul.f32 %v5520, %v5520
    %v8888 = vmul.f32 %v5623, %v5623
    %v8889 = vmul.f32 %v5726, %v5726
    %v8890 = vmul.f32 %v5829, %v5829
    %v8891 = vmul.f32 %v5932, %v5932
    %v8892 = vmul.f32 %v6035, %v6035
    %v8893 = vmul.f32 %v6138, %v6138
    %v8894 = vmul.f32 %v6241, %v6241
    %v8895 = vmul.f32 %v6344, %v6344
    %v8896 = vmul.f32 %v6447, %v6447
    %v8897 = vmul.f32 %v6550, %v6550
    %v8898 = vmul.f32 %v6653, %v6653
    %v8899 = vmul.f32 %v6756, %v6756
    %v8900 = vmul.f32 %v6859, %v6859
    %v8901 = vmul.f32 %v6962, %v6962
    %v8902 = vmul.f32 %v7065, %v7065
    %v8903 = vmul.f32 %v7168, %v7168
    %v8904 = vmul.f32 %v7271, %v7271
    %v8905 = vmul.f32 %v7374, %v7374
    %v8906 = vmul.f32 %v7477, %v7477
    %v8907 = vmul.f32 %v7580, %v7580
    %v8908 = vmul.f32 %v7683, %v7683
    %v8909 = vmul.f32 %v7786, %v7786
    %v8910 = vmul.f32 %v7889, %v7889
    %v8911 = vmul.f32 %v7992, %v7992
    %v8912 = vmul.f32 %v8095, %v8095
    %v8913 = vmul.f32 %v8198, %v8198
    %v8914 = vmul.f32 %v8301, %v8301
    %v8915 = vsel %vm8368, %v8883, 0.0
    %v8916 = vsel %vm8368, %v8884, 0.0
    %v8917 = vadd.f32 %v8915, %v8916
    %v8918 = vsel %vm8368, %v8885, 0.0
    %v8919 = vadd.f32 %v8917, %v8918
    %v8920 = vsel %vm8368, %v8886, 0.0
    %v8921 = vadd.f32 %v8919, %v8920
    %v8922 = vsel %vm8368, %v8887, 0.0
    %v8923 = vadd.f32 %v8921, %v8922
    %v8924 = vsel %vm8368, %v8888, 0.0
    %v8925 = vadd.f32 %v8923, %v8924
    %v8926 = vsel %vm8368, %v8889, 0.0
    %v8927 = vadd.f32 %v8925, %v8926
    %v8928 = vsel %vm8368, %v8890, 0.0
    %v8929 = vadd.f32 %v8927, %v8928
    %v8930 = vsel %vm8368, %v8891, 0.0
    %v8931 = vadd.f32 %v8929, %v8930
    %v8932 = vsel %vm8368, %v8892, 0.0
    %v8933 = vadd.f32 %v8931, %v8932
    %v8934 = vsel %vm8368, %v8893, 0.0
    %v8935 = vadd.f32 %v8933, %v8934
    %v8936 = vsel %vm8368, %v8894, 0.0
    %v8937 = vadd.f32 %v8935, %v8936
    %v8938 = vsel %vm8368, %v8895, 0.0
    %v8939 = vadd.f32 %v8937, %v8938
    %v8940 = vsel %vm8368, %v8896, 0.0
    %v8941 = vadd.f32 %v8939, %v8940
    %v8942 = vsel %vm8368, %v8897, 0.0
    %v8943 = vadd.f32 %v8941, %v8942
    %v8944 = vsel %vm8368, %v8898, 0.0
    %v8945 = vadd.f32 %v8943, %v8944
    %v8946 = vsel %vm8368, %v8899, 0.0
    %v8947 = vadd.f32 %v8945, %v8946
    %v8948 = vsel %vm8368, %v8900, 0.0
    %v8949 = vadd.f32 %v8947, %v8948
    %v8950 = vsel %vm8368, %v8901, 0.0
    %v8951 = vadd.f32 %v8949, %v8950
    %v8952 = vsel %vm8368, %v8902, 0.0
    %v8953 = vadd.f32 %v8951, %v8952
    %v8954 = vsel %vm8368, %v8903, 0.0
    %v8955 = vadd.f32 %v8953, %v8954
    %v8956 = vsel %vm8368, %v8904, 0.0
    %v8957 = vadd.f32 %v8955, %v8956
    %v8958 = vsel %vm8368, %v8905, 0.0
    %v8959 = vadd.f32 %v8957, %v8958
    %v8960 = vsel %vm8368, %v8906, 0.0
    %v8961 = vadd.f32 %v8959, %v8960
    %v8962 = vsel %vm8368, %v8907, 0.0
    %v8963 = vadd.f32 %v8961, %v8962
    %v8964 = vsel %vm8368, %v8908, 0.0
    %v8965 = vadd.f32 %v8963, %v8964
    %v8966 = vsel %vm8368, %v8909, 0.0
    %v8967 = vadd.f32 %v8965, %v8966
    %v8968 = vsel %vm8368, %v8910, 0.0
    %v8969 = vadd.f32 %v8967, %v8968
    %v8970 = vsel %vm8368, %v8911, 0.0
    %v8971 = vadd.f32 %v8969, %v8970
    %v8972 = vsel %vm8368, %v8912, 0.0
    %v8973 = vadd.f32 %v8971, %v8972
    %v8974 = vsel %vm8368, %v8913, 0.0
    %v8975 = vadd.f32 %v8973, %v8974
    %v8976 = vsel %vm8368, %v8914, 0.0
    %v8977 = vadd.f32 %v8975, %v8976
    %v8978 = vrot.slane %v8977, 4
    %v8979 = vadd.f32 %v8977, %v8978
    %v8980 = vrot.slane %v8979, 2
    %v8981 = vadd.f32 %v8979, %v8980
    %v8982 = vrot.slane %v8981, 1
    %v8983 = vadd.f32 %v8981, %v8982
    %8985 = vset.pattern.permute.xlu0 0
    %8986 = vperm.xlu0 %8985, %v8334
    %v8987 = vpop.permute.xlu0 %8986
    %8990 = vset.pattern.permute.xlu0 0
    %8991 = vperm.xlu0 %8990, %v8335
    %v8992 = vpop.permute.xlu0 %8991
    %8995 = vset.pattern.permute.xlu0 0
    %8996 = vperm.xlu0 %8995, %v8336
    %v8997 = vpop.permute.xlu0 %8996
    %9000 = vset.pattern.permute.xlu0 0
    %9001 = vperm.xlu0 %9000, %v8337
    %v9002 = vpop.permute.xlu0 %9001
    %9005 = vset.pattern.permute.xlu0 0
    %9006 = vperm.xlu0 %9005, %v8338
    %v9007 = vpop.permute.xlu0 %9006
    %9010 = vset.pattern.permute.xlu0 0
    %9011 = vperm.xlu0 %9010, %v8339
    %v9012 = vpop.permute.xlu0 %9011
    %9015 = vset.pattern.permute.xlu0 0
    %9016 = vperm.xlu0 %9015, %v8340
    %v9017 = vpop.permute.xlu0 %9016
    %9020 = vset.pattern.permute.xlu0 0
    %9021 = vperm.xlu0 %9020, %v8341
    %v9022 = vpop.permute.xlu0 %9021
    %9025 = vset.pattern.permute.xlu0 0
    %9026 = vperm.xlu0 %9025, %v8342
    %v9027 = vpop.permute.xlu0 %9026
    %9030 = vset.pattern.permute.xlu0 0
    %9031 = vperm.xlu0 %9030, %v8343
    %v9032 = vpop.permute.xlu0 %9031
    %9035 = vset.pattern.permute.xlu0 0
    %9036 = vperm.xlu0 %9035, %v8344
    %v9037 = vpop.permute.xlu0 %9036
    %9040 = vset.pattern.permute.xlu0 0
    %9041 = vperm.xlu0 %9040, %v8345
    %v9042 = vpop.permute.xlu0 %9041
    %9045 = vset.pattern.permute.xlu0 0
    %9046 = vperm.xlu0 %9045, %v8346
    %v9047 = vpop.permute.xlu0 %9046
    %9050 = vset.pattern.permute.xlu0 0
    %9051 = vperm.xlu0 %9050, %v8347
    %v9052 = vpop.permute.xlu0 %9051
    %9055 = vset.pattern.permute.xlu0 0
    %9056 = vperm.xlu0 %9055, %v8348
    %v9057 = vpop.permute.xlu0 %9056
    %9060 = vset.pattern.permute.xlu0 0
    %9061 = vperm.xlu0 %9060, %v8349
    %v9062 = vpop.permute.xlu0 %9061
    %9065 = vset.pattern.permute.xlu0 0
    %9066 = vperm.xlu0 %9065, %v8350
    %v9067 = vpop.permute.xlu0 %9066
    %9070 = vset.pattern.permute.xlu0 0
    %9071 = vperm.xlu0 %9070, %v8351
    %v9072 = vpop.permute.xlu0 %9071
    %9075 = vset.pattern.permute.xlu0 0
    %9076 = vperm.xlu0 %9075, %v8352
    %v9077 = vpop.permute.xlu0 %9076
    %9080 = vset.pattern.permute.xlu0 0
    %9081 = vperm.xlu0 %9080, %v8353
    %v9082 = vpop.permute.xlu0 %9081
    %9085 = vset.pattern.permute.xlu0 0
    %9086 = vperm.xlu0 %9085, %v8354
    %v9087 = vpop.permute.xlu0 %9086
    %9090 = vset.pattern.permute.xlu0 0
    %9091 = vperm.xlu0 %9090, %v8355
    %v9092 = vpop.permute.xlu0 %9091
    %9095 = vset.pattern.permute.xlu0 0
    %9096 = vperm.xlu0 %9095, %v8356
    %v9097 = vpop.permute.xlu0 %9096
    %9100 = vset.pattern.permute.xlu0 0
    %9101 = vperm.xlu0 %9100, %v8357
    %v9102 = vpop.permute.xlu0 %9101
    %9105 = vset.pattern.permute.xlu0 0
    %9106 = vperm.xlu0 %9105, %v8358
    %v9107 = vpop.permute.xlu0 %9106
    %9110 = vset.pattern.permute.xlu0 0
    %9111 = vperm.xlu0 %9110, %v8359
    %v9112 = vpop.permute.xlu0 %9111
    %9115 = vset.pattern.permute.xlu0 0
    %9116 = vperm.xlu0 %9115, %v8360
    %v9117 = vpop.permute.xlu0 %9116
    %9120 = vset.pattern.permute.xlu0 0
    %9121 = vperm.xlu0 %9120, %v8361
    %v9122 = vpop.permute.xlu0 %9121
    %9125 = vset.pattern.permute.xlu0 0
    %9126 = vperm.xlu0 %9125, %v8362
    %v9127 = vpop.permute.xlu0 %9126
    %9130 = vset.pattern.permute.xlu0 0
    %9131 = vperm.xlu0 %9130, %v8363
    %v9132 = vpop.permute.xlu0 %9131
    %9135 = vset.pattern.permute.xlu0 0
    %9136 = vperm.xlu0 %9135, %v8364
    %v9137 = vpop.permute.xlu0 %9136
    %9140 = vset.pattern.permute.xlu0 0
    %9141 = vperm.xlu0 %9140, %v8365
    %v9142 = vpop.permute.xlu0 %9141
    %v9144 = vmul.f32 %v5108, %v8987
    %v9145 = vmul.f32 %v5211, %v8992
    %v9146 = vmul.f32 %v5314, %v8997
    %v9147 = vmul.f32 %v5417, %v9002
    %v9148 = vmul.f32 %v5520, %v9007
    %v9149 = vmul.f32 %v5623, %v9012
    %v9150 = vmul.f32 %v5726, %v9017
    %v9151 = vmul.f32 %v5829, %v9022
    %v9152 = vmul.f32 %v5932, %v9027
    %v9153 = vmul.f32 %v6035, %v9032
    %v9154 = vmul.f32 %v6138, %v9037
    %v9155 = vmul.f32 %v6241, %v9042
    %v9156 = vmul.f32 %v6344, %v9047
    %v9157 = vmul.f32 %v6447, %v9052
    %v9158 = vmul.f32 %v6550, %v9057
    %v9159 = vmul.f32 %v6653, %v9062
    %v9160 = vmul.f32 %v6756, %v9067
    %v9161 = vmul.f32 %v6859, %v9072
    %v9162 = vmul.f32 %v6962, %v9077
    %v9163 = vmul.f32 %v7065, %v9082
    %v9164 = vmul.f32 %v7168, %v9087
    %v9165 = vmul.f32 %v7271, %v9092
    %v9166 = vmul.f32 %v7374, %v9097
    %v9167 = vmul.f32 %v7477, %v9102
    %v9168 = vmul.f32 %v7580, %v9107
    %v9169 = vmul.f32 %v7683, %v9112
    %v9170 = vmul.f32 %v7786, %v9117
    %v9171 = vmul.f32 %v7889, %v9122
    %v9172 = vmul.f32 %v7992, %v9127
    %v9173 = vmul.f32 %v8095, %v9132
    %v9174 = vmul.f32 %v8198, %v9137
    %v9175 = vmul.f32 %v8301, %v9142
    %v9176 = vsel %vm8368, %v9144, 0.0
    %v9177 = vsel %vm8368, %v9145, 0.0
    %v9178 = vadd.f32 %v9176, %v9177
    %v9179 = vsel %vm8368, %v9146, 0.0
    %v9180 = vadd.f32 %v9178, %v9179
    %v9181 = vsel %vm8368, %v9147, 0.0
    %v9182 = vadd.f32 %v9180, %v9181
    %v9183 = vsel %vm8368, %v9148, 0.0
    %v9184 = vadd.f32 %v9182, %v9183
    %v9185 = vsel %vm8368, %v9149, 0.0
    %v9186 = vadd.f32 %v9184, %v9185
    %v9187 = vsel %vm8368, %v9150, 0.0
    %v9188 = vadd.f32 %v9186, %v9187
    %v9189 = vsel %vm8368, %v9151, 0.0
    %v9190 = vadd.f32 %v9188, %v9189
    %v9191 = vsel %vm8368, %v9152, 0.0
    %v9192 = vadd.f32 %v9190, %v9191
    %v9193 = vsel %vm8368, %v9153, 0.0
    %v9194 = vadd.f32 %v9192, %v9193
    %v9195 = vsel %vm8368, %v9154, 0.0
    %v9196 = vadd.f32 %v9194, %v9195
    %v9197 = vsel %vm8368, %v9155, 0.0
    %v9198 = vadd.f32 %v9196, %v9197
    %v9199 = vsel %vm8368, %v9156, 0.0
    %v9200 = vadd.f32 %v9198, %v9199
    %v9201 = vsel %vm8368, %v9157, 0.0
    %v9202 = vadd.f32 %v9200, %v9201
    %v9203 = vsel %vm8368, %v9158, 0.0
    %v9204 = vadd.f32 %v9202, %v9203
    %v9205 = vsel %vm8368, %v9159, 0.0
    %v9206 = vadd.f32 %v9204, %v9205
    %v9207 = vsel %vm8368, %v9160, 0.0
    %v9208 = vadd.f32 %v9206, %v9207
    %v9209 = vsel %vm8368, %v9161, 0.0
    %v9210 = vadd.f32 %v9208, %v9209
    %v9211 = vsel %vm8368, %v9162, 0.0
    %v9212 = vadd.f32 %v9210, %v9211
    %v9213 = vsel %vm8368, %v9163, 0.0
    %v9214 = vadd.f32 %v9212, %v9213
    %v9215 = vsel %vm8368, %v9164, 0.0
    %v9216 = vadd.f32 %v9214, %v9215
    %v9217 = vsel %vm8368, %v9165, 0.0
    %v9218 = vadd.f32 %v9216, %v9217
    %v9219 = vsel %vm8368, %v9166, 0.0
    %v9220 = vadd.f32 %v9218, %v9219
    %v9221 = vsel %vm8368, %v9167, 0.0
    %v9222 = vadd.f32 %v9220, %v9221
    %v9223 = vsel %vm8368, %v9168, 0.0
    %v9224 = vadd.f32 %v9222, %v9223
    %v9225 = vsel %vm8368, %v9169, 0.0
    %v9226 = vadd.f32 %v9224, %v9225
    %v9227 = vsel %vm8368, %v9170, 0.0
    %v9228 = vadd.f32 %v9226, %v9227
    %v9229 = vsel %vm8368, %v9171, 0.0
    %v9230 = vadd.f32 %v9228, %v9229
    %v9231 = vsel %vm8368, %v9172, 0.0
    %v9232 = vadd.f32 %v9230, %v9231
    %v9233 = vsel %vm8368, %v9173, 0.0
    %v9234 = vadd.f32 %v9232, %v9233
    %v9235 = vsel %vm8368, %v9174, 0.0
    %v9236 = vadd.f32 %v9234, %v9235
    %v9237 = vsel %vm8368, %v9175, 0.0
    %v9238 = vadd.f32 %v9236, %v9237
    %v9239 = vrot.slane %v9238, 4
    %v9240 = vadd.f32 %v9238, %v9239
    %v9241 = vrot.slane %v9240, 2
    %v9242 = vadd.f32 %v9240, %v9241
    %v9243 = vrot.slane %v9242, 1
    %v9244 = vadd.f32 %v9242, %v9243
    %v9245 = vmul.f32 %v8882, 0.00390625
    %v9246 = vmul.f32 %v8983, 0.00390625
    %v9247 = vmul.f32 %v9245, %v9245
    %v9248 = vsub.f32 %v9246, %v9247
    %v9249 = vadd.f32 %v9248, 1e-05
    %v9250 = vrsqrt.pop %v9249
    %v9251 = vstv %s8812
    %v9252 = vmul.f32 %v9245, %v9251
    %v9253 = vsub.f32 %v9244, %v9252
    %v9254 = vmul.f32 %v9250, %v9253
    %v9255 = vstv %s8813
    %v9256 = vadd.f32 %v9254, %v9255
    %vm9257 = vcmask 1040384
    %v9258 = vsel %vm9257, %v8811, %v9256
    %vm9259 = vcmask 58368
    %9260 = vst.msk [vmem:[%s5] sm:$0x3] %vm9259, %v9258
    // Predicated region
    $region26: #{rfv_critic_forward.1} parent=1 // pred_check
      _
    $region27: #{rfv_critic_forward.1} parent=1 // pred_check_branch
      %9262 = sbr.rel (0) target = $region29
    $region28: #{rfv_critic_forward.1} parent=1 // pred_region
      _
    $region29: #{rfv_critic_forward.1} parent=1 // pred_fallthru
      _
    // Predicated region
    $region30: #{rfv_critic_forward.1} parent=1 // pred_check
      _
    $region31: #{rfv_critic_forward.1} parent=1 // pred_check_branch
      %9264 = sbr.rel (0) target = $region33
    $region32: #{rfv_critic_forward.1} parent=1 // pred_region
      _
    $region33: #{rfv_critic_forward.1} parent=1 // pred_fallthru
      _
    %9265 = vsyncpa [#allocation3], 1

</llo_original>
